<compile_context>
chip_gen: v6e
topology: v6e:2x2x1
jax: 0.10.0
libtpu: 0.0.40
codegen_flags: <defaults>
</compile_context>

<pallas_src>
import functools

import jax
import jax.numpy as jnp
from jax import lax
from jax.experimental import pallas as pl
from jax.experimental.pallas import tpu as pltpu


def _round_up(x, m):
    return (x + m - 1) // m * m


# ----------------------------- Pallas kernel --------------------------------
def _residual_block_kernel(x_ref, w1_ref, w2_ref, o_ref,
                           xpad_ref, midpad_ref, *, H, W, C, Wp, S, R):
    # x_ref     : (1, H, W, C)  VMEM  NHWC input, one batch element
    # w1_ref    : (9, C, C)     VMEM  bf16 conv1 weights, (kh*3+kw, Cin, Cout)
    # w2_ref    : (9, C, C)     VMEM  bf16 conv2 weights
    # o_ref     : (1, H, W, C)  VMEM  output tile
    # xpad_ref  : (R, C) bf16   VMEM  flattened zero-halo'd input (row stride Wp)
    # midpad_ref: (R, C) bf16   VMEM  flattened zero-halo'd relu(conv1(x))
    #
    # Flat layout: image pixel (i, j) of the wide (row-stride Wp) interior sits
    # at flat row S + i*Wp + j.  Rows [0, S) and [S + H*Wp, R) are the zero
    # halo; columns [W, Wp) inside the slab are zero alignment padding.
    f32 = jnp.float32
    bf16 = jnp.bfloat16
    slab = H * Wp

    # Per-step halo re-zero: two small aligned contiguous stores per scratch
    # (keeps the batch axis "parallel"/megacore-safe; interior is overwritten).
    for ref in (xpad_ref, midpad_ref):
        ref[0:S, :] = jnp.zeros((S, C), bf16)
        ref[S + slab:R, :] = jnp.zeros((R - (S + slab), C), bf16)

    # Pack x into the wide layout (zero columns [W, Wp)) and store it with an
    # 8-aligned offset / 8-multiple row count -> unmasked stores.
    x_wide = jnp.concatenate(
        [x_ref[0].astype(bf16), jnp.zeros((H, Wp - W, C), bf16)], axis=1)
    xpad_ref[S:S + slab, :] = x_wide.reshape(slab, C)

    # Valid-output-column mask in the wide layout (used to keep the mid halo
    # buffer's padding columns / borders exactly zero).
    col = lax.broadcasted_iota(jnp.int32, (H, Wp, 1), 1).reshape(slab, 1)
    valid = col < W

    def conv3x3(src_ref, w_ref):
        # 9 shifted channel-contraction matmuls on the MXU (bf16 x bf16 -> f32).
        # Every tap is a contiguous leading-dim slice: no sublane relayouts.
        acc = None
        for kh in range(3):
            for kw in range(3):
                off = S + (kh - 1) * Wp + (kw - 1)
                patch = src_ref[off:off + slab, :]          # (H*Wp, C) bf16
                d = jnp.dot(patch, w_ref[kh * 3 + kw],
                            preferred_element_type=f32)
                acc = d if acc is None else acc + d
        return acc                                          # (H*Wp, C) f32

    # ---- conv1 + ReLU (+ zero the wide-padding columns) -> mid scratch ----
    mid = conv3x3(xpad_ref, w1_ref)
    mid = jnp.where(valid, jnp.maximum(mid, 0.0), 0.0)
    midpad_ref[S:S + slab, :] = mid.astype(bf16)

    # ---- conv2 + residual add (residual path stays f32) ----
    y = conv3x3(midpad_ref, w2_ref).reshape(H, Wp, C)[:, :W, :]
    o_ref[0] = (x_ref[0].astype(f32) + y).astype(o_ref.dtype)


# ------------------------------ wrapper --------------------------------------
def residual_block_pallas(x_nchw, w1_oihw, w2_oihw):
    """x_nchw: (N, C, H, W); w*_oihw: (C, C, 3, 3) already spectrally normalized."""
    N, C, H, W = x_nchw.shape

    # Wide-row stride (multiple of 8 sublanes, >= W+1 so halo columns exist),
    # aligned slab start S, and total flat scratch rows R.
    Wp = _round_up(W + 1, 8)
    S = Wp + 8
    R = S + (H + 1) * Wp + 8

    # Layout plumbing (XLA glue): NCHW -> NHWC so channels sit on the lane axis.
    x_nhwc = jnp.transpose(x_nchw, (0, 2, 3, 1))
    # OIHW -> HWIO -> (tap, Cin, Cout), bf16 for the MXU.
    w1 = jnp.transpose(w1_oihw, (2, 3, 1, 0)).reshape(9, C, C).astype(jnp.bfloat16)
    w2 = jnp.transpose(w2_oihw, (2, 3, 1, 0)).reshape(9, C, C).astype(jnp.bfloat16)

    kernel = functools.partial(_residual_block_kernel,
                               H=H, W=W, C=C, Wp=Wp, S=S, R=R)

    itemsize = x_nchw.dtype.itemsize
    need = (2 * R * C * 2                      # two bf16 halo scratches
            + 2 * 2 * H * W * C * itemsize     # double-buffered in/out blocks
            + 2 * 2 * 9 * C * C * 2            # (double-buffered) bf16 weights
            + (2 << 20))                       # margin / internal scratch
    vmem_limit = int(min(64 << 20, max(32 << 20, 2 * need)))

    out_nhwc = pl.pallas_call(
        kernel,
        out_shape=jax.ShapeDtypeStruct((N, H, W, C), x_nchw.dtype),
        grid_spec=pltpu.PrefetchScalarGridSpec(
            num_scalar_prefetch=0,
            grid=(N,),
            in_specs=[
                pl.BlockSpec((1, H, W, C), lambda n: (n, 0, 0, 0)),
                pl.BlockSpec((9, C, C), lambda n: (0, 0, 0)),   # resident weights
                pl.BlockSpec((9, C, C), lambda n: (0, 0, 0)),
            ],
            out_specs=pl.BlockSpec((1, H, W, C), lambda n: (n, 0, 0, 0)),
            scratch_shapes=[
                pltpu.VMEM((R, C), jnp.bfloat16),   # x halo (flattened, wide)
                pltpu.VMEM((R, C), jnp.bfloat16),   # relu(conv1) halo
            ],
        ),
        compiler_params=pltpu.CompilerParams(
            dimension_semantics=("parallel",),
            vmem_limit_bytes=vmem_limit),
    )(x_nhwc, w1, w2)

    return jnp.transpose(out_nhwc, (0, 3, 1, 2))   # back to NCHW


# -------------------- spectral norm (parameter setup, plain JAX) -------------
def _l2normalize(v, eps=1e-12):
    return v / (jnp.linalg.norm(v) + eps)


def spectral_normalize(w_oihw, u, power_iterations=1):
    """Replicates SpectralNorm._update_u_v: w_bar = w / sigma (1 power iter)."""
    cout = w_oihw.shape[0]
    w_mat = w_oihw.reshape(cout, -1)
    v = None
    for _ in range(power_iterations):
        v = _l2normalize(w_mat.T @ u)
        u = _l2normalize(w_mat @ v)
    sigma = u @ (w_mat @ v)
    return w_oihw / sigma


# ----------------------------- reference (checking) --------------------------
def _reference(x, w1, w2):
    dn = ('NCHW', 'OIHW', 'NCHW')
    y = lax.conv_general_dilated(x, w1, (1, 1), 'SAME', dimension_numbers=dn)
    y = jnp.maximum(y, 0.0)
    y = lax.conv_general_dilated(y, w2, (1, 1), 'SAME', dimension_numbers=dn)
    return x + y


if __name__ == "__main__":
    key = jax.random.PRNGKey(0)
    N, C, H, W = 2, 4, 16, 16          # dim_in == dim_out == C (residual add)
    k_x, k_w1, k_w2, k_u1, k_u2 = jax.random.split(key, 5)

    x = jax.random.normal(k_x, (N, C, H, W), jnp.float32)

    # deterministic Conv2d-style init (kaiming-uniform bound = 1/sqrt(fan_in))
    fan_in = C * 3 * 3
    bound = 1.0 / (fan_in ** 0.5)
    w1_raw = jax.random.uniform(k_w1, (C, C, 3, 3), jnp.float32, -bound, bound)
    w2_raw = jax.random.uniform(k_w2, (C, C, 3, 3), jnp.float32, -bound, bound)

    # SpectralNorm u vectors (normal, l2-normalized), one power iteration
    u1 = _l2normalize(jax.random.normal(k_u1, (C,), jnp.float32))
    u2 = _l2normalize(jax.random.normal(k_u2, (C,), jnp.float32))
    w1 = spectral_normalize(w1_raw, u1)
    w2 = spectral_normalize(w2_raw, u2)

    out = residual_block_pallas(x, w1, w2)
    out = jax.block_until_ready(out)

    expected = _reference(x, w1, w2)
    assert out.shape == (N, C, H, W)
    # bf16 MXU operands (f32 accumulation) vs. a pure-f32 reference.
    assert jnp.allclose(out, expected, atol=3e-2, rtol=3e-2), "mismatch vs reference"

    print("KERNEL_OK")
</pallas_src>

<mosaic_0001>
module attributes {stable_mosaic.version = 11 : i64} {
  func.func @_residual_block_kernel(%arg0: i32, %arg1: memref<1x16x16x4xf32, #tpu.memory_space<vmem>>, %arg2: memref<9x4x4xbf16, #tpu.memory_space<vmem>>, %arg3: memref<9x4x4xbf16, #tpu.memory_space<vmem>>, %arg4: memref<1x16x16x4xf32, #tpu.memory_space<vmem>>, %arg5: memref<448x4xbf16, #tpu.memory_space<vmem>>, %arg6: memref<448x4xbf16, #tpu.memory_space<vmem>>) attributes {dimension_semantics = [#tpu.dimension_semantics<parallel>], iteration_bounds = array<i64: 2>, scalar_prefetch = 0 : i64, scratch_operands = 2 : i64, tpu.core_type = #tpu.core_type<tc>, window_params = [{transform_indices = @transform_0, window_bounds = array<i64: 1, 16, 16, 4>}, {pipeline_mode = #tpu.pipeline_mode<synchronous>, transform_indices = @transform_1, window_bounds = array<i64: 9, 4, 4>}, {pipeline_mode = #tpu.pipeline_mode<synchronous>, transform_indices = @transform_2, window_bounds = array<i64: 9, 4, 4>}, {transform_indices = @transform_3, window_bounds = array<i64: 1, 16, 16, 4>}]} {
    %cst = arith.constant 0.000000e+00 : bf16
    %0 = vector.broadcast %cst : bf16 to vector<32x4xbf16>
    %c0 = arith.constant 0 : index
    %c0_0 = arith.constant 0 : index
    %1 = vector.load %arg5[%c0, %c0_0] : memref<448x4xbf16, #tpu.memory_space<vmem>>, vector<32x4xbf16>
    tpu.vector_store %arg5[%c0, %c0_0], %0 {strides = array<i32>} : memref<448x4xbf16, #tpu.memory_space<vmem>>, vector<32x4xbf16>,
    %cst_1 = arith.constant 0.000000e+00 : bf16
    %2 = vector.broadcast %cst_1 : bf16 to vector<32x4xbf16>
    %c416 = arith.constant 416 : index
    %c0_2 = arith.constant 0 : index
    %3 = vector.load %arg5[%c416, %c0_2] : memref<448x4xbf16, #tpu.memory_space<vmem>>, vector<32x4xbf16>
    tpu.vector_store %arg5[%c416, %c0_2], %2 {strides = array<i32>} : memref<448x4xbf16, #tpu.memory_space<vmem>>, vector<32x4xbf16>,
    %cst_3 = arith.constant 0.000000e+00 : bf16
    %4 = vector.broadcast %cst_3 : bf16 to vector<32x4xbf16>
    %c0_4 = arith.constant 0 : index
    %c0_5 = arith.constant 0 : index
    %5 = vector.load %arg6[%c0_4, %c0_5] : memref<448x4xbf16, #tpu.memory_space<vmem>>, vector<32x4xbf16>
    tpu.vector_store %arg6[%c0_4, %c0_5], %4 {strides = array<i32>} : memref<448x4xbf16, #tpu.memory_space<vmem>>, vector<32x4xbf16>,
    %cst_6 = arith.constant 0.000000e+00 : bf16
    %6 = vector.broadcast %cst_6 : bf16 to vector<32x4xbf16>
    %c416_7 = arith.constant 416 : index
    %c0_8 = arith.constant 0 : index
    %7 = vector.load %arg6[%c416_7, %c0_8] : memref<448x4xbf16, #tpu.memory_space<vmem>>, vector<32x4xbf16>
    tpu.vector_store %arg6[%c416_7, %c0_8], %6 {strides = array<i32>} : memref<448x4xbf16, #tpu.memory_space<vmem>>, vector<32x4xbf16>,
    %c0_9 = arith.constant 0 : index
    %c0_10 = arith.constant 0 : index
    %c0_11 = arith.constant 0 : index
    %c0_12 = arith.constant 0 : index
    %8 = vector.load %arg1[%c0_9, %c0_10, %c0_11, %c0_12] : memref<1x16x16x4xf32, #tpu.memory_space<vmem>>, vector<1x16x16x4xf32>
    %9 = vector.shape_cast %8 : vector<1x16x16x4xf32> to vector<16x16x4xf32>
    %10 = arith.truncf %9 : vector<16x16x4xf32> to vector<16x16x4xbf16>
    %cst_13 = arith.constant 0.000000e+00 : bf16
    %11 = vector.broadcast %cst_13 : bf16 to vector<16x8x4xbf16>
    %12 = tpu.concatenate %10, %11 in 1 : vector<16x16x4xbf16>, vector<16x8x4xbf16> -> vector<16x24x4xbf16>
    %13 = vector.shape_cast %12 : vector<16x24x4xbf16> to vector<384x4xbf16>
    %c32 = arith.constant 32 : index
    %c0_14 = arith.constant 0 : index
    %14 = vector.load %arg5[%c32, %c0_14] : memref<448x4xbf16, #tpu.memory_space<vmem>>, vector<384x4xbf16>
    tpu.vector_store %arg5[%c32, %c0_14], %13 {strides = array<i32>} : memref<448x4xbf16, #tpu.memory_space<vmem>>, vector<384x4xbf16>,
    %15 = tpu.iota {dimensions = array<i32: 1>} : vector<16x24x1xi32>
    %16 = vector.shape_cast %15 : vector<16x24x1xi32> to vector<384x1xi32>
    %c16_i32 = arith.constant 16 : i32
    %17 = vector.broadcast %c16_i32 : i32 to vector<384x1xi32>
    %18 = arith.cmpi slt, %16, %17 : vector<384x1xi32>
    %c7 = arith.constant 7 : index
    %c0_15 = arith.constant 0 : index
    %19 = vector.load %arg5[%c7, %c0_15] : memref<448x4xbf16, #tpu.memory_space<vmem>>, vector<384x4xbf16>
    %c0_16 = arith.constant 0 : index
    %c0_17 = arith.constant 0 : index
    %c0_18 = arith.constant 0 : index
    %20 = vector.load %arg2[%c0_16, %c0_17, %c0_18] : memref<9x4x4xbf16, #tpu.memory_space<vmem>>, vector<1x4x4xbf16>
    %21 = vector.shape_cast %20 : vector<1x4x4xbf16> to vector<4x4xbf16>
    %cst_19 = arith.constant dense<0.000000e+00> : vector<384x4xf32>
    %22 = tpu.matmul %19, %21, %cst_19 {dimension_numbers = #tpu.dot_dimension_numbers<[1], [0], [0], [1], [0, 0, 1, 1], [], []>} : vector<384x4xbf16>, vector<4x4xbf16>, vector<384x4xf32> -> vector<384x4xf32>
    %c8 = arith.constant 8 : index
    %c0_20 = arith.constant 0 : index
    %23 = vector.load %arg5[%c8, %c0_20] : memref<448x4xbf16, #tpu.memory_space<vmem>>, vector<384x4xbf16>
    %c1 = arith.constant 1 : index
    %c0_21 = arith.constant 0 : index
    %c0_22 = arith.constant 0 : index
    %24 = vector.load %arg2[%c1, %c0_21, %c0_22] : memref<9x4x4xbf16, #tpu.memory_space<vmem>>, vector<1x4x4xbf16>
    %25 = vector.shape_cast %24 : vector<1x4x4xbf16> to vector<4x4xbf16>
    %cst_23 = arith.constant dense<0.000000e+00> : vector<384x4xf32>
    %26 = tpu.matmul %23, %25, %cst_23 {dimension_numbers = #tpu.dot_dimension_numbers<[1], [0], [0], [1], [0, 0, 1, 1], [], []>} : vector<384x4xbf16>, vector<4x4xbf16>, vector<384x4xf32> -> vector<384x4xf32>
    %27 = arith.addf %22, %26 : vector<384x4xf32>
    %c9 = arith.constant 9 : index
    %c0_24 = arith.constant 0 : index
    %28 = vector.load %arg5[%c9, %c0_24] : memref<448x4xbf16, #tpu.memory_space<vmem>>, vector<384x4xbf16>
    %c2 = arith.constant 2 : index
    %c0_25 = arith.constant 0 : index
    %c0_26 = arith.constant 0 : index
    %29 = vector.load %arg2[%c2, %c0_25, %c0_26] : memref<9x4x4xbf16, #tpu.memory_space<vmem>>, vector<1x4x4xbf16>
    %30 = vector.shape_cast %29 : vector<1x4x4xbf16> to vector<4x4xbf16>
    %cst_27 = arith.constant dense<0.000000e+00> : vector<384x4xf32>
    %31 = tpu.matmul %28, %30, %cst_27 {dimension_numbers = #tpu.dot_dimension_numbers<[1], [0], [0], [1], [0, 0, 1, 1], [], []>} : vector<384x4xbf16>, vector<4x4xbf16>, vector<384x4xf32> -> vector<384x4xf32>
    %32 = arith.addf %27, %31 : vector<384x4xf32>
    %c31 = arith.constant 31 : index
    %c0_28 = arith.constant 0 : index
    %33 = vector.load %arg5[%c31, %c0_28] : memref<448x4xbf16, #tpu.memory_space<vmem>>, vector<384x4xbf16>
    %c3 = arith.constant 3 : index
    %c0_29 = arith.constant 0 : index
    %c0_30 = arith.constant 0 : index
    %34 = vector.load %arg2[%c3, %c0_29, %c0_30] : memref<9x4x4xbf16, #tpu.memory_space<vmem>>, vector<1x4x4xbf16>
    %35 = vector.shape_cast %34 : vector<1x4x4xbf16> to vector<4x4xbf16>
    %cst_31 = arith.constant dense<0.000000e+00> : vector<384x4xf32>
    %36 = tpu.matmul %33, %35, %cst_31 {dimension_numbers = #tpu.dot_dimension_numbers<[1], [0], [0], [1], [0, 0, 1, 1], [], []>} : vector<384x4xbf16>, vector<4x4xbf16>, vector<384x4xf32> -> vector<384x4xf32>
    %37 = arith.addf %32, %36 : vector<384x4xf32>
    %c32_32 = arith.constant 32 : index
    %c0_33 = arith.constant 0 : index
    %38 = vector.load %arg5[%c32_32, %c0_33] : memref<448x4xbf16, #tpu.memory_space<vmem>>, vector<384x4xbf16>
    %c4 = arith.constant 4 : index
    %c0_34 = arith.constant 0 : index
    %c0_35 = arith.constant 0 : index
    %39 = vector.load %arg2[%c4, %c0_34, %c0_35] : memref<9x4x4xbf16, #tpu.memory_space<vmem>>, vector<1x4x4xbf16>
    %40 = vector.shape_cast %39 : vector<1x4x4xbf16> to vector<4x4xbf16>
    %cst_36 = arith.constant dense<0.000000e+00> : vector<384x4xf32>
    %41 = tpu.matmul %38, %40, %cst_36 {dimension_numbers = #tpu.dot_dimension_numbers<[1], [0], [0], [1], [0, 0, 1, 1], [], []>} : vector<384x4xbf16>, vector<4x4xbf16>, vector<384x4xf32> -> vector<384x4xf32>
    %42 = arith.addf %37, %41 : vector<384x4xf32>
    %c33 = arith.constant 33 : index
    %c0_37 = arith.constant 0 : index
    %43 = vector.load %arg5[%c33, %c0_37] : memref<448x4xbf16, #tpu.memory_space<vmem>>, vector<384x4xbf16>
    %c5 = arith.constant 5 : index
    %c0_38 = arith.constant 0 : index
    %c0_39 = arith.constant 0 : index
    %44 = vector.load %arg2[%c5, %c0_38, %c0_39] : memref<9x4x4xbf16, #tpu.memory_space<vmem>>, vector<1x4x4xbf16>
    %45 = vector.shape_cast %44 : vector<1x4x4xbf16> to vector<4x4xbf16>
    %cst_40 = arith.constant dense<0.000000e+00> : vector<384x4xf32>
    %46 = tpu.matmul %43, %45, %cst_40 {dimension_numbers = #tpu.dot_dimension_numbers<[1], [0], [0], [1], [0, 0, 1, 1], [], []>} : vector<384x4xbf16>, vector<4x4xbf16>, vector<384x4xf32> -> vector<384x4xf32>
    %47 = arith.addf %42, %46 : vector<384x4xf32>
    %c55 = arith.constant 55 : index
    %c0_41 = arith.constant 0 : index
    %48 = vector.load %arg5[%c55, %c0_41] : memref<448x4xbf16, #tpu.memory_space<vmem>>, vector<384x4xbf16>
    %c6 = arith.constant 6 : index
    %c0_42 = arith.constant 0 : index
    %c0_43 = arith.constant 0 : index
    %49 = vector.load %arg2[%c6, %c0_42, %c0_43] : memref<9x4x4xbf16, #tpu.memory_space<vmem>>, vector<1x4x4xbf16>
    %50 = vector.shape_cast %49 : vector<1x4x4xbf16> to vector<4x4xbf16>
    %cst_44 = arith.constant dense<0.000000e+00> : vector<384x4xf32>
    %51 = tpu.matmul %48, %50, %cst_44 {dimension_numbers = #tpu.dot_dimension_numbers<[1], [0], [0], [1], [0, 0, 1, 1], [], []>} : vector<384x4xbf16>, vector<4x4xbf16>, vector<384x4xf32> -> vector<384x4xf32>
    %52 = arith.addf %47, %51 : vector<384x4xf32>
    %c56 = arith.constant 56 : index
    %c0_45 = arith.constant 0 : index
    %53 = vector.load %arg5[%c56, %c0_45] : memref<448x4xbf16, #tpu.memory_space<vmem>>, vector<384x4xbf16>
    %c7_46 = arith.constant 7 : index
    %c0_47 = arith.constant 0 : index
    %c0_48 = arith.constant 0 : index
    %54 = vector.load %arg2[%c7_46, %c0_47, %c0_48] : memref<9x4x4xbf16, #tpu.memory_space<vmem>>, vector<1x4x4xbf16>
    %55 = vector.shape_cast %54 : vector<1x4x4xbf16> to vector<4x4xbf16>
    %cst_49 = arith.constant dense<0.000000e+00> : vector<384x4xf32>
    %56 = tpu.matmul %53, %55, %cst_49 {dimension_numbers = #tpu.dot_dimension_numbers<[1], [0], [0], [1], [0, 0, 1, 1], [], []>} : vector<384x4xbf16>, vector<4x4xbf16>, vector<384x4xf32> -> vector<384x4xf32>
    %57 = arith.addf %52, %56 : vector<384x4xf32>
    %c57 = arith.constant 57 : index
    %c0_50 = arith.constant 0 : index
    %58 = vector.load %arg5[%c57, %c0_50] : memref<448x4xbf16, #tpu.memory_space<vmem>>, vector<384x4xbf16>
    %c8_51 = arith.constant 8 : index
    %c0_52 = arith.constant 0 : index
    %c0_53 = arith.constant 0 : index
    %59 = vector.load %arg2[%c8_51, %c0_52, %c0_53] : memref<9x4x4xbf16, #tpu.memory_space<vmem>>, vector<1x4x4xbf16>
    %60 = vector.shape_cast %59 : vector<1x4x4xbf16> to vector<4x4xbf16>
    %cst_54 = arith.constant dense<0.000000e+00> : vector<384x4xf32>
    %61 = tpu.matmul %58, %60, %cst_54 {dimension_numbers = #tpu.dot_dimension_numbers<[1], [0], [0], [1], [0, 0, 1, 1], [], []>} : vector<384x4xbf16>, vector<4x4xbf16>, vector<384x4xf32> -> vector<384x4xf32>
    %62 = arith.addf %57, %61 : vector<384x4xf32>
    %cst_55 = arith.constant 0.000000e+00 : f32
    %63 = vector.broadcast %cst_55 : f32 to vector<384x4xf32>
    %64 = arith.maximumf %62, %63 : vector<384x4xf32>
    %cst_56 = arith.constant 0.000000e+00 : f32
    %65 = vector.shape_cast %18 : vector<384x1xi1> to vector<384x1xi1>
    %66 = vector.broadcast %65 : vector<384x1xi1> to vector<384x4xi1>
    %67 = vector.broadcast %cst_56 : f32 to vector<384x4xf32>
    %68 = arith.select %66, %64, %67 : vector<384x4xi1>, vector<384x4xf32>
    %69 = arith.truncf %68 : vector<384x4xf32> to vector<384x4xbf16>
    %c32_57 = arith.constant 32 : index
    %c0_58 = arith.constant 0 : index
    %70 = vector.load %arg6[%c32_57, %c0_58] : memref<448x4xbf16, #tpu.memory_space<vmem>>, vector<384x4xbf16>
    tpu.vector_store %arg6[%c32_57, %c0_58], %69 {strides = array<i32>} : memref<448x4xbf16, #tpu.memory_space<vmem>>, vector<384x4xbf16>,
    %c7_59 = arith.constant 7 : index
    %c0_60 = arith.constant 0 : index
    %71 = vector.load %arg6[%c7_59, %c0_60] : memref<448x4xbf16, #tpu.memory_space<vmem>>, vector<384x4xbf16>
    %c0_61 = arith.constant 0 : index
    %c0_62 = arith.constant 0 : index
    %c0_63 = arith.constant 0 : index
    %72 = vector.load %arg3[%c0_61, %c0_62, %c0_63] : memref<9x4x4xbf16, #tpu.memory_space<vmem>>, vector<1x4x4xbf16>
    %73 = vector.shape_cast %72 : vector<1x4x4xbf16> to vector<4x4xbf16>
    %cst_64 = arith.constant dense<0.000000e+00> : vector<384x4xf32>
    %74 = tpu.matmul %71, %73, %cst_64 {dimension_numbers = #tpu.dot_dimension_numbers<[1], [0], [0], [1], [0, 0, 1, 1], [], []>} : vector<384x4xbf16>, vector<4x4xbf16>, vector<384x4xf32> -> vector<384x4xf32>
    %c8_65 = arith.constant 8 : index
    %c0_66 = arith.constant 0 : index
    %75 = vector.load %arg6[%c8_65, %c0_66] : memref<448x4xbf16, #tpu.memory_space<vmem>>, vector<384x4xbf16>
    %c1_67 = arith.constant 1 : index
    %c0_68 = arith.constant 0 : index
    %c0_69 = arith.constant 0 : index
    %76 = vector.load %arg3[%c1_67, %c0_68, %c0_69] : memref<9x4x4xbf16, #tpu.memory_space<vmem>>, vector<1x4x4xbf16>
    %77 = vector.shape_cast %76 : vector<1x4x4xbf16> to vector<4x4xbf16>
    %cst_70 = arith.constant dense<0.000000e+00> : vector<384x4xf32>
    %78 = tpu.matmul %75, %77, %cst_70 {dimension_numbers = #tpu.dot_dimension_numbers<[1], [0], [0], [1], [0, 0, 1, 1], [], []>} : vector<384x4xbf16>, vector<4x4xbf16>, vector<384x4xf32> -> vector<384x4xf32>
    %79 = arith.addf %74, %78 : vector<384x4xf32>
    %c9_71 = arith.constant 9 : index
    %c0_72 = arith.constant 0 : index
    %80 = vector.load %arg6[%c9_71, %c0_72] : memref<448x4xbf16, #tpu.memory_space<vmem>>, vector<384x4xbf16>
    %c2_73 = arith.constant 2 : index
    %c0_74 = arith.constant 0 : index
    %c0_75 = arith.constant 0 : index
    %81 = vector.load %arg3[%c2_73, %c0_74, %c0_75] : memref<9x4x4xbf16, #tpu.memory_space<vmem>>, vector<1x4x4xbf16>
    %82 = vector.shape_cast %81 : vector<1x4x4xbf16> to vector<4x4xbf16>
    %cst_76 = arith.constant dense<0.000000e+00> : vector<384x4xf32>
    %83 = tpu.matmul %80, %82, %cst_76 {dimension_numbers = #tpu.dot_dimension_numbers<[1], [0], [0], [1], [0, 0, 1, 1], [], []>} : vector<384x4xbf16>, vector<4x4xbf16>, vector<384x4xf32> -> vector<384x4xf32>
    %84 = arith.addf %79, %83 : vector<384x4xf32>
    %c31_77 = arith.constant 31 : index
    %c0_78 = arith.constant 0 : index
    %85 = vector.load %arg6[%c31_77, %c0_78] : memref<448x4xbf16, #tpu.memory_space<vmem>>, vector<384x4xbf16>
    %c3_79 = arith.constant 3 : index
    %c0_80 = arith.constant 0 : index
    %c0_81 = arith.constant 0 : index
    %86 = vector.load %arg3[%c3_79, %c0_80, %c0_81] : memref<9x4x4xbf16, #tpu.memory_space<vmem>>, vector<1x4x4xbf16>
    %87 = vector.shape_cast %86 : vector<1x4x4xbf16> to vector<4x4xbf16>
    %cst_82 = arith.constant dense<0.000000e+00> : vector<384x4xf32>
    %88 = tpu.matmul %85, %87, %cst_82 {dimension_numbers = #tpu.dot_dimension_numbers<[1], [0], [0], [1], [0, 0, 1, 1], [], []>} : vector<384x4xbf16>, vector<4x4xbf16>, vector<384x4xf32> -> vector<384x4xf32>
    %89 = arith.addf %84, %88 : vector<384x4xf32>
    %c32_83 = arith.constant 32 : index
    %c0_84 = arith.constant 0 : index
    %90 = vector.load %arg6[%c32_83, %c0_84] : memref<448x4xbf16, #tpu.memory_space<vmem>>, vector<384x4xbf16>
    %c4_85 = arith.constant 4 : index
    %c0_86 = arith.constant 0 : index
    %c0_87 = arith.constant 0 : index
    %91 = vector.load %arg3[%c4_85, %c0_86, %c0_87] : memref<9x4x4xbf16, #tpu.memory_space<vmem>>, vector<1x4x4xbf16>
    %92 = vector.shape_cast %91 : vector<1x4x4xbf16> to vector<4x4xbf16>
    %cst_88 = arith.constant dense<0.000000e+00> : vector<384x4xf32>
    %93 = tpu.matmul %90, %92, %cst_88 {dimension_numbers = #tpu.dot_dimension_numbers<[1], [0], [0], [1], [0, 0, 1, 1], [], []>} : vector<384x4xbf16>, vector<4x4xbf16>, vector<384x4xf32> -> vector<384x4xf32>
    %94 = arith.addf %89, %93 : vector<384x4xf32>
    %c33_89 = arith.constant 33 : index
    %c0_90 = arith.constant 0 : index
    %95 = vector.load %arg6[%c33_89, %c0_90] : memref<448x4xbf16, #tpu.memory_space<vmem>>, vector<384x4xbf16>
    %c5_91 = arith.constant 5 : index
    %c0_92 = arith.constant 0 : index
    %c0_93 = arith.constant 0 : index
    %96 = vector.load %arg3[%c5_91, %c0_92, %c0_93] : memref<9x4x4xbf16, #tpu.memory_space<vmem>>, vector<1x4x4xbf16>
    %97 = vector.shape_cast %96 : vector<1x4x4xbf16> to vector<4x4xbf16>
    %cst_94 = arith.constant dense<0.000000e+00> : vector<384x4xf32>
    %98 = tpu.matmul %95, %97, %cst_94 {dimension_numbers = #tpu.dot_dimension_numbers<[1], [0], [0], [1], [0, 0, 1, 1], [], []>} : vector<384x4xbf16>, vector<4x4xbf16>, vector<384x4xf32> -> vector<384x4xf32>
    %99 = arith.addf %94, %98 : vector<384x4xf32>
    %c55_95 = arith.constant 55 : index
    %c0_96 = arith.constant 0 : index
    %100 = vector.load %arg6[%c55_95, %c0_96] : memref<448x4xbf16, #tpu.memory_space<vmem>>, vector<384x4xbf16>
    %c6_97 = arith.constant 6 : index
    %c0_98 = arith.constant 0 : index
    %c0_99 = arith.constant 0 : index
    %101 = vector.load %arg3[%c6_97, %c0_98, %c0_99] : memref<9x4x4xbf16, #tpu.memory_space<vmem>>, vector<1x4x4xbf16>
    %102 = vector.shape_cast %101 : vector<1x4x4xbf16> to vector<4x4xbf16>
    %cst_100 = arith.constant dense<0.000000e+00> : vector<384x4xf32>
    %103 = tpu.matmul %100, %102, %cst_100 {dimension_numbers = #tpu.dot_dimension_numbers<[1], [0], [0], [1], [0, 0, 1, 1], [], []>} : vector<384x4xbf16>, vector<4x4xbf16>, vector<384x4xf32> -> vector<384x4xf32>
    %104 = arith.addf %99, %103 : vector<384x4xf32>
    %c56_101 = arith.constant 56 : index
    %c0_102 = arith.constant 0 : index
    %105 = vector.load %arg6[%c56_101, %c0_102] : memref<448x4xbf16, #tpu.memory_space<vmem>>, vector<384x4xbf16>
    %c7_103 = arith.constant 7 : index
    %c0_104 = arith.constant 0 : index
    %c0_105 = arith.constant 0 : index
    %106 = vector.load %arg3[%c7_103, %c0_104, %c0_105] : memref<9x4x4xbf16, #tpu.memory_space<vmem>>, vector<1x4x4xbf16>
    %107 = vector.shape_cast %106 : vector<1x4x4xbf16> to vector<4x4xbf16>
    %cst_106 = arith.constant dense<0.000000e+00> : vector<384x4xf32>
    %108 = tpu.matmul %105, %107, %cst_106 {dimension_numbers = #tpu.dot_dimension_numbers<[1], [0], [0], [1], [0, 0, 1, 1], [], []>} : vector<384x4xbf16>, vector<4x4xbf16>, vector<384x4xf32> -> vector<384x4xf32>
    %109 = arith.addf %104, %108 : vector<384x4xf32>
    %c57_107 = arith.constant 57 : index
    %c0_108 = arith.constant 0 : index
    %110 = vector.load %arg6[%c57_107, %c0_108] : memref<448x4xbf16, #tpu.memory_space<vmem>>, vector<384x4xbf16>
    %c8_109 = arith.constant 8 : index
    %c0_110 = arith.constant 0 : index
    %c0_111 = arith.constant 0 : index
    %111 = vector.load %arg3[%c8_109, %c0_110, %c0_111] : memref<9x4x4xbf16, #tpu.memory_space<vmem>>, vector<1x4x4xbf16>
    %112 = vector.shape_cast %111 : vector<1x4x4xbf16> to vector<4x4xbf16>
    %cst_112 = arith.constant dense<0.000000e+00> : vector<384x4xf32>
    %113 = tpu.matmul %110, %112, %cst_112 {dimension_numbers = #tpu.dot_dimension_numbers<[1], [0], [0], [1], [0, 0, 1, 1], [], []>} : vector<384x4xbf16>, vector<4x4xbf16>, vector<384x4xf32> -> vector<384x4xf32>
    %114 = arith.addf %109, %113 : vector<384x4xf32>
    %115 = vector.shape_cast %114 : vector<384x4xf32> to vector<16x24x4xf32>
    %116 = vector.extract_strided_slice %115 {offsets = [0, 0, 0], sizes = [16, 16, 4], strides = [1, 1, 1]} : vector<16x24x4xf32> to vector<16x16x4xf32>
    %c0_113 = arith.constant 0 : index
    %c0_114 = arith.constant 0 : index
    %c0_115 = arith.constant 0 : index
    %c0_116 = arith.constant 0 : index
    %117 = vector.load %arg1[%c0_113, %c0_114, %c0_115, %c0_116] : memref<1x16x16x4xf32, #tpu.memory_space<vmem>>, vector<1x16x16x4xf32>
    %118 = vector.shape_cast %117 : vector<1x16x16x4xf32> to vector<16x16x4xf32>
    %119 = arith.addf %118, %116 : vector<16x16x4xf32>
    %c0_117 = arith.constant 0 : index
    %c0_118 = arith.constant 0 : index
    %c0_119 = arith.constant 0 : index
    %c0_120 = arith.constant 0 : index
    %120 = vector.load %arg4[%c0_117, %c0_118, %c0_119, %c0_120] : memref<1x16x16x4xf32, #tpu.memory_space<vmem>>, vector<1x16x16x4xf32>
    %121 = vector.shape_cast %120 : vector<1x16x16x4xf32> to vector<16x16x4xf32>
    %122 = vector.shape_cast %119 : vector<16x16x4xf32> to vector<1x16x16x4xf32>
    tpu.vector_store %arg4[%c0_117, %c0_118, %c0_119, %c0_120], %122 {strides = array<i32>} : memref<1x16x16x4xf32, #tpu.memory_space<vmem>>, vector<1x16x16x4xf32>,
    return
  }
  func.func @transform_0(%arg0: i32) -> (i32, i32, i32, i32) {
    %c0_i32 = arith.constant 0 : i32
    %c0_i32_0 = arith.constant 0 : i32
    %c0_i32_1 = arith.constant 0 : i32
    %c0_i32_2 = arith.constant 0 : i32
    return %arg0, %c0_i32, %c0_i32_0, %c0_i32_1 : i32, i32, i32, i32
  }
  func.func @transform_1(%arg0: i32) -> (i32, i32, i32) {
    %c0_i32 = arith.constant 0 : i32
    %c0_i32_0 = arith.constant 0 : i32
    %c0_i32_1 = arith.constant 0 : i32
    %c0_i32_2 = arith.constant 0 : i32
    return %c0_i32, %c0_i32_0, %c0_i32_1 : i32, i32, i32
  }
  func.func @transform_2(%arg0: i32) -> (i32, i32, i32) {
    %c0_i32 = arith.constant 0 : i32
    %c0_i32_0 = arith.constant 0 : i32
    %c0_i32_1 = arith.constant 0 : i32
    %c0_i32_2 = arith.constant 0 : i32
    return %c0_i32, %c0_i32_0, %c0_i32_1 : i32, i32, i32
  }
  func.func @transform_3(%arg0: i32) -> (i32, i32, i32, i32) {
    %c0_i32 = arith.constant 0 : i32
    %c0_i32_0 = arith.constant 0 : i32
    %c0_i32_1 = arith.constant 0 : i32
    %c0_i32_2 = arith.constant 0 : i32
    return %arg0, %c0_i32, %c0_i32_0, %c0_i32_1 : i32, i32, i32, i32
  }
}

</mosaic_0001>

<llo_original>
// kernel: tpu_custom_call.1
$region0: #{tpu_custom_call.1}
  #allocation0 [shape = 'u32[]', space=smem, size = 0x4, offset = 0x4, fixed_abs, tag = 'smem constant byte address 0x4 - core index']
  #allocation1 [shape = 'u32[144,128]{1,0:T(1,128)}', space=vmem, size = 0x12000, scoped, tag = 'internal scratch']
  #allocation2 [shape = 'bf16[448,4]{1,0:T(8,128)(2,1)}', space=vmem, size = 0x1c000, scoped, tag = 'scratch operand']
  #allocation3 [shape = 'bf16[448,4]{1,0:T(8,128)(2,1)}', space=vmem, size = 0x1c000, scoped, tag = 'scratch operand']
  %s0 = inlined_call_operand.vmem [shape: f32[2,16,16,4], index: 0, kind: input, shape index: {}]
  %s1 = inlined_call_operand.vmem [shape: bf16[9,4,4], index: 1, kind: input, shape index: {}]
  %s2 = inlined_call_operand.vmem [shape: bf16[9,4,4], index: 2, kind: input, shape index: {}]
  %s3 = inlined_call_operand.vmem [shape: f32[2,16,16,4], index: 3, kind: output, shape index: {}]
  %s4 = sld [smem:[#allocation0]]
  $region45: #{tpu_custom_call.1} parent=0
    _
  %s6 = ssub.s32 1, %s4
  %s7 = scalar_select 0, %s6, %s4
  loop: start=0, step=1, limit=4
  $region2: #{tpu_custom_call.1} parent=0 // loop_pre_header
    _
  $region3: #{tpu_custom_call.1} parent=0 // loop_header
    %s9 = sphi 0, %s13
    %p10 = scmp.ge.s32.totalorder %s9, 4
    %s19 = sphi 0, %s21
    %s22 = sphi 0, %s19
    %s23 = sphi 0, %s22
    %s39 = sphi 0, %s23
    %s43 = sphi 0, %s43
    %s45 = sphi 0, %s43
    %s46 = sphi 0, %s45
    %s60 = sphi 0, %s46
    %s64 = sphi 0, %s64
    %s66 = sphi 0, %s64
    %s67 = sphi 0, %s66
    %s81 = sphi 0, %s67
    %s87 = sphi 0, %s89
    %s90 = sphi 0, %s87
    %s91 = sphi 0, %s90
    %s107 = sphi 0, %s91
  $region4: #{tpu_custom_call.1} parent=0 // loop_header_branch
    %12 = sbr.rel (%p10) target = $region8
  $region5: #{tpu_custom_call.1} parent=0 // loop_body
    %s14 = ssub.s32 %s9, 1
    %s15 = ssub.s32 %s9, 2
    %s16 = sadd.s32 %s9, 1
    %s17 = ssub.s32 %s9, %s16
    %p18 = scmp.eq.s32.totalorder %s17, 0
    %s20 = sadd.s32 %s19, 1
    %s21 = scalar_select %p18, %s19, %s20
    %p24 = pneg %p18
    %p25 = scmp.eq.s32.totalorder %s9, 1
    %p26 = por %p24, %p25
    %p27 = scmp.ne.s32.totalorder %s19, %s22
    %p28 = scmp.eq.s32.totalorder %s9, 0
    %p29 = por %p27, %p28
    %p30 = scmp.ne.s32.totalorder %s19, %s22
    %p31 = scmp.eq.s32.totalorder %s14, 1
    %p32 = por %p30, %p31
    %p33 = scmp.ne.s32.totalorder %s22, %s23
    %p34 = scmp.eq.s32.totalorder %s14, 0
    %p35 = por %p33, %p34
    %p36 = scmp.ne.s32.totalorder %s22, %s23
    %p37 = scmp.eq.s32.totalorder %s15, 1
    %p38 = por %p36, %p37
    %p40 = scmp.ne.s32.totalorder %s23, %s39
    %p41 = scmp.eq.s32.totalorder %s15, 0
    %p42 = por %p40, %p41
    %s44 = sadd.s32 %s43, 1
    %p47 = scmp.eq.s32.totalorder %s9, 1
    %p48 = scmp.ne.s32.totalorder %s43, %s45
    %p49 = scmp.eq.s32.totalorder %s9, 0
    %p50 = por %p48, %p49
    %p51 = scmp.ne.s32.totalorder %s43, %s45
    %p52 = scmp.eq.s32.totalorder %s14, 1
    %p53 = por %p51, %p52
    %p54 = scmp.ne.s32.totalorder %s45, %s46
    %p55 = scmp.eq.s32.totalorder %s14, 0
    %p56 = por %p54, %p55
    %p57 = scmp.ne.s32.totalorder %s45, %s46
    %p58 = scmp.eq.s32.totalorder %s15, 1
    %p59 = por %p57, %p58
    %p61 = scmp.ne.s32.totalorder %s46, %s60
    %p62 = scmp.eq.s32.totalorder %s15, 0
    %p63 = por %p61, %p62
    %s65 = sadd.s32 %s64, 1
    %p68 = scmp.eq.s32.totalorder %s9, 1
    %p69 = scmp.ne.s32.totalorder %s64, %s66
    %p70 = scmp.eq.s32.totalorder %s9, 0
    %p71 = por %p69, %p70
    %p72 = scmp.ne.s32.totalorder %s64, %s66
    %p73 = scmp.eq.s32.totalorder %s14, 1
    %p74 = por %p72, %p73
    %p75 = scmp.ne.s32.totalorder %s66, %s67
    %p76 = scmp.eq.s32.totalorder %s14, 0
    %p77 = por %p75, %p76
    %p78 = scmp.ne.s32.totalorder %s66, %s67
    %p79 = scmp.eq.s32.totalorder %s15, 1
    %p80 = por %p78, %p79
    %p82 = scmp.ne.s32.totalorder %s67, %s81
    %p83 = scmp.eq.s32.totalorder %s15, 0
    %p84 = por %p82, %p83
    %s85 = ssub.s32 %s9, %s16
    %p86 = scmp.eq.s32.totalorder %s85, 0
    %s88 = sadd.s32 %s87, 1
    %s89 = scalar_select %p86, %s87, %s88
    %p92 = pneg %p86
    %p93 = scmp.eq.s32.totalorder %s9, 1
    %p94 = por %p92, %p93
    %p95 = scmp.ne.s32.totalorder %s87, %s90
    %p96 = scmp.eq.s32.totalorder %s9, 0
    %p97 = por %p95, %p96
    %p98 = scmp.ne.s32.totalorder %s87, %s90
    %p99 = scmp.eq.s32.totalorder %s14, 1
    %p100 = por %p98, %p99
    %p101 = scmp.ne.s32.totalorder %s90, %s91
    %p102 = scmp.eq.s32.totalorder %s14, 0
    %p103 = por %p101, %p102
    %p104 = scmp.ne.s32.totalorder %s90, %s91
    %p105 = scmp.eq.s32.totalorder %s15, 1
    %p106 = por %p104, %p105
    %p108 = scmp.ne.s32.totalorder %s91, %s107
    %p109 = scmp.eq.s32.totalorder %s15, 0
    %p110 = por %p108, %p109
    %p111 = scmp.le.s32.totalorder 1, %s9
    %p112 = scmp.lt.s32.totalorder %s9, 3
    %p113 = pnand %p111, %p112
    %p114 = pneg %p113
    // Predicated region
    $region9: #{tpu_custom_call.1} parent=5 // pred_check
      _
    $region10: #{tpu_custom_call.1} parent=5 // pred_check_branch
      %116 = sbr.rel (%p113) target = $region12
    $region11: #{tpu_custom_call.1} parent=5 // pred_region
      %s117 = ssub.s32 %s9, 1
      // Predicated region
      $region13: #{tpu_custom_call.1} parent=11 // pred_check
        %p118 = pneg %p56
      $region14: #{tpu_custom_call.1} parent=11 // pred_check_branch
        %120 = sbr.rel (%p118) target = $region16
      $region15: #{tpu_custom_call.1} parent=11 // pred_region
        _
      $region16: #{tpu_custom_call.1} parent=11 // pred_fallthru
        _
      // Predicated region
      $region17: #{tpu_custom_call.1} parent=11 // pred_check
        %p121 = pneg %p77
      $region18: #{tpu_custom_call.1} parent=11 // pred_check_branch
        %123 = sbr.rel (%p121) target = $region20
      $region19: #{tpu_custom_call.1} parent=11 // pred_region
        _
      $region20: #{tpu_custom_call.1} parent=11 // pred_fallthru
        _
    $region12: #{tpu_custom_call.1} parent=5 // pred_fallthru
      _
    %p124 = scmp.lt.s32.totalorder %s9, 2
    // Predicated region
    $region21: #{tpu_custom_call.1} parent=5 // pred_check
      %p125 = pneg %p124
    $region22: #{tpu_custom_call.1} parent=5 // pred_check_branch
      %127 = sbr.rel (%p125) target = $region24
    $region23: #{tpu_custom_call.1} parent=5 // pred_region
      // Predicated region
      $region25: #{tpu_custom_call.1} parent=23 // pred_check
        %p128 = pneg %p29
      $region26: #{tpu_custom_call.1} parent=23 // pred_check_branch
        %130 = sbr.rel (%p128) target = $region28
      $region27: #{tpu_custom_call.1} parent=23 // pred_region
        %p131 = scmp.lt.s32.totalorder %s9, 1
        %s132 = scalar_select %p131, %s9, 1
        %s133 = smul.addr %s132, 32
        %s134 = smul.addr %s133, 8
        %s135 = scalar_lea.vmem %s0, %s134
      $region28: #{tpu_custom_call.1} parent=23 // pred_fallthru
        _
    $region24: #{tpu_custom_call.1} parent=5 // pred_fallthru
      _
    %p136 = scmp.le.s32.totalorder 1, %s9
    %p137 = scmp.lt.s32.totalorder %s9, 3
    %p138 = pnand %p136, %p137
    %p139 = pneg %p138
    // Predicated region
    $region29: #{tpu_custom_call.1} parent=5 // pred_check
      _
    $region30: #{tpu_custom_call.1} parent=5 // pred_check_branch
      %141 = sbr.rel (%p138) target = $region32
    $region31: #{tpu_custom_call.1} parent=5 // pred_region
      %s142 = ssub.s32 %s9, 1
      %p143 = scmp.lt.s32.totalorder %s14, 1
      %s144 = scalar_select %p143, %s14, 1
      %s145 = smul.addr %s144, 32
      %s146 = smul.addr %s145, 8
      %s147 = scalar_lea.vmem %s0, %s146
      %p148 = pneg %p35
      %p149 = pneg %p32
      %p150 = pneg %p56
      %p151 = pneg %p53
      %p152 = pneg %p77
      %p153 = pneg %p74
      %p154 = pneg %p103
      %p155 = pneg %p100
      %p156 = scmp.lt.s32.totalorder %s14, 1
      %s157 = scalar_select %p156, %s14, 1
      %s158 = smul.addr %s157, 32
      %s159 = smul.addr %s158, 8
      %s160 = scalar_lea.vmem %s3, %s159
      %p161 = scmp.lt.s32.totalorder %s14, 1
      %s162 = scalar_select %p161, %s14, 1
      %s163 = smul.addr %s162, 32
      %s164 = smul.addr %s163, 8
      %s165 = scalar_lea.vmem %s0, %s164
      %p166 = scmp.lt.s32.totalorder %s14, 1
      %s167 = scalar_select %p166, %s14, 1
      %s168 = smul.addr %s167, 32
      %s169 = smul.addr %s168, 8
      %s170 = scalar_lea.vmem %s3, %s169
      %vm172 = vcmask 27648
      %173 = vst.msk [vmem:[#allocation2] sm:$0xf] %vm172, 0
      %174 = vst.msk [vmem:[#allocation2 + $0x4] sm:$0xf] %vm172, 0
      %175 = vst.msk [vmem:[#allocation2 + $0x8] sm:$0xf] %vm172, 0
      %176 = vst.msk [vmem:[#allocation2 + $0xc] sm:$0xf] %vm172, 0
      %177 = vst.msk [vmem:[#allocation2 + $0xd0] sm:$0xf] %vm172, 0
      %178 = vst.msk [vmem:[#allocation2 + $0xd4] sm:$0xf] %vm172, 0
      %179 = vst.msk [vmem:[#allocation2 + $0xd8] sm:$0xf] %vm172, 0
      %180 = vst.msk [vmem:[#allocation2 + $0xdc] sm:$0xf] %vm172, 0
      %181 = vst.msk [vmem:[#allocation3] sm:$0xf] %vm172, 0
      %182 = vst.msk [vmem:[#allocation3 + $0x4] sm:$0xf] %vm172, 0
      %183 = vst.msk [vmem:[#allocation3 + $0x8] sm:$0xf] %vm172, 0
      %184 = vst.msk [vmem:[#allocation3 + $0xc] sm:$0xf] %vm172, 0
      %185 = vst.msk [vmem:[#allocation3 + $0xd0] sm:$0xf] %vm172, 0
      %186 = vst.msk [vmem:[#allocation3 + $0xd4] sm:$0xf] %vm172, 0
      %187 = vst.msk [vmem:[#allocation3 + $0xd8] sm:$0xf] %vm172, 0
      %188 = vst.msk [vmem:[#allocation3 + $0xdc] sm:$0xf] %vm172, 0
      %v189 = vld [vmem:[%s165] sm:$0xff]
      %v190 = vld [vmem:[%s165 + $0x8] sm:$0xff]
      %v191 = vld [vmem:[%s165 + $0x10] sm:$0xff]
      %v192 = vld [vmem:[%s165 + $0x18] sm:$0xff]
      %v193 = vld [vmem:[%s165 + $0x20] sm:$0xff]
      %v194 = vld [vmem:[%s165 + $0x28] sm:$0xff]
      %v195 = vld [vmem:[%s165 + $0x30] sm:$0xff]
      %v196 = vld [vmem:[%s165 + $0x38] sm:$0xff]
      %v197 = vld [vmem:[%s165 + $0x40] sm:$0xff]
      %v198 = vld [vmem:[%s165 + $0x48] sm:$0xff]
      %v199 = vld [vmem:[%s165 + $0x50] sm:$0xff]
      %v200 = vld [vmem:[%s165 + $0x58] sm:$0xff]
      %v201 = vld [vmem:[%s165 + $0x60] sm:$0xff]
      %v202 = vld [vmem:[%s165 + $0x68] sm:$0xff]
      %v203 = vld [vmem:[%s165 + $0x70] sm:$0xff]
      %v204 = vld [vmem:[%s165 + $0x78] sm:$0xff]
      %v205 = vld [vmem:[%s165 + $0x80] sm:$0xff]
      %v206 = vld [vmem:[%s165 + $0x88] sm:$0xff]
      %v207 = vld [vmem:[%s165 + $0x90] sm:$0xff]
      %v208 = vld [vmem:[%s165 + $0x98] sm:$0xff]
      %v209 = vld [vmem:[%s165 + $0xa0] sm:$0xff]
      %v210 = vld [vmem:[%s165 + $0xa8] sm:$0xff]
      %v211 = vld [vmem:[%s165 + $0xb0] sm:$0xff]
      %v212 = vld [vmem:[%s165 + $0xb8] sm:$0xff]
      %v213 = vld [vmem:[%s165 + $0xc0] sm:$0xff]
      %v214 = vld [vmem:[%s165 + $0xc8] sm:$0xff]
      %v215 = vld [vmem:[%s165 + $0xd0] sm:$0xff]
      %v216 = vld [vmem:[%s165 + $0xd8] sm:$0xff]
      %v217 = vld [vmem:[%s165 + $0xe0] sm:$0xff]
      %v218 = vld [vmem:[%s165 + $0xe8] sm:$0xff]
      %v219 = vld [vmem:[%s165 + $0xf0] sm:$0xff]
      %v220 = vld [vmem:[%s165 + $0xf8] sm:$0xff]
      %v221 = vpack.c.bf16 %v190, %v189
      %v222 = vpack.c.bf16 %v192, %v191
      %v223 = vpack.c.bf16 %v194, %v193
      %v224 = vpack.c.bf16 %v196, %v195
      %v225 = vpack.c.bf16 %v198, %v197
      %v226 = vpack.c.bf16 %v200, %v199
      %v227 = vpack.c.bf16 %v202, %v201
      %v228 = vpack.c.bf16 %v204, %v203
      %v229 = vpack.c.bf16 %v206, %v205
      %v230 = vpack.c.bf16 %v208, %v207
      %v231 = vpack.c.bf16 %v210, %v209
      %v232 = vpack.c.bf16 %v212, %v211
      %v233 = vpack.c.bf16 %v214, %v213
      %v234 = vpack.c.bf16 %v216, %v215
      %v235 = vpack.c.bf16 %v218, %v217
      %v236 = vpack.c.bf16 %v220, %v219
      %v254 = vunpack.c.l.b16 %v221
      %v255 = vunpack.c.h.b16 %v221
      %v256 = vunpack.c.l.b16 0
      %v257 = vunpack.c.l.b16 %v222
      %v258 = vunpack.c.h.b16 %v222
      %v259 = vunpack.c.l.b16 %v223
      %v260 = vunpack.c.h.b16 %v223
      %v261 = vunpack.c.l.b16 %v224
      %v262 = vunpack.c.h.b16 %v224
      %v263 = vunpack.c.l.b16 %v225
      %v264 = vunpack.c.h.b16 %v225
      %v265 = vunpack.c.l.b16 %v226
      %v266 = vunpack.c.h.b16 %v226
      %v267 = vunpack.c.l.b16 %v227
      %v268 = vunpack.c.h.b16 %v227
      %v269 = vunpack.c.l.b16 %v228
      %v270 = vunpack.c.h.b16 %v228
      %v271 = vunpack.c.l.b16 %v229
      %v272 = vunpack.c.h.b16 %v229
      %v273 = vunpack.c.l.b16 %v230
      %v274 = vunpack.c.h.b16 %v230
      %v275 = vunpack.c.l.b16 %v231
      %v276 = vunpack.c.h.b16 %v231
      %v277 = vunpack.c.l.b16 %v232
      %v278 = vunpack.c.h.b16 %v232
      %v279 = vunpack.c.l.b16 %v233
      %v280 = vunpack.c.h.b16 %v233
      %v281 = vunpack.c.l.b16 %v234
      %v282 = vunpack.c.h.b16 %v234
      %v283 = vunpack.c.l.b16 %v235
      %v284 = vunpack.c.h.b16 %v235
      %v285 = vunpack.c.l.b16 %v236
      %v286 = vunpack.c.h.b16 %v236
      %v287 = vpack.c.b16 %v254, %v254
      %v288 = vpack.c.b16 %v255, %v255
      %v289 = vpack.c.b16 %v256, %v256
      %v290 = vpack.c.b16 %v257, %v257
      %v291 = vpack.c.b16 %v258, %v258
      %v292 = vpack.c.b16 %v259, %v259
      %v293 = vpack.c.b16 %v260, %v260
      %v294 = vpack.c.b16 %v261, %v261
      %v295 = vpack.c.b16 %v262, %v262
      %v296 = vpack.c.b16 %v263, %v263
      %v297 = vpack.c.b16 %v264, %v264
      %v298 = vpack.c.b16 %v265, %v265
      %v299 = vpack.c.b16 %v266, %v266
      %v300 = vpack.c.b16 %v267, %v267
      %v301 = vpack.c.b16 %v268, %v268
      %v302 = vpack.c.b16 %v269, %v269
      %v303 = vpack.c.b16 %v270, %v270
      %v304 = vpack.c.b16 %v271, %v271
      %v305 = vpack.c.b16 %v272, %v272
      %v306 = vpack.c.b16 %v273, %v273
      %v307 = vpack.c.b16 %v274, %v274
      %v308 = vpack.c.b16 %v275, %v275
      %v309 = vpack.c.b16 %v276, %v276
      %v310 = vpack.c.b16 %v277, %v277
      %v311 = vpack.c.b16 %v278, %v278
      %v312 = vpack.c.b16 %v279, %v279
      %v313 = vpack.c.b16 %v280, %v280
      %v314 = vpack.c.b16 %v281, %v281
      %v315 = vpack.c.b16 %v282, %v282
      %v316 = vpack.c.b16 %v283, %v283
      %v317 = vpack.c.b16 %v284, %v284
      %v318 = vpack.c.b16 %v285, %v285
      %v319 = vpack.c.b16 %v286, %v286
      %353 = vst.msk [vmem:[#allocation2 + $0x10] sm:$0xf] %vm172, %v287
      %354 = vst.msk [vmem:[#allocation2 + $0x14] sm:$0xf] %vm172, %v288
      %355 = vst.msk [vmem:[#allocation2 + $0x18] sm:$0xf] %vm172, %v289
      %356 = vst.msk [vmem:[#allocation2 + $0x1c] sm:$0xf] %vm172, %v290
      %357 = vst.msk [vmem:[#allocation2 + $0x20] sm:$0xf] %vm172, %v291
      %358 = vst.msk [vmem:[#allocation2 + $0x24] sm:$0xf] %vm172, %v289
      %359 = vst.msk [vmem:[#allocation2 + $0x28] sm:$0xf] %vm172, %v292
      %360 = vst.msk [vmem:[#allocation2 + $0x2c] sm:$0xf] %vm172, %v293
      %361 = vst.msk [vmem:[#allocation2 + $0x30] sm:$0xf] %vm172, %v289
      %362 = vst.msk [vmem:[#allocation2 + $0x34] sm:$0xf] %vm172, %v294
      %363 = vst.msk [vmem:[#allocation2 + $0x38] sm:$0xf] %vm172, %v295
      %364 = vst.msk [vmem:[#allocation2 + $0x3c] sm:$0xf] %vm172, %v289
      %365 = vst.msk [vmem:[#allocation2 + $0x40] sm:$0xf] %vm172, %v296
      %366 = vst.msk [vmem:[#allocation2 + $0x44] sm:$0xf] %vm172, %v297
      %367 = vst.msk [vmem:[#allocation2 + $0x48] sm:$0xf] %vm172, %v289
      %368 = vst.msk [vmem:[#allocation2 + $0x4c] sm:$0xf] %vm172, %v298
      %369 = vst.msk [vmem:[#allocation2 + $0x50] sm:$0xf] %vm172, %v299
      %370 = vst.msk [vmem:[#allocation2 + $0x54] sm:$0xf] %vm172, %v289
      %371 = vst.msk [vmem:[#allocation2 + $0x58] sm:$0xf] %vm172, %v300
      %372 = vst.msk [vmem:[#allocation2 + $0x5c] sm:$0xf] %vm172, %v301
      %373 = vst.msk [vmem:[#allocation2 + $0x60] sm:$0xf] %vm172, %v289
      %374 = vst.msk [vmem:[#allocation2 + $0x64] sm:$0xf] %vm172, %v302
      %375 = vst.msk [vmem:[#allocation2 + $0x68] sm:$0xf] %vm172, %v303
      %376 = vst.msk [vmem:[#allocation2 + $0x6c] sm:$0xf] %vm172, %v289
      %377 = vst.msk [vmem:[#allocation2 + $0x70] sm:$0xf] %vm172, %v304
      %378 = vst.msk [vmem:[#allocation2 + $0x74] sm:$0xf] %vm172, %v305
      %379 = vst.msk [vmem:[#allocation2 + $0x78] sm:$0xf] %vm172, %v289
      %380 = vst.msk [vmem:[#allocation2 + $0x7c] sm:$0xf] %vm172, %v306
      %381 = vst.msk [vmem:[#allocation2 + $0x80] sm:$0xf] %vm172, %v307
      %382 = vst.msk [vmem:[#allocation2 + $0x84] sm:$0xf] %vm172, %v289
      %383 = vst.msk [vmem:[#allocation2 + $0x88] sm:$0xf] %vm172, %v308
      %384 = vst.msk [vmem:[#allocation2 + $0x8c] sm:$0xf] %vm172, %v309
      %385 = vst.msk [vmem:[#allocation2 + $0x90] sm:$0xf] %vm172, %v289
      %386 = vst.msk [vmem:[#allocation2 + $0x94] sm:$0xf] %vm172, %v310
      %387 = vst.msk [vmem:[#allocation2 + $0x98] sm:$0xf] %vm172, %v311
      %388 = vst.msk [vmem:[#allocation2 + $0x9c] sm:$0xf] %vm172, %v289
      %389 = vst.msk [vmem:[#allocation2 + $0xa0] sm:$0xf] %vm172, %v312
      %390 = vst.msk [vmem:[#allocation2 + $0xa4] sm:$0xf] %vm172, %v313
      %391 = vst.msk [vmem:[#allocation2 + $0xa8] sm:$0xf] %vm172, %v289
      %392 = vst.msk [vmem:[#allocation2 + $0xac] sm:$0xf] %vm172, %v314
      %393 = vst.msk [vmem:[#allocation2 + $0xb0] sm:$0xf] %vm172, %v315
      %394 = vst.msk [vmem:[#allocation2 + $0xb4] sm:$0xf] %vm172, %v289
      %395 = vst.msk [vmem:[#allocation2 + $0xb8] sm:$0xf] %vm172, %v316
      %396 = vst.msk [vmem:[#allocation2 + $0xbc] sm:$0xf] %vm172, %v317
      %397 = vst.msk [vmem:[#allocation2 + $0xc0] sm:$0xf] %vm172, %v289
      %398 = vst.msk [vmem:[#allocation2 + $0xc4] sm:$0xf] %vm172, %v318
      %399 = vst.msk [vmem:[#allocation2 + $0xc8] sm:$0xf] %vm172, %v319
      %400 = vst.msk [vmem:[#allocation2 + $0xcc] sm:$0xf] %vm172, %v289
      %v401 = vlaneseq
      %v402 = vshrl.u32 %v401, 7
      %v403 = vadd.s32 %v402, 8
      %v404 = vadd.s32 %v402, 16
      %vm405 = vcmp.lt.s32.totalorder %v402, 16
      %vm406 = vcmp.lt.s32.totalorder %v403, 16
      %vm407 = vcmp.lt.s32.totalorder %v404, 16
      %v408 = vld [vmem:[#allocation2] sm:$0x8]
      %v409 = vld [vmem:[#allocation2 + $0x4] sm:$0xf]
      %v410 = vld [vmem:[#allocation2 + $0x8] sm:$0xf]
      %v411 = vld [vmem:[#allocation2 + $0xc] sm:$0xf]
      %v412 = vld [vmem:[#allocation2 + $0x10] sm:$0xf]
      %v413 = vld [vmem:[#allocation2 + $0x14] sm:$0xf]
      %v414 = vld [vmem:[#allocation2 + $0x18] sm:$0xf]
      %v415 = vld [vmem:[#allocation2 + $0x1c] sm:$0xf]
      %v416 = vld [vmem:[#allocation2 + $0x20] sm:$0xf]
      %v417 = vld [vmem:[#allocation2 + $0x24] sm:$0xf]
      %v418 = vld [vmem:[#allocation2 + $0x28] sm:$0xf]
      %v419 = vld [vmem:[#allocation2 + $0x2c] sm:$0xf]
      %v420 = vld [vmem:[#allocation2 + $0x30] sm:$0xf]
      %v421 = vld [vmem:[#allocation2 + $0x34] sm:$0xf]
      %v422 = vld [vmem:[#allocation2 + $0x38] sm:$0xf]
      %v423 = vld [vmem:[#allocation2 + $0x3c] sm:$0xf]
      %v424 = vld [vmem:[#allocation2 + $0x40] sm:$0xf]
      %v425 = vld [vmem:[#allocation2 + $0x44] sm:$0xf]
      %v426 = vld [vmem:[#allocation2 + $0x48] sm:$0xf]
      %v427 = vld [vmem:[#allocation2 + $0x4c] sm:$0xf]
      %v428 = vld [vmem:[#allocation2 + $0x50] sm:$0xf]
      %v429 = vld [vmem:[#allocation2 + $0x54] sm:$0xf]
      %v430 = vld [vmem:[#allocation2 + $0x58] sm:$0xf]
      %v431 = vld [vmem:[#allocation2 + $0x5c] sm:$0xf]
      %v432 = vld [vmem:[#allocation2 + $0x60] sm:$0xf]
      %v433 = vld [vmem:[#allocation2 + $0x64] sm:$0xf]
      %v434 = vld [vmem:[#allocation2 + $0x68] sm:$0xf]
      %v435 = vld [vmem:[#allocation2 + $0x6c] sm:$0xf]
      %v436 = vld [vmem:[#allocation2 + $0x70] sm:$0xf]
      %v437 = vld [vmem:[#allocation2 + $0x74] sm:$0xf]
      %v438 = vld [vmem:[#allocation2 + $0x78] sm:$0xf]
      %v439 = vld [vmem:[#allocation2 + $0x7c] sm:$0xf]
      %v440 = vld [vmem:[#allocation2 + $0x80] sm:$0xf]
      %v441 = vld [vmem:[#allocation2 + $0x84] sm:$0xf]
      %v442 = vld [vmem:[#allocation2 + $0x88] sm:$0xf]
      %v443 = vld [vmem:[#allocation2 + $0x8c] sm:$0xf]
      %v444 = vld [vmem:[#allocation2 + $0x90] sm:$0xf]
      %v445 = vld [vmem:[#allocation2 + $0x94] sm:$0xf]
      %v446 = vld [vmem:[#allocation2 + $0x98] sm:$0xf]
      %v447 = vld [vmem:[#allocation2 + $0x9c] sm:$0xf]
      %v448 = vld [vmem:[#allocation2 + $0xa0] sm:$0xf]
      %v449 = vld [vmem:[#allocation2 + $0xa4] sm:$0xf]
      %v450 = vld [vmem:[#allocation2 + $0xa8] sm:$0xf]
      %v451 = vld [vmem:[#allocation2 + $0xac] sm:$0xf]
      %v452 = vld [vmem:[#allocation2 + $0xb0] sm:$0xf]
      %v453 = vld [vmem:[#allocation2 + $0xb4] sm:$0xf]
      %v454 = vld [vmem:[#allocation2 + $0xb8] sm:$0xf]
      %v455 = vld [vmem:[#allocation2 + $0xbc] sm:$0xf]
      %v456 = vld [vmem:[#allocation2 + $0xc0] sm:$0xf]
      %v457 = vld [vmem:[%s1] sm:$0x3]
      %s458 = scalar_lea.vmem %s1, 2
      %v459 = vld [vmem:[%s458] sm:$0x3]
      %v508 = vunpack.c.l.b16 %v409
      %v509 = vunpack.c.l.b16 %v410
      %v510 = vunpack.c.l.b16 %v411
      %v511 = vunpack.c.l.b16 %v412
      %v512 = vunpack.c.l.b16 %v413
      %v513 = vunpack.c.l.b16 %v414
      %v514 = vunpack.c.l.b16 %v415
      %v515 = vunpack.c.l.b16 %v416
      %v516 = vunpack.c.l.b16 %v417
      %v517 = vunpack.c.l.b16 %v418
      %v518 = vunpack.c.l.b16 %v419
      %v519 = vunpack.c.l.b16 %v420
      %v520 = vunpack.c.l.b16 %v421
      %v521 = vunpack.c.l.b16 %v422
      %v522 = vunpack.c.l.b16 %v423
      %v523 = vunpack.c.l.b16 %v424
      %v524 = vunpack.c.l.b16 %v425
      %v525 = vunpack.c.l.b16 %v426
      %v526 = vunpack.c.l.b16 %v427
      %v527 = vunpack.c.l.b16 %v428
      %v528 = vunpack.c.l.b16 %v429
      %v529 = vunpack.c.l.b16 %v430
      %v530 = vunpack.c.l.b16 %v431
      %v531 = vunpack.c.l.b16 %v432
      %v532 = vunpack.c.l.b16 %v433
      %v533 = vunpack.c.l.b16 %v434
      %v534 = vunpack.c.l.b16 %v435
      %v535 = vunpack.c.l.b16 %v436
      %v536 = vunpack.c.l.b16 %v437
      %v537 = vunpack.c.l.b16 %v438
      %v538 = vunpack.c.l.b16 %v439
      %v539 = vunpack.c.l.b16 %v440
      %v540 = vunpack.c.l.b16 %v441
      %v541 = vunpack.c.l.b16 %v442
      %v542 = vunpack.c.l.b16 %v443
      %v543 = vunpack.c.l.b16 %v444
      %v544 = vunpack.c.l.b16 %v445
      %v545 = vunpack.c.l.b16 %v446
      %v546 = vunpack.c.l.b16 %v447
      %v547 = vunpack.c.l.b16 %v448
      %v548 = vunpack.c.l.b16 %v449
      %v549 = vunpack.c.l.b16 %v450
      %v550 = vunpack.c.l.b16 %v451
      %v551 = vunpack.c.l.b16 %v452
      %v552 = vunpack.c.l.b16 %v453
      %v553 = vunpack.c.l.b16 %v454
      %v554 = vunpack.c.l.b16 %v455
      %v555 = vunpack.c.l.b16 %v456
      %v556 = vpack.c.b16 %v509, %v508
      %v557 = vpack.c.b16 %v511, %v510
      %v558 = vpack.c.b16 %v513, %v512
      %v559 = vpack.c.b16 %v515, %v514
      %v560 = vpack.c.b16 %v517, %v516
      %v561 = vpack.c.b16 %v519, %v518
      %v562 = vpack.c.b16 %v521, %v520
      %v563 = vpack.c.b16 %v523, %v522
      %v564 = vpack.c.b16 %v525, %v524
      %v565 = vpack.c.b16 %v527, %v526
      %v566 = vpack.c.b16 %v529, %v528
      %v567 = vpack.c.b16 %v531, %v530
      %v568 = vpack.c.b16 %v533, %v532
      %v569 = vpack.c.b16 %v535, %v534
      %v570 = vpack.c.b16 %v537, %v536
      %v571 = vpack.c.b16 %v539, %v538
      %v572 = vpack.c.b16 %v541, %v540
      %v573 = vpack.c.b16 %v543, %v542
      %v574 = vpack.c.b16 %v545, %v544
      %v575 = vpack.c.b16 %v547, %v546
      %v576 = vpack.c.b16 %v549, %v548
      %v577 = vpack.c.b16 %v551, %v550
      %v578 = vpack.c.b16 %v553, %v552
      %v579 = vpack.c.b16 %v555, %v554
      %vm580 = vcmask 31744
      %v582 = vsel %vm580, %v556, 0
      %v585 = vsel %vm580, %v557, 0
      %v588 = vsel %vm580, %v558, 0
      %v591 = vsel %vm580, %v559, 0
      %v594 = vsel %vm580, %v560, 0
      %v597 = vsel %vm580, %v561, 0
      %v600 = vsel %vm580, %v562, 0
      %v603 = vsel %vm580, %v563, 0
      %v606 = vsel %vm580, %v564, 0
      %v609 = vsel %vm580, %v565, 0
      %v612 = vsel %vm580, %v566, 0
      %v615 = vsel %vm580, %v567, 0
      %v618 = vsel %vm580, %v568, 0
      %v621 = vsel %vm580, %v569, 0
      %v624 = vsel %vm580, %v570, 0
      %v627 = vsel %vm580, %v571, 0
      %v630 = vsel %vm580, %v572, 0
      %v633 = vsel %vm580, %v573, 0
      %v636 = vsel %vm580, %v574, 0
      %v639 = vsel %vm580, %v575, 0
      %v642 = vsel %vm580, %v576, 0
      %v645 = vsel %vm580, %v577, 0
      %v648 = vsel %vm580, %v578, 0
      %v651 = vsel %vm580, %v579, 0
      %vm653 = vcmask 1041408
      %v655 = vsel %vm653, %v459, 0
      %657 = vmatprep.subr.bf16.mxu0 0
      %658 = vmatpush1.bf16.msra.mxu0 0
      %659 = vmatprep.subr.bf16.mxu0 0
      %660 = vmatpush1.bf16.msra.mxu0 0
      %661 = vmatprep.subr.bf16.mxu0 0
      %662 = vmatpush1.bf16.msra.mxu0 0
      %663 = vmatprep.subr.bf16.mxu0 0
      %664 = vmatpush1.bf16.msra.mxu0 0
      %665 = vmatprep.subr.bf16.mxu0 0
      %666 = vmatpush1.bf16.msra.mxu0 0
      %667 = vmatprep.subr.bf16.mxu0 0
      %668 = vmatpush1.bf16.msra.mxu0 0
      %669 = vmatprep.subr.bf16.mxu0 0
      %670 = vmatpush1.bf16.msra.mxu0 0
      %671 = vmatprep.subr.bf16.mxu0 0
      %672 = vmatpush1.bf16.msra.mxu0 %v655
      %673 = vmatprep.subr.bf16.mxu0 0
      %674 = vmatpush2.bf16.msra.mxu0 0
      %675 = vmatprep.subr.bf16.mxu0 0
      %676 = vmatpush2.bf16.msra.mxu0 0
      %677 = vmatprep.subr.bf16.mxu0 0
      %678 = vmatpush2.bf16.msra.mxu0 0
      %679 = vmatprep.subr.bf16.mxu0 0
      %680 = vmatpush2.bf16.msra.mxu0 0
      %681 = vmatprep.subr.bf16.mxu0 0
      %682 = vmatpush2.bf16.msra.mxu0 0
      %683 = vmatprep.subr.bf16.mxu0 0
      %684 = vmatpush2.bf16.msra.mxu0 0
      %685 = vmatprep.subr.bf16.mxu0 0
      %686 = vmatpush2.bf16.msra.mxu0 0
      %687 = vmatprep.subr.bf16.mxu0 0
      %688 = vmatpush2.bf16.msra.mxu0 0
      %689 = vmatprep.mubr.bf16.mxu0 0
      %690 = vmatmul.mubr.bf16.gmra.mxu0 %v582
      %v691 = vpop.f32.mrf.mxu0
      %v692 = vadd.f32 0.0, %v691
      %v693 = vpop.f32.mrf.mxu0
      %v694 = vpop.f32.mrf.mxu0
      %v695 = vadd.f32 0.0, %v694
      %v696 = vpop.f32.mrf.mxu0
      %697 = vmatprep.mubr.bf16.mxu0 0
      %698 = vmatmul.mubr.bf16.gmra.mxu0 %v585
      %v699 = vpop.f32.mrf.mxu0
      %v700 = vadd.f32 0.0, %v699
      %v701 = vpop.f32.mrf.mxu0
      %v702 = vpop.f32.mrf.mxu0
      %v703 = vadd.f32 0.0, %v702
      %v704 = vpop.f32.mrf.mxu0
      %705 = vmatprep.mubr.bf16.mxu0 0
      %706 = vmatmul.mubr.bf16.gmra.mxu0 %v588
      %v707 = vpop.f32.mrf.mxu0
      %v708 = vadd.f32 0.0, %v707
      %v709 = vpop.f32.mrf.mxu0
      %v710 = vpop.f32.mrf.mxu0
      %v711 = vadd.f32 0.0, %v710
      %v712 = vpop.f32.mrf.mxu0
      %713 = vmatprep.mubr.bf16.mxu0 0
      %714 = vmatmul.mubr.bf16.gmra.mxu0 %v591
      %v715 = vpop.f32.mrf.mxu0
      %v716 = vadd.f32 0.0, %v715
      %v717 = vpop.f32.mrf.mxu0
      %v718 = vpop.f32.mrf.mxu0
      %v719 = vadd.f32 0.0, %v718
      %v720 = vpop.f32.mrf.mxu0
      %721 = vmatprep.mubr.bf16.mxu0 0
      %722 = vmatmul.mubr.bf16.gmra.mxu0 %v594
      %v723 = vpop.f32.mrf.mxu0
      %v724 = vadd.f32 0.0, %v723
      %v725 = vpop.f32.mrf.mxu0
      %v726 = vpop.f32.mrf.mxu0
      %v727 = vadd.f32 0.0, %v726
      %v728 = vpop.f32.mrf.mxu0
      %729 = vmatprep.mubr.bf16.mxu0 0
      %730 = vmatmul.mubr.bf16.gmra.mxu0 %v597
      %v731 = vpop.f32.mrf.mxu0
      %v732 = vadd.f32 0.0, %v731
      %v733 = vpop.f32.mrf.mxu0
      %v734 = vpop.f32.mrf.mxu0
      %v735 = vadd.f32 0.0, %v734
      %v736 = vpop.f32.mrf.mxu0
      %737 = vmatprep.mubr.bf16.mxu0 0
      %738 = vmatmul.mubr.bf16.gmra.mxu0 %v600
      %v739 = vpop.f32.mrf.mxu0
      %v740 = vadd.f32 0.0, %v739
      %v741 = vpop.f32.mrf.mxu0
      %v742 = vpop.f32.mrf.mxu0
      %v743 = vadd.f32 0.0, %v742
      %v744 = vpop.f32.mrf.mxu0
      %745 = vmatprep.mubr.bf16.mxu0 0
      %746 = vmatmul.mubr.bf16.gmra.mxu0 %v603
      %v747 = vpop.f32.mrf.mxu0
      %v748 = vadd.f32 0.0, %v747
      %v749 = vpop.f32.mrf.mxu0
      %v750 = vpop.f32.mrf.mxu0
      %v751 = vadd.f32 0.0, %v750
      %v752 = vpop.f32.mrf.mxu0
      %753 = vmatprep.mubr.bf16.mxu0 0
      %754 = vmatmul.mubr.bf16.gmra.mxu0 %v606
      %v755 = vpop.f32.mrf.mxu0
      %v756 = vadd.f32 0.0, %v755
      %v757 = vpop.f32.mrf.mxu0
      %v758 = vpop.f32.mrf.mxu0
      %v759 = vadd.f32 0.0, %v758
      %v760 = vpop.f32.mrf.mxu0
      %761 = vmatprep.mubr.bf16.mxu0 0
      %762 = vmatmul.mubr.bf16.gmra.mxu0 %v609
      %v763 = vpop.f32.mrf.mxu0
      %v764 = vadd.f32 0.0, %v763
      %v765 = vpop.f32.mrf.mxu0
      %v766 = vpop.f32.mrf.mxu0
      %v767 = vadd.f32 0.0, %v766
      %v768 = vpop.f32.mrf.mxu0
      %769 = vmatprep.mubr.bf16.mxu0 0
      %770 = vmatmul.mubr.bf16.gmra.mxu0 %v612
      %v771 = vpop.f32.mrf.mxu0
      %v772 = vadd.f32 0.0, %v771
      %v773 = vpop.f32.mrf.mxu0
      %v774 = vpop.f32.mrf.mxu0
      %v775 = vadd.f32 0.0, %v774
      %v776 = vpop.f32.mrf.mxu0
      %777 = vmatprep.mubr.bf16.mxu0 0
      %778 = vmatmul.mubr.bf16.gmra.mxu0 %v615
      %v779 = vpop.f32.mrf.mxu0
      %v780 = vadd.f32 0.0, %v779
      %v781 = vpop.f32.mrf.mxu0
      %v782 = vpop.f32.mrf.mxu0
      %v783 = vadd.f32 0.0, %v782
      %v784 = vpop.f32.mrf.mxu0
      %785 = vmatprep.mubr.bf16.mxu0 0
      %786 = vmatmul.mubr.bf16.gmra.mxu0 %v618
      %v787 = vpop.f32.mrf.mxu0
      %v788 = vadd.f32 0.0, %v787
      %v789 = vpop.f32.mrf.mxu0
      %v790 = vpop.f32.mrf.mxu0
      %v791 = vadd.f32 0.0, %v790
      %v792 = vpop.f32.mrf.mxu0
      %793 = vmatprep.mubr.bf16.mxu0 0
      %794 = vmatmul.mubr.bf16.gmra.mxu0 %v621
      %v795 = vpop.f32.mrf.mxu0
      %v796 = vadd.f32 0.0, %v795
      %v797 = vpop.f32.mrf.mxu0
      %v798 = vpop.f32.mrf.mxu0
      %v799 = vadd.f32 0.0, %v798
      %v800 = vpop.f32.mrf.mxu0
      %801 = vmatprep.mubr.bf16.mxu0 0
      %802 = vmatmul.mubr.bf16.gmra.mxu0 %v624
      %v803 = vpop.f32.mrf.mxu0
      %v804 = vadd.f32 0.0, %v803
      %v805 = vpop.f32.mrf.mxu0
      %v806 = vpop.f32.mrf.mxu0
      %v807 = vadd.f32 0.0, %v806
      %v808 = vpop.f32.mrf.mxu0
      %809 = vmatprep.mubr.bf16.mxu0 0
      %810 = vmatmul.mubr.bf16.gmra.mxu0 %v627
      %v811 = vpop.f32.mrf.mxu0
      %v812 = vadd.f32 0.0, %v811
      %v813 = vpop.f32.mrf.mxu0
      %v814 = vpop.f32.mrf.mxu0
      %v815 = vadd.f32 0.0, %v814
      %v816 = vpop.f32.mrf.mxu0
      %817 = vmatprep.mubr.bf16.mxu0 0
      %818 = vmatmul.mubr.bf16.gmra.mxu0 %v630
      %v819 = vpop.f32.mrf.mxu0
      %v820 = vadd.f32 0.0, %v819
      %v821 = vpop.f32.mrf.mxu0
      %v822 = vpop.f32.mrf.mxu0
      %v823 = vadd.f32 0.0, %v822
      %v824 = vpop.f32.mrf.mxu0
      %825 = vmatprep.mubr.bf16.mxu0 0
      %826 = vmatmul.mubr.bf16.gmra.mxu0 %v633
      %v827 = vpop.f32.mrf.mxu0
      %v828 = vadd.f32 0.0, %v827
      %v829 = vpop.f32.mrf.mxu0
      %v830 = vpop.f32.mrf.mxu0
      %v831 = vadd.f32 0.0, %v830
      %v832 = vpop.f32.mrf.mxu0
      %833 = vmatprep.mubr.bf16.mxu0 0
      %834 = vmatmul.mubr.bf16.gmra.mxu0 %v636
      %v835 = vpop.f32.mrf.mxu0
      %v836 = vadd.f32 0.0, %v835
      %v837 = vpop.f32.mrf.mxu0
      %v838 = vpop.f32.mrf.mxu0
      %v839 = vadd.f32 0.0, %v838
      %v840 = vpop.f32.mrf.mxu0
      %841 = vmatprep.mubr.bf16.mxu0 0
      %842 = vmatmul.mubr.bf16.gmra.mxu0 %v639
      %v843 = vpop.f32.mrf.mxu0
      %v844 = vadd.f32 0.0, %v843
      %v845 = vpop.f32.mrf.mxu0
      %v846 = vpop.f32.mrf.mxu0
      %v847 = vadd.f32 0.0, %v846
      %v848 = vpop.f32.mrf.mxu0
      %849 = vmatprep.mubr.bf16.mxu0 0
      %850 = vmatmul.mubr.bf16.gmra.mxu0 %v642
      %v851 = vpop.f32.mrf.mxu0
      %v852 = vadd.f32 0.0, %v851
      %v853 = vpop.f32.mrf.mxu0
      %v854 = vpop.f32.mrf.mxu0
      %v855 = vadd.f32 0.0, %v854
      %v856 = vpop.f32.mrf.mxu0
      %857 = vmatprep.mubr.bf16.mxu0 0
      %858 = vmatmul.mubr.bf16.gmra.mxu0 %v645
      %v859 = vpop.f32.mrf.mxu0
      %v860 = vadd.f32 0.0, %v859
      %v861 = vpop.f32.mrf.mxu0
      %v862 = vpop.f32.mrf.mxu0
      %v863 = vadd.f32 0.0, %v862
      %v864 = vpop.f32.mrf.mxu0
      %865 = vmatprep.mubr.bf16.mxu0 0
      %866 = vmatmul.mubr.bf16.gmra.mxu0 %v648
      %v867 = vpop.f32.mrf.mxu0
      %v868 = vadd.f32 0.0, %v867
      %v869 = vpop.f32.mrf.mxu0
      %v870 = vpop.f32.mrf.mxu0
      %v871 = vadd.f32 0.0, %v870
      %v872 = vpop.f32.mrf.mxu0
      %873 = vmatprep.mubr.bf16.mxu0 0
      %874 = vmatmul.mubr.bf16.gmra.mxu0 %v651
      %v875 = vpop.f32.mrf.mxu0
      %v876 = vadd.f32 0.0, %v875
      %v877 = vpop.f32.mrf.mxu0
      %v878 = vpop.f32.mrf.mxu0
      %v879 = vadd.f32 0.0, %v878
      %v880 = vpop.f32.mrf.mxu0
      %881 = vdwg.mxu0
      %v883 = vunpack.c.l.b16 %v408
      %v884 = vpack.c.b16 %v508, %v883
      %v885 = vpack.c.b16 %v510, %v509
      %v886 = vpack.c.b16 %v512, %v511
      %v887 = vpack.c.b16 %v514, %v513
      %v888 = vpack.c.b16 %v516, %v515
      %v889 = vpack.c.b16 %v518, %v517
      %v890 = vpack.c.b16 %v520, %v519
      %v891 = vpack.c.b16 %v522, %v521
      %v892 = vpack.c.b16 %v524, %v523
      %v893 = vpack.c.b16 %v526, %v525
      %v894 = vpack.c.b16 %v528, %v527
      %v895 = vpack.c.b16 %v530, %v529
      %v896 = vpack.c.b16 %v532, %v531
      %v897 = vpack.c.b16 %v534, %v533
      %v898 = vpack.c.b16 %v536, %v535
      %v899 = vpack.c.b16 %v538, %v537
      %v900 = vpack.c.b16 %v540, %v539
      %v901 = vpack.c.b16 %v542, %v541
      %v902 = vpack.c.b16 %v544, %v543
      %v903 = vpack.c.b16 %v546, %v545
      %v904 = vpack.c.b16 %v548, %v547
      %v905 = vpack.c.b16 %v550, %v549
      %v906 = vpack.c.b16 %v552, %v551
      %v907 = vpack.c.b16 %v554, %v553
      %v908 = vpack.c.b16 %v555, %v555
      %vm909 = vsmask.f32 4352
      %v911 = vshrl.u32 %v884, 16
      %v913 = vrot.slane %v911, 3
      %v914 = vshll.u32 %v884, 16
      %v916 = vrot.slane %v914, 4
      %v917 = vor.u32 %v913, %v916
      %v919 = vshrl.u32 %v885, 16
      %v921 = vrot.slane %v919, 3
      %v922 = vshll.u32 %v885, 16
      %v924 = vrot.slane %v922, 4
      %v925 = vor.u32 %v921, %v924
      %v926 = vsel %vm909, %v917, %v925
      %v928 = vshrl.u32 %v886, 16
      %v930 = vrot.slane %v928, 3
      %v931 = vshll.u32 %v886, 16
      %v933 = vrot.slane %v931, 4
      %v934 = vor.u32 %v930, %v933
      %v935 = vsel %vm909, %v925, %v934
      %v937 = vshrl.u32 %v887, 16
      %v939 = vrot.slane %v937, 3
      %v940 = vshll.u32 %v887, 16
      %v942 = vrot.slane %v940, 4
      %v943 = vor.u32 %v939, %v942
      %v944 = vsel %vm909, %v934, %v943
      %v946 = vshrl.u32 %v888, 16
      %v948 = vrot.slane %v946, 3
      %v949 = vshll.u32 %v888, 16
      %v951 = vrot.slane %v949, 4
      %v952 = vor.u32 %v948, %v951
      %v953 = vsel %vm909, %v943, %v952
      %v955 = vshrl.u32 %v889, 16
      %v957 = vrot.slane %v955, 3
      %v958 = vshll.u32 %v889, 16
      %v960 = vrot.slane %v958, 4
      %v961 = vor.u32 %v957, %v960
      %v962 = vsel %vm909, %v952, %v961
      %v964 = vshrl.u32 %v890, 16
      %v966 = vrot.slane %v964, 3
      %v967 = vshll.u32 %v890, 16
      %v969 = vrot.slane %v967, 4
      %v970 = vor.u32 %v966, %v969
      %v971 = vsel %vm909, %v961, %v970
      %v973 = vshrl.u32 %v891, 16
      %v975 = vrot.slane %v973, 3
      %v976 = vshll.u32 %v891, 16
      %v978 = vrot.slane %v976, 4
      %v979 = vor.u32 %v975, %v978
      %v980 = vsel %vm909, %v970, %v979
      %v982 = vshrl.u32 %v892, 16
      %v984 = vrot.slane %v982, 3
      %v985 = vshll.u32 %v892, 16
      %v987 = vrot.slane %v985, 4
      %v988 = vor.u32 %v984, %v987
      %v989 = vsel %vm909, %v979, %v988
      %v991 = vshrl.u32 %v893, 16
      %v993 = vrot.slane %v991, 3
      %v994 = vshll.u32 %v893, 16
      %v996 = vrot.slane %v994, 4
      %v997 = vor.u32 %v993, %v996
      %v998 = vsel %vm909, %v988, %v997
      %v1000 = vshrl.u32 %v894, 16
      %v1002 = vrot.slane %v1000, 3
      %v1003 = vshll.u32 %v894, 16
      %v1005 = vrot.slane %v1003, 4
      %v1006 = vor.u32 %v1002, %v1005
      %v1007 = vsel %vm909, %v997, %v1006
      %v1009 = vshrl.u32 %v895, 16
      %v1011 = vrot.slane %v1009, 3
      %v1012 = vshll.u32 %v895, 16
      %v1014 = vrot.slane %v1012, 4
      %v1015 = vor.u32 %v1011, %v1014
      %v1016 = vsel %vm909, %v1006, %v1015
      %v1018 = vshrl.u32 %v896, 16
      %v1020 = vrot.slane %v1018, 3
      %v1021 = vshll.u32 %v896, 16
      %v1023 = vrot.slane %v1021, 4
      %v1024 = vor.u32 %v1020, %v1023
      %v1025 = vsel %vm909, %v1015, %v1024
      %v1027 = vshrl.u32 %v897, 16
      %v1029 = vrot.slane %v1027, 3
      %v1030 = vshll.u32 %v897, 16
      %v1032 = vrot.slane %v1030, 4
      %v1033 = vor.u32 %v1029, %v1032
      %v1034 = vsel %vm909, %v1024, %v1033
      %v1036 = vshrl.u32 %v898, 16
      %v1038 = vrot.slane %v1036, 3
      %v1039 = vshll.u32 %v898, 16
      %v1041 = vrot.slane %v1039, 4
      %v1042 = vor.u32 %v1038, %v1041
      %v1043 = vsel %vm909, %v1033, %v1042
      %v1045 = vshrl.u32 %v899, 16
      %v1047 = vrot.slane %v1045, 3
      %v1048 = vshll.u32 %v899, 16
      %v1050 = vrot.slane %v1048, 4
      %v1051 = vor.u32 %v1047, %v1050
      %v1052 = vsel %vm909, %v1042, %v1051
      %v1054 = vshrl.u32 %v900, 16
      %v1056 = vrot.slane %v1054, 3
      %v1057 = vshll.u32 %v900, 16
      %v1059 = vrot.slane %v1057, 4
      %v1060 = vor.u32 %v1056, %v1059
      %v1061 = vsel %vm909, %v1051, %v1060
      %v1063 = vshrl.u32 %v901, 16
      %v1065 = vrot.slane %v1063, 3
      %v1066 = vshll.u32 %v901, 16
      %v1068 = vrot.slane %v1066, 4
      %v1069 = vor.u32 %v1065, %v1068
      %v1070 = vsel %vm909, %v1060, %v1069
      %v1072 = vshrl.u32 %v902, 16
      %v1074 = vrot.slane %v1072, 3
      %v1075 = vshll.u32 %v902, 16
      %v1077 = vrot.slane %v1075, 4
      %v1078 = vor.u32 %v1074, %v1077
      %v1079 = vsel %vm909, %v1069, %v1078
      %v1081 = vshrl.u32 %v903, 16
      %v1083 = vrot.slane %v1081, 3
      %v1084 = vshll.u32 %v903, 16
      %v1086 = vrot.slane %v1084, 4
      %v1087 = vor.u32 %v1083, %v1086
      %v1088 = vsel %vm909, %v1078, %v1087
      %v1090 = vshrl.u32 %v904, 16
      %v1092 = vrot.slane %v1090, 3
      %v1093 = vshll.u32 %v904, 16
      %v1095 = vrot.slane %v1093, 4
      %v1096 = vor.u32 %v1092, %v1095
      %v1097 = vsel %vm909, %v1087, %v1096
      %v1099 = vshrl.u32 %v905, 16
      %v1101 = vrot.slane %v1099, 3
      %v1102 = vshll.u32 %v905, 16
      %v1104 = vrot.slane %v1102, 4
      %v1105 = vor.u32 %v1101, %v1104
      %v1106 = vsel %vm909, %v1096, %v1105
      %v1108 = vshrl.u32 %v906, 16
      %v1110 = vrot.slane %v1108, 3
      %v1111 = vshll.u32 %v906, 16
      %v1113 = vrot.slane %v1111, 4
      %v1114 = vor.u32 %v1110, %v1113
      %v1115 = vsel %vm909, %v1105, %v1114
      %v1117 = vshrl.u32 %v907, 16
      %v1119 = vrot.slane %v1117, 3
      %v1120 = vshll.u32 %v907, 16
      %v1122 = vrot.slane %v1120, 4
      %v1123 = vor.u32 %v1119, %v1122
      %v1124 = vsel %vm909, %v1114, %v1123
      %v1126 = vshrl.u32 %v908, 16
      %v1128 = vrot.slane %v1126, 3
      %v1129 = vshll.u32 %v908, 16
      %v1131 = vrot.slane %v1129, 4
      %v1132 = vor.u32 %v1128, %v1131
      %v1133 = vsel %vm909, %v1123, %v1132
      %v1135 = vsel %vm580, %v926, 0
      %v1138 = vsel %vm580, %v935, 0
      %v1141 = vsel %vm580, %v944, 0
      %v1144 = vsel %vm580, %v953, 0
      %v1147 = vsel %vm580, %v962, 0
      %v1150 = vsel %vm580, %v971, 0
      %v1153 = vsel %vm580, %v980, 0
      %v1156 = vsel %vm580, %v989, 0
      %v1159 = vsel %vm580, %v998, 0
      %v1162 = vsel %vm580, %v1007, 0
      %v1165 = vsel %vm580, %v1016, 0
      %v1168 = vsel %vm580, %v1025, 0
      %v1171 = vsel %vm580, %v1034, 0
      %v1174 = vsel %vm580, %v1043, 0
      %v1177 = vsel %vm580, %v1052, 0
      %v1180 = vsel %vm580, %v1061, 0
      %v1183 = vsel %vm580, %v1070, 0
      %v1186 = vsel %vm580, %v1079, 0
      %v1189 = vsel %vm580, %v1088, 0
      %v1192 = vsel %vm580, %v1097, 0
      %v1195 = vsel %vm580, %v1106, 0
      %v1198 = vsel %vm580, %v1115, 0
      %v1201 = vsel %vm580, %v1124, 0
      %v1204 = vsel %vm580, %v1133, 0
      %v1207 = vsel %vm653, %v457, 0
      %1209 = vmatprep.subr.bf16.mxu0 0
      %1210 = vmatpush1.bf16.msra.mxu0 0
      %1211 = vmatprep.subr.bf16.mxu0 0
      %1212 = vmatpush1.bf16.msra.mxu0 0
      %1213 = vmatprep.subr.bf16.mxu0 0
      %1214 = vmatpush1.bf16.msra.mxu0 0
      %1215 = vmatprep.subr.bf16.mxu0 0
      %1216 = vmatpush1.bf16.msra.mxu0 0
      %1217 = vmatprep.subr.bf16.mxu0 0
      %1218 = vmatpush1.bf16.msra.mxu0 0
      %1219 = vmatprep.subr.bf16.mxu0 0
      %1220 = vmatpush1.bf16.msra.mxu0 0
      %1221 = vmatprep.subr.bf16.mxu0 0
      %1222 = vmatpush1.bf16.msra.mxu0 0
      %1223 = vmatprep.subr.bf16.mxu0 0
      %1224 = vmatpush1.bf16.msra.mxu0 %v1207
      %1225 = vmatprep.subr.bf16.mxu0 0
      %1226 = vmatpush2.bf16.msra.mxu0 0
      %1227 = vmatprep.subr.bf16.mxu0 0
      %1228 = vmatpush2.bf16.msra.mxu0 0
      %1229 = vmatprep.subr.bf16.mxu0 0
      %1230 = vmatpush2.bf16.msra.mxu0 0
      %1231 = vmatprep.subr.bf16.mxu0 0
      %1232 = vmatpush2.bf16.msra.mxu0 0
      %1233 = vmatprep.subr.bf16.mxu0 0
      %1234 = vmatpush2.bf16.msra.mxu0 0
      %1235 = vmatprep.subr.bf16.mxu0 0
      %1236 = vmatpush2.bf16.msra.mxu0 0
      %1237 = vmatprep.subr.bf16.mxu0 0
      %1238 = vmatpush2.bf16.msra.mxu0 0
      %1239 = vmatprep.subr.bf16.mxu0 0
      %1240 = vmatpush2.bf16.msra.mxu0 0
      %1241 = vmatprep.mubr.bf16.mxu0 0
      %1242 = vmatmul.mubr.bf16.gmra.mxu0 %v1135
      %v1243 = vpop.f32.mrf.mxu0
      %v1244 = vadd.f32 %v692, %v1243
      %v1245 = vpop.f32.mrf.mxu0
      %v1246 = vpop.f32.mrf.mxu0
      %v1247 = vadd.f32 %v695, %v1246
      %v1248 = vpop.f32.mrf.mxu0
      %1249 = vmatprep.mubr.bf16.mxu0 0
      %1250 = vmatmul.mubr.bf16.gmra.mxu0 %v1138
      %v1251 = vpop.f32.mrf.mxu0
      %v1252 = vadd.f32 %v700, %v1251
      %v1253 = vpop.f32.mrf.mxu0
      %v1254 = vpop.f32.mrf.mxu0
      %v1255 = vadd.f32 %v703, %v1254
      %v1256 = vpop.f32.mrf.mxu0
      %1257 = vmatprep.mubr.bf16.mxu0 0
      %1258 = vmatmul.mubr.bf16.gmra.mxu0 %v1141
      %v1259 = vpop.f32.mrf.mxu0
      %v1260 = vadd.f32 %v708, %v1259
      %v1261 = vpop.f32.mrf.mxu0
      %v1262 = vpop.f32.mrf.mxu0
      %v1263 = vadd.f32 %v711, %v1262
      %v1264 = vpop.f32.mrf.mxu0
      %1265 = vmatprep.mubr.bf16.mxu0 0
      %1266 = vmatmul.mubr.bf16.gmra.mxu0 %v1144
      %v1267 = vpop.f32.mrf.mxu0
      %v1268 = vadd.f32 %v716, %v1267
      %v1269 = vpop.f32.mrf.mxu0
      %v1270 = vpop.f32.mrf.mxu0
      %v1271 = vadd.f32 %v719, %v1270
      %v1272 = vpop.f32.mrf.mxu0
      %1273 = vmatprep.mubr.bf16.mxu0 0
      %1274 = vmatmul.mubr.bf16.gmra.mxu0 %v1147
      %v1275 = vpop.f32.mrf.mxu0
      %v1276 = vadd.f32 %v724, %v1275
      %v1277 = vpop.f32.mrf.mxu0
      %v1278 = vpop.f32.mrf.mxu0
      %v1279 = vadd.f32 %v727, %v1278
      %v1280 = vpop.f32.mrf.mxu0
      %1281 = vmatprep.mubr.bf16.mxu0 0
      %1282 = vmatmul.mubr.bf16.gmra.mxu0 %v1150
      %v1283 = vpop.f32.mrf.mxu0
      %v1284 = vadd.f32 %v732, %v1283
      %v1285 = vpop.f32.mrf.mxu0
      %v1286 = vpop.f32.mrf.mxu0
      %v1287 = vadd.f32 %v735, %v1286
      %v1288 = vpop.f32.mrf.mxu0
      %1289 = vmatprep.mubr.bf16.mxu0 0
      %1290 = vmatmul.mubr.bf16.gmra.mxu0 %v1153
      %v1291 = vpop.f32.mrf.mxu0
      %v1292 = vadd.f32 %v740, %v1291
      %v1293 = vpop.f32.mrf.mxu0
      %v1294 = vpop.f32.mrf.mxu0
      %v1295 = vadd.f32 %v743, %v1294
      %v1296 = vpop.f32.mrf.mxu0
      %1297 = vmatprep.mubr.bf16.mxu0 0
      %1298 = vmatmul.mubr.bf16.gmra.mxu0 %v1156
      %v1299 = vpop.f32.mrf.mxu0
      %v1300 = vadd.f32 %v748, %v1299
      %v1301 = vpop.f32.mrf.mxu0
      %v1302 = vpop.f32.mrf.mxu0
      %v1303 = vadd.f32 %v751, %v1302
      %v1304 = vpop.f32.mrf.mxu0
      %1305 = vmatprep.mubr.bf16.mxu0 0
      %1306 = vmatmul.mubr.bf16.gmra.mxu0 %v1159
      %v1307 = vpop.f32.mrf.mxu0
      %v1308 = vadd.f32 %v756, %v1307
      %v1309 = vpop.f32.mrf.mxu0
      %v1310 = vpop.f32.mrf.mxu0
      %v1311 = vadd.f32 %v759, %v1310
      %v1312 = vpop.f32.mrf.mxu0
      %1313 = vmatprep.mubr.bf16.mxu0 0
      %1314 = vmatmul.mubr.bf16.gmra.mxu0 %v1162
      %v1315 = vpop.f32.mrf.mxu0
      %v1316 = vadd.f32 %v764, %v1315
      %v1317 = vpop.f32.mrf.mxu0
      %v1318 = vpop.f32.mrf.mxu0
      %v1319 = vadd.f32 %v767, %v1318
      %v1320 = vpop.f32.mrf.mxu0
      %1321 = vmatprep.mubr.bf16.mxu0 0
      %1322 = vmatmul.mubr.bf16.gmra.mxu0 %v1165
      %v1323 = vpop.f32.mrf.mxu0
      %v1324 = vadd.f32 %v772, %v1323
      %v1325 = vpop.f32.mrf.mxu0
      %v1326 = vpop.f32.mrf.mxu0
      %v1327 = vadd.f32 %v775, %v1326
      %v1328 = vpop.f32.mrf.mxu0
      %1329 = vmatprep.mubr.bf16.mxu0 0
      %1330 = vmatmul.mubr.bf16.gmra.mxu0 %v1168
      %v1331 = vpop.f32.mrf.mxu0
      %v1332 = vadd.f32 %v780, %v1331
      %v1333 = vpop.f32.mrf.mxu0
      %v1334 = vpop.f32.mrf.mxu0
      %v1335 = vadd.f32 %v783, %v1334
      %v1336 = vpop.f32.mrf.mxu0
      %1337 = vmatprep.mubr.bf16.mxu0 0
      %1338 = vmatmul.mubr.bf16.gmra.mxu0 %v1171
      %v1339 = vpop.f32.mrf.mxu0
      %v1340 = vadd.f32 %v788, %v1339
      %v1341 = vpop.f32.mrf.mxu0
      %v1342 = vpop.f32.mrf.mxu0
      %v1343 = vadd.f32 %v791, %v1342
      %v1344 = vpop.f32.mrf.mxu0
      %1345 = vmatprep.mubr.bf16.mxu0 0
      %1346 = vmatmul.mubr.bf16.gmra.mxu0 %v1174
      %v1347 = vpop.f32.mrf.mxu0
      %v1348 = vadd.f32 %v796, %v1347
      %v1349 = vpop.f32.mrf.mxu0
      %v1350 = vpop.f32.mrf.mxu0
      %v1351 = vadd.f32 %v799, %v1350
      %v1352 = vpop.f32.mrf.mxu0
      %1353 = vmatprep.mubr.bf16.mxu0 0
      %1354 = vmatmul.mubr.bf16.gmra.mxu0 %v1177
      %v1355 = vpop.f32.mrf.mxu0
      %v1356 = vadd.f32 %v804, %v1355
      %v1357 = vpop.f32.mrf.mxu0
      %v1358 = vpop.f32.mrf.mxu0
      %v1359 = vadd.f32 %v807, %v1358
      %v1360 = vpop.f32.mrf.mxu0
      %1361 = vmatprep.mubr.bf16.mxu0 0
      %1362 = vmatmul.mubr.bf16.gmra.mxu0 %v1180
      %v1363 = vpop.f32.mrf.mxu0
      %v1364 = vadd.f32 %v812, %v1363
      %v1365 = vpop.f32.mrf.mxu0
      %v1366 = vpop.f32.mrf.mxu0
      %v1367 = vadd.f32 %v815, %v1366
      %v1368 = vpop.f32.mrf.mxu0
      %1369 = vmatprep.mubr.bf16.mxu0 0
      %1370 = vmatmul.mubr.bf16.gmra.mxu0 %v1183
      %v1371 = vpop.f32.mrf.mxu0
      %v1372 = vadd.f32 %v820, %v1371
      %v1373 = vpop.f32.mrf.mxu0
      %v1374 = vpop.f32.mrf.mxu0
      %v1375 = vadd.f32 %v823, %v1374
      %v1376 = vpop.f32.mrf.mxu0
      %1377 = vmatprep.mubr.bf16.mxu0 0
      %1378 = vmatmul.mubr.bf16.gmra.mxu0 %v1186
      %v1379 = vpop.f32.mrf.mxu0
      %v1380 = vadd.f32 %v828, %v1379
      %v1381 = vpop.f32.mrf.mxu0
      %v1382 = vpop.f32.mrf.mxu0
      %v1383 = vadd.f32 %v831, %v1382
      %v1384 = vpop.f32.mrf.mxu0
      %1385 = vmatprep.mubr.bf16.mxu0 0
      %1386 = vmatmul.mubr.bf16.gmra.mxu0 %v1189
      %v1387 = vpop.f32.mrf.mxu0
      %v1388 = vadd.f32 %v836, %v1387
      %v1389 = vpop.f32.mrf.mxu0
      %v1390 = vpop.f32.mrf.mxu0
      %v1391 = vadd.f32 %v839, %v1390
      %v1392 = vpop.f32.mrf.mxu0
      %1393 = vmatprep.mubr.bf16.mxu0 0
      %1394 = vmatmul.mubr.bf16.gmra.mxu0 %v1192
      %v1395 = vpop.f32.mrf.mxu0
      %v1396 = vadd.f32 %v844, %v1395
      %v1397 = vpop.f32.mrf.mxu0
      %v1398 = vpop.f32.mrf.mxu0
      %v1399 = vadd.f32 %v847, %v1398
      %v1400 = vpop.f32.mrf.mxu0
      %1401 = vmatprep.mubr.bf16.mxu0 0
      %1402 = vmatmul.mubr.bf16.gmra.mxu0 %v1195
      %v1403 = vpop.f32.mrf.mxu0
      %v1404 = vadd.f32 %v852, %v1403
      %v1405 = vpop.f32.mrf.mxu0
      %v1406 = vpop.f32.mrf.mxu0
      %v1407 = vadd.f32 %v855, %v1406
      %v1408 = vpop.f32.mrf.mxu0
      %1409 = vmatprep.mubr.bf16.mxu0 0
      %1410 = vmatmul.mubr.bf16.gmra.mxu0 %v1198
      %v1411 = vpop.f32.mrf.mxu0
      %v1412 = vadd.f32 %v860, %v1411
      %v1413 = vpop.f32.mrf.mxu0
      %v1414 = vpop.f32.mrf.mxu0
      %v1415 = vadd.f32 %v863, %v1414
      %v1416 = vpop.f32.mrf.mxu0
      %1417 = vmatprep.mubr.bf16.mxu0 0
      %1418 = vmatmul.mubr.bf16.gmra.mxu0 %v1201
      %v1419 = vpop.f32.mrf.mxu0
      %v1420 = vadd.f32 %v868, %v1419
      %v1421 = vpop.f32.mrf.mxu0
      %v1422 = vpop.f32.mrf.mxu0
      %v1423 = vadd.f32 %v871, %v1422
      %v1424 = vpop.f32.mrf.mxu0
      %1425 = vmatprep.mubr.bf16.mxu0 0
      %1426 = vmatmul.mubr.bf16.gmra.mxu0 %v1204
      %v1427 = vpop.f32.mrf.mxu0
      %v1428 = vadd.f32 %v876, %v1427
      %v1429 = vpop.f32.mrf.mxu0
      %v1430 = vpop.f32.mrf.mxu0
      %v1431 = vadd.f32 %v879, %v1430
      %v1432 = vpop.f32.mrf.mxu0
      %1433 = vdwg.mxu0
      %v1434 = vld [vmem:[#allocation2 + $0x4] sm:$0xf]
      %v1435 = vld [vmem:[#allocation2 + $0x8] sm:$0xf]
      %v1436 = vld [vmem:[#allocation2 + $0xc] sm:$0xf]
      %v1437 = vld [vmem:[#allocation2 + $0x10] sm:$0xf]
      %v1438 = vld [vmem:[#allocation2 + $0x14] sm:$0xf]
      %v1439 = vld [vmem:[#allocation2 + $0x18] sm:$0xf]
      %v1440 = vld [vmem:[#allocation2 + $0x1c] sm:$0xf]
      %v1441 = vld [vmem:[#allocation2 + $0x20] sm:$0xf]
      %v1442 = vld [vmem:[#allocation2 + $0x24] sm:$0xf]
      %v1443 = vld [vmem:[#allocation2 + $0x28] sm:$0xf]
      %v1444 = vld [vmem:[#allocation2 + $0x2c] sm:$0xf]
      %v1445 = vld [vmem:[#allocation2 + $0x30] sm:$0xf]
      %v1446 = vld [vmem:[#allocation2 + $0x34] sm:$0xf]
      %v1447 = vld [vmem:[#allocation2 + $0x38] sm:$0xf]
      %v1448 = vld [vmem:[#allocation2 + $0x3c] sm:$0xf]
      %v1449 = vld [vmem:[#allocation2 + $0x40] sm:$0xf]
      %v1450 = vld [vmem:[#allocation2 + $0x44] sm:$0xf]
      %v1451 = vld [vmem:[#allocation2 + $0x48] sm:$0xf]
      %v1452 = vld [vmem:[#allocation2 + $0x4c] sm:$0xf]
      %v1453 = vld [vmem:[#allocation2 + $0x50] sm:$0xf]
      %v1454 = vld [vmem:[#allocation2 + $0x54] sm:$0xf]
      %v1455 = vld [vmem:[#allocation2 + $0x58] sm:$0xf]
      %v1456 = vld [vmem:[#allocation2 + $0x5c] sm:$0xf]
      %v1457 = vld [vmem:[#allocation2 + $0x60] sm:$0xf]
      %v1458 = vld [vmem:[#allocation2 + $0x64] sm:$0xf]
      %v1459 = vld [vmem:[#allocation2 + $0x68] sm:$0xf]
      %v1460 = vld [vmem:[#allocation2 + $0x6c] sm:$0xf]
      %v1461 = vld [vmem:[#allocation2 + $0x70] sm:$0xf]
      %v1462 = vld [vmem:[#allocation2 + $0x74] sm:$0xf]
      %v1463 = vld [vmem:[#allocation2 + $0x78] sm:$0xf]
      %v1464 = vld [vmem:[#allocation2 + $0x7c] sm:$0xf]
      %v1465 = vld [vmem:[#allocation2 + $0x80] sm:$0xf]
      %v1466 = vld [vmem:[#allocation2 + $0x84] sm:$0xf]
      %v1467 = vld [vmem:[#allocation2 + $0x88] sm:$0xf]
      %v1468 = vld [vmem:[#allocation2 + $0x8c] sm:$0xf]
      %v1469 = vld [vmem:[#allocation2 + $0x90] sm:$0xf]
      %v1470 = vld [vmem:[#allocation2 + $0x94] sm:$0xf]
      %v1471 = vld [vmem:[#allocation2 + $0x98] sm:$0xf]
      %v1472 = vld [vmem:[#allocation2 + $0x9c] sm:$0xf]
      %v1473 = vld [vmem:[#allocation2 + $0xa0] sm:$0xf]
      %v1474 = vld [vmem:[#allocation2 + $0xa4] sm:$0xf]
      %v1475 = vld [vmem:[#allocation2 + $0xa8] sm:$0xf]
      %v1476 = vld [vmem:[#allocation2 + $0xac] sm:$0xf]
      %v1477 = vld [vmem:[#allocation2 + $0xb0] sm:$0xf]
      %v1478 = vld [vmem:[#allocation2 + $0xb4] sm:$0xf]
      %v1479 = vld [vmem:[#allocation2 + $0xb8] sm:$0xf]
      %v1480 = vld [vmem:[#allocation2 + $0xbc] sm:$0xf]
      %v1481 = vld [vmem:[#allocation2 + $0xc0] sm:$0xf]
      %v1482 = vld [vmem:[#allocation2 + $0xc4] sm:$0x1]
      %s1483 = scalar_lea.vmem %s1, 4
      %v1484 = vld [vmem:[%s1483] sm:$0x3]
      %v1534 = vunpack.c.l.b16 %v1434
      %v1535 = vunpack.c.l.b16 %v1435
      %v1536 = vunpack.c.l.b16 %v1436
      %v1537 = vunpack.c.l.b16 %v1437
      %v1538 = vunpack.c.l.b16 %v1438
      %v1539 = vunpack.c.l.b16 %v1439
      %v1540 = vunpack.c.l.b16 %v1440
      %v1541 = vunpack.c.l.b16 %v1441
      %v1542 = vunpack.c.l.b16 %v1442
      %v1543 = vunpack.c.l.b16 %v1443
      %v1544 = vunpack.c.l.b16 %v1444
      %v1545 = vunpack.c.l.b16 %v1445
      %v1546 = vunpack.c.l.b16 %v1446
      %v1547 = vunpack.c.l.b16 %v1447
      %v1548 = vunpack.c.l.b16 %v1448
      %v1549 = vunpack.c.l.b16 %v1449
      %v1550 = vunpack.c.l.b16 %v1450
      %v1551 = vunpack.c.l.b16 %v1451
      %v1552 = vunpack.c.l.b16 %v1452
      %v1553 = vunpack.c.l.b16 %v1453
      %v1554 = vunpack.c.l.b16 %v1454
      %v1555 = vunpack.c.l.b16 %v1455
      %v1556 = vunpack.c.l.b16 %v1456
      %v1557 = vunpack.c.l.b16 %v1457
      %v1558 = vunpack.c.l.b16 %v1458
      %v1559 = vunpack.c.l.b16 %v1459
      %v1560 = vunpack.c.l.b16 %v1460
      %v1561 = vunpack.c.l.b16 %v1461
      %v1562 = vunpack.c.l.b16 %v1462
      %v1563 = vunpack.c.l.b16 %v1463
      %v1564 = vunpack.c.l.b16 %v1464
      %v1565 = vunpack.c.l.b16 %v1465
      %v1566 = vunpack.c.l.b16 %v1466
      %v1567 = vunpack.c.l.b16 %v1467
      %v1568 = vunpack.c.l.b16 %v1468
      %v1569 = vunpack.c.l.b16 %v1469
      %v1570 = vunpack.c.l.b16 %v1470
      %v1571 = vunpack.c.l.b16 %v1471
      %v1572 = vunpack.c.l.b16 %v1472
      %v1573 = vunpack.c.l.b16 %v1473
      %v1574 = vunpack.c.l.b16 %v1474
      %v1575 = vunpack.c.l.b16 %v1475
      %v1576 = vunpack.c.l.b16 %v1476
      %v1577 = vunpack.c.l.b16 %v1477
      %v1578 = vunpack.c.l.b16 %v1478
      %v1579 = vunpack.c.l.b16 %v1479
      %v1580 = vunpack.c.l.b16 %v1480
      %v1581 = vunpack.c.l.b16 %v1481
      %v1582 = vunpack.c.l.b16 %v1482
      %v1583 = vpack.c.b16 %v1535, %v1534
      %v1584 = vpack.c.b16 %v1537, %v1536
      %v1585 = vpack.c.b16 %v1539, %v1538
      %v1586 = vpack.c.b16 %v1541, %v1540
      %v1587 = vpack.c.b16 %v1543, %v1542
      %v1588 = vpack.c.b16 %v1545, %v1544
      %v1589 = vpack.c.b16 %v1547, %v1546
      %v1590 = vpack.c.b16 %v1549, %v1548
      %v1591 = vpack.c.b16 %v1551, %v1550
      %v1592 = vpack.c.b16 %v1553, %v1552
      %v1593 = vpack.c.b16 %v1555, %v1554
      %v1594 = vpack.c.b16 %v1557, %v1556
      %v1595 = vpack.c.b16 %v1559, %v1558
      %v1596 = vpack.c.b16 %v1561, %v1560
      %v1597 = vpack.c.b16 %v1563, %v1562
      %v1598 = vpack.c.b16 %v1565, %v1564
      %v1599 = vpack.c.b16 %v1567, %v1566
      %v1600 = vpack.c.b16 %v1569, %v1568
      %v1601 = vpack.c.b16 %v1571, %v1570
      %v1602 = vpack.c.b16 %v1573, %v1572
      %v1603 = vpack.c.b16 %v1575, %v1574
      %v1604 = vpack.c.b16 %v1577, %v1576
      %v1605 = vpack.c.b16 %v1579, %v1578
      %v1606 = vpack.c.b16 %v1581, %v1580
      %v1607 = vpack.c.b16 %v1582, %v1582
      %vm1608 = vsmask.f32 7424
      %v1610 = vshrl.u32 %v1583, 16
      %v1612 = vshll.u32 %v1583, 16
      %v1614 = vrot.slane %v1612, 1
      %v1615 = vor.u32 %v1610, %v1614
      %v1617 = vshll.u32 %v1584, 16
      %v1619 = vrot.slane %v1617, 1
      %v1620 = vsel %vm1608, %v1615, %v1619
      %v1621 = vshrl.u32 %v1584, 16
      %v1623 = vor.u32 %v1621, %v1619
      %v1625 = vshll.u32 %v1585, 16
      %v1627 = vrot.slane %v1625, 1
      %v1628 = vsel %vm1608, %v1623, %v1627
      %v1629 = vshrl.u32 %v1585, 16
      %v1631 = vor.u32 %v1629, %v1627
      %v1633 = vshll.u32 %v1586, 16
      %v1635 = vrot.slane %v1633, 1
      %v1636 = vsel %vm1608, %v1631, %v1635
      %v1637 = vshrl.u32 %v1586, 16
      %v1639 = vor.u32 %v1637, %v1635
      %v1641 = vshll.u32 %v1587, 16
      %v1643 = vrot.slane %v1641, 1
      %v1644 = vsel %vm1608, %v1639, %v1643
      %v1645 = vshrl.u32 %v1587, 16
      %v1647 = vor.u32 %v1645, %v1643
      %v1649 = vshll.u32 %v1588, 16
      %v1651 = vrot.slane %v1649, 1
      %v1652 = vsel %vm1608, %v1647, %v1651
      %v1653 = vshrl.u32 %v1588, 16
      %v1655 = vor.u32 %v1653, %v1651
      %v1657 = vshll.u32 %v1589, 16
      %v1659 = vrot.slane %v1657, 1
      %v1660 = vsel %vm1608, %v1655, %v1659
      %v1661 = vshrl.u32 %v1589, 16
      %v1663 = vor.u32 %v1661, %v1659
      %v1665 = vshll.u32 %v1590, 16
      %v1667 = vrot.slane %v1665, 1
      %v1668 = vsel %vm1608, %v1663, %v1667
      %v1669 = vshrl.u32 %v1590, 16
      %v1671 = vor.u32 %v1669, %v1667
      %v1673 = vshll.u32 %v1591, 16
      %v1675 = vrot.slane %v1673, 1
      %v1676 = vsel %vm1608, %v1671, %v1675
      %v1677 = vshrl.u32 %v1591, 16
      %v1679 = vor.u32 %v1677, %v1675
      %v1681 = vshll.u32 %v1592, 16
      %v1683 = vrot.slane %v1681, 1
      %v1684 = vsel %vm1608, %v1679, %v1683
      %v1685 = vshrl.u32 %v1592, 16
      %v1687 = vor.u32 %v1685, %v1683
      %v1689 = vshll.u32 %v1593, 16
      %v1691 = vrot.slane %v1689, 1
      %v1692 = vsel %vm1608, %v1687, %v1691
      %v1693 = vshrl.u32 %v1593, 16
      %v1695 = vor.u32 %v1693, %v1691
      %v1697 = vshll.u32 %v1594, 16
      %v1699 = vrot.slane %v1697, 1
      %v1700 = vsel %vm1608, %v1695, %v1699
      %v1701 = vshrl.u32 %v1594, 16
      %v1703 = vor.u32 %v1701, %v1699
      %v1705 = vshll.u32 %v1595, 16
      %v1707 = vrot.slane %v1705, 1
      %v1708 = vsel %vm1608, %v1703, %v1707
      %v1709 = vshrl.u32 %v1595, 16
      %v1711 = vor.u32 %v1709, %v1707
      %v1713 = vshll.u32 %v1596, 16
      %v1715 = vrot.slane %v1713, 1
      %v1716 = vsel %vm1608, %v1711, %v1715
      %v1717 = vshrl.u32 %v1596, 16
      %v1719 = vor.u32 %v1717, %v1715
      %v1721 = vshll.u32 %v1597, 16
      %v1723 = vrot.slane %v1721, 1
      %v1724 = vsel %vm1608, %v1719, %v1723
      %v1725 = vshrl.u32 %v1597, 16
      %v1727 = vor.u32 %v1725, %v1723
      %v1729 = vshll.u32 %v1598, 16
      %v1731 = vrot.slane %v1729, 1
      %v1732 = vsel %vm1608, %v1727, %v1731
      %v1733 = vshrl.u32 %v1598, 16
      %v1735 = vor.u32 %v1733, %v1731
      %v1737 = vshll.u32 %v1599, 16
      %v1739 = vrot.slane %v1737, 1
      %v1740 = vsel %vm1608, %v1735, %v1739
      %v1741 = vshrl.u32 %v1599, 16
      %v1743 = vor.u32 %v1741, %v1739
      %v1745 = vshll.u32 %v1600, 16
      %v1747 = vrot.slane %v1745, 1
      %v1748 = vsel %vm1608, %v1743, %v1747
      %v1749 = vshrl.u32 %v1600, 16
      %v1751 = vor.u32 %v1749, %v1747
      %v1753 = vshll.u32 %v1601, 16
      %v1755 = vrot.slane %v1753, 1
      %v1756 = vsel %vm1608, %v1751, %v1755
      %v1757 = vshrl.u32 %v1601, 16
      %v1759 = vor.u32 %v1757, %v1755
      %v1761 = vshll.u32 %v1602, 16
      %v1763 = vrot.slane %v1761, 1
      %v1764 = vsel %vm1608, %v1759, %v1763
      %v1765 = vshrl.u32 %v1602, 16
      %v1767 = vor.u32 %v1765, %v1763
      %v1769 = vshll.u32 %v1603, 16
      %v1771 = vrot.slane %v1769, 1
      %v1772 = vsel %vm1608, %v1767, %v1771
      %v1773 = vshrl.u32 %v1603, 16
      %v1775 = vor.u32 %v1773, %v1771
      %v1777 = vshll.u32 %v1604, 16
      %v1779 = vrot.slane %v1777, 1
      %v1780 = vsel %vm1608, %v1775, %v1779
      %v1781 = vshrl.u32 %v1604, 16
      %v1783 = vor.u32 %v1781, %v1779
      %v1785 = vshll.u32 %v1605, 16
      %v1787 = vrot.slane %v1785, 1
      %v1788 = vsel %vm1608, %v1783, %v1787
      %v1789 = vshrl.u32 %v1605, 16
      %v1791 = vor.u32 %v1789, %v1787
      %v1793 = vshll.u32 %v1606, 16
      %v1795 = vrot.slane %v1793, 1
      %v1796 = vsel %vm1608, %v1791, %v1795
      %v1797 = vshrl.u32 %v1606, 16
      %v1799 = vor.u32 %v1797, %v1795
      %v1801 = vshll.u32 %v1607, 16
      %v1803 = vrot.slane %v1801, 1
      %v1804 = vsel %vm1608, %v1799, %v1803
      %v1806 = vsel %vm580, %v1620, 0
      %v1809 = vsel %vm580, %v1628, 0
      %v1812 = vsel %vm580, %v1636, 0
      %v1815 = vsel %vm580, %v1644, 0
      %v1818 = vsel %vm580, %v1652, 0
      %v1821 = vsel %vm580, %v1660, 0
      %v1824 = vsel %vm580, %v1668, 0
      %v1827 = vsel %vm580, %v1676, 0
      %v1830 = vsel %vm580, %v1684, 0
      %v1833 = vsel %vm580, %v1692, 0
      %v1836 = vsel %vm580, %v1700, 0
      %v1839 = vsel %vm580, %v1708, 0
      %v1842 = vsel %vm580, %v1716, 0
      %v1845 = vsel %vm580, %v1724, 0
      %v1848 = vsel %vm580, %v1732, 0
      %v1851 = vsel %vm580, %v1740, 0
      %v1854 = vsel %vm580, %v1748, 0
      %v1857 = vsel %vm580, %v1756, 0
      %v1860 = vsel %vm580, %v1764, 0
      %v1863 = vsel %vm580, %v1772, 0
      %v1866 = vsel %vm580, %v1780, 0
      %v1869 = vsel %vm580, %v1788, 0
      %v1872 = vsel %vm580, %v1796, 0
      %v1875 = vsel %vm580, %v1804, 0
      %v1878 = vsel %vm653, %v1484, 0
      %1880 = vmatprep.subr.bf16.mxu0 0
      %1881 = vmatpush1.bf16.msra.mxu0 0
      %1882 = vmatprep.subr.bf16.mxu0 0
      %1883 = vmatpush1.bf16.msra.mxu0 0
      %1884 = vmatprep.subr.bf16.mxu0 0
      %1885 = vmatpush1.bf16.msra.mxu0 0
      %1886 = vmatprep.subr.bf16.mxu0 0
      %1887 = vmatpush1.bf16.msra.mxu0 0
      %1888 = vmatprep.subr.bf16.mxu0 0
      %1889 = vmatpush1.bf16.msra.mxu0 0
      %1890 = vmatprep.subr.bf16.mxu0 0
      %1891 = vmatpush1.bf16.msra.mxu0 0
      %1892 = vmatprep.subr.bf16.mxu0 0
      %1893 = vmatpush1.bf16.msra.mxu0 0
      %1894 = vmatprep.subr.bf16.mxu0 0
      %1895 = vmatpush1.bf16.msra.mxu0 %v1878
      %1896 = vmatprep.subr.bf16.mxu0 0
      %1897 = vmatpush2.bf16.msra.mxu0 0
      %1898 = vmatprep.subr.bf16.mxu0 0
      %1899 = vmatpush2.bf16.msra.mxu0 0
      %1900 = vmatprep.subr.bf16.mxu0 0
      %1901 = vmatpush2.bf16.msra.mxu0 0
      %1902 = vmatprep.subr.bf16.mxu0 0
      %1903 = vmatpush2.bf16.msra.mxu0 0
      %1904 = vmatprep.subr.bf16.mxu0 0
      %1905 = vmatpush2.bf16.msra.mxu0 0
      %1906 = vmatprep.subr.bf16.mxu0 0
      %1907 = vmatpush2.bf16.msra.mxu0 0
      %1908 = vmatprep.subr.bf16.mxu0 0
      %1909 = vmatpush2.bf16.msra.mxu0 0
      %1910 = vmatprep.subr.bf16.mxu0 0
      %1911 = vmatpush2.bf16.msra.mxu0 0
      %1912 = vmatprep.mubr.bf16.mxu0 0
      %1913 = vmatmul.mubr.bf16.gmra.mxu0 %v1806
      %v1914 = vpop.f32.mrf.mxu0
      %v1915 = vadd.f32 0.0, %v1914
      %v1916 = vpop.f32.mrf.mxu0
      %v1917 = vpop.f32.mrf.mxu0
      %v1918 = vadd.f32 0.0, %v1917
      %v1919 = vpop.f32.mrf.mxu0
      %1920 = vmatprep.mubr.bf16.mxu0 0
      %1921 = vmatmul.mubr.bf16.gmra.mxu0 %v1809
      %v1922 = vpop.f32.mrf.mxu0
      %v1923 = vadd.f32 0.0, %v1922
      %v1924 = vpop.f32.mrf.mxu0
      %v1925 = vpop.f32.mrf.mxu0
      %v1926 = vadd.f32 0.0, %v1925
      %v1927 = vpop.f32.mrf.mxu0
      %1928 = vmatprep.mubr.bf16.mxu0 0
      %1929 = vmatmul.mubr.bf16.gmra.mxu0 %v1812
      %v1930 = vpop.f32.mrf.mxu0
      %v1931 = vadd.f32 0.0, %v1930
      %v1932 = vpop.f32.mrf.mxu0
      %v1933 = vpop.f32.mrf.mxu0
      %v1934 = vadd.f32 0.0, %v1933
      %v1935 = vpop.f32.mrf.mxu0
      %1936 = vmatprep.mubr.bf16.mxu0 0
      %1937 = vmatmul.mubr.bf16.gmra.mxu0 %v1815
      %v1938 = vpop.f32.mrf.mxu0
      %v1939 = vadd.f32 0.0, %v1938
      %v1940 = vpop.f32.mrf.mxu0
      %v1941 = vpop.f32.mrf.mxu0
      %v1942 = vadd.f32 0.0, %v1941
      %v1943 = vpop.f32.mrf.mxu0
      %1944 = vmatprep.mubr.bf16.mxu0 0
      %1945 = vmatmul.mubr.bf16.gmra.mxu0 %v1818
      %v1946 = vpop.f32.mrf.mxu0
      %v1947 = vadd.f32 0.0, %v1946
      %v1948 = vpop.f32.mrf.mxu0
      %v1949 = vpop.f32.mrf.mxu0
      %v1950 = vadd.f32 0.0, %v1949
      %v1951 = vpop.f32.mrf.mxu0
      %1952 = vmatprep.mubr.bf16.mxu0 0
      %1953 = vmatmul.mubr.bf16.gmra.mxu0 %v1821
      %v1954 = vpop.f32.mrf.mxu0
      %v1955 = vadd.f32 0.0, %v1954
      %v1956 = vpop.f32.mrf.mxu0
      %v1957 = vpop.f32.mrf.mxu0
      %v1958 = vadd.f32 0.0, %v1957
      %v1959 = vpop.f32.mrf.mxu0
      %1960 = vmatprep.mubr.bf16.mxu0 0
      %1961 = vmatmul.mubr.bf16.gmra.mxu0 %v1824
      %v1962 = vpop.f32.mrf.mxu0
      %v1963 = vadd.f32 0.0, %v1962
      %v1964 = vpop.f32.mrf.mxu0
      %v1965 = vpop.f32.mrf.mxu0
      %v1966 = vadd.f32 0.0, %v1965
      %v1967 = vpop.f32.mrf.mxu0
      %1968 = vmatprep.mubr.bf16.mxu0 0
      %1969 = vmatmul.mubr.bf16.gmra.mxu0 %v1827
      %v1970 = vpop.f32.mrf.mxu0
      %v1971 = vadd.f32 0.0, %v1970
      %v1972 = vpop.f32.mrf.mxu0
      %v1973 = vpop.f32.mrf.mxu0
      %v1974 = vadd.f32 0.0, %v1973
      %v1975 = vpop.f32.mrf.mxu0
      %1976 = vmatprep.mubr.bf16.mxu0 0
      %1977 = vmatmul.mubr.bf16.gmra.mxu0 %v1830
      %v1978 = vpop.f32.mrf.mxu0
      %v1979 = vadd.f32 0.0, %v1978
      %v1980 = vpop.f32.mrf.mxu0
      %v1981 = vpop.f32.mrf.mxu0
      %v1982 = vadd.f32 0.0, %v1981
      %v1983 = vpop.f32.mrf.mxu0
      %1984 = vmatprep.mubr.bf16.mxu0 0
      %1985 = vmatmul.mubr.bf16.gmra.mxu0 %v1833
      %v1986 = vpop.f32.mrf.mxu0
      %v1987 = vadd.f32 0.0, %v1986
      %v1988 = vpop.f32.mrf.mxu0
      %v1989 = vpop.f32.mrf.mxu0
      %v1990 = vadd.f32 0.0, %v1989
      %v1991 = vpop.f32.mrf.mxu0
      %1992 = vmatprep.mubr.bf16.mxu0 0
      %1993 = vmatmul.mubr.bf16.gmra.mxu0 %v1836
      %v1994 = vpop.f32.mrf.mxu0
      %v1995 = vadd.f32 0.0, %v1994
      %v1996 = vpop.f32.mrf.mxu0
      %v1997 = vpop.f32.mrf.mxu0
      %v1998 = vadd.f32 0.0, %v1997
      %v1999 = vpop.f32.mrf.mxu0
      %2000 = vmatprep.mubr.bf16.mxu0 0
      %2001 = vmatmul.mubr.bf16.gmra.mxu0 %v1839
      %v2002 = vpop.f32.mrf.mxu0
      %v2003 = vadd.f32 0.0, %v2002
      %v2004 = vpop.f32.mrf.mxu0
      %v2005 = vpop.f32.mrf.mxu0
      %v2006 = vadd.f32 0.0, %v2005
      %v2007 = vpop.f32.mrf.mxu0
      %2008 = vmatprep.mubr.bf16.mxu0 0
      %2009 = vmatmul.mubr.bf16.gmra.mxu0 %v1842
      %v2010 = vpop.f32.mrf.mxu0
      %v2011 = vadd.f32 0.0, %v2010
      %v2012 = vpop.f32.mrf.mxu0
      %v2013 = vpop.f32.mrf.mxu0
      %v2014 = vadd.f32 0.0, %v2013
      %v2015 = vpop.f32.mrf.mxu0
      %2016 = vmatprep.mubr.bf16.mxu0 0
      %2017 = vmatmul.mubr.bf16.gmra.mxu0 %v1845
      %v2018 = vpop.f32.mrf.mxu0
      %v2019 = vadd.f32 0.0, %v2018
      %v2020 = vpop.f32.mrf.mxu0
      %v2021 = vpop.f32.mrf.mxu0
      %v2022 = vadd.f32 0.0, %v2021
      %v2023 = vpop.f32.mrf.mxu0
      %2024 = vmatprep.mubr.bf16.mxu0 0
      %2025 = vmatmul.mubr.bf16.gmra.mxu0 %v1848
      %v2026 = vpop.f32.mrf.mxu0
      %v2027 = vadd.f32 0.0, %v2026
      %v2028 = vpop.f32.mrf.mxu0
      %v2029 = vpop.f32.mrf.mxu0
      %v2030 = vadd.f32 0.0, %v2029
      %v2031 = vpop.f32.mrf.mxu0
      %2032 = vmatprep.mubr.bf16.mxu0 0
      %2033 = vmatmul.mubr.bf16.gmra.mxu0 %v1851
      %v2034 = vpop.f32.mrf.mxu0
      %v2035 = vadd.f32 0.0, %v2034
      %v2036 = vpop.f32.mrf.mxu0
      %v2037 = vpop.f32.mrf.mxu0
      %v2038 = vadd.f32 0.0, %v2037
      %v2039 = vpop.f32.mrf.mxu0
      %2040 = vmatprep.mubr.bf16.mxu0 0
      %2041 = vmatmul.mubr.bf16.gmra.mxu0 %v1854
      %v2042 = vpop.f32.mrf.mxu0
      %v2043 = vadd.f32 0.0, %v2042
      %v2044 = vpop.f32.mrf.mxu0
      %v2045 = vpop.f32.mrf.mxu0
      %v2046 = vadd.f32 0.0, %v2045
      %v2047 = vpop.f32.mrf.mxu0
      %2048 = vmatprep.mubr.bf16.mxu0 0
      %2049 = vmatmul.mubr.bf16.gmra.mxu0 %v1857
      %v2050 = vpop.f32.mrf.mxu0
      %v2051 = vadd.f32 0.0, %v2050
      %v2052 = vpop.f32.mrf.mxu0
      %v2053 = vpop.f32.mrf.mxu0
      %v2054 = vadd.f32 0.0, %v2053
      %v2055 = vpop.f32.mrf.mxu0
      %2056 = vmatprep.mubr.bf16.mxu0 0
      %2057 = vmatmul.mubr.bf16.gmra.mxu0 %v1860
      %v2058 = vpop.f32.mrf.mxu0
      %v2059 = vadd.f32 0.0, %v2058
      %v2060 = vpop.f32.mrf.mxu0
      %v2061 = vpop.f32.mrf.mxu0
      %v2062 = vadd.f32 0.0, %v2061
      %v2063 = vpop.f32.mrf.mxu0
      %2064 = vmatprep.mubr.bf16.mxu0 0
      %2065 = vmatmul.mubr.bf16.gmra.mxu0 %v1863
      %v2066 = vpop.f32.mrf.mxu0
      %v2067 = vadd.f32 0.0, %v2066
      %v2068 = vpop.f32.mrf.mxu0
      %v2069 = vpop.f32.mrf.mxu0
      %v2070 = vadd.f32 0.0, %v2069
      %v2071 = vpop.f32.mrf.mxu0
      %2072 = vmatprep.mubr.bf16.mxu0 0
      %2073 = vmatmul.mubr.bf16.gmra.mxu0 %v1866
      %v2074 = vpop.f32.mrf.mxu0
      %v2075 = vadd.f32 0.0, %v2074
      %v2076 = vpop.f32.mrf.mxu0
      %v2077 = vpop.f32.mrf.mxu0
      %v2078 = vadd.f32 0.0, %v2077
      %v2079 = vpop.f32.mrf.mxu0
      %2080 = vmatprep.mubr.bf16.mxu0 0
      %2081 = vmatmul.mubr.bf16.gmra.mxu0 %v1869
      %v2082 = vpop.f32.mrf.mxu0
      %v2083 = vadd.f32 0.0, %v2082
      %v2084 = vpop.f32.mrf.mxu0
      %v2085 = vpop.f32.mrf.mxu0
      %v2086 = vadd.f32 0.0, %v2085
      %v2087 = vpop.f32.mrf.mxu0
      %2088 = vmatprep.mubr.bf16.mxu0 0
      %2089 = vmatmul.mubr.bf16.gmra.mxu0 %v1872
      %v2090 = vpop.f32.mrf.mxu0
      %v2091 = vadd.f32 0.0, %v2090
      %v2092 = vpop.f32.mrf.mxu0
      %v2093 = vpop.f32.mrf.mxu0
      %v2094 = vadd.f32 0.0, %v2093
      %v2095 = vpop.f32.mrf.mxu0
      %2096 = vmatprep.mubr.bf16.mxu0 0
      %2097 = vmatmul.mubr.bf16.gmra.mxu0 %v1875
      %v2098 = vpop.f32.mrf.mxu0
      %v2099 = vadd.f32 0.0, %v2098
      %v2100 = vpop.f32.mrf.mxu0
      %v2101 = vpop.f32.mrf.mxu0
      %v2102 = vadd.f32 0.0, %v2101
      %v2103 = vpop.f32.mrf.mxu0
      %2104 = vdwg.mxu0
      %v2105 = vadd.f32 %v1244, %v1915
      %v2106 = vadd.f32 %v1247, %v1918
      %v2107 = vadd.f32 %v1252, %v1923
      %v2108 = vadd.f32 %v1255, %v1926
      %v2109 = vadd.f32 %v1260, %v1931
      %v2110 = vadd.f32 %v1263, %v1934
      %v2111 = vadd.f32 %v1268, %v1939
      %v2112 = vadd.f32 %v1271, %v1942
      %v2113 = vadd.f32 %v1276, %v1947
      %v2114 = vadd.f32 %v1279, %v1950
      %v2115 = vadd.f32 %v1284, %v1955
      %v2116 = vadd.f32 %v1287, %v1958
      %v2117 = vadd.f32 %v1292, %v1963
      %v2118 = vadd.f32 %v1295, %v1966
      %v2119 = vadd.f32 %v1300, %v1971
      %v2120 = vadd.f32 %v1303, %v1974
      %v2121 = vadd.f32 %v1308, %v1979
      %v2122 = vadd.f32 %v1311, %v1982
      %v2123 = vadd.f32 %v1316, %v1987
      %v2124 = vadd.f32 %v1319, %v1990
      %v2125 = vadd.f32 %v1324, %v1995
      %v2126 = vadd.f32 %v1327, %v1998
      %v2127 = vadd.f32 %v1332, %v2003
      %v2128 = vadd.f32 %v1335, %v2006
      %v2129 = vadd.f32 %v1340, %v2011
      %v2130 = vadd.f32 %v1343, %v2014
      %v2131 = vadd.f32 %v1348, %v2019
      %v2132 = vadd.f32 %v1351, %v2022
      %v2133 = vadd.f32 %v1356, %v2027
      %v2134 = vadd.f32 %v1359, %v2030
      %v2135 = vadd.f32 %v1364, %v2035
      %v2136 = vadd.f32 %v1367, %v2038
      %v2137 = vadd.f32 %v1372, %v2043
      %v2138 = vadd.f32 %v1375, %v2046
      %v2139 = vadd.f32 %v1380, %v2051
      %v2140 = vadd.f32 %v1383, %v2054
      %v2141 = vadd.f32 %v1388, %v2059
      %v2142 = vadd.f32 %v1391, %v2062
      %v2143 = vadd.f32 %v1396, %v2067
      %v2144 = vadd.f32 %v1399, %v2070
      %v2145 = vadd.f32 %v1404, %v2075
      %v2146 = vadd.f32 %v1407, %v2078
      %v2147 = vadd.f32 %v1412, %v2083
      %v2148 = vadd.f32 %v1415, %v2086
      %v2149 = vadd.f32 %v1420, %v2091
      %v2150 = vadd.f32 %v1423, %v2094
      %v2151 = vadd.f32 %v1428, %v2099
      %v2152 = vadd.f32 %v1431, %v2102
      %v2153 = vld [vmem:[#allocation2 + $0xc] sm:$0x8]
      %v2154 = vld [vmem:[#allocation2 + $0x10] sm:$0xf]
      %v2155 = vld [vmem:[#allocation2 + $0x14] sm:$0xf]
      %v2156 = vld [vmem:[#allocation2 + $0x18] sm:$0xf]
      %v2157 = vld [vmem:[#allocation2 + $0x1c] sm:$0xf]
      %v2158 = vld [vmem:[#allocation2 + $0x20] sm:$0xf]
      %v2159 = vld [vmem:[#allocation2 + $0x24] sm:$0xf]
      %v2160 = vld [vmem:[#allocation2 + $0x28] sm:$0xf]
      %v2161 = vld [vmem:[#allocation2 + $0x2c] sm:$0xf]
      %v2162 = vld [vmem:[#allocation2 + $0x30] sm:$0xf]
      %v2163 = vld [vmem:[#allocation2 + $0x34] sm:$0xf]
      %v2164 = vld [vmem:[#allocation2 + $0x38] sm:$0xf]
      %v2165 = vld [vmem:[#allocation2 + $0x3c] sm:$0xf]
      %v2166 = vld [vmem:[#allocation2 + $0x40] sm:$0xf]
      %v2167 = vld [vmem:[#allocation2 + $0x44] sm:$0xf]
      %v2168 = vld [vmem:[#allocation2 + $0x48] sm:$0xf]
      %v2169 = vld [vmem:[#allocation2 + $0x4c] sm:$0xf]
      %v2170 = vld [vmem:[#allocation2 + $0x50] sm:$0xf]
      %v2171 = vld [vmem:[#allocation2 + $0x54] sm:$0xf]
      %v2172 = vld [vmem:[#allocation2 + $0x58] sm:$0xf]
      %v2173 = vld [vmem:[#allocation2 + $0x5c] sm:$0xf]
      %v2174 = vld [vmem:[#allocation2 + $0x60] sm:$0xf]
      %v2175 = vld [vmem:[#allocation2 + $0x64] sm:$0xf]
      %v2176 = vld [vmem:[#allocation2 + $0x68] sm:$0xf]
      %v2177 = vld [vmem:[#allocation2 + $0x6c] sm:$0xf]
      %v2178 = vld [vmem:[#allocation2 + $0x70] sm:$0xf]
      %v2179 = vld [vmem:[#allocation2 + $0x74] sm:$0xf]
      %v2180 = vld [vmem:[#allocation2 + $0x78] sm:$0xf]
      %v2181 = vld [vmem:[#allocation2 + $0x7c] sm:$0xf]
      %v2182 = vld [vmem:[#allocation2 + $0x80] sm:$0xf]
      %v2183 = vld [vmem:[#allocation2 + $0x84] sm:$0xf]
      %v2184 = vld [vmem:[#allocation2 + $0x88] sm:$0xf]
      %v2185 = vld [vmem:[#allocation2 + $0x8c] sm:$0xf]
      %v2186 = vld [vmem:[#allocation2 + $0x90] sm:$0xf]
      %v2187 = vld [vmem:[#allocation2 + $0x94] sm:$0xf]
      %v2188 = vld [vmem:[#allocation2 + $0x98] sm:$0xf]
      %v2189 = vld [vmem:[#allocation2 + $0x9c] sm:$0xf]
      %v2190 = vld [vmem:[#allocation2 + $0xa0] sm:$0xf]
      %v2191 = vld [vmem:[#allocation2 + $0xa4] sm:$0xf]
      %v2192 = vld [vmem:[#allocation2 + $0xa8] sm:$0xf]
      %v2193 = vld [vmem:[#allocation2 + $0xac] sm:$0xf]
      %v2194 = vld [vmem:[#allocation2 + $0xb0] sm:$0xf]
      %v2195 = vld [vmem:[#allocation2 + $0xb4] sm:$0xf]
      %v2196 = vld [vmem:[#allocation2 + $0xb8] sm:$0xf]
      %v2197 = vld [vmem:[#allocation2 + $0xbc] sm:$0xf]
      %v2198 = vld [vmem:[#allocation2 + $0xc0] sm:$0xf]
      %v2199 = vld [vmem:[#allocation2 + $0xc4] sm:$0xf]
      %v2200 = vld [vmem:[#allocation2 + $0xc8] sm:$0xf]
      %v2201 = vld [vmem:[#allocation2 + $0xcc] sm:$0xf]
      %s2202 = scalar_lea.vmem %s1, 6
      %v2203 = vld [vmem:[%s2202] sm:$0x3]
      %v2253 = vunpack.c.l.b16 %v2153
      %v2254 = vunpack.c.l.b16 %v2154
      %v2255 = vunpack.c.l.b16 %v2155
      %v2256 = vunpack.c.l.b16 %v2156
      %v2257 = vunpack.c.l.b16 %v2157
      %v2258 = vunpack.c.l.b16 %v2158
      %v2259 = vunpack.c.l.b16 %v2159
      %v2260 = vunpack.c.l.b16 %v2160
      %v2261 = vunpack.c.l.b16 %v2161
      %v2262 = vunpack.c.l.b16 %v2162
      %v2263 = vunpack.c.l.b16 %v2163
      %v2264 = vunpack.c.l.b16 %v2164
      %v2265 = vunpack.c.l.b16 %v2165
      %v2266 = vunpack.c.l.b16 %v2166
      %v2267 = vunpack.c.l.b16 %v2167
      %v2268 = vunpack.c.l.b16 %v2168
      %v2269 = vunpack.c.l.b16 %v2169
      %v2270 = vunpack.c.l.b16 %v2170
      %v2271 = vunpack.c.l.b16 %v2171
      %v2272 = vunpack.c.l.b16 %v2172
      %v2273 = vunpack.c.l.b16 %v2173
      %v2274 = vunpack.c.l.b16 %v2174
      %v2275 = vunpack.c.l.b16 %v2175
      %v2276 = vunpack.c.l.b16 %v2176
      %v2277 = vunpack.c.l.b16 %v2177
      %v2278 = vunpack.c.l.b16 %v2178
      %v2279 = vunpack.c.l.b16 %v2179
      %v2280 = vunpack.c.l.b16 %v2180
      %v2281 = vunpack.c.l.b16 %v2181
      %v2282 = vunpack.c.l.b16 %v2182
      %v2283 = vunpack.c.l.b16 %v2183
      %v2284 = vunpack.c.l.b16 %v2184
      %v2285 = vunpack.c.l.b16 %v2185
      %v2286 = vunpack.c.l.b16 %v2186
      %v2287 = vunpack.c.l.b16 %v2187
      %v2288 = vunpack.c.l.b16 %v2188
      %v2289 = vunpack.c.l.b16 %v2189
      %v2290 = vunpack.c.l.b16 %v2190
      %v2291 = vunpack.c.l.b16 %v2191
      %v2292 = vunpack.c.l.b16 %v2192
      %v2293 = vunpack.c.l.b16 %v2193
      %v2294 = vunpack.c.l.b16 %v2194
      %v2295 = vunpack.c.l.b16 %v2195
      %v2296 = vunpack.c.l.b16 %v2196
      %v2297 = vunpack.c.l.b16 %v2197
      %v2298 = vunpack.c.l.b16 %v2198
      %v2299 = vunpack.c.l.b16 %v2199
      %v2300 = vunpack.c.l.b16 %v2200
      %v2301 = vunpack.c.l.b16 %v2201
      %v2302 = vpack.c.b16 %v2254, %v2253
      %v2303 = vpack.c.b16 %v2256, %v2255
      %v2304 = vpack.c.b16 %v2258, %v2257
      %v2305 = vpack.c.b16 %v2260, %v2259
      %v2306 = vpack.c.b16 %v2262, %v2261
      %v2307 = vpack.c.b16 %v2264, %v2263
      %v2308 = vpack.c.b16 %v2266, %v2265
      %v2309 = vpack.c.b16 %v2268, %v2267
      %v2310 = vpack.c.b16 %v2270, %v2269
      %v2311 = vpack.c.b16 %v2272, %v2271
      %v2312 = vpack.c.b16 %v2274, %v2273
      %v2313 = vpack.c.b16 %v2276, %v2275
      %v2314 = vpack.c.b16 %v2278, %v2277
      %v2315 = vpack.c.b16 %v2280, %v2279
      %v2316 = vpack.c.b16 %v2282, %v2281
      %v2317 = vpack.c.b16 %v2284, %v2283
      %v2318 = vpack.c.b16 %v2286, %v2285
      %v2319 = vpack.c.b16 %v2288, %v2287
      %v2320 = vpack.c.b16 %v2290, %v2289
      %v2321 = vpack.c.b16 %v2292, %v2291
      %v2322 = vpack.c.b16 %v2294, %v2293
      %v2323 = vpack.c.b16 %v2296, %v2295
      %v2324 = vpack.c.b16 %v2298, %v2297
      %v2325 = vpack.c.b16 %v2300, %v2299
      %v2326 = vpack.c.b16 %v2301, %v2301
      %v2328 = vshrl.u32 %v2302, 16
      %v2330 = vrot.slane %v2328, 3
      %v2331 = vshll.u32 %v2302, 16
      %v2333 = vrot.slane %v2331, 4
      %v2334 = vor.u32 %v2330, %v2333
      %v2336 = vshrl.u32 %v2303, 16
      %v2338 = vrot.slane %v2336, 3
      %v2339 = vshll.u32 %v2303, 16
      %v2341 = vrot.slane %v2339, 4
      %v2342 = vor.u32 %v2338, %v2341
      %v2343 = vsel %vm909, %v2334, %v2342
      %v2345 = vshrl.u32 %v2304, 16
      %v2347 = vrot.slane %v2345, 3
      %v2348 = vshll.u32 %v2304, 16
      %v2350 = vrot.slane %v2348, 4
      %v2351 = vor.u32 %v2347, %v2350
      %v2352 = vsel %vm909, %v2342, %v2351
      %v2354 = vshrl.u32 %v2305, 16
      %v2356 = vrot.slane %v2354, 3
      %v2357 = vshll.u32 %v2305, 16
      %v2359 = vrot.slane %v2357, 4
      %v2360 = vor.u32 %v2356, %v2359
      %v2361 = vsel %vm909, %v2351, %v2360
      %v2363 = vshrl.u32 %v2306, 16
      %v2365 = vrot.slane %v2363, 3
      %v2366 = vshll.u32 %v2306, 16
      %v2368 = vrot.slane %v2366, 4
      %v2369 = vor.u32 %v2365, %v2368
      %v2370 = vsel %vm909, %v2360, %v2369
      %v2372 = vshrl.u32 %v2307, 16
      %v2374 = vrot.slane %v2372, 3
      %v2375 = vshll.u32 %v2307, 16
      %v2377 = vrot.slane %v2375, 4
      %v2378 = vor.u32 %v2374, %v2377
      %v2379 = vsel %vm909, %v2369, %v2378
      %v2381 = vshrl.u32 %v2308, 16
      %v2383 = vrot.slane %v2381, 3
      %v2384 = vshll.u32 %v2308, 16
      %v2386 = vrot.slane %v2384, 4
      %v2387 = vor.u32 %v2383, %v2386
      %v2388 = vsel %vm909, %v2378, %v2387
      %v2390 = vshrl.u32 %v2309, 16
      %v2392 = vrot.slane %v2390, 3
      %v2393 = vshll.u32 %v2309, 16
      %v2395 = vrot.slane %v2393, 4
      %v2396 = vor.u32 %v2392, %v2395
      %v2397 = vsel %vm909, %v2387, %v2396
      %v2399 = vshrl.u32 %v2310, 16
      %v2401 = vrot.slane %v2399, 3
      %v2402 = vshll.u32 %v2310, 16
      %v2404 = vrot.slane %v2402, 4
      %v2405 = vor.u32 %v2401, %v2404
      %v2406 = vsel %vm909, %v2396, %v2405
      %v2408 = vshrl.u32 %v2311, 16
      %v2410 = vrot.slane %v2408, 3
      %v2411 = vshll.u32 %v2311, 16
      %v2413 = vrot.slane %v2411, 4
      %v2414 = vor.u32 %v2410, %v2413
      %v2415 = vsel %vm909, %v2405, %v2414
      %v2417 = vshrl.u32 %v2312, 16
      %v2419 = vrot.slane %v2417, 3
      %v2420 = vshll.u32 %v2312, 16
      %v2422 = vrot.slane %v2420, 4
      %v2423 = vor.u32 %v2419, %v2422
      %v2424 = vsel %vm909, %v2414, %v2423
      %v2426 = vshrl.u32 %v2313, 16
      %v2428 = vrot.slane %v2426, 3
      %v2429 = vshll.u32 %v2313, 16
      %v2431 = vrot.slane %v2429, 4
      %v2432 = vor.u32 %v2428, %v2431
      %v2433 = vsel %vm909, %v2423, %v2432
      %v2435 = vshrl.u32 %v2314, 16
      %v2437 = vrot.slane %v2435, 3
      %v2438 = vshll.u32 %v2314, 16
      %v2440 = vrot.slane %v2438, 4
      %v2441 = vor.u32 %v2437, %v2440
      %v2442 = vsel %vm909, %v2432, %v2441
      %v2444 = vshrl.u32 %v2315, 16
      %v2446 = vrot.slane %v2444, 3
      %v2447 = vshll.u32 %v2315, 16
      %v2449 = vrot.slane %v2447, 4
      %v2450 = vor.u32 %v2446, %v2449
      %v2451 = vsel %vm909, %v2441, %v2450
      %v2453 = vshrl.u32 %v2316, 16
      %v2455 = vrot.slane %v2453, 3
      %v2456 = vshll.u32 %v2316, 16
      %v2458 = vrot.slane %v2456, 4
      %v2459 = vor.u32 %v2455, %v2458
      %v2460 = vsel %vm909, %v2450, %v2459
      %v2462 = vshrl.u32 %v2317, 16
      %v2464 = vrot.slane %v2462, 3
      %v2465 = vshll.u32 %v2317, 16
      %v2467 = vrot.slane %v2465, 4
      %v2468 = vor.u32 %v2464, %v2467
      %v2469 = vsel %vm909, %v2459, %v2468
      %v2471 = vshrl.u32 %v2318, 16
      %v2473 = vrot.slane %v2471, 3
      %v2474 = vshll.u32 %v2318, 16
      %v2476 = vrot.slane %v2474, 4
      %v2477 = vor.u32 %v2473, %v2476
      %v2478 = vsel %vm909, %v2468, %v2477
      %v2480 = vshrl.u32 %v2319, 16
      %v2482 = vrot.slane %v2480, 3
      %v2483 = vshll.u32 %v2319, 16
      %v2485 = vrot.slane %v2483, 4
      %v2486 = vor.u32 %v2482, %v2485
      %v2487 = vsel %vm909, %v2477, %v2486
      %v2489 = vshrl.u32 %v2320, 16
      %v2491 = vrot.slane %v2489, 3
      %v2492 = vshll.u32 %v2320, 16
      %v2494 = vrot.slane %v2492, 4
      %v2495 = vor.u32 %v2491, %v2494
      %v2496 = vsel %vm909, %v2486, %v2495
      %v2498 = vshrl.u32 %v2321, 16
      %v2500 = vrot.slane %v2498, 3
      %v2501 = vshll.u32 %v2321, 16
      %v2503 = vrot.slane %v2501, 4
      %v2504 = vor.u32 %v2500, %v2503
      %v2505 = vsel %vm909, %v2495, %v2504
      %v2507 = vshrl.u32 %v2322, 16
      %v2509 = vrot.slane %v2507, 3
      %v2510 = vshll.u32 %v2322, 16
      %v2512 = vrot.slane %v2510, 4
      %v2513 = vor.u32 %v2509, %v2512
      %v2514 = vsel %vm909, %v2504, %v2513
      %v2516 = vshrl.u32 %v2323, 16
      %v2518 = vrot.slane %v2516, 3
      %v2519 = vshll.u32 %v2323, 16
      %v2521 = vrot.slane %v2519, 4
      %v2522 = vor.u32 %v2518, %v2521
      %v2523 = vsel %vm909, %v2513, %v2522
      %v2525 = vshrl.u32 %v2324, 16
      %v2527 = vrot.slane %v2525, 3
      %v2528 = vshll.u32 %v2324, 16
      %v2530 = vrot.slane %v2528, 4
      %v2531 = vor.u32 %v2527, %v2530
      %v2532 = vsel %vm909, %v2522, %v2531
      %v2534 = vshrl.u32 %v2325, 16
      %v2536 = vrot.slane %v2534, 3
      %v2537 = vshll.u32 %v2325, 16
      %v2539 = vrot.slane %v2537, 4
      %v2540 = vor.u32 %v2536, %v2539
      %v2541 = vsel %vm909, %v2531, %v2540
      %v2543 = vshrl.u32 %v2326, 16
      %v2545 = vrot.slane %v2543, 3
      %v2546 = vshll.u32 %v2326, 16
      %v2548 = vrot.slane %v2546, 4
      %v2549 = vor.u32 %v2545, %v2548
      %v2550 = vsel %vm909, %v2540, %v2549
      %v2552 = vsel %vm580, %v2343, 0
      %v2555 = vsel %vm580, %v2352, 0
      %v2558 = vsel %vm580, %v2361, 0
      %v2561 = vsel %vm580, %v2370, 0
      %v2564 = vsel %vm580, %v2379, 0
      %v2567 = vsel %vm580, %v2388, 0
      %v2570 = vsel %vm580, %v2397, 0
      %v2573 = vsel %vm580, %v2406, 0
      %v2576 = vsel %vm580, %v2415, 0
      %v2579 = vsel %vm580, %v2424, 0
      %v2582 = vsel %vm580, %v2433, 0
      %v2585 = vsel %vm580, %v2442, 0
      %v2588 = vsel %vm580, %v2451, 0
      %v2591 = vsel %vm580, %v2460, 0
      %v2594 = vsel %vm580, %v2469, 0
      %v2597 = vsel %vm580, %v2478, 0
      %v2600 = vsel %vm580, %v2487, 0
      %v2603 = vsel %vm580, %v2496, 0
      %v2606 = vsel %vm580, %v2505, 0
      %v2609 = vsel %vm580, %v2514, 0
      %v2612 = vsel %vm580, %v2523, 0
      %v2615 = vsel %vm580, %v2532, 0
      %v2618 = vsel %vm580, %v2541, 0
      %v2621 = vsel %vm580, %v2550, 0
      %v2624 = vsel %vm653, %v2203, 0
      %2626 = vmatprep.subr.bf16.mxu0 0
      %2627 = vmatpush1.bf16.msra.mxu0 0
      %2628 = vmatprep.subr.bf16.mxu0 0
      %2629 = vmatpush1.bf16.msra.mxu0 0
      %2630 = vmatprep.subr.bf16.mxu0 0
      %2631 = vmatpush1.bf16.msra.mxu0 0
      %2632 = vmatprep.subr.bf16.mxu0 0
      %2633 = vmatpush1.bf16.msra.mxu0 0
      %2634 = vmatprep.subr.bf16.mxu0 0
      %2635 = vmatpush1.bf16.msra.mxu0 0
      %2636 = vmatprep.subr.bf16.mxu0 0
      %2637 = vmatpush1.bf16.msra.mxu0 0
      %2638 = vmatprep.subr.bf16.mxu0 0
      %2639 = vmatpush1.bf16.msra.mxu0 0
      %2640 = vmatprep.subr.bf16.mxu0 0
      %2641 = vmatpush1.bf16.msra.mxu0 %v2624
      %2642 = vmatprep.subr.bf16.mxu0 0
      %2643 = vmatpush2.bf16.msra.mxu0 0
      %2644 = vmatprep.subr.bf16.mxu0 0
      %2645 = vmatpush2.bf16.msra.mxu0 0
      %2646 = vmatprep.subr.bf16.mxu0 0
      %2647 = vmatpush2.bf16.msra.mxu0 0
      %2648 = vmatprep.subr.bf16.mxu0 0
      %2649 = vmatpush2.bf16.msra.mxu0 0
      %2650 = vmatprep.subr.bf16.mxu0 0
      %2651 = vmatpush2.bf16.msra.mxu0 0
      %2652 = vmatprep.subr.bf16.mxu0 0
      %2653 = vmatpush2.bf16.msra.mxu0 0
      %2654 = vmatprep.subr.bf16.mxu0 0
      %2655 = vmatpush2.bf16.msra.mxu0 0
      %2656 = vmatprep.subr.bf16.mxu0 0
      %2657 = vmatpush2.bf16.msra.mxu0 0
      %2658 = vmatprep.mubr.bf16.mxu0 0
      %2659 = vmatmul.mubr.bf16.gmra.mxu0 %v2552
      %v2660 = vpop.f32.mrf.mxu0
      %v2661 = vadd.f32 0.0, %v2660
      %v2662 = vpop.f32.mrf.mxu0
      %v2663 = vpop.f32.mrf.mxu0
      %v2664 = vadd.f32 0.0, %v2663
      %v2665 = vpop.f32.mrf.mxu0
      %2666 = vmatprep.mubr.bf16.mxu0 0
      %2667 = vmatmul.mubr.bf16.gmra.mxu0 %v2555
      %v2668 = vpop.f32.mrf.mxu0
      %v2669 = vadd.f32 0.0, %v2668
      %v2670 = vpop.f32.mrf.mxu0
      %v2671 = vpop.f32.mrf.mxu0
      %v2672 = vadd.f32 0.0, %v2671
      %v2673 = vpop.f32.mrf.mxu0
      %2674 = vmatprep.mubr.bf16.mxu0 0
      %2675 = vmatmul.mubr.bf16.gmra.mxu0 %v2558
      %v2676 = vpop.f32.mrf.mxu0
      %v2677 = vadd.f32 0.0, %v2676
      %v2678 = vpop.f32.mrf.mxu0
      %v2679 = vpop.f32.mrf.mxu0
      %v2680 = vadd.f32 0.0, %v2679
      %v2681 = vpop.f32.mrf.mxu0
      %2682 = vmatprep.mubr.bf16.mxu0 0
      %2683 = vmatmul.mubr.bf16.gmra.mxu0 %v2561
      %v2684 = vpop.f32.mrf.mxu0
      %v2685 = vadd.f32 0.0, %v2684
      %v2686 = vpop.f32.mrf.mxu0
      %v2687 = vpop.f32.mrf.mxu0
      %v2688 = vadd.f32 0.0, %v2687
      %v2689 = vpop.f32.mrf.mxu0
      %2690 = vmatprep.mubr.bf16.mxu0 0
      %2691 = vmatmul.mubr.bf16.gmra.mxu0 %v2564
      %v2692 = vpop.f32.mrf.mxu0
      %v2693 = vadd.f32 0.0, %v2692
      %v2694 = vpop.f32.mrf.mxu0
      %v2695 = vpop.f32.mrf.mxu0
      %v2696 = vadd.f32 0.0, %v2695
      %v2697 = vpop.f32.mrf.mxu0
      %2698 = vmatprep.mubr.bf16.mxu0 0
      %2699 = vmatmul.mubr.bf16.gmra.mxu0 %v2567
      %v2700 = vpop.f32.mrf.mxu0
      %v2701 = vadd.f32 0.0, %v2700
      %v2702 = vpop.f32.mrf.mxu0
      %v2703 = vpop.f32.mrf.mxu0
      %v2704 = vadd.f32 0.0, %v2703
      %v2705 = vpop.f32.mrf.mxu0
      %2706 = vmatprep.mubr.bf16.mxu0 0
      %2707 = vmatmul.mubr.bf16.gmra.mxu0 %v2570
      %v2708 = vpop.f32.mrf.mxu0
      %v2709 = vadd.f32 0.0, %v2708
      %v2710 = vpop.f32.mrf.mxu0
      %v2711 = vpop.f32.mrf.mxu0
      %v2712 = vadd.f32 0.0, %v2711
      %v2713 = vpop.f32.mrf.mxu0
      %2714 = vmatprep.mubr.bf16.mxu0 0
      %2715 = vmatmul.mubr.bf16.gmra.mxu0 %v2573
      %v2716 = vpop.f32.mrf.mxu0
      %v2717 = vadd.f32 0.0, %v2716
      %v2718 = vpop.f32.mrf.mxu0
      %v2719 = vpop.f32.mrf.mxu0
      %v2720 = vadd.f32 0.0, %v2719
      %v2721 = vpop.f32.mrf.mxu0
      %2722 = vmatprep.mubr.bf16.mxu0 0
      %2723 = vmatmul.mubr.bf16.gmra.mxu0 %v2576
      %v2724 = vpop.f32.mrf.mxu0
      %v2725 = vadd.f32 0.0, %v2724
      %v2726 = vpop.f32.mrf.mxu0
      %v2727 = vpop.f32.mrf.mxu0
      %v2728 = vadd.f32 0.0, %v2727
      %v2729 = vpop.f32.mrf.mxu0
      %2730 = vmatprep.mubr.bf16.mxu0 0
      %2731 = vmatmul.mubr.bf16.gmra.mxu0 %v2579
      %v2732 = vpop.f32.mrf.mxu0
      %v2733 = vadd.f32 0.0, %v2732
      %v2734 = vpop.f32.mrf.mxu0
      %v2735 = vpop.f32.mrf.mxu0
      %v2736 = vadd.f32 0.0, %v2735
      %v2737 = vpop.f32.mrf.mxu0
      %2738 = vmatprep.mubr.bf16.mxu0 0
      %2739 = vmatmul.mubr.bf16.gmra.mxu0 %v2582
      %v2740 = vpop.f32.mrf.mxu0
      %v2741 = vadd.f32 0.0, %v2740
      %v2742 = vpop.f32.mrf.mxu0
      %v2743 = vpop.f32.mrf.mxu0
      %v2744 = vadd.f32 0.0, %v2743
      %v2745 = vpop.f32.mrf.mxu0
      %2746 = vmatprep.mubr.bf16.mxu0 0
      %2747 = vmatmul.mubr.bf16.gmra.mxu0 %v2585
      %v2748 = vpop.f32.mrf.mxu0
      %v2749 = vadd.f32 0.0, %v2748
      %v2750 = vpop.f32.mrf.mxu0
      %v2751 = vpop.f32.mrf.mxu0
      %v2752 = vadd.f32 0.0, %v2751
      %v2753 = vpop.f32.mrf.mxu0
      %2754 = vmatprep.mubr.bf16.mxu0 0
      %2755 = vmatmul.mubr.bf16.gmra.mxu0 %v2588
      %v2756 = vpop.f32.mrf.mxu0
      %v2757 = vadd.f32 0.0, %v2756
      %v2758 = vpop.f32.mrf.mxu0
      %v2759 = vpop.f32.mrf.mxu0
      %v2760 = vadd.f32 0.0, %v2759
      %v2761 = vpop.f32.mrf.mxu0
      %2762 = vmatprep.mubr.bf16.mxu0 0
      %2763 = vmatmul.mubr.bf16.gmra.mxu0 %v2591
      %v2764 = vpop.f32.mrf.mxu0
      %v2765 = vadd.f32 0.0, %v2764
      %v2766 = vpop.f32.mrf.mxu0
      %v2767 = vpop.f32.mrf.mxu0
      %v2768 = vadd.f32 0.0, %v2767
      %v2769 = vpop.f32.mrf.mxu0
      %2770 = vmatprep.mubr.bf16.mxu0 0
      %2771 = vmatmul.mubr.bf16.gmra.mxu0 %v2594
      %v2772 = vpop.f32.mrf.mxu0
      %v2773 = vadd.f32 0.0, %v2772
      %v2774 = vpop.f32.mrf.mxu0
      %v2775 = vpop.f32.mrf.mxu0
      %v2776 = vadd.f32 0.0, %v2775
      %v2777 = vpop.f32.mrf.mxu0
      %2778 = vmatprep.mubr.bf16.mxu0 0
      %2779 = vmatmul.mubr.bf16.gmra.mxu0 %v2597
      %v2780 = vpop.f32.mrf.mxu0
      %v2781 = vadd.f32 0.0, %v2780
      %v2782 = vpop.f32.mrf.mxu0
      %v2783 = vpop.f32.mrf.mxu0
      %v2784 = vadd.f32 0.0, %v2783
      %v2785 = vpop.f32.mrf.mxu0
      %2786 = vmatprep.mubr.bf16.mxu0 0
      %2787 = vmatmul.mubr.bf16.gmra.mxu0 %v2600
      %v2788 = vpop.f32.mrf.mxu0
      %v2789 = vadd.f32 0.0, %v2788
      %v2790 = vpop.f32.mrf.mxu0
      %v2791 = vpop.f32.mrf.mxu0
      %v2792 = vadd.f32 0.0, %v2791
      %v2793 = vpop.f32.mrf.mxu0
      %2794 = vmatprep.mubr.bf16.mxu0 0
      %2795 = vmatmul.mubr.bf16.gmra.mxu0 %v2603
      %v2796 = vpop.f32.mrf.mxu0
      %v2797 = vadd.f32 0.0, %v2796
      %v2798 = vpop.f32.mrf.mxu0
      %v2799 = vpop.f32.mrf.mxu0
      %v2800 = vadd.f32 0.0, %v2799
      %v2801 = vpop.f32.mrf.mxu0
      %2802 = vmatprep.mubr.bf16.mxu0 0
      %2803 = vmatmul.mubr.bf16.gmra.mxu0 %v2606
      %v2804 = vpop.f32.mrf.mxu0
      %v2805 = vadd.f32 0.0, %v2804
      %v2806 = vpop.f32.mrf.mxu0
      %v2807 = vpop.f32.mrf.mxu0
      %v2808 = vadd.f32 0.0, %v2807
      %v2809 = vpop.f32.mrf.mxu0
      %2810 = vmatprep.mubr.bf16.mxu0 0
      %2811 = vmatmul.mubr.bf16.gmra.mxu0 %v2609
      %v2812 = vpop.f32.mrf.mxu0
      %v2813 = vadd.f32 0.0, %v2812
      %v2814 = vpop.f32.mrf.mxu0
      %v2815 = vpop.f32.mrf.mxu0
      %v2816 = vadd.f32 0.0, %v2815
      %v2817 = vpop.f32.mrf.mxu0
      %2818 = vmatprep.mubr.bf16.mxu0 0
      %2819 = vmatmul.mubr.bf16.gmra.mxu0 %v2612
      %v2820 = vpop.f32.mrf.mxu0
      %v2821 = vadd.f32 0.0, %v2820
      %v2822 = vpop.f32.mrf.mxu0
      %v2823 = vpop.f32.mrf.mxu0
      %v2824 = vadd.f32 0.0, %v2823
      %v2825 = vpop.f32.mrf.mxu0
      %2826 = vmatprep.mubr.bf16.mxu0 0
      %2827 = vmatmul.mubr.bf16.gmra.mxu0 %v2615
      %v2828 = vpop.f32.mrf.mxu0
      %v2829 = vadd.f32 0.0, %v2828
      %v2830 = vpop.f32.mrf.mxu0
      %v2831 = vpop.f32.mrf.mxu0
      %v2832 = vadd.f32 0.0, %v2831
      %v2833 = vpop.f32.mrf.mxu0
      %2834 = vmatprep.mubr.bf16.mxu0 0
      %2835 = vmatmul.mubr.bf16.gmra.mxu0 %v2618
      %v2836 = vpop.f32.mrf.mxu0
      %v2837 = vadd.f32 0.0, %v2836
      %v2838 = vpop.f32.mrf.mxu0
      %v2839 = vpop.f32.mrf.mxu0
      %v2840 = vadd.f32 0.0, %v2839
      %v2841 = vpop.f32.mrf.mxu0
      %2842 = vmatprep.mubr.bf16.mxu0 0
      %2843 = vmatmul.mubr.bf16.gmra.mxu0 %v2621
      %v2844 = vpop.f32.mrf.mxu0
      %v2845 = vadd.f32 0.0, %v2844
      %v2846 = vpop.f32.mrf.mxu0
      %v2847 = vpop.f32.mrf.mxu0
      %v2848 = vadd.f32 0.0, %v2847
      %v2849 = vpop.f32.mrf.mxu0
      %2850 = vdwg.mxu0
      %v2851 = vadd.f32 %v2105, %v2661
      %v2852 = vadd.f32 %v2106, %v2664
      %v2853 = vadd.f32 %v2107, %v2669
      %v2854 = vadd.f32 %v2108, %v2672
      %v2855 = vadd.f32 %v2109, %v2677
      %v2856 = vadd.f32 %v2110, %v2680
      %v2857 = vadd.f32 %v2111, %v2685
      %v2858 = vadd.f32 %v2112, %v2688
      %v2859 = vadd.f32 %v2113, %v2693
      %v2860 = vadd.f32 %v2114, %v2696
      %v2861 = vadd.f32 %v2115, %v2701
      %v2862 = vadd.f32 %v2116, %v2704
      %v2863 = vadd.f32 %v2117, %v2709
      %v2864 = vadd.f32 %v2118, %v2712
      %v2865 = vadd.f32 %v2119, %v2717
      %v2866 = vadd.f32 %v2120, %v2720
      %v2867 = vadd.f32 %v2121, %v2725
      %v2868 = vadd.f32 %v2122, %v2728
      %v2869 = vadd.f32 %v2123, %v2733
      %v2870 = vadd.f32 %v2124, %v2736
      %v2871 = vadd.f32 %v2125, %v2741
      %v2872 = vadd.f32 %v2126, %v2744
      %v2873 = vadd.f32 %v2127, %v2749
      %v2874 = vadd.f32 %v2128, %v2752
      %v2875 = vadd.f32 %v2129, %v2757
      %v2876 = vadd.f32 %v2130, %v2760
      %v2877 = vadd.f32 %v2131, %v2765
      %v2878 = vadd.f32 %v2132, %v2768
      %v2879 = vadd.f32 %v2133, %v2773
      %v2880 = vadd.f32 %v2134, %v2776
      %v2881 = vadd.f32 %v2135, %v2781
      %v2882 = vadd.f32 %v2136, %v2784
      %v2883 = vadd.f32 %v2137, %v2789
      %v2884 = vadd.f32 %v2138, %v2792
      %v2885 = vadd.f32 %v2139, %v2797
      %v2886 = vadd.f32 %v2140, %v2800
      %v2887 = vadd.f32 %v2141, %v2805
      %v2888 = vadd.f32 %v2142, %v2808
      %v2889 = vadd.f32 %v2143, %v2813
      %v2890 = vadd.f32 %v2144, %v2816
      %v2891 = vadd.f32 %v2145, %v2821
      %v2892 = vadd.f32 %v2146, %v2824
      %v2893 = vadd.f32 %v2147, %v2829
      %v2894 = vadd.f32 %v2148, %v2832
      %v2895 = vadd.f32 %v2149, %v2837
      %v2896 = vadd.f32 %v2150, %v2840
      %v2897 = vadd.f32 %v2151, %v2845
      %v2898 = vadd.f32 %v2152, %v2848
      %s2899 = scalar_lea.vmem %s1, 8
      %v2900 = vld [vmem:[%s2899] sm:$0x3]
      %v2901 = vpack.c.b16 %v2255, %v2254
      %v2902 = vpack.c.b16 %v2257, %v2256
      %v2903 = vpack.c.b16 %v2259, %v2258
      %v2904 = vpack.c.b16 %v2261, %v2260
      %v2905 = vpack.c.b16 %v2263, %v2262
      %v2906 = vpack.c.b16 %v2265, %v2264
      %v2907 = vpack.c.b16 %v2267, %v2266
      %v2908 = vpack.c.b16 %v2269, %v2268
      %v2909 = vpack.c.b16 %v2271, %v2270
      %v2910 = vpack.c.b16 %v2273, %v2272
      %v2911 = vpack.c.b16 %v2275, %v2274
      %v2912 = vpack.c.b16 %v2277, %v2276
      %v2913 = vpack.c.b16 %v2279, %v2278
      %v2914 = vpack.c.b16 %v2281, %v2280
      %v2915 = vpack.c.b16 %v2283, %v2282
      %v2916 = vpack.c.b16 %v2285, %v2284
      %v2917 = vpack.c.b16 %v2287, %v2286
      %v2918 = vpack.c.b16 %v2289, %v2288
      %v2919 = vpack.c.b16 %v2291, %v2290
      %v2920 = vpack.c.b16 %v2293, %v2292
      %v2921 = vpack.c.b16 %v2295, %v2294
      %v2922 = vpack.c.b16 %v2297, %v2296
      %v2923 = vpack.c.b16 %v2299, %v2298
      %v2924 = vpack.c.b16 %v2301, %v2300
      %v2926 = vsel %vm580, %v2901, 0
      %v2929 = vsel %vm580, %v2902, 0
      %v2932 = vsel %vm580, %v2903, 0
      %v2935 = vsel %vm580, %v2904, 0
      %v2938 = vsel %vm580, %v2905, 0
      %v2941 = vsel %vm580, %v2906, 0
      %v2944 = vsel %vm580, %v2907, 0
      %v2947 = vsel %vm580, %v2908, 0
      %v2950 = vsel %vm580, %v2909, 0
      %v2953 = vsel %vm580, %v2910, 0
      %v2956 = vsel %vm580, %v2911, 0
      %v2959 = vsel %vm580, %v2912, 0
      %v2962 = vsel %vm580, %v2913, 0
      %v2965 = vsel %vm580, %v2914, 0
      %v2968 = vsel %vm580, %v2915, 0
      %v2971 = vsel %vm580, %v2916, 0
      %v2974 = vsel %vm580, %v2917, 0
      %v2977 = vsel %vm580, %v2918, 0
      %v2980 = vsel %vm580, %v2919, 0
      %v2983 = vsel %vm580, %v2920, 0
      %v2986 = vsel %vm580, %v2921, 0
      %v2989 = vsel %vm580, %v2922, 0
      %v2992 = vsel %vm580, %v2923, 0
      %v2995 = vsel %vm580, %v2924, 0
      %v2998 = vsel %vm653, %v2900, 0
      %3000 = vmatprep.subr.bf16.mxu0 0
      %3001 = vmatpush1.bf16.msra.mxu0 0
      %3002 = vmatprep.subr.bf16.mxu0 0
      %3003 = vmatpush1.bf16.msra.mxu0 0
      %3004 = vmatprep.subr.bf16.mxu0 0
      %3005 = vmatpush1.bf16.msra.mxu0 0
      %3006 = vmatprep.subr.bf16.mxu0 0
      %3007 = vmatpush1.bf16.msra.mxu0 0
      %3008 = vmatprep.subr.bf16.mxu0 0
      %3009 = vmatpush1.bf16.msra.mxu0 0
      %3010 = vmatprep.subr.bf16.mxu0 0
      %3011 = vmatpush1.bf16.msra.mxu0 0
      %3012 = vmatprep.subr.bf16.mxu0 0
      %3013 = vmatpush1.bf16.msra.mxu0 0
      %3014 = vmatprep.subr.bf16.mxu0 0
      %3015 = vmatpush1.bf16.msra.mxu0 %v2998
      %3016 = vmatprep.subr.bf16.mxu0 0
      %3017 = vmatpush2.bf16.msra.mxu0 0
      %3018 = vmatprep.subr.bf16.mxu0 0
      %3019 = vmatpush2.bf16.msra.mxu0 0
      %3020 = vmatprep.subr.bf16.mxu0 0
      %3021 = vmatpush2.bf16.msra.mxu0 0
      %3022 = vmatprep.subr.bf16.mxu0 0
      %3023 = vmatpush2.bf16.msra.mxu0 0
      %3024 = vmatprep.subr.bf16.mxu0 0
      %3025 = vmatpush2.bf16.msra.mxu0 0
      %3026 = vmatprep.subr.bf16.mxu0 0
      %3027 = vmatpush2.bf16.msra.mxu0 0
      %3028 = vmatprep.subr.bf16.mxu0 0
      %3029 = vmatpush2.bf16.msra.mxu0 0
      %3030 = vmatprep.subr.bf16.mxu0 0
      %3031 = vmatpush2.bf16.msra.mxu0 0
      %3032 = vmatprep.mubr.bf16.mxu0 0
      %3033 = vmatmul.mubr.bf16.gmra.mxu0 %v2926
      %v3034 = vpop.f32.mrf.mxu0
      %v3035 = vadd.f32 0.0, %v3034
      %v3036 = vpop.f32.mrf.mxu0
      %v3037 = vpop.f32.mrf.mxu0
      %v3038 = vadd.f32 0.0, %v3037
      %v3039 = vpop.f32.mrf.mxu0
      %3040 = vmatprep.mubr.bf16.mxu0 0
      %3041 = vmatmul.mubr.bf16.gmra.mxu0 %v2929
      %v3042 = vpop.f32.mrf.mxu0
      %v3043 = vadd.f32 0.0, %v3042
      %v3044 = vpop.f32.mrf.mxu0
      %v3045 = vpop.f32.mrf.mxu0
      %v3046 = vadd.f32 0.0, %v3045
      %v3047 = vpop.f32.mrf.mxu0
      %3048 = vmatprep.mubr.bf16.mxu0 0
      %3049 = vmatmul.mubr.bf16.gmra.mxu0 %v2932
      %v3050 = vpop.f32.mrf.mxu0
      %v3051 = vadd.f32 0.0, %v3050
      %v3052 = vpop.f32.mrf.mxu0
      %v3053 = vpop.f32.mrf.mxu0
      %v3054 = vadd.f32 0.0, %v3053
      %v3055 = vpop.f32.mrf.mxu0
      %3056 = vmatprep.mubr.bf16.mxu0 0
      %3057 = vmatmul.mubr.bf16.gmra.mxu0 %v2935
      %v3058 = vpop.f32.mrf.mxu0
      %v3059 = vadd.f32 0.0, %v3058
      %v3060 = vpop.f32.mrf.mxu0
      %v3061 = vpop.f32.mrf.mxu0
      %v3062 = vadd.f32 0.0, %v3061
      %v3063 = vpop.f32.mrf.mxu0
      %3064 = vmatprep.mubr.bf16.mxu0 0
      %3065 = vmatmul.mubr.bf16.gmra.mxu0 %v2938
      %v3066 = vpop.f32.mrf.mxu0
      %v3067 = vadd.f32 0.0, %v3066
      %v3068 = vpop.f32.mrf.mxu0
      %v3069 = vpop.f32.mrf.mxu0
      %v3070 = vadd.f32 0.0, %v3069
      %v3071 = vpop.f32.mrf.mxu0
      %3072 = vmatprep.mubr.bf16.mxu0 0
      %3073 = vmatmul.mubr.bf16.gmra.mxu0 %v2941
      %v3074 = vpop.f32.mrf.mxu0
      %v3075 = vadd.f32 0.0, %v3074
      %v3076 = vpop.f32.mrf.mxu0
      %v3077 = vpop.f32.mrf.mxu0
      %v3078 = vadd.f32 0.0, %v3077
      %v3079 = vpop.f32.mrf.mxu0
      %3080 = vmatprep.mubr.bf16.mxu0 0
      %3081 = vmatmul.mubr.bf16.gmra.mxu0 %v2944
      %v3082 = vpop.f32.mrf.mxu0
      %v3083 = vadd.f32 0.0, %v3082
      %v3084 = vpop.f32.mrf.mxu0
      %v3085 = vpop.f32.mrf.mxu0
      %v3086 = vadd.f32 0.0, %v3085
      %v3087 = vpop.f32.mrf.mxu0
      %3088 = vmatprep.mubr.bf16.mxu0 0
      %3089 = vmatmul.mubr.bf16.gmra.mxu0 %v2947
      %v3090 = vpop.f32.mrf.mxu0
      %v3091 = vadd.f32 0.0, %v3090
      %v3092 = vpop.f32.mrf.mxu0
      %v3093 = vpop.f32.mrf.mxu0
      %v3094 = vadd.f32 0.0, %v3093
      %v3095 = vpop.f32.mrf.mxu0
      %3096 = vmatprep.mubr.bf16.mxu0 0
      %3097 = vmatmul.mubr.bf16.gmra.mxu0 %v2950
      %v3098 = vpop.f32.mrf.mxu0
      %v3099 = vadd.f32 0.0, %v3098
      %v3100 = vpop.f32.mrf.mxu0
      %v3101 = vpop.f32.mrf.mxu0
      %v3102 = vadd.f32 0.0, %v3101
      %v3103 = vpop.f32.mrf.mxu0
      %3104 = vmatprep.mubr.bf16.mxu0 0
      %3105 = vmatmul.mubr.bf16.gmra.mxu0 %v2953
      %v3106 = vpop.f32.mrf.mxu0
      %v3107 = vadd.f32 0.0, %v3106
      %v3108 = vpop.f32.mrf.mxu0
      %v3109 = vpop.f32.mrf.mxu0
      %v3110 = vadd.f32 0.0, %v3109
      %v3111 = vpop.f32.mrf.mxu0
      %3112 = vmatprep.mubr.bf16.mxu0 0
      %3113 = vmatmul.mubr.bf16.gmra.mxu0 %v2956
      %v3114 = vpop.f32.mrf.mxu0
      %v3115 = vadd.f32 0.0, %v3114
      %v3116 = vpop.f32.mrf.mxu0
      %v3117 = vpop.f32.mrf.mxu0
      %v3118 = vadd.f32 0.0, %v3117
      %v3119 = vpop.f32.mrf.mxu0
      %3120 = vmatprep.mubr.bf16.mxu0 0
      %3121 = vmatmul.mubr.bf16.gmra.mxu0 %v2959
      %v3122 = vpop.f32.mrf.mxu0
      %v3123 = vadd.f32 0.0, %v3122
      %v3124 = vpop.f32.mrf.mxu0
      %v3125 = vpop.f32.mrf.mxu0
      %v3126 = vadd.f32 0.0, %v3125
      %v3127 = vpop.f32.mrf.mxu0
      %3128 = vmatprep.mubr.bf16.mxu0 0
      %3129 = vmatmul.mubr.bf16.gmra.mxu0 %v2962
      %v3130 = vpop.f32.mrf.mxu0
      %v3131 = vadd.f32 0.0, %v3130
      %v3132 = vpop.f32.mrf.mxu0
      %v3133 = vpop.f32.mrf.mxu0
      %v3134 = vadd.f32 0.0, %v3133
      %v3135 = vpop.f32.mrf.mxu0
      %3136 = vmatprep.mubr.bf16.mxu0 0
      %3137 = vmatmul.mubr.bf16.gmra.mxu0 %v2965
      %v3138 = vpop.f32.mrf.mxu0
      %v3139 = vadd.f32 0.0, %v3138
      %v3140 = vpop.f32.mrf.mxu0
      %v3141 = vpop.f32.mrf.mxu0
      %v3142 = vadd.f32 0.0, %v3141
      %v3143 = vpop.f32.mrf.mxu0
      %3144 = vmatprep.mubr.bf16.mxu0 0
      %3145 = vmatmul.mubr.bf16.gmra.mxu0 %v2968
      %v3146 = vpop.f32.mrf.mxu0
      %v3147 = vadd.f32 0.0, %v3146
      %v3148 = vpop.f32.mrf.mxu0
      %v3149 = vpop.f32.mrf.mxu0
      %v3150 = vadd.f32 0.0, %v3149
      %v3151 = vpop.f32.mrf.mxu0
      %3152 = vmatprep.mubr.bf16.mxu0 0
      %3153 = vmatmul.mubr.bf16.gmra.mxu0 %v2971
      %v3154 = vpop.f32.mrf.mxu0
      %v3155 = vadd.f32 0.0, %v3154
      %v3156 = vpop.f32.mrf.mxu0
      %v3157 = vpop.f32.mrf.mxu0
      %v3158 = vadd.f32 0.0, %v3157
      %v3159 = vpop.f32.mrf.mxu0
      %3160 = vmatprep.mubr.bf16.mxu0 0
      %3161 = vmatmul.mubr.bf16.gmra.mxu0 %v2974
      %v3162 = vpop.f32.mrf.mxu0
      %v3163 = vadd.f32 0.0, %v3162
      %v3164 = vpop.f32.mrf.mxu0
      %v3165 = vpop.f32.mrf.mxu0
      %v3166 = vadd.f32 0.0, %v3165
      %v3167 = vpop.f32.mrf.mxu0
      %3168 = vmatprep.mubr.bf16.mxu0 0
      %3169 = vmatmul.mubr.bf16.gmra.mxu0 %v2977
      %v3170 = vpop.f32.mrf.mxu0
      %v3171 = vadd.f32 0.0, %v3170
      %v3172 = vpop.f32.mrf.mxu0
      %v3173 = vpop.f32.mrf.mxu0
      %v3174 = vadd.f32 0.0, %v3173
      %v3175 = vpop.f32.mrf.mxu0
      %3176 = vmatprep.mubr.bf16.mxu0 0
      %3177 = vmatmul.mubr.bf16.gmra.mxu0 %v2980
      %v3178 = vpop.f32.mrf.mxu0
      %v3179 = vadd.f32 0.0, %v3178
      %v3180 = vpop.f32.mrf.mxu0
      %v3181 = vpop.f32.mrf.mxu0
      %v3182 = vadd.f32 0.0, %v3181
      %v3183 = vpop.f32.mrf.mxu0
      %3184 = vmatprep.mubr.bf16.mxu0 0
      %3185 = vmatmul.mubr.bf16.gmra.mxu0 %v2983
      %v3186 = vpop.f32.mrf.mxu0
      %v3187 = vadd.f32 0.0, %v3186
      %v3188 = vpop.f32.mrf.mxu0
      %v3189 = vpop.f32.mrf.mxu0
      %v3190 = vadd.f32 0.0, %v3189
      %v3191 = vpop.f32.mrf.mxu0
      %3192 = vmatprep.mubr.bf16.mxu0 0
      %3193 = vmatmul.mubr.bf16.gmra.mxu0 %v2986
      %v3194 = vpop.f32.mrf.mxu0
      %v3195 = vadd.f32 0.0, %v3194
      %v3196 = vpop.f32.mrf.mxu0
      %v3197 = vpop.f32.mrf.mxu0
      %v3198 = vadd.f32 0.0, %v3197
      %v3199 = vpop.f32.mrf.mxu0
      %3200 = vmatprep.mubr.bf16.mxu0 0
      %3201 = vmatmul.mubr.bf16.gmra.mxu0 %v2989
      %v3202 = vpop.f32.mrf.mxu0
      %v3203 = vadd.f32 0.0, %v3202
      %v3204 = vpop.f32.mrf.mxu0
      %v3205 = vpop.f32.mrf.mxu0
      %v3206 = vadd.f32 0.0, %v3205
      %v3207 = vpop.f32.mrf.mxu0
      %3208 = vmatprep.mubr.bf16.mxu0 0
      %3209 = vmatmul.mubr.bf16.gmra.mxu0 %v2992
      %v3210 = vpop.f32.mrf.mxu0
      %v3211 = vadd.f32 0.0, %v3210
      %v3212 = vpop.f32.mrf.mxu0
      %v3213 = vpop.f32.mrf.mxu0
      %v3214 = vadd.f32 0.0, %v3213
      %v3215 = vpop.f32.mrf.mxu0
      %3216 = vmatprep.mubr.bf16.mxu0 0
      %3217 = vmatmul.mubr.bf16.gmra.mxu0 %v2995
      %v3218 = vpop.f32.mrf.mxu0
      %v3219 = vadd.f32 0.0, %v3218
      %v3220 = vpop.f32.mrf.mxu0
      %v3221 = vpop.f32.mrf.mxu0
      %v3222 = vadd.f32 0.0, %v3221
      %v3223 = vpop.f32.mrf.mxu0
      %3224 = vdwg.mxu0
      %v3225 = vadd.f32 %v2851, %v3035
      %v3226 = vadd.f32 %v2852, %v3038
      %v3227 = vadd.f32 %v2853, %v3043
      %v3228 = vadd.f32 %v2854, %v3046
      %v3229 = vadd.f32 %v2855, %v3051
      %v3230 = vadd.f32 %v2856, %v3054
      %v3231 = vadd.f32 %v2857, %v3059
      %v3232 = vadd.f32 %v2858, %v3062
      %v3233 = vadd.f32 %v2859, %v3067
      %v3234 = vadd.f32 %v2860, %v3070
      %v3235 = vadd.f32 %v2861, %v3075
      %v3236 = vadd.f32 %v2862, %v3078
      %v3237 = vadd.f32 %v2863, %v3083
      %v3238 = vadd.f32 %v2864, %v3086
      %v3239 = vadd.f32 %v2865, %v3091
      %v3240 = vadd.f32 %v2866, %v3094
      %v3241 = vadd.f32 %v2867, %v3099
      %v3242 = vadd.f32 %v2868, %v3102
      %v3243 = vadd.f32 %v2869, %v3107
      %v3244 = vadd.f32 %v2870, %v3110
      %v3245 = vadd.f32 %v2871, %v3115
      %v3246 = vadd.f32 %v2872, %v3118
      %v3247 = vadd.f32 %v2873, %v3123
      %v3248 = vadd.f32 %v2874, %v3126
      %v3249 = vadd.f32 %v2875, %v3131
      %v3250 = vadd.f32 %v2876, %v3134
      %v3251 = vadd.f32 %v2877, %v3139
      %v3252 = vadd.f32 %v2878, %v3142
      %v3253 = vadd.f32 %v2879, %v3147
      %v3254 = vadd.f32 %v2880, %v3150
      %v3255 = vadd.f32 %v2881, %v3155
      %v3256 = vadd.f32 %v2882, %v3158
      %v3257 = vadd.f32 %v2883, %v3163
      %v3258 = vadd.f32 %v2884, %v3166
      %v3259 = vadd.f32 %v2885, %v3171
      %v3260 = vadd.f32 %v2886, %v3174
      %v3261 = vadd.f32 %v2887, %v3179
      %v3262 = vadd.f32 %v2888, %v3182
      %v3263 = vadd.f32 %v2889, %v3187
      %v3264 = vadd.f32 %v2890, %v3190
      %v3265 = vadd.f32 %v2891, %v3195
      %v3266 = vadd.f32 %v2892, %v3198
      %v3267 = vadd.f32 %v2893, %v3203
      %v3268 = vadd.f32 %v2894, %v3206
      %v3269 = vadd.f32 %v2895, %v3211
      %v3270 = vadd.f32 %v2896, %v3214
      %v3271 = vadd.f32 %v2897, %v3219
      %v3272 = vadd.f32 %v2898, %v3222
      %v3273 = vld [vmem:[#allocation2 + $0x10] sm:$0xf]
      %v3274 = vld [vmem:[#allocation2 + $0x14] sm:$0xf]
      %v3275 = vld [vmem:[#allocation2 + $0x18] sm:$0xf]
      %v3276 = vld [vmem:[#allocation2 + $0x1c] sm:$0xf]
      %v3277 = vld [vmem:[#allocation2 + $0x20] sm:$0xf]
      %v3278 = vld [vmem:[#allocation2 + $0x24] sm:$0xf]
      %v3279 = vld [vmem:[#allocation2 + $0x28] sm:$0xf]
      %v3280 = vld [vmem:[#allocation2 + $0x2c] sm:$0xf]
      %v3281 = vld [vmem:[#allocation2 + $0x30] sm:$0xf]
      %v3282 = vld [vmem:[#allocation2 + $0x34] sm:$0xf]
      %v3283 = vld [vmem:[#allocation2 + $0x38] sm:$0xf]
      %v3284 = vld [vmem:[#allocation2 + $0x3c] sm:$0xf]
      %v3285 = vld [vmem:[#allocation2 + $0x40] sm:$0xf]
      %v3286 = vld [vmem:[#allocation2 + $0x44] sm:$0xf]
      %v3287 = vld [vmem:[#allocation2 + $0x48] sm:$0xf]
      %v3288 = vld [vmem:[#allocation2 + $0x4c] sm:$0xf]
      %v3289 = vld [vmem:[#allocation2 + $0x50] sm:$0xf]
      %v3290 = vld [vmem:[#allocation2 + $0x54] sm:$0xf]
      %v3291 = vld [vmem:[#allocation2 + $0x58] sm:$0xf]
      %v3292 = vld [vmem:[#allocation2 + $0x5c] sm:$0xf]
      %v3293 = vld [vmem:[#allocation2 + $0x60] sm:$0xf]
      %v3294 = vld [vmem:[#allocation2 + $0x64] sm:$0xf]
      %v3295 = vld [vmem:[#allocation2 + $0x68] sm:$0xf]
      %v3296 = vld [vmem:[#allocation2 + $0x6c] sm:$0xf]
      %v3297 = vld [vmem:[#allocation2 + $0x70] sm:$0xf]
      %v3298 = vld [vmem:[#allocation2 + $0x74] sm:$0xf]
      %v3299 = vld [vmem:[#allocation2 + $0x78] sm:$0xf]
      %v3300 = vld [vmem:[#allocation2 + $0x7c] sm:$0xf]
      %v3301 = vld [vmem:[#allocation2 + $0x80] sm:$0xf]
      %v3302 = vld [vmem:[#allocation2 + $0x84] sm:$0xf]
      %v3303 = vld [vmem:[#allocation2 + $0x88] sm:$0xf]
      %v3304 = vld [vmem:[#allocation2 + $0x8c] sm:$0xf]
      %v3305 = vld [vmem:[#allocation2 + $0x90] sm:$0xf]
      %v3306 = vld [vmem:[#allocation2 + $0x94] sm:$0xf]
      %v3307 = vld [vmem:[#allocation2 + $0x98] sm:$0xf]
      %v3308 = vld [vmem:[#allocation2 + $0x9c] sm:$0xf]
      %v3309 = vld [vmem:[#allocation2 + $0xa0] sm:$0xf]
      %v3310 = vld [vmem:[#allocation2 + $0xa4] sm:$0xf]
      %v3311 = vld [vmem:[#allocation2 + $0xa8] sm:$0xf]
      %v3312 = vld [vmem:[#allocation2 + $0xac] sm:$0xf]
      %v3313 = vld [vmem:[#allocation2 + $0xb0] sm:$0xf]
      %v3314 = vld [vmem:[#allocation2 + $0xb4] sm:$0xf]
      %v3315 = vld [vmem:[#allocation2 + $0xb8] sm:$0xf]
      %v3316 = vld [vmem:[#allocation2 + $0xbc] sm:$0xf]
      %v3317 = vld [vmem:[#allocation2 + $0xc0] sm:$0xf]
      %v3318 = vld [vmem:[#allocation2 + $0xc4] sm:$0xf]
      %v3319 = vld [vmem:[#allocation2 + $0xc8] sm:$0xf]
      %v3320 = vld [vmem:[#allocation2 + $0xcc] sm:$0xf]
      %v3321 = vld [vmem:[#allocation2 + $0xd0] sm:$0x1]
      %s3322 = scalar_lea.vmem %s1, 10
      %v3323 = vld [vmem:[%s3322] sm:$0x3]
      %v3373 = vunpack.c.l.b16 %v3273
      %v3374 = vunpack.c.l.b16 %v3274
      %v3375 = vunpack.c.l.b16 %v3275
      %v3376 = vunpack.c.l.b16 %v3276
      %v3377 = vunpack.c.l.b16 %v3277
      %v3378 = vunpack.c.l.b16 %v3278
      %v3379 = vunpack.c.l.b16 %v3279
      %v3380 = vunpack.c.l.b16 %v3280
      %v3381 = vunpack.c.l.b16 %v3281
      %v3382 = vunpack.c.l.b16 %v3282
      %v3383 = vunpack.c.l.b16 %v3283
      %v3384 = vunpack.c.l.b16 %v3284
      %v3385 = vunpack.c.l.b16 %v3285
      %v3386 = vunpack.c.l.b16 %v3286
      %v3387 = vunpack.c.l.b16 %v3287
      %v3388 = vunpack.c.l.b16 %v3288
      %v3389 = vunpack.c.l.b16 %v3289
      %v3390 = vunpack.c.l.b16 %v3290
      %v3391 = vunpack.c.l.b16 %v3291
      %v3392 = vunpack.c.l.b16 %v3292
      %v3393 = vunpack.c.l.b16 %v3293
      %v3394 = vunpack.c.l.b16 %v3294
      %v3395 = vunpack.c.l.b16 %v3295
      %v3396 = vunpack.c.l.b16 %v3296
      %v3397 = vunpack.c.l.b16 %v3297
      %v3398 = vunpack.c.l.b16 %v3298
      %v3399 = vunpack.c.l.b16 %v3299
      %v3400 = vunpack.c.l.b16 %v3300
      %v3401 = vunpack.c.l.b16 %v3301
      %v3402 = vunpack.c.l.b16 %v3302
      %v3403 = vunpack.c.l.b16 %v3303
      %v3404 = vunpack.c.l.b16 %v3304
      %v3405 = vunpack.c.l.b16 %v3305
      %v3406 = vunpack.c.l.b16 %v3306
      %v3407 = vunpack.c.l.b16 %v3307
      %v3408 = vunpack.c.l.b16 %v3308
      %v3409 = vunpack.c.l.b16 %v3309
      %v3410 = vunpack.c.l.b16 %v3310
      %v3411 = vunpack.c.l.b16 %v3311
      %v3412 = vunpack.c.l.b16 %v3312
      %v3413 = vunpack.c.l.b16 %v3313
      %v3414 = vunpack.c.l.b16 %v3314
      %v3415 = vunpack.c.l.b16 %v3315
      %v3416 = vunpack.c.l.b16 %v3316
      %v3417 = vunpack.c.l.b16 %v3317
      %v3418 = vunpack.c.l.b16 %v3318
      %v3419 = vunpack.c.l.b16 %v3319
      %v3420 = vunpack.c.l.b16 %v3320
      %v3421 = vunpack.c.l.b16 %v3321
      %v3422 = vpack.c.b16 %v3374, %v3373
      %v3423 = vpack.c.b16 %v3376, %v3375
      %v3424 = vpack.c.b16 %v3378, %v3377
      %v3425 = vpack.c.b16 %v3380, %v3379
      %v3426 = vpack.c.b16 %v3382, %v3381
      %v3427 = vpack.c.b16 %v3384, %v3383
      %v3428 = vpack.c.b16 %v3386, %v3385
      %v3429 = vpack.c.b16 %v3388, %v3387
      %v3430 = vpack.c.b16 %v3390, %v3389
      %v3431 = vpack.c.b16 %v3392, %v3391
      %v3432 = vpack.c.b16 %v3394, %v3393
      %v3433 = vpack.c.b16 %v3396, %v3395
      %v3434 = vpack.c.b16 %v3398, %v3397
      %v3435 = vpack.c.b16 %v3400, %v3399
      %v3436 = vpack.c.b16 %v3402, %v3401
      %v3437 = vpack.c.b16 %v3404, %v3403
      %v3438 = vpack.c.b16 %v3406, %v3405
      %v3439 = vpack.c.b16 %v3408, %v3407
      %v3440 = vpack.c.b16 %v3410, %v3409
      %v3441 = vpack.c.b16 %v3412, %v3411
      %v3442 = vpack.c.b16 %v3414, %v3413
      %v3443 = vpack.c.b16 %v3416, %v3415
      %v3444 = vpack.c.b16 %v3418, %v3417
      %v3445 = vpack.c.b16 %v3420, %v3419
      %v3446 = vpack.c.b16 %v3421, %v3421
      %v3448 = vshrl.u32 %v3422, 16
      %v3450 = vshll.u32 %v3422, 16
      %v3452 = vrot.slane %v3450, 1
      %v3453 = vor.u32 %v3448, %v3452
      %v3455 = vshll.u32 %v3423, 16
      %v3457 = vrot.slane %v3455, 1
      %v3458 = vsel %vm1608, %v3453, %v3457
      %v3459 = vshrl.u32 %v3423, 16
      %v3461 = vor.u32 %v3459, %v3457
      %v3463 = vshll.u32 %v3424, 16
      %v3465 = vrot.slane %v3463, 1
      %v3466 = vsel %vm1608, %v3461, %v3465
      %v3467 = vshrl.u32 %v3424, 16
      %v3469 = vor.u32 %v3467, %v3465
      %v3471 = vshll.u32 %v3425, 16
      %v3473 = vrot.slane %v3471, 1
      %v3474 = vsel %vm1608, %v3469, %v3473
      %v3475 = vshrl.u32 %v3425, 16
      %v3477 = vor.u32 %v3475, %v3473
      %v3479 = vshll.u32 %v3426, 16
      %v3481 = vrot.slane %v3479, 1
      %v3482 = vsel %vm1608, %v3477, %v3481
      %v3483 = vshrl.u32 %v3426, 16
      %v3485 = vor.u32 %v3483, %v3481
      %v3487 = vshll.u32 %v3427, 16
      %v3489 = vrot.slane %v3487, 1
      %v3490 = vsel %vm1608, %v3485, %v3489
      %v3491 = vshrl.u32 %v3427, 16
      %v3493 = vor.u32 %v3491, %v3489
      %v3495 = vshll.u32 %v3428, 16
      %v3497 = vrot.slane %v3495, 1
      %v3498 = vsel %vm1608, %v3493, %v3497
      %v3499 = vshrl.u32 %v3428, 16
      %v3501 = vor.u32 %v3499, %v3497
      %v3503 = vshll.u32 %v3429, 16
      %v3505 = vrot.slane %v3503, 1
      %v3506 = vsel %vm1608, %v3501, %v3505
      %v3507 = vshrl.u32 %v3429, 16
      %v3509 = vor.u32 %v3507, %v3505
      %v3511 = vshll.u32 %v3430, 16
      %v3513 = vrot.slane %v3511, 1
      %v3514 = vsel %vm1608, %v3509, %v3513
      %v3515 = vshrl.u32 %v3430, 16
      %v3517 = vor.u32 %v3515, %v3513
      %v3519 = vshll.u32 %v3431, 16
      %v3521 = vrot.slane %v3519, 1
      %v3522 = vsel %vm1608, %v3517, %v3521
      %v3523 = vshrl.u32 %v3431, 16
      %v3525 = vor.u32 %v3523, %v3521
      %v3527 = vshll.u32 %v3432, 16
      %v3529 = vrot.slane %v3527, 1
      %v3530 = vsel %vm1608, %v3525, %v3529
      %v3531 = vshrl.u32 %v3432, 16
      %v3533 = vor.u32 %v3531, %v3529
      %v3535 = vshll.u32 %v3433, 16
      %v3537 = vrot.slane %v3535, 1
      %v3538 = vsel %vm1608, %v3533, %v3537
      %v3539 = vshrl.u32 %v3433, 16
      %v3541 = vor.u32 %v3539, %v3537
      %v3543 = vshll.u32 %v3434, 16
      %v3545 = vrot.slane %v3543, 1
      %v3546 = vsel %vm1608, %v3541, %v3545
      %v3547 = vshrl.u32 %v3434, 16
      %v3549 = vor.u32 %v3547, %v3545
      %v3551 = vshll.u32 %v3435, 16
      %v3553 = vrot.slane %v3551, 1
      %v3554 = vsel %vm1608, %v3549, %v3553
      %v3555 = vshrl.u32 %v3435, 16
      %v3557 = vor.u32 %v3555, %v3553
      %v3559 = vshll.u32 %v3436, 16
      %v3561 = vrot.slane %v3559, 1
      %v3562 = vsel %vm1608, %v3557, %v3561
      %v3563 = vshrl.u32 %v3436, 16
      %v3565 = vor.u32 %v3563, %v3561
      %v3567 = vshll.u32 %v3437, 16
      %v3569 = vrot.slane %v3567, 1
      %v3570 = vsel %vm1608, %v3565, %v3569
      %v3571 = vshrl.u32 %v3437, 16
      %v3573 = vor.u32 %v3571, %v3569
      %v3575 = vshll.u32 %v3438, 16
      %v3577 = vrot.slane %v3575, 1
      %v3578 = vsel %vm1608, %v3573, %v3577
      %v3579 = vshrl.u32 %v3438, 16
      %v3581 = vor.u32 %v3579, %v3577
      %v3583 = vshll.u32 %v3439, 16
      %v3585 = vrot.slane %v3583, 1
      %v3586 = vsel %vm1608, %v3581, %v3585
      %v3587 = vshrl.u32 %v3439, 16
      %v3589 = vor.u32 %v3587, %v3585
      %v3591 = vshll.u32 %v3440, 16
      %v3593 = vrot.slane %v3591, 1
      %v3594 = vsel %vm1608, %v3589, %v3593
      %v3595 = vshrl.u32 %v3440, 16
      %v3597 = vor.u32 %v3595, %v3593
      %v3599 = vshll.u32 %v3441, 16
      %v3601 = vrot.slane %v3599, 1
      %v3602 = vsel %vm1608, %v3597, %v3601
      %v3603 = vshrl.u32 %v3441, 16
      %v3605 = vor.u32 %v3603, %v3601
      %v3607 = vshll.u32 %v3442, 16
      %v3609 = vrot.slane %v3607, 1
      %v3610 = vsel %vm1608, %v3605, %v3609
      %v3611 = vshrl.u32 %v3442, 16
      %v3613 = vor.u32 %v3611, %v3609
      %v3615 = vshll.u32 %v3443, 16
      %v3617 = vrot.slane %v3615, 1
      %v3618 = vsel %vm1608, %v3613, %v3617
      %v3619 = vshrl.u32 %v3443, 16
      %v3621 = vor.u32 %v3619, %v3617
      %v3623 = vshll.u32 %v3444, 16
      %v3625 = vrot.slane %v3623, 1
      %v3626 = vsel %vm1608, %v3621, %v3625
      %v3627 = vshrl.u32 %v3444, 16
      %v3629 = vor.u32 %v3627, %v3625
      %v3631 = vshll.u32 %v3445, 16
      %v3633 = vrot.slane %v3631, 1
      %v3634 = vsel %vm1608, %v3629, %v3633
      %v3635 = vshrl.u32 %v3445, 16
      %v3637 = vor.u32 %v3635, %v3633
      %v3639 = vshll.u32 %v3446, 16
      %v3641 = vrot.slane %v3639, 1
      %v3642 = vsel %vm1608, %v3637, %v3641
      %v3644 = vsel %vm580, %v3458, 0
      %v3647 = vsel %vm580, %v3466, 0
      %v3650 = vsel %vm580, %v3474, 0
      %v3653 = vsel %vm580, %v3482, 0
      %v3656 = vsel %vm580, %v3490, 0
      %v3659 = vsel %vm580, %v3498, 0
      %v3662 = vsel %vm580, %v3506, 0
      %v3665 = vsel %vm580, %v3514, 0
      %v3668 = vsel %vm580, %v3522, 0
      %v3671 = vsel %vm580, %v3530, 0
      %v3674 = vsel %vm580, %v3538, 0
      %v3677 = vsel %vm580, %v3546, 0
      %v3680 = vsel %vm580, %v3554, 0
      %v3683 = vsel %vm580, %v3562, 0
      %v3686 = vsel %vm580, %v3570, 0
      %v3689 = vsel %vm580, %v3578, 0
      %v3692 = vsel %vm580, %v3586, 0
      %v3695 = vsel %vm580, %v3594, 0
      %v3698 = vsel %vm580, %v3602, 0
      %v3701 = vsel %vm580, %v3610, 0
      %v3704 = vsel %vm580, %v3618, 0
      %v3707 = vsel %vm580, %v3626, 0
      %v3710 = vsel %vm580, %v3634, 0
      %v3713 = vsel %vm580, %v3642, 0
      %v3716 = vsel %vm653, %v3323, 0
      %3718 = vmatprep.subr.bf16.mxu0 0
      %3719 = vmatpush1.bf16.msra.mxu0 0
      %3720 = vmatprep.subr.bf16.mxu0 0
      %3721 = vmatpush1.bf16.msra.mxu0 0
      %3722 = vmatprep.subr.bf16.mxu0 0
      %3723 = vmatpush1.bf16.msra.mxu0 0
      %3724 = vmatprep.subr.bf16.mxu0 0
      %3725 = vmatpush1.bf16.msra.mxu0 0
      %3726 = vmatprep.subr.bf16.mxu0 0
      %3727 = vmatpush1.bf16.msra.mxu0 0
      %3728 = vmatprep.subr.bf16.mxu0 0
      %3729 = vmatpush1.bf16.msra.mxu0 0
      %3730 = vmatprep.subr.bf16.mxu0 0
      %3731 = vmatpush1.bf16.msra.mxu0 0
      %3732 = vmatprep.subr.bf16.mxu0 0
      %3733 = vmatpush1.bf16.msra.mxu0 %v3716
      %3734 = vmatprep.subr.bf16.mxu0 0
      %3735 = vmatpush2.bf16.msra.mxu0 0
      %3736 = vmatprep.subr.bf16.mxu0 0
      %3737 = vmatpush2.bf16.msra.mxu0 0
      %3738 = vmatprep.subr.bf16.mxu0 0
      %3739 = vmatpush2.bf16.msra.mxu0 0
      %3740 = vmatprep.subr.bf16.mxu0 0
      %3741 = vmatpush2.bf16.msra.mxu0 0
      %3742 = vmatprep.subr.bf16.mxu0 0
      %3743 = vmatpush2.bf16.msra.mxu0 0
      %3744 = vmatprep.subr.bf16.mxu0 0
      %3745 = vmatpush2.bf16.msra.mxu0 0
      %3746 = vmatprep.subr.bf16.mxu0 0
      %3747 = vmatpush2.bf16.msra.mxu0 0
      %3748 = vmatprep.subr.bf16.mxu0 0
      %3749 = vmatpush2.bf16.msra.mxu0 0
      %3750 = vmatprep.mubr.bf16.mxu0 0
      %3751 = vmatmul.mubr.bf16.gmra.mxu0 %v3644
      %v3752 = vpop.f32.mrf.mxu0
      %v3753 = vadd.f32 0.0, %v3752
      %v3754 = vpop.f32.mrf.mxu0
      %v3755 = vpop.f32.mrf.mxu0
      %v3756 = vadd.f32 0.0, %v3755
      %v3757 = vpop.f32.mrf.mxu0
      %3758 = vmatprep.mubr.bf16.mxu0 0
      %3759 = vmatmul.mubr.bf16.gmra.mxu0 %v3647
      %v3760 = vpop.f32.mrf.mxu0
      %v3761 = vadd.f32 0.0, %v3760
      %v3762 = vpop.f32.mrf.mxu0
      %v3763 = vpop.f32.mrf.mxu0
      %v3764 = vadd.f32 0.0, %v3763
      %v3765 = vpop.f32.mrf.mxu0
      %3766 = vmatprep.mubr.bf16.mxu0 0
      %3767 = vmatmul.mubr.bf16.gmra.mxu0 %v3650
      %v3768 = vpop.f32.mrf.mxu0
      %v3769 = vadd.f32 0.0, %v3768
      %v3770 = vpop.f32.mrf.mxu0
      %v3771 = vpop.f32.mrf.mxu0
      %v3772 = vadd.f32 0.0, %v3771
      %v3773 = vpop.f32.mrf.mxu0
      %3774 = vmatprep.mubr.bf16.mxu0 0
      %3775 = vmatmul.mubr.bf16.gmra.mxu0 %v3653
      %v3776 = vpop.f32.mrf.mxu0
      %v3777 = vadd.f32 0.0, %v3776
      %v3778 = vpop.f32.mrf.mxu0
      %v3779 = vpop.f32.mrf.mxu0
      %v3780 = vadd.f32 0.0, %v3779
      %v3781 = vpop.f32.mrf.mxu0
      %3782 = vmatprep.mubr.bf16.mxu0 0
      %3783 = vmatmul.mubr.bf16.gmra.mxu0 %v3656
      %v3784 = vpop.f32.mrf.mxu0
      %v3785 = vadd.f32 0.0, %v3784
      %v3786 = vpop.f32.mrf.mxu0
      %v3787 = vpop.f32.mrf.mxu0
      %v3788 = vadd.f32 0.0, %v3787
      %v3789 = vpop.f32.mrf.mxu0
      %3790 = vmatprep.mubr.bf16.mxu0 0
      %3791 = vmatmul.mubr.bf16.gmra.mxu0 %v3659
      %v3792 = vpop.f32.mrf.mxu0
      %v3793 = vadd.f32 0.0, %v3792
      %v3794 = vpop.f32.mrf.mxu0
      %v3795 = vpop.f32.mrf.mxu0
      %v3796 = vadd.f32 0.0, %v3795
      %v3797 = vpop.f32.mrf.mxu0
      %3798 = vmatprep.mubr.bf16.mxu0 0
      %3799 = vmatmul.mubr.bf16.gmra.mxu0 %v3662
      %v3800 = vpop.f32.mrf.mxu0
      %v3801 = vadd.f32 0.0, %v3800
      %v3802 = vpop.f32.mrf.mxu0
      %v3803 = vpop.f32.mrf.mxu0
      %v3804 = vadd.f32 0.0, %v3803
      %v3805 = vpop.f32.mrf.mxu0
      %3806 = vmatprep.mubr.bf16.mxu0 0
      %3807 = vmatmul.mubr.bf16.gmra.mxu0 %v3665
      %v3808 = vpop.f32.mrf.mxu0
      %v3809 = vadd.f32 0.0, %v3808
      %v3810 = vpop.f32.mrf.mxu0
      %v3811 = vpop.f32.mrf.mxu0
      %v3812 = vadd.f32 0.0, %v3811
      %v3813 = vpop.f32.mrf.mxu0
      %3814 = vmatprep.mubr.bf16.mxu0 0
      %3815 = vmatmul.mubr.bf16.gmra.mxu0 %v3668
      %v3816 = vpop.f32.mrf.mxu0
      %v3817 = vadd.f32 0.0, %v3816
      %v3818 = vpop.f32.mrf.mxu0
      %v3819 = vpop.f32.mrf.mxu0
      %v3820 = vadd.f32 0.0, %v3819
      %v3821 = vpop.f32.mrf.mxu0
      %3822 = vmatprep.mubr.bf16.mxu0 0
      %3823 = vmatmul.mubr.bf16.gmra.mxu0 %v3671
      %v3824 = vpop.f32.mrf.mxu0
      %v3825 = vadd.f32 0.0, %v3824
      %v3826 = vpop.f32.mrf.mxu0
      %v3827 = vpop.f32.mrf.mxu0
      %v3828 = vadd.f32 0.0, %v3827
      %v3829 = vpop.f32.mrf.mxu0
      %3830 = vmatprep.mubr.bf16.mxu0 0
      %3831 = vmatmul.mubr.bf16.gmra.mxu0 %v3674
      %v3832 = vpop.f32.mrf.mxu0
      %v3833 = vadd.f32 0.0, %v3832
      %v3834 = vpop.f32.mrf.mxu0
      %v3835 = vpop.f32.mrf.mxu0
      %v3836 = vadd.f32 0.0, %v3835
      %v3837 = vpop.f32.mrf.mxu0
      %3838 = vmatprep.mubr.bf16.mxu0 0
      %3839 = vmatmul.mubr.bf16.gmra.mxu0 %v3677
      %v3840 = vpop.f32.mrf.mxu0
      %v3841 = vadd.f32 0.0, %v3840
      %v3842 = vpop.f32.mrf.mxu0
      %v3843 = vpop.f32.mrf.mxu0
      %v3844 = vadd.f32 0.0, %v3843
      %v3845 = vpop.f32.mrf.mxu0
      %3846 = vmatprep.mubr.bf16.mxu0 0
      %3847 = vmatmul.mubr.bf16.gmra.mxu0 %v3680
      %v3848 = vpop.f32.mrf.mxu0
      %v3849 = vadd.f32 0.0, %v3848
      %v3850 = vpop.f32.mrf.mxu0
      %v3851 = vpop.f32.mrf.mxu0
      %v3852 = vadd.f32 0.0, %v3851
      %v3853 = vpop.f32.mrf.mxu0
      %3854 = vmatprep.mubr.bf16.mxu0 0
      %3855 = vmatmul.mubr.bf16.gmra.mxu0 %v3683
      %v3856 = vpop.f32.mrf.mxu0
      %v3857 = vadd.f32 0.0, %v3856
      %v3858 = vpop.f32.mrf.mxu0
      %v3859 = vpop.f32.mrf.mxu0
      %v3860 = vadd.f32 0.0, %v3859
      %v3861 = vpop.f32.mrf.mxu0
      %3862 = vmatprep.mubr.bf16.mxu0 0
      %3863 = vmatmul.mubr.bf16.gmra.mxu0 %v3686
      %v3864 = vpop.f32.mrf.mxu0
      %v3865 = vadd.f32 0.0, %v3864
      %v3866 = vpop.f32.mrf.mxu0
      %v3867 = vpop.f32.mrf.mxu0
      %v3868 = vadd.f32 0.0, %v3867
      %v3869 = vpop.f32.mrf.mxu0
      %3870 = vmatprep.mubr.bf16.mxu0 0
      %3871 = vmatmul.mubr.bf16.gmra.mxu0 %v3689
      %v3872 = vpop.f32.mrf.mxu0
      %v3873 = vadd.f32 0.0, %v3872
      %v3874 = vpop.f32.mrf.mxu0
      %v3875 = vpop.f32.mrf.mxu0
      %v3876 = vadd.f32 0.0, %v3875
      %v3877 = vpop.f32.mrf.mxu0
      %3878 = vmatprep.mubr.bf16.mxu0 0
      %3879 = vmatmul.mubr.bf16.gmra.mxu0 %v3692
      %v3880 = vpop.f32.mrf.mxu0
      %v3881 = vadd.f32 0.0, %v3880
      %v3882 = vpop.f32.mrf.mxu0
      %v3883 = vpop.f32.mrf.mxu0
      %v3884 = vadd.f32 0.0, %v3883
      %v3885 = vpop.f32.mrf.mxu0
      %3886 = vmatprep.mubr.bf16.mxu0 0
      %3887 = vmatmul.mubr.bf16.gmra.mxu0 %v3695
      %v3888 = vpop.f32.mrf.mxu0
      %v3889 = vadd.f32 0.0, %v3888
      %v3890 = vpop.f32.mrf.mxu0
      %v3891 = vpop.f32.mrf.mxu0
      %v3892 = vadd.f32 0.0, %v3891
      %v3893 = vpop.f32.mrf.mxu0
      %3894 = vmatprep.mubr.bf16.mxu0 0
      %3895 = vmatmul.mubr.bf16.gmra.mxu0 %v3698
      %v3896 = vpop.f32.mrf.mxu0
      %v3897 = vadd.f32 0.0, %v3896
      %v3898 = vpop.f32.mrf.mxu0
      %v3899 = vpop.f32.mrf.mxu0
      %v3900 = vadd.f32 0.0, %v3899
      %v3901 = vpop.f32.mrf.mxu0
      %3902 = vmatprep.mubr.bf16.mxu0 0
      %3903 = vmatmul.mubr.bf16.gmra.mxu0 %v3701
      %v3904 = vpop.f32.mrf.mxu0
      %v3905 = vadd.f32 0.0, %v3904
      %v3906 = vpop.f32.mrf.mxu0
      %v3907 = vpop.f32.mrf.mxu0
      %v3908 = vadd.f32 0.0, %v3907
      %v3909 = vpop.f32.mrf.mxu0
      %3910 = vmatprep.mubr.bf16.mxu0 0
      %3911 = vmatmul.mubr.bf16.gmra.mxu0 %v3704
      %v3912 = vpop.f32.mrf.mxu0
      %v3913 = vadd.f32 0.0, %v3912
      %v3914 = vpop.f32.mrf.mxu0
      %v3915 = vpop.f32.mrf.mxu0
      %v3916 = vadd.f32 0.0, %v3915
      %v3917 = vpop.f32.mrf.mxu0
      %3918 = vmatprep.mubr.bf16.mxu0 0
      %3919 = vmatmul.mubr.bf16.gmra.mxu0 %v3707
      %v3920 = vpop.f32.mrf.mxu0
      %v3921 = vadd.f32 0.0, %v3920
      %v3922 = vpop.f32.mrf.mxu0
      %v3923 = vpop.f32.mrf.mxu0
      %v3924 = vadd.f32 0.0, %v3923
      %v3925 = vpop.f32.mrf.mxu0
      %3926 = vmatprep.mubr.bf16.mxu0 0
      %3927 = vmatmul.mubr.bf16.gmra.mxu0 %v3710
      %v3928 = vpop.f32.mrf.mxu0
      %v3929 = vadd.f32 0.0, %v3928
      %v3930 = vpop.f32.mrf.mxu0
      %v3931 = vpop.f32.mrf.mxu0
      %v3932 = vadd.f32 0.0, %v3931
      %v3933 = vpop.f32.mrf.mxu0
      %3934 = vmatprep.mubr.bf16.mxu0 0
      %3935 = vmatmul.mubr.bf16.gmra.mxu0 %v3713
      %v3936 = vpop.f32.mrf.mxu0
      %v3937 = vadd.f32 0.0, %v3936
      %v3938 = vpop.f32.mrf.mxu0
      %v3939 = vpop.f32.mrf.mxu0
      %v3940 = vadd.f32 0.0, %v3939
      %v3941 = vpop.f32.mrf.mxu0
      %3942 = vdwg.mxu0
      %v3943 = vadd.f32 %v3225, %v3753
      %v3944 = vadd.f32 %v3226, %v3756
      %v3945 = vadd.f32 %v3227, %v3761
      %v3946 = vadd.f32 %v3228, %v3764
      %v3947 = vadd.f32 %v3229, %v3769
      %v3948 = vadd.f32 %v3230, %v3772
      %v3949 = vadd.f32 %v3231, %v3777
      %v3950 = vadd.f32 %v3232, %v3780
      %v3951 = vadd.f32 %v3233, %v3785
      %v3952 = vadd.f32 %v3234, %v3788
      %v3953 = vadd.f32 %v3235, %v3793
      %v3954 = vadd.f32 %v3236, %v3796
      %v3955 = vadd.f32 %v3237, %v3801
      %v3956 = vadd.f32 %v3238, %v3804
      %v3957 = vadd.f32 %v3239, %v3809
      %v3958 = vadd.f32 %v3240, %v3812
      %v3959 = vadd.f32 %v3241, %v3817
      %v3960 = vadd.f32 %v3242, %v3820
      %v3961 = vadd.f32 %v3243, %v3825
      %v3962 = vadd.f32 %v3244, %v3828
      %v3963 = vadd.f32 %v3245, %v3833
      %v3964 = vadd.f32 %v3246, %v3836
      %v3965 = vadd.f32 %v3247, %v3841
      %v3966 = vadd.f32 %v3248, %v3844
      %v3967 = vadd.f32 %v3249, %v3849
      %v3968 = vadd.f32 %v3250, %v3852
      %v3969 = vadd.f32 %v3251, %v3857
      %v3970 = vadd.f32 %v3252, %v3860
      %v3971 = vadd.f32 %v3253, %v3865
      %v3972 = vadd.f32 %v3254, %v3868
      %v3973 = vadd.f32 %v3255, %v3873
      %v3974 = vadd.f32 %v3256, %v3876
      %v3975 = vadd.f32 %v3257, %v3881
      %v3976 = vadd.f32 %v3258, %v3884
      %v3977 = vadd.f32 %v3259, %v3889
      %v3978 = vadd.f32 %v3260, %v3892
      %v3979 = vadd.f32 %v3261, %v3897
      %v3980 = vadd.f32 %v3262, %v3900
      %v3981 = vadd.f32 %v3263, %v3905
      %v3982 = vadd.f32 %v3264, %v3908
      %v3983 = vadd.f32 %v3265, %v3913
      %v3984 = vadd.f32 %v3266, %v3916
      %v3985 = vadd.f32 %v3267, %v3921
      %v3986 = vadd.f32 %v3268, %v3924
      %v3987 = vadd.f32 %v3269, %v3929
      %v3988 = vadd.f32 %v3270, %v3932
      %v3989 = vadd.f32 %v3271, %v3937
      %v3990 = vadd.f32 %v3272, %v3940
      %v3991 = vld [vmem:[#allocation2 + $0x18] sm:$0x8]
      %v3992 = vld [vmem:[#allocation2 + $0x1c] sm:$0xf]
      %v3993 = vld [vmem:[#allocation2 + $0x20] sm:$0xf]
      %v3994 = vld [vmem:[#allocation2 + $0x24] sm:$0xf]
      %v3995 = vld [vmem:[#allocation2 + $0x28] sm:$0xf]
      %v3996 = vld [vmem:[#allocation2 + $0x2c] sm:$0xf]
      %v3997 = vld [vmem:[#allocation2 + $0x30] sm:$0xf]
      %v3998 = vld [vmem:[#allocation2 + $0x34] sm:$0xf]
      %v3999 = vld [vmem:[#allocation2 + $0x38] sm:$0xf]
      %v4000 = vld [vmem:[#allocation2 + $0x3c] sm:$0xf]
      %v4001 = vld [vmem:[#allocation2 + $0x40] sm:$0xf]
      %v4002 = vld [vmem:[#allocation2 + $0x44] sm:$0xf]
      %v4003 = vld [vmem:[#allocation2 + $0x48] sm:$0xf]
      %v4004 = vld [vmem:[#allocation2 + $0x4c] sm:$0xf]
      %v4005 = vld [vmem:[#allocation2 + $0x50] sm:$0xf]
      %v4006 = vld [vmem:[#allocation2 + $0x54] sm:$0xf]
      %v4007 = vld [vmem:[#allocation2 + $0x58] sm:$0xf]
      %v4008 = vld [vmem:[#allocation2 + $0x5c] sm:$0xf]
      %v4009 = vld [vmem:[#allocation2 + $0x60] sm:$0xf]
      %v4010 = vld [vmem:[#allocation2 + $0x64] sm:$0xf]
      %v4011 = vld [vmem:[#allocation2 + $0x68] sm:$0xf]
      %v4012 = vld [vmem:[#allocation2 + $0x6c] sm:$0xf]
      %v4013 = vld [vmem:[#allocation2 + $0x70] sm:$0xf]
      %v4014 = vld [vmem:[#allocation2 + $0x74] sm:$0xf]
      %v4015 = vld [vmem:[#allocation2 + $0x78] sm:$0xf]
      %v4016 = vld [vmem:[#allocation2 + $0x7c] sm:$0xf]
      %v4017 = vld [vmem:[#allocation2 + $0x80] sm:$0xf]
      %v4018 = vld [vmem:[#allocation2 + $0x84] sm:$0xf]
      %v4019 = vld [vmem:[#allocation2 + $0x88] sm:$0xf]
      %v4020 = vld [vmem:[#allocation2 + $0x8c] sm:$0xf]
      %v4021 = vld [vmem:[#allocation2 + $0x90] sm:$0xf]
      %v4022 = vld [vmem:[#allocation2 + $0x94] sm:$0xf]
      %v4023 = vld [vmem:[#allocation2 + $0x98] sm:$0xf]
      %v4024 = vld [vmem:[#allocation2 + $0x9c] sm:$0xf]
      %v4025 = vld [vmem:[#allocation2 + $0xa0] sm:$0xf]
      %v4026 = vld [vmem:[#allocation2 + $0xa4] sm:$0xf]
      %v4027 = vld [vmem:[#allocation2 + $0xa8] sm:$0xf]
      %v4028 = vld [vmem:[#allocation2 + $0xac] sm:$0xf]
      %v4029 = vld [vmem:[#allocation2 + $0xb0] sm:$0xf]
      %v4030 = vld [vmem:[#allocation2 + $0xb4] sm:$0xf]
      %v4031 = vld [vmem:[#allocation2 + $0xb8] sm:$0xf]
      %v4032 = vld [vmem:[#allocation2 + $0xbc] sm:$0xf]
      %v4033 = vld [vmem:[#allocation2 + $0xc0] sm:$0xf]
      %v4034 = vld [vmem:[#allocation2 + $0xc4] sm:$0xf]
      %v4035 = vld [vmem:[#allocation2 + $0xc8] sm:$0xf]
      %v4036 = vld [vmem:[#allocation2 + $0xcc] sm:$0xf]
      %v4037 = vld [vmem:[#allocation2 + $0xd0] sm:$0xf]
      %v4038 = vld [vmem:[#allocation2 + $0xd4] sm:$0xf]
      %v4039 = vld [vmem:[#allocation2 + $0xd8] sm:$0xf]
      %s4040 = scalar_lea.vmem %s1, 12
      %v4041 = vld [vmem:[%s4040] sm:$0x3]
      %v4091 = vunpack.c.l.b16 %v3991
      %v4092 = vunpack.c.l.b16 %v3992
      %v4093 = vunpack.c.l.b16 %v3993
      %v4094 = vunpack.c.l.b16 %v3994
      %v4095 = vunpack.c.l.b16 %v3995
      %v4096 = vunpack.c.l.b16 %v3996
      %v4097 = vunpack.c.l.b16 %v3997
      %v4098 = vunpack.c.l.b16 %v3998
      %v4099 = vunpack.c.l.b16 %v3999
      %v4100 = vunpack.c.l.b16 %v4000
      %v4101 = vunpack.c.l.b16 %v4001
      %v4102 = vunpack.c.l.b16 %v4002
      %v4103 = vunpack.c.l.b16 %v4003
      %v4104 = vunpack.c.l.b16 %v4004
      %v4105 = vunpack.c.l.b16 %v4005
      %v4106 = vunpack.c.l.b16 %v4006
      %v4107 = vunpack.c.l.b16 %v4007
      %v4108 = vunpack.c.l.b16 %v4008
      %v4109 = vunpack.c.l.b16 %v4009
      %v4110 = vunpack.c.l.b16 %v4010
      %v4111 = vunpack.c.l.b16 %v4011
      %v4112 = vunpack.c.l.b16 %v4012
      %v4113 = vunpack.c.l.b16 %v4013
      %v4114 = vunpack.c.l.b16 %v4014
      %v4115 = vunpack.c.l.b16 %v4015
      %v4116 = vunpack.c.l.b16 %v4016
      %v4117 = vunpack.c.l.b16 %v4017
      %v4118 = vunpack.c.l.b16 %v4018
      %v4119 = vunpack.c.l.b16 %v4019
      %v4120 = vunpack.c.l.b16 %v4020
      %v4121 = vunpack.c.l.b16 %v4021
      %v4122 = vunpack.c.l.b16 %v4022
      %v4123 = vunpack.c.l.b16 %v4023
      %v4124 = vunpack.c.l.b16 %v4024
      %v4125 = vunpack.c.l.b16 %v4025
      %v4126 = vunpack.c.l.b16 %v4026
      %v4127 = vunpack.c.l.b16 %v4027
      %v4128 = vunpack.c.l.b16 %v4028
      %v4129 = vunpack.c.l.b16 %v4029
      %v4130 = vunpack.c.l.b16 %v4030
      %v4131 = vunpack.c.l.b16 %v4031
      %v4132 = vunpack.c.l.b16 %v4032
      %v4133 = vunpack.c.l.b16 %v4033
      %v4134 = vunpack.c.l.b16 %v4034
      %v4135 = vunpack.c.l.b16 %v4035
      %v4136 = vunpack.c.l.b16 %v4036
      %v4137 = vunpack.c.l.b16 %v4037
      %v4138 = vunpack.c.l.b16 %v4038
      %v4139 = vunpack.c.l.b16 %v4039
      %v4140 = vpack.c.b16 %v4092, %v4091
      %v4141 = vpack.c.b16 %v4094, %v4093
      %v4142 = vpack.c.b16 %v4096, %v4095
      %v4143 = vpack.c.b16 %v4098, %v4097
      %v4144 = vpack.c.b16 %v4100, %v4099
      %v4145 = vpack.c.b16 %v4102, %v4101
      %v4146 = vpack.c.b16 %v4104, %v4103
      %v4147 = vpack.c.b16 %v4106, %v4105
      %v4148 = vpack.c.b16 %v4108, %v4107
      %v4149 = vpack.c.b16 %v4110, %v4109
      %v4150 = vpack.c.b16 %v4112, %v4111
      %v4151 = vpack.c.b16 %v4114, %v4113
      %v4152 = vpack.c.b16 %v4116, %v4115
      %v4153 = vpack.c.b16 %v4118, %v4117
      %v4154 = vpack.c.b16 %v4120, %v4119
      %v4155 = vpack.c.b16 %v4122, %v4121
      %v4156 = vpack.c.b16 %v4124, %v4123
      %v4157 = vpack.c.b16 %v4126, %v4125
      %v4158 = vpack.c.b16 %v4128, %v4127
      %v4159 = vpack.c.b16 %v4130, %v4129
      %v4160 = vpack.c.b16 %v4132, %v4131
      %v4161 = vpack.c.b16 %v4134, %v4133
      %v4162 = vpack.c.b16 %v4136, %v4135
      %v4163 = vpack.c.b16 %v4138, %v4137
      %v4164 = vpack.c.b16 %v4139, %v4139
      %v4166 = vshrl.u32 %v4140, 16
      %v4168 = vrot.slane %v4166, 3
      %v4169 = vshll.u32 %v4140, 16
      %v4171 = vrot.slane %v4169, 4
      %v4172 = vor.u32 %v4168, %v4171
      %v4174 = vshrl.u32 %v4141, 16
      %v4176 = vrot.slane %v4174, 3
      %v4177 = vshll.u32 %v4141, 16
      %v4179 = vrot.slane %v4177, 4
      %v4180 = vor.u32 %v4176, %v4179
      %v4181 = vsel %vm909, %v4172, %v4180
      %v4183 = vshrl.u32 %v4142, 16
      %v4185 = vrot.slane %v4183, 3
      %v4186 = vshll.u32 %v4142, 16
      %v4188 = vrot.slane %v4186, 4
      %v4189 = vor.u32 %v4185, %v4188
      %v4190 = vsel %vm909, %v4180, %v4189
      %v4192 = vshrl.u32 %v4143, 16
      %v4194 = vrot.slane %v4192, 3
      %v4195 = vshll.u32 %v4143, 16
      %v4197 = vrot.slane %v4195, 4
      %v4198 = vor.u32 %v4194, %v4197
      %v4199 = vsel %vm909, %v4189, %v4198
      %v4201 = vshrl.u32 %v4144, 16
      %v4203 = vrot.slane %v4201, 3
      %v4204 = vshll.u32 %v4144, 16
      %v4206 = vrot.slane %v4204, 4
      %v4207 = vor.u32 %v4203, %v4206
      %v4208 = vsel %vm909, %v4198, %v4207
      %v4210 = vshrl.u32 %v4145, 16
      %v4212 = vrot.slane %v4210, 3
      %v4213 = vshll.u32 %v4145, 16
      %v4215 = vrot.slane %v4213, 4
      %v4216 = vor.u32 %v4212, %v4215
      %v4217 = vsel %vm909, %v4207, %v4216
      %v4219 = vshrl.u32 %v4146, 16
      %v4221 = vrot.slane %v4219, 3
      %v4222 = vshll.u32 %v4146, 16
      %v4224 = vrot.slane %v4222, 4
      %v4225 = vor.u32 %v4221, %v4224
      %v4226 = vsel %vm909, %v4216, %v4225
      %v4228 = vshrl.u32 %v4147, 16
      %v4230 = vrot.slane %v4228, 3
      %v4231 = vshll.u32 %v4147, 16
      %v4233 = vrot.slane %v4231, 4
      %v4234 = vor.u32 %v4230, %v4233
      %v4235 = vsel %vm909, %v4225, %v4234
      %v4237 = vshrl.u32 %v4148, 16
      %v4239 = vrot.slane %v4237, 3
      %v4240 = vshll.u32 %v4148, 16
      %v4242 = vrot.slane %v4240, 4
      %v4243 = vor.u32 %v4239, %v4242
      %v4244 = vsel %vm909, %v4234, %v4243
      %v4246 = vshrl.u32 %v4149, 16
      %v4248 = vrot.slane %v4246, 3
      %v4249 = vshll.u32 %v4149, 16
      %v4251 = vrot.slane %v4249, 4
      %v4252 = vor.u32 %v4248, %v4251
      %v4253 = vsel %vm909, %v4243, %v4252
      %v4255 = vshrl.u32 %v4150, 16
      %v4257 = vrot.slane %v4255, 3
      %v4258 = vshll.u32 %v4150, 16
      %v4260 = vrot.slane %v4258, 4
      %v4261 = vor.u32 %v4257, %v4260
      %v4262 = vsel %vm909, %v4252, %v4261
      %v4264 = vshrl.u32 %v4151, 16
      %v4266 = vrot.slane %v4264, 3
      %v4267 = vshll.u32 %v4151, 16
      %v4269 = vrot.slane %v4267, 4
      %v4270 = vor.u32 %v4266, %v4269
      %v4271 = vsel %vm909, %v4261, %v4270
      %v4273 = vshrl.u32 %v4152, 16
      %v4275 = vrot.slane %v4273, 3
      %v4276 = vshll.u32 %v4152, 16
      %v4278 = vrot.slane %v4276, 4
      %v4279 = vor.u32 %v4275, %v4278
      %v4280 = vsel %vm909, %v4270, %v4279
      %v4282 = vshrl.u32 %v4153, 16
      %v4284 = vrot.slane %v4282, 3
      %v4285 = vshll.u32 %v4153, 16
      %v4287 = vrot.slane %v4285, 4
      %v4288 = vor.u32 %v4284, %v4287
      %v4289 = vsel %vm909, %v4279, %v4288
      %v4291 = vshrl.u32 %v4154, 16
      %v4293 = vrot.slane %v4291, 3
      %v4294 = vshll.u32 %v4154, 16
      %v4296 = vrot.slane %v4294, 4
      %v4297 = vor.u32 %v4293, %v4296
      %v4298 = vsel %vm909, %v4288, %v4297
      %v4300 = vshrl.u32 %v4155, 16
      %v4302 = vrot.slane %v4300, 3
      %v4303 = vshll.u32 %v4155, 16
      %v4305 = vrot.slane %v4303, 4
      %v4306 = vor.u32 %v4302, %v4305
      %v4307 = vsel %vm909, %v4297, %v4306
      %v4309 = vshrl.u32 %v4156, 16
      %v4311 = vrot.slane %v4309, 3
      %v4312 = vshll.u32 %v4156, 16
      %v4314 = vrot.slane %v4312, 4
      %v4315 = vor.u32 %v4311, %v4314
      %v4316 = vsel %vm909, %v4306, %v4315
      %v4318 = vshrl.u32 %v4157, 16
      %v4320 = vrot.slane %v4318, 3
      %v4321 = vshll.u32 %v4157, 16
      %v4323 = vrot.slane %v4321, 4
      %v4324 = vor.u32 %v4320, %v4323
      %v4325 = vsel %vm909, %v4315, %v4324
      %v4327 = vshrl.u32 %v4158, 16
      %v4329 = vrot.slane %v4327, 3
      %v4330 = vshll.u32 %v4158, 16
      %v4332 = vrot.slane %v4330, 4
      %v4333 = vor.u32 %v4329, %v4332
      %v4334 = vsel %vm909, %v4324, %v4333
      %v4336 = vshrl.u32 %v4159, 16
      %v4338 = vrot.slane %v4336, 3
      %v4339 = vshll.u32 %v4159, 16
      %v4341 = vrot.slane %v4339, 4
      %v4342 = vor.u32 %v4338, %v4341
      %v4343 = vsel %vm909, %v4333, %v4342
      %v4345 = vshrl.u32 %v4160, 16
      %v4347 = vrot.slane %v4345, 3
      %v4348 = vshll.u32 %v4160, 16
      %v4350 = vrot.slane %v4348, 4
      %v4351 = vor.u32 %v4347, %v4350
      %v4352 = vsel %vm909, %v4342, %v4351
      %v4354 = vshrl.u32 %v4161, 16
      %v4356 = vrot.slane %v4354, 3
      %v4357 = vshll.u32 %v4161, 16
      %v4359 = vrot.slane %v4357, 4
      %v4360 = vor.u32 %v4356, %v4359
      %v4361 = vsel %vm909, %v4351, %v4360
      %v4363 = vshrl.u32 %v4162, 16
      %v4365 = vrot.slane %v4363, 3
      %v4366 = vshll.u32 %v4162, 16
      %v4368 = vrot.slane %v4366, 4
      %v4369 = vor.u32 %v4365, %v4368
      %v4370 = vsel %vm909, %v4360, %v4369
      %v4372 = vshrl.u32 %v4163, 16
      %v4374 = vrot.slane %v4372, 3
      %v4375 = vshll.u32 %v4163, 16
      %v4377 = vrot.slane %v4375, 4
      %v4378 = vor.u32 %v4374, %v4377
      %v4379 = vsel %vm909, %v4369, %v4378
      %v4381 = vshrl.u32 %v4164, 16
      %v4383 = vrot.slane %v4381, 3
      %v4384 = vshll.u32 %v4164, 16
      %v4386 = vrot.slane %v4384, 4
      %v4387 = vor.u32 %v4383, %v4386
      %v4388 = vsel %vm909, %v4378, %v4387
      %v4390 = vsel %vm580, %v4181, 0
      %v4393 = vsel %vm580, %v4190, 0
      %v4396 = vsel %vm580, %v4199, 0
      %v4399 = vsel %vm580, %v4208, 0
      %v4402 = vsel %vm580, %v4217, 0
      %v4405 = vsel %vm580, %v4226, 0
      %v4408 = vsel %vm580, %v4235, 0
      %v4411 = vsel %vm580, %v4244, 0
      %v4414 = vsel %vm580, %v4253, 0
      %v4417 = vsel %vm580, %v4262, 0
      %v4420 = vsel %vm580, %v4271, 0
      %v4423 = vsel %vm580, %v4280, 0
      %v4426 = vsel %vm580, %v4289, 0
      %v4429 = vsel %vm580, %v4298, 0
      %v4432 = vsel %vm580, %v4307, 0
      %v4435 = vsel %vm580, %v4316, 0
      %v4438 = vsel %vm580, %v4325, 0
      %v4441 = vsel %vm580, %v4334, 0
      %v4444 = vsel %vm580, %v4343, 0
      %v4447 = vsel %vm580, %v4352, 0
      %v4450 = vsel %vm580, %v4361, 0
      %v4453 = vsel %vm580, %v4370, 0
      %v4456 = vsel %vm580, %v4379, 0
      %v4459 = vsel %vm580, %v4388, 0
      %v4462 = vsel %vm653, %v4041, 0
      %4464 = vmatprep.subr.bf16.mxu0 0
      %4465 = vmatpush1.bf16.msra.mxu0 0
      %4466 = vmatprep.subr.bf16.mxu0 0
      %4467 = vmatpush1.bf16.msra.mxu0 0
      %4468 = vmatprep.subr.bf16.mxu0 0
      %4469 = vmatpush1.bf16.msra.mxu0 0
      %4470 = vmatprep.subr.bf16.mxu0 0
      %4471 = vmatpush1.bf16.msra.mxu0 0
      %4472 = vmatprep.subr.bf16.mxu0 0
      %4473 = vmatpush1.bf16.msra.mxu0 0
      %4474 = vmatprep.subr.bf16.mxu0 0
      %4475 = vmatpush1.bf16.msra.mxu0 0
      %4476 = vmatprep.subr.bf16.mxu0 0
      %4477 = vmatpush1.bf16.msra.mxu0 0
      %4478 = vmatprep.subr.bf16.mxu0 0
      %4479 = vmatpush1.bf16.msra.mxu0 %v4462
      %4480 = vmatprep.subr.bf16.mxu0 0
      %4481 = vmatpush2.bf16.msra.mxu0 0
      %4482 = vmatprep.subr.bf16.mxu0 0
      %4483 = vmatpush2.bf16.msra.mxu0 0
      %4484 = vmatprep.subr.bf16.mxu0 0
      %4485 = vmatpush2.bf16.msra.mxu0 0
      %4486 = vmatprep.subr.bf16.mxu0 0
      %4487 = vmatpush2.bf16.msra.mxu0 0
      %4488 = vmatprep.subr.bf16.mxu0 0
      %4489 = vmatpush2.bf16.msra.mxu0 0
      %4490 = vmatprep.subr.bf16.mxu0 0
      %4491 = vmatpush2.bf16.msra.mxu0 0
      %4492 = vmatprep.subr.bf16.mxu0 0
      %4493 = vmatpush2.bf16.msra.mxu0 0
      %4494 = vmatprep.subr.bf16.mxu0 0
      %4495 = vmatpush2.bf16.msra.mxu0 0
      %4496 = vmatprep.mubr.bf16.mxu0 0
      %4497 = vmatmul.mubr.bf16.gmra.mxu0 %v4390
      %v4498 = vpop.f32.mrf.mxu0
      %v4499 = vadd.f32 0.0, %v4498
      %v4500 = vpop.f32.mrf.mxu0
      %v4501 = vpop.f32.mrf.mxu0
      %v4502 = vadd.f32 0.0, %v4501
      %v4503 = vpop.f32.mrf.mxu0
      %4504 = vmatprep.mubr.bf16.mxu0 0
      %4505 = vmatmul.mubr.bf16.gmra.mxu0 %v4393
      %v4506 = vpop.f32.mrf.mxu0
      %v4507 = vadd.f32 0.0, %v4506
      %v4508 = vpop.f32.mrf.mxu0
      %v4509 = vpop.f32.mrf.mxu0
      %v4510 = vadd.f32 0.0, %v4509
      %v4511 = vpop.f32.mrf.mxu0
      %4512 = vmatprep.mubr.bf16.mxu0 0
      %4513 = vmatmul.mubr.bf16.gmra.mxu0 %v4396
      %v4514 = vpop.f32.mrf.mxu0
      %v4515 = vadd.f32 0.0, %v4514
      %v4516 = vpop.f32.mrf.mxu0
      %v4517 = vpop.f32.mrf.mxu0
      %v4518 = vadd.f32 0.0, %v4517
      %v4519 = vpop.f32.mrf.mxu0
      %4520 = vmatprep.mubr.bf16.mxu0 0
      %4521 = vmatmul.mubr.bf16.gmra.mxu0 %v4399
      %v4522 = vpop.f32.mrf.mxu0
      %v4523 = vadd.f32 0.0, %v4522
      %v4524 = vpop.f32.mrf.mxu0
      %v4525 = vpop.f32.mrf.mxu0
      %v4526 = vadd.f32 0.0, %v4525
      %v4527 = vpop.f32.mrf.mxu0
      %4528 = vmatprep.mubr.bf16.mxu0 0
      %4529 = vmatmul.mubr.bf16.gmra.mxu0 %v4402
      %v4530 = vpop.f32.mrf.mxu0
      %v4531 = vadd.f32 0.0, %v4530
      %v4532 = vpop.f32.mrf.mxu0
      %v4533 = vpop.f32.mrf.mxu0
      %v4534 = vadd.f32 0.0, %v4533
      %v4535 = vpop.f32.mrf.mxu0
      %4536 = vmatprep.mubr.bf16.mxu0 0
      %4537 = vmatmul.mubr.bf16.gmra.mxu0 %v4405
      %v4538 = vpop.f32.mrf.mxu0
      %v4539 = vadd.f32 0.0, %v4538
      %v4540 = vpop.f32.mrf.mxu0
      %v4541 = vpop.f32.mrf.mxu0
      %v4542 = vadd.f32 0.0, %v4541
      %v4543 = vpop.f32.mrf.mxu0
      %4544 = vmatprep.mubr.bf16.mxu0 0
      %4545 = vmatmul.mubr.bf16.gmra.mxu0 %v4408
      %v4546 = vpop.f32.mrf.mxu0
      %v4547 = vadd.f32 0.0, %v4546
      %v4548 = vpop.f32.mrf.mxu0
      %v4549 = vpop.f32.mrf.mxu0
      %v4550 = vadd.f32 0.0, %v4549
      %v4551 = vpop.f32.mrf.mxu0
      %4552 = vmatprep.mubr.bf16.mxu0 0
      %4553 = vmatmul.mubr.bf16.gmra.mxu0 %v4411
      %v4554 = vpop.f32.mrf.mxu0
      %v4555 = vadd.f32 0.0, %v4554
      %v4556 = vpop.f32.mrf.mxu0
      %v4557 = vpop.f32.mrf.mxu0
      %v4558 = vadd.f32 0.0, %v4557
      %v4559 = vpop.f32.mrf.mxu0
      %4560 = vmatprep.mubr.bf16.mxu0 0
      %4561 = vmatmul.mubr.bf16.gmra.mxu0 %v4414
      %v4562 = vpop.f32.mrf.mxu0
      %v4563 = vadd.f32 0.0, %v4562
      %v4564 = vpop.f32.mrf.mxu0
      %v4565 = vpop.f32.mrf.mxu0
      %v4566 = vadd.f32 0.0, %v4565
      %v4567 = vpop.f32.mrf.mxu0
      %4568 = vmatprep.mubr.bf16.mxu0 0
      %4569 = vmatmul.mubr.bf16.gmra.mxu0 %v4417
      %v4570 = vpop.f32.mrf.mxu0
      %v4571 = vadd.f32 0.0, %v4570
      %v4572 = vpop.f32.mrf.mxu0
      %v4573 = vpop.f32.mrf.mxu0
      %v4574 = vadd.f32 0.0, %v4573
      %v4575 = vpop.f32.mrf.mxu0
      %4576 = vmatprep.mubr.bf16.mxu0 0
      %4577 = vmatmul.mubr.bf16.gmra.mxu0 %v4420
      %v4578 = vpop.f32.mrf.mxu0
      %v4579 = vadd.f32 0.0, %v4578
      %v4580 = vpop.f32.mrf.mxu0
      %v4581 = vpop.f32.mrf.mxu0
      %v4582 = vadd.f32 0.0, %v4581
      %v4583 = vpop.f32.mrf.mxu0
      %4584 = vmatprep.mubr.bf16.mxu0 0
      %4585 = vmatmul.mubr.bf16.gmra.mxu0 %v4423
      %v4586 = vpop.f32.mrf.mxu0
      %v4587 = vadd.f32 0.0, %v4586
      %v4588 = vpop.f32.mrf.mxu0
      %v4589 = vpop.f32.mrf.mxu0
      %v4590 = vadd.f32 0.0, %v4589
      %v4591 = vpop.f32.mrf.mxu0
      %4592 = vmatprep.mubr.bf16.mxu0 0
      %4593 = vmatmul.mubr.bf16.gmra.mxu0 %v4426
      %v4594 = vpop.f32.mrf.mxu0
      %v4595 = vadd.f32 0.0, %v4594
      %v4596 = vpop.f32.mrf.mxu0
      %v4597 = vpop.f32.mrf.mxu0
      %v4598 = vadd.f32 0.0, %v4597
      %v4599 = vpop.f32.mrf.mxu0
      %4600 = vmatprep.mubr.bf16.mxu0 0
      %4601 = vmatmul.mubr.bf16.gmra.mxu0 %v4429
      %v4602 = vpop.f32.mrf.mxu0
      %v4603 = vadd.f32 0.0, %v4602
      %v4604 = vpop.f32.mrf.mxu0
      %v4605 = vpop.f32.mrf.mxu0
      %v4606 = vadd.f32 0.0, %v4605
      %v4607 = vpop.f32.mrf.mxu0
      %4608 = vmatprep.mubr.bf16.mxu0 0
      %4609 = vmatmul.mubr.bf16.gmra.mxu0 %v4432
      %v4610 = vpop.f32.mrf.mxu0
      %v4611 = vadd.f32 0.0, %v4610
      %v4612 = vpop.f32.mrf.mxu0
      %v4613 = vpop.f32.mrf.mxu0
      %v4614 = vadd.f32 0.0, %v4613
      %v4615 = vpop.f32.mrf.mxu0
      %4616 = vmatprep.mubr.bf16.mxu0 0
      %4617 = vmatmul.mubr.bf16.gmra.mxu0 %v4435
      %v4618 = vpop.f32.mrf.mxu0
      %v4619 = vadd.f32 0.0, %v4618
      %v4620 = vpop.f32.mrf.mxu0
      %v4621 = vpop.f32.mrf.mxu0
      %v4622 = vadd.f32 0.0, %v4621
      %v4623 = vpop.f32.mrf.mxu0
      %4624 = vmatprep.mubr.bf16.mxu0 0
      %4625 = vmatmul.mubr.bf16.gmra.mxu0 %v4438
      %v4626 = vpop.f32.mrf.mxu0
      %v4627 = vadd.f32 0.0, %v4626
      %v4628 = vpop.f32.mrf.mxu0
      %v4629 = vpop.f32.mrf.mxu0
      %v4630 = vadd.f32 0.0, %v4629
      %v4631 = vpop.f32.mrf.mxu0
      %4632 = vmatprep.mubr.bf16.mxu0 0
      %4633 = vmatmul.mubr.bf16.gmra.mxu0 %v4441
      %v4634 = vpop.f32.mrf.mxu0
      %v4635 = vadd.f32 0.0, %v4634
      %v4636 = vpop.f32.mrf.mxu0
      %v4637 = vpop.f32.mrf.mxu0
      %v4638 = vadd.f32 0.0, %v4637
      %v4639 = vpop.f32.mrf.mxu0
      %4640 = vmatprep.mubr.bf16.mxu0 0
      %4641 = vmatmul.mubr.bf16.gmra.mxu0 %v4444
      %v4642 = vpop.f32.mrf.mxu0
      %v4643 = vadd.f32 0.0, %v4642
      %v4644 = vpop.f32.mrf.mxu0
      %v4645 = vpop.f32.mrf.mxu0
      %v4646 = vadd.f32 0.0, %v4645
      %v4647 = vpop.f32.mrf.mxu0
      %4648 = vmatprep.mubr.bf16.mxu0 0
      %4649 = vmatmul.mubr.bf16.gmra.mxu0 %v4447
      %v4650 = vpop.f32.mrf.mxu0
      %v4651 = vadd.f32 0.0, %v4650
      %v4652 = vpop.f32.mrf.mxu0
      %v4653 = vpop.f32.mrf.mxu0
      %v4654 = vadd.f32 0.0, %v4653
      %v4655 = vpop.f32.mrf.mxu0
      %4656 = vmatprep.mubr.bf16.mxu0 0
      %4657 = vmatmul.mubr.bf16.gmra.mxu0 %v4450
      %v4658 = vpop.f32.mrf.mxu0
      %v4659 = vadd.f32 0.0, %v4658
      %v4660 = vpop.f32.mrf.mxu0
      %v4661 = vpop.f32.mrf.mxu0
      %v4662 = vadd.f32 0.0, %v4661
      %v4663 = vpop.f32.mrf.mxu0
      %4664 = vmatprep.mubr.bf16.mxu0 0
      %4665 = vmatmul.mubr.bf16.gmra.mxu0 %v4453
      %v4666 = vpop.f32.mrf.mxu0
      %v4667 = vadd.f32 0.0, %v4666
      %v4668 = vpop.f32.mrf.mxu0
      %v4669 = vpop.f32.mrf.mxu0
      %v4670 = vadd.f32 0.0, %v4669
      %v4671 = vpop.f32.mrf.mxu0
      %4672 = vmatprep.mubr.bf16.mxu0 0
      %4673 = vmatmul.mubr.bf16.gmra.mxu0 %v4456
      %v4674 = vpop.f32.mrf.mxu0
      %v4675 = vadd.f32 0.0, %v4674
      %v4676 = vpop.f32.mrf.mxu0
      %v4677 = vpop.f32.mrf.mxu0
      %v4678 = vadd.f32 0.0, %v4677
      %v4679 = vpop.f32.mrf.mxu0
      %4680 = vmatprep.mubr.bf16.mxu0 0
      %4681 = vmatmul.mubr.bf16.gmra.mxu0 %v4459
      %v4682 = vpop.f32.mrf.mxu0
      %v4683 = vadd.f32 0.0, %v4682
      %v4684 = vpop.f32.mrf.mxu0
      %v4685 = vpop.f32.mrf.mxu0
      %v4686 = vadd.f32 0.0, %v4685
      %v4687 = vpop.f32.mrf.mxu0
      %4688 = vdwg.mxu0
      %v4689 = vadd.f32 %v3943, %v4499
      %v4690 = vadd.f32 %v3944, %v4502
      %v4691 = vadd.f32 %v3945, %v4507
      %v4692 = vadd.f32 %v3946, %v4510
      %v4693 = vadd.f32 %v3947, %v4515
      %v4694 = vadd.f32 %v3948, %v4518
      %v4695 = vadd.f32 %v3949, %v4523
      %v4696 = vadd.f32 %v3950, %v4526
      %v4697 = vadd.f32 %v3951, %v4531
      %v4698 = vadd.f32 %v3952, %v4534
      %v4699 = vadd.f32 %v3953, %v4539
      %v4700 = vadd.f32 %v3954, %v4542
      %v4701 = vadd.f32 %v3955, %v4547
      %v4702 = vadd.f32 %v3956, %v4550
      %v4703 = vadd.f32 %v3957, %v4555
      %v4704 = vadd.f32 %v3958, %v4558
      %v4705 = vadd.f32 %v3959, %v4563
      %v4706 = vadd.f32 %v3960, %v4566
      %v4707 = vadd.f32 %v3961, %v4571
      %v4708 = vadd.f32 %v3962, %v4574
      %v4709 = vadd.f32 %v3963, %v4579
      %v4710 = vadd.f32 %v3964, %v4582
      %v4711 = vadd.f32 %v3965, %v4587
      %v4712 = vadd.f32 %v3966, %v4590
      %v4713 = vadd.f32 %v3967, %v4595
      %v4714 = vadd.f32 %v3968, %v4598
      %v4715 = vadd.f32 %v3969, %v4603
      %v4716 = vadd.f32 %v3970, %v4606
      %v4717 = vadd.f32 %v3971, %v4611
      %v4718 = vadd.f32 %v3972, %v4614
      %v4719 = vadd.f32 %v3973, %v4619
      %v4720 = vadd.f32 %v3974, %v4622
      %v4721 = vadd.f32 %v3975, %v4627
      %v4722 = vadd.f32 %v3976, %v4630
      %v4723 = vadd.f32 %v3977, %v4635
      %v4724 = vadd.f32 %v3978, %v4638
      %v4725 = vadd.f32 %v3979, %v4643
      %v4726 = vadd.f32 %v3980, %v4646
      %v4727 = vadd.f32 %v3981, %v4651
      %v4728 = vadd.f32 %v3982, %v4654
      %v4729 = vadd.f32 %v3983, %v4659
      %v4730 = vadd.f32 %v3984, %v4662
      %v4731 = vadd.f32 %v3985, %v4667
      %v4732 = vadd.f32 %v3986, %v4670
      %v4733 = vadd.f32 %v3987, %v4675
      %v4734 = vadd.f32 %v3988, %v4678
      %v4735 = vadd.f32 %v3989, %v4683
      %v4736 = vadd.f32 %v3990, %v4686
      %s4737 = scalar_lea.vmem %s1, 14
      %v4738 = vld [vmem:[%s4737] sm:$0x3]
      %v4739 = vpack.c.b16 %v4093, %v4092
      %v4740 = vpack.c.b16 %v4095, %v4094
      %v4741 = vpack.c.b16 %v4097, %v4096
      %v4742 = vpack.c.b16 %v4099, %v4098
      %v4743 = vpack.c.b16 %v4101, %v4100
      %v4744 = vpack.c.b16 %v4103, %v4102
      %v4745 = vpack.c.b16 %v4105, %v4104
      %v4746 = vpack.c.b16 %v4107, %v4106
      %v4747 = vpack.c.b16 %v4109, %v4108
      %v4748 = vpack.c.b16 %v4111, %v4110
      %v4749 = vpack.c.b16 %v4113, %v4112
      %v4750 = vpack.c.b16 %v4115, %v4114
      %v4751 = vpack.c.b16 %v4117, %v4116
      %v4752 = vpack.c.b16 %v4119, %v4118
      %v4753 = vpack.c.b16 %v4121, %v4120
      %v4754 = vpack.c.b16 %v4123, %v4122
      %v4755 = vpack.c.b16 %v4125, %v4124
      %v4756 = vpack.c.b16 %v4127, %v4126
      %v4757 = vpack.c.b16 %v4129, %v4128
      %v4758 = vpack.c.b16 %v4131, %v4130
      %v4759 = vpack.c.b16 %v4133, %v4132
      %v4760 = vpack.c.b16 %v4135, %v4134
      %v4761 = vpack.c.b16 %v4137, %v4136
      %v4762 = vpack.c.b16 %v4139, %v4138
      %v4764 = vsel %vm580, %v4739, 0
      %v4767 = vsel %vm580, %v4740, 0
      %v4770 = vsel %vm580, %v4741, 0
      %v4773 = vsel %vm580, %v4742, 0
      %v4776 = vsel %vm580, %v4743, 0
      %v4779 = vsel %vm580, %v4744, 0
      %v4782 = vsel %vm580, %v4745, 0
      %v4785 = vsel %vm580, %v4746, 0
      %v4788 = vsel %vm580, %v4747, 0
      %v4791 = vsel %vm580, %v4748, 0
      %v4794 = vsel %vm580, %v4749, 0
      %v4797 = vsel %vm580, %v4750, 0
      %v4800 = vsel %vm580, %v4751, 0
      %v4803 = vsel %vm580, %v4752, 0
      %v4806 = vsel %vm580, %v4753, 0
      %v4809 = vsel %vm580, %v4754, 0
      %v4812 = vsel %vm580, %v4755, 0
      %v4815 = vsel %vm580, %v4756, 0
      %v4818 = vsel %vm580, %v4757, 0
      %v4821 = vsel %vm580, %v4758, 0
      %v4824 = vsel %vm580, %v4759, 0
      %v4827 = vsel %vm580, %v4760, 0
      %v4830 = vsel %vm580, %v4761, 0
      %v4833 = vsel %vm580, %v4762, 0
      %v4836 = vsel %vm653, %v4738, 0
      %4838 = vmatprep.subr.bf16.mxu0 0
      %4839 = vmatpush1.bf16.msra.mxu0 0
      %4840 = vmatprep.subr.bf16.mxu0 0
      %4841 = vmatpush1.bf16.msra.mxu0 0
      %4842 = vmatprep.subr.bf16.mxu0 0
      %4843 = vmatpush1.bf16.msra.mxu0 0
      %4844 = vmatprep.subr.bf16.mxu0 0
      %4845 = vmatpush1.bf16.msra.mxu0 0
      %4846 = vmatprep.subr.bf16.mxu0 0
      %4847 = vmatpush1.bf16.msra.mxu0 0
      %4848 = vmatprep.subr.bf16.mxu0 0
      %4849 = vmatpush1.bf16.msra.mxu0 0
      %4850 = vmatprep.subr.bf16.mxu0 0
      %4851 = vmatpush1.bf16.msra.mxu0 0
      %4852 = vmatprep.subr.bf16.mxu0 0
      %4853 = vmatpush1.bf16.msra.mxu0 %v4836
      %4854 = vmatprep.subr.bf16.mxu0 0
      %4855 = vmatpush2.bf16.msra.mxu0 0
      %4856 = vmatprep.subr.bf16.mxu0 0
      %4857 = vmatpush2.bf16.msra.mxu0 0
      %4858 = vmatprep.subr.bf16.mxu0 0
      %4859 = vmatpush2.bf16.msra.mxu0 0
      %4860 = vmatprep.subr.bf16.mxu0 0
      %4861 = vmatpush2.bf16.msra.mxu0 0
      %4862 = vmatprep.subr.bf16.mxu0 0
      %4863 = vmatpush2.bf16.msra.mxu0 0
      %4864 = vmatprep.subr.bf16.mxu0 0
      %4865 = vmatpush2.bf16.msra.mxu0 0
      %4866 = vmatprep.subr.bf16.mxu0 0
      %4867 = vmatpush2.bf16.msra.mxu0 0
      %4868 = vmatprep.subr.bf16.mxu0 0
      %4869 = vmatpush2.bf16.msra.mxu0 0
      %4870 = vmatprep.mubr.bf16.mxu0 0
      %4871 = vmatmul.mubr.bf16.gmra.mxu0 %v4764
      %v4872 = vpop.f32.mrf.mxu0
      %v4873 = vadd.f32 0.0, %v4872
      %v4874 = vpop.f32.mrf.mxu0
      %v4875 = vpop.f32.mrf.mxu0
      %v4876 = vadd.f32 0.0, %v4875
      %v4877 = vpop.f32.mrf.mxu0
      %4878 = vmatprep.mubr.bf16.mxu0 0
      %4879 = vmatmul.mubr.bf16.gmra.mxu0 %v4767
      %v4880 = vpop.f32.mrf.mxu0
      %v4881 = vadd.f32 0.0, %v4880
      %v4882 = vpop.f32.mrf.mxu0
      %v4883 = vpop.f32.mrf.mxu0
      %v4884 = vadd.f32 0.0, %v4883
      %v4885 = vpop.f32.mrf.mxu0
      %4886 = vmatprep.mubr.bf16.mxu0 0
      %4887 = vmatmul.mubr.bf16.gmra.mxu0 %v4770
      %v4888 = vpop.f32.mrf.mxu0
      %v4889 = vadd.f32 0.0, %v4888
      %v4890 = vpop.f32.mrf.mxu0
      %v4891 = vpop.f32.mrf.mxu0
      %v4892 = vadd.f32 0.0, %v4891
      %v4893 = vpop.f32.mrf.mxu0
      %4894 = vmatprep.mubr.bf16.mxu0 0
      %4895 = vmatmul.mubr.bf16.gmra.mxu0 %v4773
      %v4896 = vpop.f32.mrf.mxu0
      %v4897 = vadd.f32 0.0, %v4896
      %v4898 = vpop.f32.mrf.mxu0
      %v4899 = vpop.f32.mrf.mxu0
      %v4900 = vadd.f32 0.0, %v4899
      %v4901 = vpop.f32.mrf.mxu0
      %4902 = vmatprep.mubr.bf16.mxu0 0
      %4903 = vmatmul.mubr.bf16.gmra.mxu0 %v4776
      %v4904 = vpop.f32.mrf.mxu0
      %v4905 = vadd.f32 0.0, %v4904
      %v4906 = vpop.f32.mrf.mxu0
      %v4907 = vpop.f32.mrf.mxu0
      %v4908 = vadd.f32 0.0, %v4907
      %v4909 = vpop.f32.mrf.mxu0
      %4910 = vmatprep.mubr.bf16.mxu0 0
      %4911 = vmatmul.mubr.bf16.gmra.mxu0 %v4779
      %v4912 = vpop.f32.mrf.mxu0
      %v4913 = vadd.f32 0.0, %v4912
      %v4914 = vpop.f32.mrf.mxu0
      %v4915 = vpop.f32.mrf.mxu0
      %v4916 = vadd.f32 0.0, %v4915
      %v4917 = vpop.f32.mrf.mxu0
      %4918 = vmatprep.mubr.bf16.mxu0 0
      %4919 = vmatmul.mubr.bf16.gmra.mxu0 %v4782
      %v4920 = vpop.f32.mrf.mxu0
      %v4921 = vadd.f32 0.0, %v4920
      %v4922 = vpop.f32.mrf.mxu0
      %v4923 = vpop.f32.mrf.mxu0
      %v4924 = vadd.f32 0.0, %v4923
      %v4925 = vpop.f32.mrf.mxu0
      %4926 = vmatprep.mubr.bf16.mxu0 0
      %4927 = vmatmul.mubr.bf16.gmra.mxu0 %v4785
      %v4928 = vpop.f32.mrf.mxu0
      %v4929 = vadd.f32 0.0, %v4928
      %v4930 = vpop.f32.mrf.mxu0
      %v4931 = vpop.f32.mrf.mxu0
      %v4932 = vadd.f32 0.0, %v4931
      %v4933 = vpop.f32.mrf.mxu0
      %4934 = vmatprep.mubr.bf16.mxu0 0
      %4935 = vmatmul.mubr.bf16.gmra.mxu0 %v4788
      %v4936 = vpop.f32.mrf.mxu0
      %v4937 = vadd.f32 0.0, %v4936
      %v4938 = vpop.f32.mrf.mxu0
      %v4939 = vpop.f32.mrf.mxu0
      %v4940 = vadd.f32 0.0, %v4939
      %v4941 = vpop.f32.mrf.mxu0
      %4942 = vmatprep.mubr.bf16.mxu0 0
      %4943 = vmatmul.mubr.bf16.gmra.mxu0 %v4791
      %v4944 = vpop.f32.mrf.mxu0
      %v4945 = vadd.f32 0.0, %v4944
      %v4946 = vpop.f32.mrf.mxu0
      %v4947 = vpop.f32.mrf.mxu0
      %v4948 = vadd.f32 0.0, %v4947
      %v4949 = vpop.f32.mrf.mxu0
      %4950 = vmatprep.mubr.bf16.mxu0 0
      %4951 = vmatmul.mubr.bf16.gmra.mxu0 %v4794
      %v4952 = vpop.f32.mrf.mxu0
      %v4953 = vadd.f32 0.0, %v4952
      %v4954 = vpop.f32.mrf.mxu0
      %v4955 = vpop.f32.mrf.mxu0
      %v4956 = vadd.f32 0.0, %v4955
      %v4957 = vpop.f32.mrf.mxu0
      %4958 = vmatprep.mubr.bf16.mxu0 0
      %4959 = vmatmul.mubr.bf16.gmra.mxu0 %v4797
      %v4960 = vpop.f32.mrf.mxu0
      %v4961 = vadd.f32 0.0, %v4960
      %v4962 = vpop.f32.mrf.mxu0
      %v4963 = vpop.f32.mrf.mxu0
      %v4964 = vadd.f32 0.0, %v4963
      %v4965 = vpop.f32.mrf.mxu0
      %4966 = vmatprep.mubr.bf16.mxu0 0
      %4967 = vmatmul.mubr.bf16.gmra.mxu0 %v4800
      %v4968 = vpop.f32.mrf.mxu0
      %v4969 = vadd.f32 0.0, %v4968
      %v4970 = vpop.f32.mrf.mxu0
      %v4971 = vpop.f32.mrf.mxu0
      %v4972 = vadd.f32 0.0, %v4971
      %v4973 = vpop.f32.mrf.mxu0
      %4974 = vmatprep.mubr.bf16.mxu0 0
      %4975 = vmatmul.mubr.bf16.gmra.mxu0 %v4803
      %v4976 = vpop.f32.mrf.mxu0
      %v4977 = vadd.f32 0.0, %v4976
      %v4978 = vpop.f32.mrf.mxu0
      %v4979 = vpop.f32.mrf.mxu0
      %v4980 = vadd.f32 0.0, %v4979
      %v4981 = vpop.f32.mrf.mxu0
      %4982 = vmatprep.mubr.bf16.mxu0 0
      %4983 = vmatmul.mubr.bf16.gmra.mxu0 %v4806
      %v4984 = vpop.f32.mrf.mxu0
      %v4985 = vadd.f32 0.0, %v4984
      %v4986 = vpop.f32.mrf.mxu0
      %v4987 = vpop.f32.mrf.mxu0
      %v4988 = vadd.f32 0.0, %v4987
      %v4989 = vpop.f32.mrf.mxu0
      %4990 = vmatprep.mubr.bf16.mxu0 0
      %4991 = vmatmul.mubr.bf16.gmra.mxu0 %v4809
      %v4992 = vpop.f32.mrf.mxu0
      %v4993 = vadd.f32 0.0, %v4992
      %v4994 = vpop.f32.mrf.mxu0
      %v4995 = vpop.f32.mrf.mxu0
      %v4996 = vadd.f32 0.0, %v4995
      %v4997 = vpop.f32.mrf.mxu0
      %4998 = vmatprep.mubr.bf16.mxu0 0
      %4999 = vmatmul.mubr.bf16.gmra.mxu0 %v4812
      %v5000 = vpop.f32.mrf.mxu0
      %v5001 = vadd.f32 0.0, %v5000
      %v5002 = vpop.f32.mrf.mxu0
      %v5003 = vpop.f32.mrf.mxu0
      %v5004 = vadd.f32 0.0, %v5003
      %v5005 = vpop.f32.mrf.mxu0
      %5006 = vmatprep.mubr.bf16.mxu0 0
      %5007 = vmatmul.mubr.bf16.gmra.mxu0 %v4815
      %v5008 = vpop.f32.mrf.mxu0
      %v5009 = vadd.f32 0.0, %v5008
      %v5010 = vpop.f32.mrf.mxu0
      %v5011 = vpop.f32.mrf.mxu0
      %v5012 = vadd.f32 0.0, %v5011
      %v5013 = vpop.f32.mrf.mxu0
      %5014 = vmatprep.mubr.bf16.mxu0 0
      %5015 = vmatmul.mubr.bf16.gmra.mxu0 %v4818
      %v5016 = vpop.f32.mrf.mxu0
      %v5017 = vadd.f32 0.0, %v5016
      %v5018 = vpop.f32.mrf.mxu0
      %v5019 = vpop.f32.mrf.mxu0
      %v5020 = vadd.f32 0.0, %v5019
      %v5021 = vpop.f32.mrf.mxu0
      %5022 = vmatprep.mubr.bf16.mxu0 0
      %5023 = vmatmul.mubr.bf16.gmra.mxu0 %v4821
      %v5024 = vpop.f32.mrf.mxu0
      %v5025 = vadd.f32 0.0, %v5024
      %v5026 = vpop.f32.mrf.mxu0
      %v5027 = vpop.f32.mrf.mxu0
      %v5028 = vadd.f32 0.0, %v5027
      %v5029 = vpop.f32.mrf.mxu0
      %5030 = vmatprep.mubr.bf16.mxu0 0
      %5031 = vmatmul.mubr.bf16.gmra.mxu0 %v4824
      %v5032 = vpop.f32.mrf.mxu0
      %v5033 = vadd.f32 0.0, %v5032
      %v5034 = vpop.f32.mrf.mxu0
      %v5035 = vpop.f32.mrf.mxu0
      %v5036 = vadd.f32 0.0, %v5035
      %v5037 = vpop.f32.mrf.mxu0
      %5038 = vmatprep.mubr.bf16.mxu0 0
      %5039 = vmatmul.mubr.bf16.gmra.mxu0 %v4827
      %v5040 = vpop.f32.mrf.mxu0
      %v5041 = vadd.f32 0.0, %v5040
      %v5042 = vpop.f32.mrf.mxu0
      %v5043 = vpop.f32.mrf.mxu0
      %v5044 = vadd.f32 0.0, %v5043
      %v5045 = vpop.f32.mrf.mxu0
      %5046 = vmatprep.mubr.bf16.mxu0 0
      %5047 = vmatmul.mubr.bf16.gmra.mxu0 %v4830
      %v5048 = vpop.f32.mrf.mxu0
      %v5049 = vadd.f32 0.0, %v5048
      %v5050 = vpop.f32.mrf.mxu0
      %v5051 = vpop.f32.mrf.mxu0
      %v5052 = vadd.f32 0.0, %v5051
      %v5053 = vpop.f32.mrf.mxu0
      %5054 = vmatprep.mubr.bf16.mxu0 0
      %5055 = vmatmul.mubr.bf16.gmra.mxu0 %v4833
      %v5056 = vpop.f32.mrf.mxu0
      %v5057 = vadd.f32 0.0, %v5056
      %v5058 = vpop.f32.mrf.mxu0
      %v5059 = vpop.f32.mrf.mxu0
      %v5060 = vadd.f32 0.0, %v5059
      %v5061 = vpop.f32.mrf.mxu0
      %5062 = vdwg.mxu0
      %v5063 = vadd.f32 %v4689, %v4873
      %v5064 = vadd.f32 %v4690, %v4876
      %v5065 = vadd.f32 %v4691, %v4881
      %v5066 = vadd.f32 %v4692, %v4884
      %v5067 = vadd.f32 %v4693, %v4889
      %v5068 = vadd.f32 %v4694, %v4892
      %v5069 = vadd.f32 %v4695, %v4897
      %v5070 = vadd.f32 %v4696, %v4900
      %v5071 = vadd.f32 %v4697, %v4905
      %v5072 = vadd.f32 %v4698, %v4908
      %v5073 = vadd.f32 %v4699, %v4913
      %v5074 = vadd.f32 %v4700, %v4916
      %v5075 = vadd.f32 %v4701, %v4921
      %v5076 = vadd.f32 %v4702, %v4924
      %v5077 = vadd.f32 %v4703, %v4929
      %v5078 = vadd.f32 %v4704, %v4932
      %v5079 = vadd.f32 %v4705, %v4937
      %v5080 = vadd.f32 %v4706, %v4940
      %v5081 = vadd.f32 %v4707, %v4945
      %v5082 = vadd.f32 %v4708, %v4948
      %v5083 = vadd.f32 %v4709, %v4953
      %v5084 = vadd.f32 %v4710, %v4956
      %v5085 = vadd.f32 %v4711, %v4961
      %v5086 = vadd.f32 %v4712, %v4964
      %v5087 = vadd.f32 %v4713, %v4969
      %v5088 = vadd.f32 %v4714, %v4972
      %v5089 = vadd.f32 %v4715, %v4977
      %v5090 = vadd.f32 %v4716, %v4980
      %v5091 = vadd.f32 %v4717, %v4985
      %v5092 = vadd.f32 %v4718, %v4988
      %v5093 = vadd.f32 %v4719, %v4993
      %v5094 = vadd.f32 %v4720, %v4996
      %v5095 = vadd.f32 %v4721, %v5001
      %v5096 = vadd.f32 %v4722, %v5004
      %v5097 = vadd.f32 %v4723, %v5009
      %v5098 = vadd.f32 %v4724, %v5012
      %v5099 = vadd.f32 %v4725, %v5017
      %v5100 = vadd.f32 %v4726, %v5020
      %v5101 = vadd.f32 %v4727, %v5025
      %v5102 = vadd.f32 %v4728, %v5028
      %v5103 = vadd.f32 %v4729, %v5033
      %v5104 = vadd.f32 %v4730, %v5036
      %v5105 = vadd.f32 %v4731, %v5041
      %v5106 = vadd.f32 %v4732, %v5044
      %v5107 = vadd.f32 %v4733, %v5049
      %v5108 = vadd.f32 %v4734, %v5052
      %v5109 = vadd.f32 %v4735, %v5057
      %v5110 = vadd.f32 %v4736, %v5060
      %v5111 = vld [vmem:[#allocation2 + $0x1c] sm:$0xf]
      %v5112 = vld [vmem:[#allocation2 + $0x20] sm:$0xf]
      %v5113 = vld [vmem:[#allocation2 + $0x24] sm:$0xf]
      %v5114 = vld [vmem:[#allocation2 + $0x28] sm:$0xf]
      %v5115 = vld [vmem:[#allocation2 + $0x2c] sm:$0xf]
      %v5116 = vld [vmem:[#allocation2 + $0x30] sm:$0xf]
      %v5117 = vld [vmem:[#allocation2 + $0x34] sm:$0xf]
      %v5118 = vld [vmem:[#allocation2 + $0x38] sm:$0xf]
      %v5119 = vld [vmem:[#allocation2 + $0x3c] sm:$0xf]
      %v5120 = vld [vmem:[#allocation2 + $0x40] sm:$0xf]
      %v5121 = vld [vmem:[#allocation2 + $0x44] sm:$0xf]
      %v5122 = vld [vmem:[#allocation2 + $0x48] sm:$0xf]
      %v5123 = vld [vmem:[#allocation2 + $0x4c] sm:$0xf]
      %v5124 = vld [vmem:[#allocation2 + $0x50] sm:$0xf]
      %v5125 = vld [vmem:[#allocation2 + $0x54] sm:$0xf]
      %v5126 = vld [vmem:[#allocation2 + $0x58] sm:$0xf]
      %v5127 = vld [vmem:[#allocation2 + $0x5c] sm:$0xf]
      %v5128 = vld [vmem:[#allocation2 + $0x60] sm:$0xf]
      %v5129 = vld [vmem:[#allocation2 + $0x64] sm:$0xf]
      %v5130 = vld [vmem:[#allocation2 + $0x68] sm:$0xf]
      %v5131 = vld [vmem:[#allocation2 + $0x6c] sm:$0xf]
      %v5132 = vld [vmem:[#allocation2 + $0x70] sm:$0xf]
      %v5133 = vld [vmem:[#allocation2 + $0x74] sm:$0xf]
      %v5134 = vld [vmem:[#allocation2 + $0x78] sm:$0xf]
      %v5135 = vld [vmem:[#allocation2 + $0x7c] sm:$0xf]
      %v5136 = vld [vmem:[#allocation2 + $0x80] sm:$0xf]
      %v5137 = vld [vmem:[#allocation2 + $0x84] sm:$0xf]
      %v5138 = vld [vmem:[#allocation2 + $0x88] sm:$0xf]
      %v5139 = vld [vmem:[#allocation2 + $0x8c] sm:$0xf]
      %v5140 = vld [vmem:[#allocation2 + $0x90] sm:$0xf]
      %v5141 = vld [vmem:[#allocation2 + $0x94] sm:$0xf]
      %v5142 = vld [vmem:[#allocation2 + $0x98] sm:$0xf]
      %v5143 = vld [vmem:[#allocation2 + $0x9c] sm:$0xf]
      %v5144 = vld [vmem:[#allocation2 + $0xa0] sm:$0xf]
      %v5145 = vld [vmem:[#allocation2 + $0xa4] sm:$0xf]
      %v5146 = vld [vmem:[#allocation2 + $0xa8] sm:$0xf]
      %v5147 = vld [vmem:[#allocation2 + $0xac] sm:$0xf]
      %v5148 = vld [vmem:[#allocation2 + $0xb0] sm:$0xf]
      %v5149 = vld [vmem:[#allocation2 + $0xb4] sm:$0xf]
      %v5150 = vld [vmem:[#allocation2 + $0xb8] sm:$0xf]
      %v5151 = vld [vmem:[#allocation2 + $0xbc] sm:$0xf]
      %v5152 = vld [vmem:[#allocation2 + $0xc0] sm:$0xf]
      %v5153 = vld [vmem:[#allocation2 + $0xc4] sm:$0xf]
      %v5154 = vld [vmem:[#allocation2 + $0xc8] sm:$0xf]
      %v5155 = vld [vmem:[#allocation2 + $0xcc] sm:$0xf]
      %v5156 = vld [vmem:[#allocation2 + $0xd0] sm:$0xf]
      %v5157 = vld [vmem:[#allocation2 + $0xd4] sm:$0xf]
      %v5158 = vld [vmem:[#allocation2 + $0xd8] sm:$0xf]
      %v5159 = vld [vmem:[#allocation2 + $0xdc] sm:$0x1]
      %s5160 = scalar_lea.vmem %s1, 16
      %v5161 = vld [vmem:[%s5160] sm:$0x3]
      %v5211 = vunpack.c.l.b16 %v5111
      %v5212 = vunpack.c.l.b16 %v5112
      %v5213 = vunpack.c.l.b16 %v5113
      %v5214 = vunpack.c.l.b16 %v5114
      %v5215 = vunpack.c.l.b16 %v5115
      %v5216 = vunpack.c.l.b16 %v5116
      %v5217 = vunpack.c.l.b16 %v5117
      %v5218 = vunpack.c.l.b16 %v5118
      %v5219 = vunpack.c.l.b16 %v5119
      %v5220 = vunpack.c.l.b16 %v5120
      %v5221 = vunpack.c.l.b16 %v5121
      %v5222 = vunpack.c.l.b16 %v5122
      %v5223 = vunpack.c.l.b16 %v5123
      %v5224 = vunpack.c.l.b16 %v5124
      %v5225 = vunpack.c.l.b16 %v5125
      %v5226 = vunpack.c.l.b16 %v5126
      %v5227 = vunpack.c.l.b16 %v5127
      %v5228 = vunpack.c.l.b16 %v5128
      %v5229 = vunpack.c.l.b16 %v5129
      %v5230 = vunpack.c.l.b16 %v5130
      %v5231 = vunpack.c.l.b16 %v5131
      %v5232 = vunpack.c.l.b16 %v5132
      %v5233 = vunpack.c.l.b16 %v5133
      %v5234 = vunpack.c.l.b16 %v5134
      %v5235 = vunpack.c.l.b16 %v5135
      %v5236 = vunpack.c.l.b16 %v5136
      %v5237 = vunpack.c.l.b16 %v5137
      %v5238 = vunpack.c.l.b16 %v5138
      %v5239 = vunpack.c.l.b16 %v5139
      %v5240 = vunpack.c.l.b16 %v5140
      %v5241 = vunpack.c.l.b16 %v5141
      %v5242 = vunpack.c.l.b16 %v5142
      %v5243 = vunpack.c.l.b16 %v5143
      %v5244 = vunpack.c.l.b16 %v5144
      %v5245 = vunpack.c.l.b16 %v5145
      %v5246 = vunpack.c.l.b16 %v5146
      %v5247 = vunpack.c.l.b16 %v5147
      %v5248 = vunpack.c.l.b16 %v5148
      %v5249 = vunpack.c.l.b16 %v5149
      %v5250 = vunpack.c.l.b16 %v5150
      %v5251 = vunpack.c.l.b16 %v5151
      %v5252 = vunpack.c.l.b16 %v5152
      %v5253 = vunpack.c.l.b16 %v5153
      %v5254 = vunpack.c.l.b16 %v5154
      %v5255 = vunpack.c.l.b16 %v5155
      %v5256 = vunpack.c.l.b16 %v5156
      %v5257 = vunpack.c.l.b16 %v5157
      %v5258 = vunpack.c.l.b16 %v5158
      %v5259 = vunpack.c.l.b16 %v5159
      %v5260 = vpack.c.b16 %v5212, %v5211
      %v5261 = vpack.c.b16 %v5214, %v5213
      %v5262 = vpack.c.b16 %v5216, %v5215
      %v5263 = vpack.c.b16 %v5218, %v5217
      %v5264 = vpack.c.b16 %v5220, %v5219
      %v5265 = vpack.c.b16 %v5222, %v5221
      %v5266 = vpack.c.b16 %v5224, %v5223
      %v5267 = vpack.c.b16 %v5226, %v5225
      %v5268 = vpack.c.b16 %v5228, %v5227
      %v5269 = vpack.c.b16 %v5230, %v5229
      %v5270 = vpack.c.b16 %v5232, %v5231
      %v5271 = vpack.c.b16 %v5234, %v5233
      %v5272 = vpack.c.b16 %v5236, %v5235
      %v5273 = vpack.c.b16 %v5238, %v5237
      %v5274 = vpack.c.b16 %v5240, %v5239
      %v5275 = vpack.c.b16 %v5242, %v5241
      %v5276 = vpack.c.b16 %v5244, %v5243
      %v5277 = vpack.c.b16 %v5246, %v5245
      %v5278 = vpack.c.b16 %v5248, %v5247
      %v5279 = vpack.c.b16 %v5250, %v5249
      %v5280 = vpack.c.b16 %v5252, %v5251
      %v5281 = vpack.c.b16 %v5254, %v5253
      %v5282 = vpack.c.b16 %v5256, %v5255
      %v5283 = vpack.c.b16 %v5258, %v5257
      %v5284 = vpack.c.b16 %v5259, %v5259
      %v5286 = vshrl.u32 %v5260, 16
      %v5288 = vshll.u32 %v5260, 16
      %v5290 = vrot.slane %v5288, 1
      %v5291 = vor.u32 %v5286, %v5290
      %v5293 = vshll.u32 %v5261, 16
      %v5295 = vrot.slane %v5293, 1
      %v5296 = vsel %vm1608, %v5291, %v5295
      %v5297 = vshrl.u32 %v5261, 16
      %v5299 = vor.u32 %v5297, %v5295
      %v5301 = vshll.u32 %v5262, 16
      %v5303 = vrot.slane %v5301, 1
      %v5304 = vsel %vm1608, %v5299, %v5303
      %v5305 = vshrl.u32 %v5262, 16
      %v5307 = vor.u32 %v5305, %v5303
      %v5309 = vshll.u32 %v5263, 16
      %v5311 = vrot.slane %v5309, 1
      %v5312 = vsel %vm1608, %v5307, %v5311
      %v5313 = vshrl.u32 %v5263, 16
      %v5315 = vor.u32 %v5313, %v5311
      %v5317 = vshll.u32 %v5264, 16
      %v5319 = vrot.slane %v5317, 1
      %v5320 = vsel %vm1608, %v5315, %v5319
      %v5321 = vshrl.u32 %v5264, 16
      %v5323 = vor.u32 %v5321, %v5319
      %v5325 = vshll.u32 %v5265, 16
      %v5327 = vrot.slane %v5325, 1
      %v5328 = vsel %vm1608, %v5323, %v5327
      %v5329 = vshrl.u32 %v5265, 16
      %v5331 = vor.u32 %v5329, %v5327
      %v5333 = vshll.u32 %v5266, 16
      %v5335 = vrot.slane %v5333, 1
      %v5336 = vsel %vm1608, %v5331, %v5335
      %v5337 = vshrl.u32 %v5266, 16
      %v5339 = vor.u32 %v5337, %v5335
      %v5341 = vshll.u32 %v5267, 16
      %v5343 = vrot.slane %v5341, 1
      %v5344 = vsel %vm1608, %v5339, %v5343
      %v5345 = vshrl.u32 %v5267, 16
      %v5347 = vor.u32 %v5345, %v5343
      %v5349 = vshll.u32 %v5268, 16
      %v5351 = vrot.slane %v5349, 1
      %v5352 = vsel %vm1608, %v5347, %v5351
      %v5353 = vshrl.u32 %v5268, 16
      %v5355 = vor.u32 %v5353, %v5351
      %v5357 = vshll.u32 %v5269, 16
      %v5359 = vrot.slane %v5357, 1
      %v5360 = vsel %vm1608, %v5355, %v5359
      %v5361 = vshrl.u32 %v5269, 16
      %v5363 = vor.u32 %v5361, %v5359
      %v5365 = vshll.u32 %v5270, 16
      %v5367 = vrot.slane %v5365, 1
      %v5368 = vsel %vm1608, %v5363, %v5367
      %v5369 = vshrl.u32 %v5270, 16
      %v5371 = vor.u32 %v5369, %v5367
      %v5373 = vshll.u32 %v5271, 16
      %v5375 = vrot.slane %v5373, 1
      %v5376 = vsel %vm1608, %v5371, %v5375
      %v5377 = vshrl.u32 %v5271, 16
      %v5379 = vor.u32 %v5377, %v5375
      %v5381 = vshll.u32 %v5272, 16
      %v5383 = vrot.slane %v5381, 1
      %v5384 = vsel %vm1608, %v5379, %v5383
      %v5385 = vshrl.u32 %v5272, 16
      %v5387 = vor.u32 %v5385, %v5383
      %v5389 = vshll.u32 %v5273, 16
      %v5391 = vrot.slane %v5389, 1
      %v5392 = vsel %vm1608, %v5387, %v5391
      %v5393 = vshrl.u32 %v5273, 16
      %v5395 = vor.u32 %v5393, %v5391
      %v5397 = vshll.u32 %v5274, 16
      %v5399 = vrot.slane %v5397, 1
      %v5400 = vsel %vm1608, %v5395, %v5399
      %v5401 = vshrl.u32 %v5274, 16
      %v5403 = vor.u32 %v5401, %v5399
      %v5405 = vshll.u32 %v5275, 16
      %v5407 = vrot.slane %v5405, 1
      %v5408 = vsel %vm1608, %v5403, %v5407
      %v5409 = vshrl.u32 %v5275, 16
      %v5411 = vor.u32 %v5409, %v5407
      %v5413 = vshll.u32 %v5276, 16
      %v5415 = vrot.slane %v5413, 1
      %v5416 = vsel %vm1608, %v5411, %v5415
      %v5417 = vshrl.u32 %v5276, 16
      %v5419 = vor.u32 %v5417, %v5415
      %v5421 = vshll.u32 %v5277, 16
      %v5423 = vrot.slane %v5421, 1
      %v5424 = vsel %vm1608, %v5419, %v5423
      %v5425 = vshrl.u32 %v5277, 16
      %v5427 = vor.u32 %v5425, %v5423
      %v5429 = vshll.u32 %v5278, 16
      %v5431 = vrot.slane %v5429, 1
      %v5432 = vsel %vm1608, %v5427, %v5431
      %v5433 = vshrl.u32 %v5278, 16
      %v5435 = vor.u32 %v5433, %v5431
      %v5437 = vshll.u32 %v5279, 16
      %v5439 = vrot.slane %v5437, 1
      %v5440 = vsel %vm1608, %v5435, %v5439
      %v5441 = vshrl.u32 %v5279, 16
      %v5443 = vor.u32 %v5441, %v5439
      %v5445 = vshll.u32 %v5280, 16
      %v5447 = vrot.slane %v5445, 1
      %v5448 = vsel %vm1608, %v5443, %v5447
      %v5449 = vshrl.u32 %v5280, 16
      %v5451 = vor.u32 %v5449, %v5447
      %v5453 = vshll.u32 %v5281, 16
      %v5455 = vrot.slane %v5453, 1
      %v5456 = vsel %vm1608, %v5451, %v5455
      %v5457 = vshrl.u32 %v5281, 16
      %v5459 = vor.u32 %v5457, %v5455
      %v5461 = vshll.u32 %v5282, 16
      %v5463 = vrot.slane %v5461, 1
      %v5464 = vsel %vm1608, %v5459, %v5463
      %v5465 = vshrl.u32 %v5282, 16
      %v5467 = vor.u32 %v5465, %v5463
      %v5469 = vshll.u32 %v5283, 16
      %v5471 = vrot.slane %v5469, 1
      %v5472 = vsel %vm1608, %v5467, %v5471
      %v5473 = vshrl.u32 %v5283, 16
      %v5475 = vor.u32 %v5473, %v5471
      %v5477 = vshll.u32 %v5284, 16
      %v5479 = vrot.slane %v5477, 1
      %v5480 = vsel %vm1608, %v5475, %v5479
      %v5482 = vsel %vm580, %v5296, 0
      %v5485 = vsel %vm580, %v5304, 0
      %v5488 = vsel %vm580, %v5312, 0
      %v5491 = vsel %vm580, %v5320, 0
      %v5494 = vsel %vm580, %v5328, 0
      %v5497 = vsel %vm580, %v5336, 0
      %v5500 = vsel %vm580, %v5344, 0
      %v5503 = vsel %vm580, %v5352, 0
      %v5506 = vsel %vm580, %v5360, 0
      %v5509 = vsel %vm580, %v5368, 0
      %v5512 = vsel %vm580, %v5376, 0
      %v5515 = vsel %vm580, %v5384, 0
      %v5518 = vsel %vm580, %v5392, 0
      %v5521 = vsel %vm580, %v5400, 0
      %v5524 = vsel %vm580, %v5408, 0
      %v5527 = vsel %vm580, %v5416, 0
      %v5530 = vsel %vm580, %v5424, 0
      %v5533 = vsel %vm580, %v5432, 0
      %v5536 = vsel %vm580, %v5440, 0
      %v5539 = vsel %vm580, %v5448, 0
      %v5542 = vsel %vm580, %v5456, 0
      %v5545 = vsel %vm580, %v5464, 0
      %v5548 = vsel %vm580, %v5472, 0
      %v5551 = vsel %vm580, %v5480, 0
      %v5554 = vsel %vm653, %v5161, 0
      %5556 = vmatprep.subr.bf16.mxu0 0
      %5557 = vmatpush1.bf16.msra.mxu0 0
      %5558 = vmatprep.subr.bf16.mxu0 0
      %5559 = vmatpush1.bf16.msra.mxu0 0
      %5560 = vmatprep.subr.bf16.mxu0 0
      %5561 = vmatpush1.bf16.msra.mxu0 0
      %5562 = vmatprep.subr.bf16.mxu0 0
      %5563 = vmatpush1.bf16.msra.mxu0 0
      %5564 = vmatprep.subr.bf16.mxu0 0
      %5565 = vmatpush1.bf16.msra.mxu0 0
      %5566 = vmatprep.subr.bf16.mxu0 0
      %5567 = vmatpush1.bf16.msra.mxu0 0
      %5568 = vmatprep.subr.bf16.mxu0 0
      %5569 = vmatpush1.bf16.msra.mxu0 0
      %5570 = vmatprep.subr.bf16.mxu0 0
      %5571 = vmatpush1.bf16.msra.mxu0 %v5554
      %5572 = vmatprep.subr.bf16.mxu0 0
      %5573 = vmatpush2.bf16.msra.mxu0 0
      %5574 = vmatprep.subr.bf16.mxu0 0
      %5575 = vmatpush2.bf16.msra.mxu0 0
      %5576 = vmatprep.subr.bf16.mxu0 0
      %5577 = vmatpush2.bf16.msra.mxu0 0
      %5578 = vmatprep.subr.bf16.mxu0 0
      %5579 = vmatpush2.bf16.msra.mxu0 0
      %5580 = vmatprep.subr.bf16.mxu0 0
      %5581 = vmatpush2.bf16.msra.mxu0 0
      %5582 = vmatprep.subr.bf16.mxu0 0
      %5583 = vmatpush2.bf16.msra.mxu0 0
      %5584 = vmatprep.subr.bf16.mxu0 0
      %5585 = vmatpush2.bf16.msra.mxu0 0
      %5586 = vmatprep.subr.bf16.mxu0 0
      %5587 = vmatpush2.bf16.msra.mxu0 0
      %5588 = vmatprep.mubr.bf16.mxu0 0
      %5589 = vmatmul.mubr.bf16.gmra.mxu0 %v5482
      %v5590 = vpop.f32.mrf.mxu0
      %v5591 = vadd.f32 0.0, %v5590
      %v5592 = vpop.f32.mrf.mxu0
      %v5593 = vpop.f32.mrf.mxu0
      %v5594 = vadd.f32 0.0, %v5593
      %v5595 = vpop.f32.mrf.mxu0
      %5596 = vmatprep.mubr.bf16.mxu0 0
      %5597 = vmatmul.mubr.bf16.gmra.mxu0 %v5485
      %v5598 = vpop.f32.mrf.mxu0
      %v5599 = vadd.f32 0.0, %v5598
      %v5600 = vpop.f32.mrf.mxu0
      %v5601 = vpop.f32.mrf.mxu0
      %v5602 = vadd.f32 0.0, %v5601
      %v5603 = vpop.f32.mrf.mxu0
      %5604 = vmatprep.mubr.bf16.mxu0 0
      %5605 = vmatmul.mubr.bf16.gmra.mxu0 %v5488
      %v5606 = vpop.f32.mrf.mxu0
      %v5607 = vadd.f32 0.0, %v5606
      %v5608 = vpop.f32.mrf.mxu0
      %v5609 = vpop.f32.mrf.mxu0
      %v5610 = vadd.f32 0.0, %v5609
      %v5611 = vpop.f32.mrf.mxu0
      %5612 = vmatprep.mubr.bf16.mxu0 0
      %5613 = vmatmul.mubr.bf16.gmra.mxu0 %v5491
      %v5614 = vpop.f32.mrf.mxu0
      %v5615 = vadd.f32 0.0, %v5614
      %v5616 = vpop.f32.mrf.mxu0
      %v5617 = vpop.f32.mrf.mxu0
      %v5618 = vadd.f32 0.0, %v5617
      %v5619 = vpop.f32.mrf.mxu0
      %5620 = vmatprep.mubr.bf16.mxu0 0
      %5621 = vmatmul.mubr.bf16.gmra.mxu0 %v5494
      %v5622 = vpop.f32.mrf.mxu0
      %v5623 = vadd.f32 0.0, %v5622
      %v5624 = vpop.f32.mrf.mxu0
      %v5625 = vpop.f32.mrf.mxu0
      %v5626 = vadd.f32 0.0, %v5625
      %v5627 = vpop.f32.mrf.mxu0
      %5628 = vmatprep.mubr.bf16.mxu0 0
      %5629 = vmatmul.mubr.bf16.gmra.mxu0 %v5497
      %v5630 = vpop.f32.mrf.mxu0
      %v5631 = vadd.f32 0.0, %v5630
      %v5632 = vpop.f32.mrf.mxu0
      %v5633 = vpop.f32.mrf.mxu0
      %v5634 = vadd.f32 0.0, %v5633
      %v5635 = vpop.f32.mrf.mxu0
      %5636 = vmatprep.mubr.bf16.mxu0 0
      %5637 = vmatmul.mubr.bf16.gmra.mxu0 %v5500
      %v5638 = vpop.f32.mrf.mxu0
      %v5639 = vadd.f32 0.0, %v5638
      %v5640 = vpop.f32.mrf.mxu0
      %v5641 = vpop.f32.mrf.mxu0
      %v5642 = vadd.f32 0.0, %v5641
      %v5643 = vpop.f32.mrf.mxu0
      %5644 = vmatprep.mubr.bf16.mxu0 0
      %5645 = vmatmul.mubr.bf16.gmra.mxu0 %v5503
      %v5646 = vpop.f32.mrf.mxu0
      %v5647 = vadd.f32 0.0, %v5646
      %v5648 = vpop.f32.mrf.mxu0
      %v5649 = vpop.f32.mrf.mxu0
      %v5650 = vadd.f32 0.0, %v5649
      %v5651 = vpop.f32.mrf.mxu0
      %5652 = vmatprep.mubr.bf16.mxu0 0
      %5653 = vmatmul.mubr.bf16.gmra.mxu0 %v5506
      %v5654 = vpop.f32.mrf.mxu0
      %v5655 = vadd.f32 0.0, %v5654
      %v5656 = vpop.f32.mrf.mxu0
      %v5657 = vpop.f32.mrf.mxu0
      %v5658 = vadd.f32 0.0, %v5657
      %v5659 = vpop.f32.mrf.mxu0
      %5660 = vmatprep.mubr.bf16.mxu0 0
      %5661 = vmatmul.mubr.bf16.gmra.mxu0 %v5509
      %v5662 = vpop.f32.mrf.mxu0
      %v5663 = vadd.f32 0.0, %v5662
      %v5664 = vpop.f32.mrf.mxu0
      %v5665 = vpop.f32.mrf.mxu0
      %v5666 = vadd.f32 0.0, %v5665
      %v5667 = vpop.f32.mrf.mxu0
      %5668 = vmatprep.mubr.bf16.mxu0 0
      %5669 = vmatmul.mubr.bf16.gmra.mxu0 %v5512
      %v5670 = vpop.f32.mrf.mxu0
      %v5671 = vadd.f32 0.0, %v5670
      %v5672 = vpop.f32.mrf.mxu0
      %v5673 = vpop.f32.mrf.mxu0
      %v5674 = vadd.f32 0.0, %v5673
      %v5675 = vpop.f32.mrf.mxu0
      %5676 = vmatprep.mubr.bf16.mxu0 0
      %5677 = vmatmul.mubr.bf16.gmra.mxu0 %v5515
      %v5678 = vpop.f32.mrf.mxu0
      %v5679 = vadd.f32 0.0, %v5678
      %v5680 = vpop.f32.mrf.mxu0
      %v5681 = vpop.f32.mrf.mxu0
      %v5682 = vadd.f32 0.0, %v5681
      %v5683 = vpop.f32.mrf.mxu0
      %5684 = vmatprep.mubr.bf16.mxu0 0
      %5685 = vmatmul.mubr.bf16.gmra.mxu0 %v5518
      %v5686 = vpop.f32.mrf.mxu0
      %v5687 = vadd.f32 0.0, %v5686
      %v5688 = vpop.f32.mrf.mxu0
      %v5689 = vpop.f32.mrf.mxu0
      %v5690 = vadd.f32 0.0, %v5689
      %v5691 = vpop.f32.mrf.mxu0
      %5692 = vmatprep.mubr.bf16.mxu0 0
      %5693 = vmatmul.mubr.bf16.gmra.mxu0 %v5521
      %v5694 = vpop.f32.mrf.mxu0
      %v5695 = vadd.f32 0.0, %v5694
      %v5696 = vpop.f32.mrf.mxu0
      %v5697 = vpop.f32.mrf.mxu0
      %v5698 = vadd.f32 0.0, %v5697
      %v5699 = vpop.f32.mrf.mxu0
      %5700 = vmatprep.mubr.bf16.mxu0 0
      %5701 = vmatmul.mubr.bf16.gmra.mxu0 %v5524
      %v5702 = vpop.f32.mrf.mxu0
      %v5703 = vadd.f32 0.0, %v5702
      %v5704 = vpop.f32.mrf.mxu0
      %v5705 = vpop.f32.mrf.mxu0
      %v5706 = vadd.f32 0.0, %v5705
      %v5707 = vpop.f32.mrf.mxu0
      %5708 = vmatprep.mubr.bf16.mxu0 0
      %5709 = vmatmul.mubr.bf16.gmra.mxu0 %v5527
      %v5710 = vpop.f32.mrf.mxu0
      %v5711 = vadd.f32 0.0, %v5710
      %v5712 = vpop.f32.mrf.mxu0
      %v5713 = vpop.f32.mrf.mxu0
      %v5714 = vadd.f32 0.0, %v5713
      %v5715 = vpop.f32.mrf.mxu0
      %5716 = vmatprep.mubr.bf16.mxu0 0
      %5717 = vmatmul.mubr.bf16.gmra.mxu0 %v5530
      %v5718 = vpop.f32.mrf.mxu0
      %v5719 = vadd.f32 0.0, %v5718
      %v5720 = vpop.f32.mrf.mxu0
      %v5721 = vpop.f32.mrf.mxu0
      %v5722 = vadd.f32 0.0, %v5721
      %v5723 = vpop.f32.mrf.mxu0
      %5724 = vmatprep.mubr.bf16.mxu0 0
      %5725 = vmatmul.mubr.bf16.gmra.mxu0 %v5533
      %v5726 = vpop.f32.mrf.mxu0
      %v5727 = vadd.f32 0.0, %v5726
      %v5728 = vpop.f32.mrf.mxu0
      %v5729 = vpop.f32.mrf.mxu0
      %v5730 = vadd.f32 0.0, %v5729
      %v5731 = vpop.f32.mrf.mxu0
      %5732 = vmatprep.mubr.bf16.mxu0 0
      %5733 = vmatmul.mubr.bf16.gmra.mxu0 %v5536
      %v5734 = vpop.f32.mrf.mxu0
      %v5735 = vadd.f32 0.0, %v5734
      %v5736 = vpop.f32.mrf.mxu0
      %v5737 = vpop.f32.mrf.mxu0
      %v5738 = vadd.f32 0.0, %v5737
      %v5739 = vpop.f32.mrf.mxu0
      %5740 = vmatprep.mubr.bf16.mxu0 0
      %5741 = vmatmul.mubr.bf16.gmra.mxu0 %v5539
      %v5742 = vpop.f32.mrf.mxu0
      %v5743 = vadd.f32 0.0, %v5742
      %v5744 = vpop.f32.mrf.mxu0
      %v5745 = vpop.f32.mrf.mxu0
      %v5746 = vadd.f32 0.0, %v5745
      %v5747 = vpop.f32.mrf.mxu0
      %5748 = vmatprep.mubr.bf16.mxu0 0
      %5749 = vmatmul.mubr.bf16.gmra.mxu0 %v5542
      %v5750 = vpop.f32.mrf.mxu0
      %v5751 = vadd.f32 0.0, %v5750
      %v5752 = vpop.f32.mrf.mxu0
      %v5753 = vpop.f32.mrf.mxu0
      %v5754 = vadd.f32 0.0, %v5753
      %v5755 = vpop.f32.mrf.mxu0
      %5756 = vmatprep.mubr.bf16.mxu0 0
      %5757 = vmatmul.mubr.bf16.gmra.mxu0 %v5545
      %v5758 = vpop.f32.mrf.mxu0
      %v5759 = vadd.f32 0.0, %v5758
      %v5760 = vpop.f32.mrf.mxu0
      %v5761 = vpop.f32.mrf.mxu0
      %v5762 = vadd.f32 0.0, %v5761
      %v5763 = vpop.f32.mrf.mxu0
      %5764 = vmatprep.mubr.bf16.mxu0 0
      %5765 = vmatmul.mubr.bf16.gmra.mxu0 %v5548
      %v5766 = vpop.f32.mrf.mxu0
      %v5767 = vadd.f32 0.0, %v5766
      %v5768 = vpop.f32.mrf.mxu0
      %v5769 = vpop.f32.mrf.mxu0
      %v5770 = vadd.f32 0.0, %v5769
      %v5771 = vpop.f32.mrf.mxu0
      %5772 = vmatprep.mubr.bf16.mxu0 0
      %5773 = vmatmul.mubr.bf16.gmra.mxu0 %v5551
      %v5774 = vpop.f32.mrf.mxu0
      %v5775 = vadd.f32 0.0, %v5774
      %v5776 = vpop.f32.mrf.mxu0
      %v5777 = vpop.f32.mrf.mxu0
      %v5778 = vadd.f32 0.0, %v5777
      %v5779 = vpop.f32.mrf.mxu0
      %5780 = vdwg.mxu0
      %v5781 = vadd.f32 %v5063, %v5591
      %v5782 = vadd.f32 %v5064, %v5594
      %v5783 = vadd.f32 %v5065, %v5599
      %v5784 = vadd.f32 %v5066, %v5602
      %v5785 = vadd.f32 %v5067, %v5607
      %v5786 = vadd.f32 %v5068, %v5610
      %v5787 = vadd.f32 %v5069, %v5615
      %v5788 = vadd.f32 %v5070, %v5618
      %v5789 = vadd.f32 %v5071, %v5623
      %v5790 = vadd.f32 %v5072, %v5626
      %v5791 = vadd.f32 %v5073, %v5631
      %v5792 = vadd.f32 %v5074, %v5634
      %v5793 = vadd.f32 %v5075, %v5639
      %v5794 = vadd.f32 %v5076, %v5642
      %v5795 = vadd.f32 %v5077, %v5647
      %v5796 = vadd.f32 %v5078, %v5650
      %v5797 = vadd.f32 %v5079, %v5655
      %v5798 = vadd.f32 %v5080, %v5658
      %v5799 = vadd.f32 %v5081, %v5663
      %v5800 = vadd.f32 %v5082, %v5666
      %v5801 = vadd.f32 %v5083, %v5671
      %v5802 = vadd.f32 %v5084, %v5674
      %v5803 = vadd.f32 %v5085, %v5679
      %v5804 = vadd.f32 %v5086, %v5682
      %v5805 = vadd.f32 %v5087, %v5687
      %v5806 = vadd.f32 %v5088, %v5690
      %v5807 = vadd.f32 %v5089, %v5695
      %v5808 = vadd.f32 %v5090, %v5698
      %v5809 = vadd.f32 %v5091, %v5703
      %v5810 = vadd.f32 %v5092, %v5706
      %v5811 = vadd.f32 %v5093, %v5711
      %v5812 = vadd.f32 %v5094, %v5714
      %v5813 = vadd.f32 %v5095, %v5719
      %v5814 = vadd.f32 %v5096, %v5722
      %v5815 = vadd.f32 %v5097, %v5727
      %v5816 = vadd.f32 %v5098, %v5730
      %v5817 = vadd.f32 %v5099, %v5735
      %v5818 = vadd.f32 %v5100, %v5738
      %v5819 = vadd.f32 %v5101, %v5743
      %v5820 = vadd.f32 %v5102, %v5746
      %v5821 = vadd.f32 %v5103, %v5751
      %v5822 = vadd.f32 %v5104, %v5754
      %v5823 = vadd.f32 %v5105, %v5759
      %v5824 = vadd.f32 %v5106, %v5762
      %v5825 = vadd.f32 %v5107, %v5767
      %v5826 = vadd.f32 %v5108, %v5770
      %v5827 = vadd.f32 %v5109, %v5775
      %v5828 = vadd.f32 %v5110, %v5778
      %v5829 = vmax.f32 %v5781, 0.0
      %v5830 = vmax.f32 %v5782, 0.0
      %v5831 = vmax.f32 %v5783, 0.0
      %v5832 = vmax.f32 %v5784, 0.0
      %v5833 = vmax.f32 %v5785, 0.0
      %v5834 = vmax.f32 %v5786, 0.0
      %v5835 = vmax.f32 %v5787, 0.0
      %v5836 = vmax.f32 %v5788, 0.0
      %v5837 = vmax.f32 %v5789, 0.0
      %v5838 = vmax.f32 %v5790, 0.0
      %v5839 = vmax.f32 %v5791, 0.0
      %v5840 = vmax.f32 %v5792, 0.0
      %v5841 = vmax.f32 %v5793, 0.0
      %v5842 = vmax.f32 %v5794, 0.0
      %v5843 = vmax.f32 %v5795, 0.0
      %v5844 = vmax.f32 %v5796, 0.0
      %v5845 = vmax.f32 %v5797, 0.0
      %v5846 = vmax.f32 %v5798, 0.0
      %v5847 = vmax.f32 %v5799, 0.0
      %v5848 = vmax.f32 %v5800, 0.0
      %v5849 = vmax.f32 %v5801, 0.0
      %v5850 = vmax.f32 %v5802, 0.0
      %v5851 = vmax.f32 %v5803, 0.0
      %v5852 = vmax.f32 %v5804, 0.0
      %v5853 = vmax.f32 %v5805, 0.0
      %v5854 = vmax.f32 %v5806, 0.0
      %v5855 = vmax.f32 %v5807, 0.0
      %v5856 = vmax.f32 %v5808, 0.0
      %v5857 = vmax.f32 %v5809, 0.0
      %v5858 = vmax.f32 %v5810, 0.0
      %v5859 = vmax.f32 %v5811, 0.0
      %v5860 = vmax.f32 %v5812, 0.0
      %v5861 = vmax.f32 %v5813, 0.0
      %v5862 = vmax.f32 %v5814, 0.0
      %v5863 = vmax.f32 %v5815, 0.0
      %v5864 = vmax.f32 %v5816, 0.0
      %v5865 = vmax.f32 %v5817, 0.0
      %v5866 = vmax.f32 %v5818, 0.0
      %v5867 = vmax.f32 %v5819, 0.0
      %v5868 = vmax.f32 %v5820, 0.0
      %v5869 = vmax.f32 %v5821, 0.0
      %v5870 = vmax.f32 %v5822, 0.0
      %v5871 = vmax.f32 %v5823, 0.0
      %v5872 = vmax.f32 %v5824, 0.0
      %v5873 = vmax.f32 %v5825, 0.0
      %v5874 = vmax.f32 %v5826, 0.0
      %v5875 = vmax.f32 %v5827, 0.0
      %v5876 = vmax.f32 %v5828, 0.0
      %v5877 = vsel %vm405, 1, 0
      %v5878 = vsel %vm406, 1, 0
      %v5879 = vsel %vm407, 1, 0
      %vm5880 = vcmp.eq.s32.totalorder %v5877, 1
      %vm5881 = vcmp.eq.s32.totalorder %v5878, 1
      %vm5882 = vcmp.eq.s32.totalorder %v5879, 1
      %v5883 = vsel %vm5880, %v5829, 0.0
      %v5884 = vsel %vm5881, %v5830, 0.0
      %v5885 = vsel %vm5882, %v5831, 0.0
      %v5886 = vsel %vm5880, %v5832, 0.0
      %v5887 = vsel %vm5881, %v5833, 0.0
      %v5888 = vsel %vm5882, %v5834, 0.0
      %v5889 = vsel %vm5880, %v5835, 0.0
      %v5890 = vsel %vm5881, %v5836, 0.0
      %v5891 = vsel %vm5882, %v5837, 0.0
      %v5892 = vsel %vm5880, %v5838, 0.0
      %v5893 = vsel %vm5881, %v5839, 0.0
      %v5894 = vsel %vm5882, %v5840, 0.0
      %v5895 = vsel %vm5880, %v5841, 0.0
      %v5896 = vsel %vm5881, %v5842, 0.0
      %v5897 = vsel %vm5882, %v5843, 0.0
      %v5898 = vsel %vm5880, %v5844, 0.0
      %v5899 = vsel %vm5881, %v5845, 0.0
      %v5900 = vsel %vm5882, %v5846, 0.0
      %v5901 = vsel %vm5880, %v5847, 0.0
      %v5902 = vsel %vm5881, %v5848, 0.0
      %v5903 = vsel %vm5882, %v5849, 0.0
      %v5904 = vsel %vm5880, %v5850, 0.0
      %v5905 = vsel %vm5881, %v5851, 0.0
      %v5906 = vsel %vm5882, %v5852, 0.0
      %v5907 = vsel %vm5880, %v5853, 0.0
      %v5908 = vsel %vm5881, %v5854, 0.0
      %v5909 = vsel %vm5882, %v5855, 0.0
      %v5910 = vsel %vm5880, %v5856, 0.0
      %v5911 = vsel %vm5881, %v5857, 0.0
      %v5912 = vsel %vm5882, %v5858, 0.0
      %v5913 = vsel %vm5880, %v5859, 0.0
      %v5914 = vsel %vm5881, %v5860, 0.0
      %v5915 = vsel %vm5882, %v5861, 0.0
      %v5916 = vsel %vm5880, %v5862, 0.0
      %v5917 = vsel %vm5881, %v5863, 0.0
      %v5918 = vsel %vm5882, %v5864, 0.0
      %v5919 = vsel %vm5880, %v5865, 0.0
      %v5920 = vsel %vm5881, %v5866, 0.0
      %v5921 = vsel %vm5882, %v5867, 0.0
      %v5922 = vsel %vm5880, %v5868, 0.0
      %v5923 = vsel %vm5881, %v5869, 0.0
      %v5924 = vsel %vm5882, %v5870, 0.0
      %v5925 = vsel %vm5880, %v5871, 0.0
      %v5926 = vsel %vm5881, %v5872, 0.0
      %v5927 = vsel %vm5882, %v5873, 0.0
      %v5928 = vsel %vm5880, %v5874, 0.0
      %v5929 = vsel %vm5881, %v5875, 0.0
      %v5930 = vsel %vm5882, %v5876, 0.0
      %v5931 = vpack.c.bf16 %v5884, %v5883
      %v5932 = vpack.c.bf16 %v5886, %v5885
      %v5933 = vpack.c.bf16 %v5888, %v5887
      %v5934 = vpack.c.bf16 %v5890, %v5889
      %v5935 = vpack.c.bf16 %v5892, %v5891
      %v5936 = vpack.c.bf16 %v5894, %v5893
      %v5937 = vpack.c.bf16 %v5896, %v5895
      %v5938 = vpack.c.bf16 %v5898, %v5897
      %v5939 = vpack.c.bf16 %v5900, %v5899
      %v5940 = vpack.c.bf16 %v5902, %v5901
      %v5941 = vpack.c.bf16 %v5904, %v5903
      %v5942 = vpack.c.bf16 %v5906, %v5905
      %v5943 = vpack.c.bf16 %v5908, %v5907
      %v5944 = vpack.c.bf16 %v5910, %v5909
      %v5945 = vpack.c.bf16 %v5912, %v5911
      %v5946 = vpack.c.bf16 %v5914, %v5913
      %v5947 = vpack.c.bf16 %v5916, %v5915
      %v5948 = vpack.c.bf16 %v5918, %v5917
      %v5949 = vpack.c.bf16 %v5920, %v5919
      %v5950 = vpack.c.bf16 %v5922, %v5921
      %v5951 = vpack.c.bf16 %v5924, %v5923
      %v5952 = vpack.c.bf16 %v5926, %v5925
      %v5953 = vpack.c.bf16 %v5928, %v5927
      %v5954 = vpack.c.bf16 %v5930, %v5929
      %v5979 = vunpack.c.l.b16 %v5931
      %v5980 = vunpack.c.h.b16 %v5931
      %v5981 = vunpack.c.l.b16 %v5932
      %v5982 = vunpack.c.h.b16 %v5932
      %v5983 = vunpack.c.l.b16 %v5933
      %v5984 = vunpack.c.h.b16 %v5933
      %v5985 = vunpack.c.l.b16 %v5934
      %v5986 = vunpack.c.h.b16 %v5934
      %v5987 = vunpack.c.l.b16 %v5935
      %v5988 = vunpack.c.h.b16 %v5935
      %v5989 = vunpack.c.l.b16 %v5936
      %v5990 = vunpack.c.h.b16 %v5936
      %v5991 = vunpack.c.l.b16 %v5937
      %v5992 = vunpack.c.h.b16 %v5937
      %v5993 = vunpack.c.l.b16 %v5938
      %v5994 = vunpack.c.h.b16 %v5938
      %v5995 = vunpack.c.l.b16 %v5939
      %v5996 = vunpack.c.h.b16 %v5939
      %v5997 = vunpack.c.l.b16 %v5940
      %v5998 = vunpack.c.h.b16 %v5940
      %v5999 = vunpack.c.l.b16 %v5941
      %v6000 = vunpack.c.h.b16 %v5941
      %v6001 = vunpack.c.l.b16 %v5942
      %v6002 = vunpack.c.h.b16 %v5942
      %v6003 = vunpack.c.l.b16 %v5943
      %v6004 = vunpack.c.h.b16 %v5943
      %v6005 = vunpack.c.l.b16 %v5944
      %v6006 = vunpack.c.h.b16 %v5944
      %v6007 = vunpack.c.l.b16 %v5945
      %v6008 = vunpack.c.h.b16 %v5945
      %v6009 = vunpack.c.l.b16 %v5946
      %v6010 = vunpack.c.h.b16 %v5946
      %v6011 = vunpack.c.l.b16 %v5947
      %v6012 = vunpack.c.h.b16 %v5947
      %v6013 = vunpack.c.l.b16 %v5948
      %v6014 = vunpack.c.h.b16 %v5948
      %v6015 = vunpack.c.l.b16 %v5949
      %v6016 = vunpack.c.h.b16 %v5949
      %v6017 = vunpack.c.l.b16 %v5950
      %v6018 = vunpack.c.h.b16 %v5950
      %v6019 = vunpack.c.l.b16 %v5951
      %v6020 = vunpack.c.h.b16 %v5951
      %v6021 = vunpack.c.l.b16 %v5952
      %v6022 = vunpack.c.h.b16 %v5952
      %v6023 = vunpack.c.l.b16 %v5953
      %v6024 = vunpack.c.h.b16 %v5953
      %v6025 = vunpack.c.l.b16 %v5954
      %v6026 = vunpack.c.h.b16 %v5954
      %v6027 = vpack.c.b16 %v5979, %v5979
      %v6028 = vpack.c.b16 %v5980, %v5980
      %v6029 = vpack.c.b16 %v5981, %v5981
      %v6030 = vpack.c.b16 %v5982, %v5982
      %v6031 = vpack.c.b16 %v5983, %v5983
      %v6032 = vpack.c.b16 %v5984, %v5984
      %v6033 = vpack.c.b16 %v5985, %v5985
      %v6034 = vpack.c.b16 %v5986, %v5986
      %v6035 = vpack.c.b16 %v5987, %v5987
      %v6036 = vpack.c.b16 %v5988, %v5988
      %v6037 = vpack.c.b16 %v5989, %v5989
      %v6038 = vpack.c.b16 %v5990, %v5990
      %v6039 = vpack.c.b16 %v5991, %v5991
      %v6040 = vpack.c.b16 %v5992, %v5992
      %v6041 = vpack.c.b16 %v5993, %v5993
      %v6042 = vpack.c.b16 %v5994, %v5994
      %v6043 = vpack.c.b16 %v5995, %v5995
      %v6044 = vpack.c.b16 %v5996, %v5996
      %v6045 = vpack.c.b16 %v5997, %v5997
      %v6046 = vpack.c.b16 %v5998, %v5998
      %v6047 = vpack.c.b16 %v5999, %v5999
      %v6048 = vpack.c.b16 %v6000, %v6000
      %v6049 = vpack.c.b16 %v6001, %v6001
      %v6050 = vpack.c.b16 %v6002, %v6002
      %v6051 = vpack.c.b16 %v6003, %v6003
      %v6052 = vpack.c.b16 %v6004, %v6004
      %v6053 = vpack.c.b16 %v6005, %v6005
      %v6054 = vpack.c.b16 %v6006, %v6006
      %v6055 = vpack.c.b16 %v6007, %v6007
      %v6056 = vpack.c.b16 %v6008, %v6008
      %v6057 = vpack.c.b16 %v6009, %v6009
      %v6058 = vpack.c.b16 %v6010, %v6010
      %v6059 = vpack.c.b16 %v6011, %v6011
      %v6060 = vpack.c.b16 %v6012, %v6012
      %v6061 = vpack.c.b16 %v6013, %v6013
      %v6062 = vpack.c.b16 %v6014, %v6014
      %v6063 = vpack.c.b16 %v6015, %v6015
      %v6064 = vpack.c.b16 %v6016, %v6016
      %v6065 = vpack.c.b16 %v6017, %v6017
      %v6066 = vpack.c.b16 %v6018, %v6018
      %v6067 = vpack.c.b16 %v6019, %v6019
      %v6068 = vpack.c.b16 %v6020, %v6020
      %v6069 = vpack.c.b16 %v6021, %v6021
      %v6070 = vpack.c.b16 %v6022, %v6022
      %v6071 = vpack.c.b16 %v6023, %v6023
      %v6072 = vpack.c.b16 %v6024, %v6024
      %v6073 = vpack.c.b16 %v6025, %v6025
      %v6074 = vpack.c.b16 %v6026, %v6026
      %6123 = vst.msk [vmem:[#allocation3 + $0x10] sm:$0xf] %vm172, %v6027
      %6124 = vst.msk [vmem:[#allocation3 + $0x14] sm:$0xf] %vm172, %v6028
      %6125 = vst.msk [vmem:[#allocation3 + $0x18] sm:$0xf] %vm172, %v6029
      %6126 = vst.msk [vmem:[#allocation3 + $0x1c] sm:$0xf] %vm172, %v6030
      %6127 = vst.msk [vmem:[#allocation3 + $0x20] sm:$0xf] %vm172, %v6031
      %6128 = vst.msk [vmem:[#allocation3 + $0x24] sm:$0xf] %vm172, %v6032
      %6129 = vst.msk [vmem:[#allocation3 + $0x28] sm:$0xf] %vm172, %v6033
      %6130 = vst.msk [vmem:[#allocation3 + $0x2c] sm:$0xf] %vm172, %v6034
      %6131 = vst.msk [vmem:[#allocation3 + $0x30] sm:$0xf] %vm172, %v6035
      %6132 = vst.msk [vmem:[#allocation3 + $0x34] sm:$0xf] %vm172, %v6036
      %6133 = vst.msk [vmem:[#allocation3 + $0x38] sm:$0xf] %vm172, %v6037
      %6134 = vst.msk [vmem:[#allocation3 + $0x3c] sm:$0xf] %vm172, %v6038
      %6135 = vst.msk [vmem:[#allocation3 + $0x40] sm:$0xf] %vm172, %v6039
      %6136 = vst.msk [vmem:[#allocation3 + $0x44] sm:$0xf] %vm172, %v6040
      %6137 = vst.msk [vmem:[#allocation3 + $0x48] sm:$0xf] %vm172, %v6041
      %6138 = vst.msk [vmem:[#allocation3 + $0x4c] sm:$0xf] %vm172, %v6042
      %6139 = vst.msk [vmem:[#allocation3 + $0x50] sm:$0xf] %vm172, %v6043
      %6140 = vst.msk [vmem:[#allocation3 + $0x54] sm:$0xf] %vm172, %v6044
      %6141 = vst.msk [vmem:[#allocation3 + $0x58] sm:$0xf] %vm172, %v6045
      %6142 = vst.msk [vmem:[#allocation3 + $0x5c] sm:$0xf] %vm172, %v6046
      %6143 = vst.msk [vmem:[#allocation3 + $0x60] sm:$0xf] %vm172, %v6047
      %6144 = vst.msk [vmem:[#allocation3 + $0x64] sm:$0xf] %vm172, %v6048
      %6145 = vst.msk [vmem:[#allocation3 + $0x68] sm:$0xf] %vm172, %v6049
      %6146 = vst.msk [vmem:[#allocation3 + $0x6c] sm:$0xf] %vm172, %v6050
      %6147 = vst.msk [vmem:[#allocation3 + $0x70] sm:$0xf] %vm172, %v6051
      %6148 = vst.msk [vmem:[#allocation3 + $0x74] sm:$0xf] %vm172, %v6052
      %6149 = vst.msk [vmem:[#allocation3 + $0x78] sm:$0xf] %vm172, %v6053
      %6150 = vst.msk [vmem:[#allocation3 + $0x7c] sm:$0xf] %vm172, %v6054
      %6151 = vst.msk [vmem:[#allocation3 + $0x80] sm:$0xf] %vm172, %v6055
      %6152 = vst.msk [vmem:[#allocation3 + $0x84] sm:$0xf] %vm172, %v6056
      %6153 = vst.msk [vmem:[#allocation3 + $0x88] sm:$0xf] %vm172, %v6057
      %6154 = vst.msk [vmem:[#allocation3 + $0x8c] sm:$0xf] %vm172, %v6058
      %6155 = vst.msk [vmem:[#allocation3 + $0x90] sm:$0xf] %vm172, %v6059
      %6156 = vst.msk [vmem:[#allocation3 + $0x94] sm:$0xf] %vm172, %v6060
      %6157 = vst.msk [vmem:[#allocation3 + $0x98] sm:$0xf] %vm172, %v6061
      %6158 = vst.msk [vmem:[#allocation3 + $0x9c] sm:$0xf] %vm172, %v6062
      %6159 = vst.msk [vmem:[#allocation3 + $0xa0] sm:$0xf] %vm172, %v6063
      %6160 = vst.msk [vmem:[#allocation3 + $0xa4] sm:$0xf] %vm172, %v6064
      %6161 = vst.msk [vmem:[#allocation3 + $0xa8] sm:$0xf] %vm172, %v6065
      %6162 = vst.msk [vmem:[#allocation3 + $0xac] sm:$0xf] %vm172, %v6066
      %6163 = vst.msk [vmem:[#allocation3 + $0xb0] sm:$0xf] %vm172, %v6067
      %6164 = vst.msk [vmem:[#allocation3 + $0xb4] sm:$0xf] %vm172, %v6068
      %6165 = vst.msk [vmem:[#allocation3 + $0xb8] sm:$0xf] %vm172, %v6069
      %6166 = vst.msk [vmem:[#allocation3 + $0xbc] sm:$0xf] %vm172, %v6070
      %6167 = vst.msk [vmem:[#allocation3 + $0xc0] sm:$0xf] %vm172, %v6071
      %6168 = vst.msk [vmem:[#allocation3 + $0xc4] sm:$0xf] %vm172, %v6072
      %6169 = vst.msk [vmem:[#allocation3 + $0xc8] sm:$0xf] %vm172, %v6073
      %6170 = vst.msk [vmem:[#allocation3 + $0xcc] sm:$0xf] %vm172, %v6074
      %v6171 = vld [vmem:[#allocation3] sm:$0x8]
      %v6172 = vld [vmem:[#allocation3 + $0x4] sm:$0xf]
      %v6173 = vld [vmem:[#allocation3 + $0x8] sm:$0xf]
      %v6174 = vld [vmem:[#allocation3 + $0xc] sm:$0xf]
      %v6175 = vld [vmem:[#allocation3 + $0x10] sm:$0xf]
      %v6176 = vld [vmem:[#allocation3 + $0x14] sm:$0xf]
      %v6177 = vld [vmem:[#allocation3 + $0x18] sm:$0xf]
      %v6178 = vld [vmem:[#allocation3 + $0x1c] sm:$0xf]
      %v6179 = vld [vmem:[#allocation3 + $0x20] sm:$0xf]
      %v6180 = vld [vmem:[#allocation3 + $0x24] sm:$0xf]
      %v6181 = vld [vmem:[#allocation3 + $0x28] sm:$0xf]
      %v6182 = vld [vmem:[#allocation3 + $0x2c] sm:$0xf]
      %v6183 = vld [vmem:[#allocation3 + $0x30] sm:$0xf]
      %v6184 = vld [vmem:[#allocation3 + $0x34] sm:$0xf]
      %v6185 = vld [vmem:[#allocation3 + $0x38] sm:$0xf]
      %v6186 = vld [vmem:[#allocation3 + $0x3c] sm:$0xf]
      %v6187 = vld [vmem:[#allocation3 + $0x40] sm:$0xf]
      %v6188 = vld [vmem:[#allocation3 + $0x44] sm:$0xf]
      %v6189 = vld [vmem:[#allocation3 + $0x48] sm:$0xf]
      %v6190 = vld [vmem:[#allocation3 + $0x4c] sm:$0xf]
      %v6191 = vld [vmem:[#allocation3 + $0x50] sm:$0xf]
      %v6192 = vld [vmem:[#allocation3 + $0x54] sm:$0xf]
      %v6193 = vld [vmem:[#allocation3 + $0x58] sm:$0xf]
      %v6194 = vld [vmem:[#allocation3 + $0x5c] sm:$0xf]
      %v6195 = vld [vmem:[#allocation3 + $0x60] sm:$0xf]
      %v6196 = vld [vmem:[#allocation3 + $0x64] sm:$0xf]
      %v6197 = vld [vmem:[#allocation3 + $0x68] sm:$0xf]
      %v6198 = vld [vmem:[#allocation3 + $0x6c] sm:$0xf]
      %v6199 = vld [vmem:[#allocation3 + $0x70] sm:$0xf]
      %v6200 = vld [vmem:[#allocation3 + $0x74] sm:$0xf]
      %v6201 = vld [vmem:[#allocation3 + $0x78] sm:$0xf]
      %v6202 = vld [vmem:[#allocation3 + $0x7c] sm:$0xf]
      %v6203 = vld [vmem:[#allocation3 + $0x80] sm:$0xf]
      %v6204 = vld [vmem:[#allocation3 + $0x84] sm:$0xf]
      %v6205 = vld [vmem:[#allocation3 + $0x88] sm:$0xf]
      %v6206 = vld [vmem:[#allocation3 + $0x8c] sm:$0xf]
      %v6207 = vld [vmem:[#allocation3 + $0x90] sm:$0xf]
      %v6208 = vld [vmem:[#allocation3 + $0x94] sm:$0xf]
      %v6209 = vld [vmem:[#allocation3 + $0x98] sm:$0xf]
      %v6210 = vld [vmem:[#allocation3 + $0x9c] sm:$0xf]
      %v6211 = vld [vmem:[#allocation3 + $0xa0] sm:$0xf]
      %v6212 = vld [vmem:[#allocation3 + $0xa4] sm:$0xf]
      %v6213 = vld [vmem:[#allocation3 + $0xa8] sm:$0xf]
      %v6214 = vld [vmem:[#allocation3 + $0xac] sm:$0xf]
      %v6215 = vld [vmem:[#allocation3 + $0xb0] sm:$0xf]
      %v6216 = vld [vmem:[#allocation3 + $0xb4] sm:$0xf]
      %v6217 = vld [vmem:[#allocation3 + $0xb8] sm:$0xf]
      %v6218 = vld [vmem:[#allocation3 + $0xbc] sm:$0xf]
      %v6219 = vld [vmem:[#allocation3 + $0xc0] sm:$0xf]
      %v6220 = vld [vmem:[%s2] sm:$0x3]
      %s6221 = scalar_lea.vmem %s2, 2
      %v6222 = vld [vmem:[%s6221] sm:$0x3]
      %v6271 = vunpack.c.l.b16 %v6172
      %v6272 = vunpack.c.l.b16 %v6173
      %v6273 = vunpack.c.l.b16 %v6174
      %v6274 = vunpack.c.l.b16 %v6175
      %v6275 = vunpack.c.l.b16 %v6176
      %v6276 = vunpack.c.l.b16 %v6177
      %v6277 = vunpack.c.l.b16 %v6178
      %v6278 = vunpack.c.l.b16 %v6179
      %v6279 = vunpack.c.l.b16 %v6180
      %v6280 = vunpack.c.l.b16 %v6181
      %v6281 = vunpack.c.l.b16 %v6182
      %v6282 = vunpack.c.l.b16 %v6183
      %v6283 = vunpack.c.l.b16 %v6184
      %v6284 = vunpack.c.l.b16 %v6185
      %v6285 = vunpack.c.l.b16 %v6186
      %v6286 = vunpack.c.l.b16 %v6187
      %v6287 = vunpack.c.l.b16 %v6188
      %v6288 = vunpack.c.l.b16 %v6189
      %v6289 = vunpack.c.l.b16 %v6190
      %v6290 = vunpack.c.l.b16 %v6191
      %v6291 = vunpack.c.l.b16 %v6192
      %v6292 = vunpack.c.l.b16 %v6193
      %v6293 = vunpack.c.l.b16 %v6194
      %v6294 = vunpack.c.l.b16 %v6195
      %v6295 = vunpack.c.l.b16 %v6196
      %v6296 = vunpack.c.l.b16 %v6197
      %v6297 = vunpack.c.l.b16 %v6198
      %v6298 = vunpack.c.l.b16 %v6199
      %v6299 = vunpack.c.l.b16 %v6200
      %v6300 = vunpack.c.l.b16 %v6201
      %v6301 = vunpack.c.l.b16 %v6202
      %v6302 = vunpack.c.l.b16 %v6203
      %v6303 = vunpack.c.l.b16 %v6204
      %v6304 = vunpack.c.l.b16 %v6205
      %v6305 = vunpack.c.l.b16 %v6206
      %v6306 = vunpack.c.l.b16 %v6207
      %v6307 = vunpack.c.l.b16 %v6208
      %v6308 = vunpack.c.l.b16 %v6209
      %v6309 = vunpack.c.l.b16 %v6210
      %v6310 = vunpack.c.l.b16 %v6211
      %v6311 = vunpack.c.l.b16 %v6212
      %v6312 = vunpack.c.l.b16 %v6213
      %v6313 = vunpack.c.l.b16 %v6214
      %v6314 = vunpack.c.l.b16 %v6215
      %v6315 = vunpack.c.l.b16 %v6216
      %v6316 = vunpack.c.l.b16 %v6217
      %v6317 = vunpack.c.l.b16 %v6218
      %v6318 = vunpack.c.l.b16 %v6219
      %v6319 = vpack.c.b16 %v6272, %v6271
      %v6320 = vpack.c.b16 %v6274, %v6273
      %v6321 = vpack.c.b16 %v6276, %v6275
      %v6322 = vpack.c.b16 %v6278, %v6277
      %v6323 = vpack.c.b16 %v6280, %v6279
      %v6324 = vpack.c.b16 %v6282, %v6281
      %v6325 = vpack.c.b16 %v6284, %v6283
      %v6326 = vpack.c.b16 %v6286, %v6285
      %v6327 = vpack.c.b16 %v6288, %v6287
      %v6328 = vpack.c.b16 %v6290, %v6289
      %v6329 = vpack.c.b16 %v6292, %v6291
      %v6330 = vpack.c.b16 %v6294, %v6293
      %v6331 = vpack.c.b16 %v6296, %v6295
      %v6332 = vpack.c.b16 %v6298, %v6297
      %v6333 = vpack.c.b16 %v6300, %v6299
      %v6334 = vpack.c.b16 %v6302, %v6301
      %v6335 = vpack.c.b16 %v6304, %v6303
      %v6336 = vpack.c.b16 %v6306, %v6305
      %v6337 = vpack.c.b16 %v6308, %v6307
      %v6338 = vpack.c.b16 %v6310, %v6309
      %v6339 = vpack.c.b16 %v6312, %v6311
      %v6340 = vpack.c.b16 %v6314, %v6313
      %v6341 = vpack.c.b16 %v6316, %v6315
      %v6342 = vpack.c.b16 %v6318, %v6317
      %v6344 = vsel %vm580, %v6319, 0
      %v6347 = vsel %vm580, %v6320, 0
      %v6350 = vsel %vm580, %v6321, 0
      %v6353 = vsel %vm580, %v6322, 0
      %v6356 = vsel %vm580, %v6323, 0
      %v6359 = vsel %vm580, %v6324, 0
      %v6362 = vsel %vm580, %v6325, 0
      %v6365 = vsel %vm580, %v6326, 0
      %v6368 = vsel %vm580, %v6327, 0
      %v6371 = vsel %vm580, %v6328, 0
      %v6374 = vsel %vm580, %v6329, 0
      %v6377 = vsel %vm580, %v6330, 0
      %v6380 = vsel %vm580, %v6331, 0
      %v6383 = vsel %vm580, %v6332, 0
      %v6386 = vsel %vm580, %v6333, 0
      %v6389 = vsel %vm580, %v6334, 0
      %v6392 = vsel %vm580, %v6335, 0
      %v6395 = vsel %vm580, %v6336, 0
      %v6398 = vsel %vm580, %v6337, 0
      %v6401 = vsel %vm580, %v6338, 0
      %v6404 = vsel %vm580, %v6339, 0
      %v6407 = vsel %vm580, %v6340, 0
      %v6410 = vsel %vm580, %v6341, 0
      %v6413 = vsel %vm580, %v6342, 0
      %v6416 = vsel %vm653, %v6222, 0
      %6418 = vmatprep.subr.bf16.mxu0 0
      %6419 = vmatpush1.bf16.msra.mxu0 0
      %6420 = vmatprep.subr.bf16.mxu0 0
      %6421 = vmatpush1.bf16.msra.mxu0 0
      %6422 = vmatprep.subr.bf16.mxu0 0
      %6423 = vmatpush1.bf16.msra.mxu0 0
      %6424 = vmatprep.subr.bf16.mxu0 0
      %6425 = vmatpush1.bf16.msra.mxu0 0
      %6426 = vmatprep.subr.bf16.mxu0 0
      %6427 = vmatpush1.bf16.msra.mxu0 0
      %6428 = vmatprep.subr.bf16.mxu0 0
      %6429 = vmatpush1.bf16.msra.mxu0 0
      %6430 = vmatprep.subr.bf16.mxu0 0
      %6431 = vmatpush1.bf16.msra.mxu0 0
      %6432 = vmatprep.subr.bf16.mxu0 0
      %6433 = vmatpush1.bf16.msra.mxu0 %v6416
      %6434 = vmatprep.subr.bf16.mxu0 0
      %6435 = vmatpush2.bf16.msra.mxu0 0
      %6436 = vmatprep.subr.bf16.mxu0 0
      %6437 = vmatpush2.bf16.msra.mxu0 0
      %6438 = vmatprep.subr.bf16.mxu0 0
      %6439 = vmatpush2.bf16.msra.mxu0 0
      %6440 = vmatprep.subr.bf16.mxu0 0
      %6441 = vmatpush2.bf16.msra.mxu0 0
      %6442 = vmatprep.subr.bf16.mxu0 0
      %6443 = vmatpush2.bf16.msra.mxu0 0
      %6444 = vmatprep.subr.bf16.mxu0 0
      %6445 = vmatpush2.bf16.msra.mxu0 0
      %6446 = vmatprep.subr.bf16.mxu0 0
      %6447 = vmatpush2.bf16.msra.mxu0 0
      %6448 = vmatprep.subr.bf16.mxu0 0
      %6449 = vmatpush2.bf16.msra.mxu0 0
      %6450 = vmatprep.mubr.bf16.mxu0 0
      %6451 = vmatmul.mubr.bf16.gmra.mxu0 %v6344
      %v6452 = vpop.f32.mrf.mxu0
      %v6453 = vadd.f32 0.0, %v6452
      %v6454 = vpop.f32.mrf.mxu0
      %v6455 = vpop.f32.mrf.mxu0
      %v6456 = vadd.f32 0.0, %v6455
      %v6457 = vpop.f32.mrf.mxu0
      %6458 = vmatprep.mubr.bf16.mxu0 0
      %6459 = vmatmul.mubr.bf16.gmra.mxu0 %v6347
      %v6460 = vpop.f32.mrf.mxu0
      %v6461 = vpop.f32.mrf.mxu0
      %v6462 = vpop.f32.mrf.mxu0
      %v6463 = vadd.f32 0.0, %v6462
      %v6464 = vpop.f32.mrf.mxu0
      %6465 = vmatprep.mubr.bf16.mxu0 0
      %6466 = vmatmul.mubr.bf16.gmra.mxu0 %v6350
      %v6467 = vpop.f32.mrf.mxu0
      %v6468 = vadd.f32 0.0, %v6467
      %v6469 = vpop.f32.mrf.mxu0
      %v6470 = vpop.f32.mrf.mxu0
      %v6471 = vpop.f32.mrf.mxu0
      %6472 = vmatprep.mubr.bf16.mxu0 0
      %6473 = vmatmul.mubr.bf16.gmra.mxu0 %v6353
      %v6474 = vpop.f32.mrf.mxu0
      %v6475 = vadd.f32 0.0, %v6474
      %v6476 = vpop.f32.mrf.mxu0
      %v6477 = vpop.f32.mrf.mxu0
      %v6478 = vadd.f32 0.0, %v6477
      %v6479 = vpop.f32.mrf.mxu0
      %6480 = vmatprep.mubr.bf16.mxu0 0
      %6481 = vmatmul.mubr.bf16.gmra.mxu0 %v6356
      %v6482 = vpop.f32.mrf.mxu0
      %v6483 = vpop.f32.mrf.mxu0
      %v6484 = vpop.f32.mrf.mxu0
      %v6485 = vadd.f32 0.0, %v6484
      %v6486 = vpop.f32.mrf.mxu0
      %6487 = vmatprep.mubr.bf16.mxu0 0
      %6488 = vmatmul.mubr.bf16.gmra.mxu0 %v6359
      %v6489 = vpop.f32.mrf.mxu0
      %v6490 = vadd.f32 0.0, %v6489
      %v6491 = vpop.f32.mrf.mxu0
      %v6492 = vpop.f32.mrf.mxu0
      %v6493 = vpop.f32.mrf.mxu0
      %6494 = vmatprep.mubr.bf16.mxu0 0
      %6495 = vmatmul.mubr.bf16.gmra.mxu0 %v6362
      %v6496 = vpop.f32.mrf.mxu0
      %v6497 = vadd.f32 0.0, %v6496
      %v6498 = vpop.f32.mrf.mxu0
      %v6499 = vpop.f32.mrf.mxu0
      %v6500 = vadd.f32 0.0, %v6499
      %v6501 = vpop.f32.mrf.mxu0
      %6502 = vmatprep.mubr.bf16.mxu0 0
      %6503 = vmatmul.mubr.bf16.gmra.mxu0 %v6365
      %v6504 = vpop.f32.mrf.mxu0
      %v6505 = vpop.f32.mrf.mxu0
      %v6506 = vpop.f32.mrf.mxu0
      %v6507 = vadd.f32 0.0, %v6506
      %v6508 = vpop.f32.mrf.mxu0
      %6509 = vmatprep.mubr.bf16.mxu0 0
      %6510 = vmatmul.mubr.bf16.gmra.mxu0 %v6368
      %v6511 = vpop.f32.mrf.mxu0
      %v6512 = vadd.f32 0.0, %v6511
      %v6513 = vpop.f32.mrf.mxu0
      %v6514 = vpop.f32.mrf.mxu0
      %v6515 = vpop.f32.mrf.mxu0
      %6516 = vmatprep.mubr.bf16.mxu0 0
      %6517 = vmatmul.mubr.bf16.gmra.mxu0 %v6371
      %v6518 = vpop.f32.mrf.mxu0
      %v6519 = vadd.f32 0.0, %v6518
      %v6520 = vpop.f32.mrf.mxu0
      %v6521 = vpop.f32.mrf.mxu0
      %v6522 = vadd.f32 0.0, %v6521
      %v6523 = vpop.f32.mrf.mxu0
      %6524 = vmatprep.mubr.bf16.mxu0 0
      %6525 = vmatmul.mubr.bf16.gmra.mxu0 %v6374
      %v6526 = vpop.f32.mrf.mxu0
      %v6527 = vpop.f32.mrf.mxu0
      %v6528 = vpop.f32.mrf.mxu0
      %v6529 = vadd.f32 0.0, %v6528
      %v6530 = vpop.f32.mrf.mxu0
      %6531 = vmatprep.mubr.bf16.mxu0 0
      %6532 = vmatmul.mubr.bf16.gmra.mxu0 %v6377
      %v6533 = vpop.f32.mrf.mxu0
      %v6534 = vadd.f32 0.0, %v6533
      %v6535 = vpop.f32.mrf.mxu0
      %v6536 = vpop.f32.mrf.mxu0
      %v6537 = vpop.f32.mrf.mxu0
      %6538 = vmatprep.mubr.bf16.mxu0 0
      %6539 = vmatmul.mubr.bf16.gmra.mxu0 %v6380
      %v6540 = vpop.f32.mrf.mxu0
      %v6541 = vadd.f32 0.0, %v6540
      %v6542 = vpop.f32.mrf.mxu0
      %v6543 = vpop.f32.mrf.mxu0
      %v6544 = vadd.f32 0.0, %v6543
      %v6545 = vpop.f32.mrf.mxu0
      %6546 = vmatprep.mubr.bf16.mxu0 0
      %6547 = vmatmul.mubr.bf16.gmra.mxu0 %v6383
      %v6548 = vpop.f32.mrf.mxu0
      %v6549 = vpop.f32.mrf.mxu0
      %v6550 = vpop.f32.mrf.mxu0
      %v6551 = vadd.f32 0.0, %v6550
      %v6552 = vpop.f32.mrf.mxu0
      %6553 = vmatprep.mubr.bf16.mxu0 0
      %6554 = vmatmul.mubr.bf16.gmra.mxu0 %v6386
      %v6555 = vpop.f32.mrf.mxu0
      %v6556 = vadd.f32 0.0, %v6555
      %v6557 = vpop.f32.mrf.mxu0
      %v6558 = vpop.f32.mrf.mxu0
      %v6559 = vpop.f32.mrf.mxu0
      %6560 = vmatprep.mubr.bf16.mxu0 0
      %6561 = vmatmul.mubr.bf16.gmra.mxu0 %v6389
      %v6562 = vpop.f32.mrf.mxu0
      %v6563 = vadd.f32 0.0, %v6562
      %v6564 = vpop.f32.mrf.mxu0
      %v6565 = vpop.f32.mrf.mxu0
      %v6566 = vadd.f32 0.0, %v6565
      %v6567 = vpop.f32.mrf.mxu0
      %6568 = vmatprep.mubr.bf16.mxu0 0
      %6569 = vmatmul.mubr.bf16.gmra.mxu0 %v6392
      %v6570 = vpop.f32.mrf.mxu0
      %v6571 = vpop.f32.mrf.mxu0
      %v6572 = vpop.f32.mrf.mxu0
      %v6573 = vadd.f32 0.0, %v6572
      %v6574 = vpop.f32.mrf.mxu0
      %6575 = vmatprep.mubr.bf16.mxu0 0
      %6576 = vmatmul.mubr.bf16.gmra.mxu0 %v6395
      %v6577 = vpop.f32.mrf.mxu0
      %v6578 = vadd.f32 0.0, %v6577
      %v6579 = vpop.f32.mrf.mxu0
      %v6580 = vpop.f32.mrf.mxu0
      %v6581 = vpop.f32.mrf.mxu0
      %6582 = vmatprep.mubr.bf16.mxu0 0
      %6583 = vmatmul.mubr.bf16.gmra.mxu0 %v6398
      %v6584 = vpop.f32.mrf.mxu0
      %v6585 = vadd.f32 0.0, %v6584
      %v6586 = vpop.f32.mrf.mxu0
      %v6587 = vpop.f32.mrf.mxu0
      %v6588 = vadd.f32 0.0, %v6587
      %v6589 = vpop.f32.mrf.mxu0
      %6590 = vmatprep.mubr.bf16.mxu0 0
      %6591 = vmatmul.mubr.bf16.gmra.mxu0 %v6401
      %v6592 = vpop.f32.mrf.mxu0
      %v6593 = vpop.f32.mrf.mxu0
      %v6594 = vpop.f32.mrf.mxu0
      %v6595 = vadd.f32 0.0, %v6594
      %v6596 = vpop.f32.mrf.mxu0
      %6597 = vmatprep.mubr.bf16.mxu0 0
      %6598 = vmatmul.mubr.bf16.gmra.mxu0 %v6404
      %v6599 = vpop.f32.mrf.mxu0
      %v6600 = vadd.f32 0.0, %v6599
      %v6601 = vpop.f32.mrf.mxu0
      %v6602 = vpop.f32.mrf.mxu0
      %v6603 = vpop.f32.mrf.mxu0
      %6604 = vmatprep.mubr.bf16.mxu0 0
      %6605 = vmatmul.mubr.bf16.gmra.mxu0 %v6407
      %v6606 = vpop.f32.mrf.mxu0
      %v6607 = vadd.f32 0.0, %v6606
      %v6608 = vpop.f32.mrf.mxu0
      %v6609 = vpop.f32.mrf.mxu0
      %v6610 = vadd.f32 0.0, %v6609
      %v6611 = vpop.f32.mrf.mxu0
      %6612 = vmatprep.mubr.bf16.mxu0 0
      %6613 = vmatmul.mubr.bf16.gmra.mxu0 %v6410
      %v6614 = vpop.f32.mrf.mxu0
      %v6615 = vpop.f32.mrf.mxu0
      %v6616 = vpop.f32.mrf.mxu0
      %v6617 = vadd.f32 0.0, %v6616
      %v6618 = vpop.f32.mrf.mxu0
      %6619 = vmatprep.mubr.bf16.mxu0 0
      %6620 = vmatmul.mubr.bf16.gmra.mxu0 %v6413
      %v6621 = vpop.f32.mrf.mxu0
      %v6622 = vadd.f32 0.0, %v6621
      %v6623 = vpop.f32.mrf.mxu0
      %v6624 = vpop.f32.mrf.mxu0
      %v6625 = vpop.f32.mrf.mxu0
      %6626 = vdwg.mxu0
      %v6628 = vunpack.c.l.b16 %v6171
      %v6629 = vpack.c.b16 %v6271, %v6628
      %v6630 = vpack.c.b16 %v6273, %v6272
      %v6631 = vpack.c.b16 %v6275, %v6274
      %v6632 = vpack.c.b16 %v6277, %v6276
      %v6633 = vpack.c.b16 %v6279, %v6278
      %v6634 = vpack.c.b16 %v6281, %v6280
      %v6635 = vpack.c.b16 %v6283, %v6282
      %v6636 = vpack.c.b16 %v6285, %v6284
      %v6637 = vpack.c.b16 %v6287, %v6286
      %v6638 = vpack.c.b16 %v6289, %v6288
      %v6639 = vpack.c.b16 %v6291, %v6290
      %v6640 = vpack.c.b16 %v6293, %v6292
      %v6641 = vpack.c.b16 %v6295, %v6294
      %v6642 = vpack.c.b16 %v6297, %v6296
      %v6643 = vpack.c.b16 %v6299, %v6298
      %v6644 = vpack.c.b16 %v6301, %v6300
      %v6645 = vpack.c.b16 %v6303, %v6302
      %v6646 = vpack.c.b16 %v6305, %v6304
      %v6647 = vpack.c.b16 %v6307, %v6306
      %v6648 = vpack.c.b16 %v6309, %v6308
      %v6649 = vpack.c.b16 %v6311, %v6310
      %v6650 = vpack.c.b16 %v6313, %v6312
      %v6651 = vpack.c.b16 %v6315, %v6314
      %v6652 = vpack.c.b16 %v6317, %v6316
      %v6653 = vpack.c.b16 %v6318, %v6318
      %v6655 = vshrl.u32 %v6629, 16
      %v6657 = vrot.slane %v6655, 3
      %v6658 = vshll.u32 %v6629, 16
      %v6660 = vrot.slane %v6658, 4
      %v6661 = vor.u32 %v6657, %v6660
      %v6663 = vshrl.u32 %v6630, 16
      %v6665 = vrot.slane %v6663, 3
      %v6666 = vshll.u32 %v6630, 16
      %v6668 = vrot.slane %v6666, 4
      %v6669 = vor.u32 %v6665, %v6668
      %v6670 = vsel %vm909, %v6661, %v6669
      %v6672 = vshrl.u32 %v6631, 16
      %v6674 = vrot.slane %v6672, 3
      %v6675 = vshll.u32 %v6631, 16
      %v6677 = vrot.slane %v6675, 4
      %v6678 = vor.u32 %v6674, %v6677
      %v6679 = vsel %vm909, %v6669, %v6678
      %v6681 = vshrl.u32 %v6632, 16
      %v6683 = vrot.slane %v6681, 3
      %v6684 = vshll.u32 %v6632, 16
      %v6686 = vrot.slane %v6684, 4
      %v6687 = vor.u32 %v6683, %v6686
      %v6688 = vsel %vm909, %v6678, %v6687
      %v6690 = vshrl.u32 %v6633, 16
      %v6692 = vrot.slane %v6690, 3
      %v6693 = vshll.u32 %v6633, 16
      %v6695 = vrot.slane %v6693, 4
      %v6696 = vor.u32 %v6692, %v6695
      %v6697 = vsel %vm909, %v6687, %v6696
      %v6699 = vshrl.u32 %v6634, 16
      %v6701 = vrot.slane %v6699, 3
      %v6702 = vshll.u32 %v6634, 16
      %v6704 = vrot.slane %v6702, 4
      %v6705 = vor.u32 %v6701, %v6704
      %v6706 = vsel %vm909, %v6696, %v6705
      %v6708 = vshrl.u32 %v6635, 16
      %v6710 = vrot.slane %v6708, 3
      %v6711 = vshll.u32 %v6635, 16
      %v6713 = vrot.slane %v6711, 4
      %v6714 = vor.u32 %v6710, %v6713
      %v6715 = vsel %vm909, %v6705, %v6714
      %v6717 = vshrl.u32 %v6636, 16
      %v6719 = vrot.slane %v6717, 3
      %v6720 = vshll.u32 %v6636, 16
      %v6722 = vrot.slane %v6720, 4
      %v6723 = vor.u32 %v6719, %v6722
      %v6724 = vsel %vm909, %v6714, %v6723
      %v6726 = vshrl.u32 %v6637, 16
      %v6728 = vrot.slane %v6726, 3
      %v6729 = vshll.u32 %v6637, 16
      %v6731 = vrot.slane %v6729, 4
      %v6732 = vor.u32 %v6728, %v6731
      %v6733 = vsel %vm909, %v6723, %v6732
      %v6735 = vshrl.u32 %v6638, 16
      %v6737 = vrot.slane %v6735, 3
      %v6738 = vshll.u32 %v6638, 16
      %v6740 = vrot.slane %v6738, 4
      %v6741 = vor.u32 %v6737, %v6740
      %v6742 = vsel %vm909, %v6732, %v6741
      %v6744 = vshrl.u32 %v6639, 16
      %v6746 = vrot.slane %v6744, 3
      %v6747 = vshll.u32 %v6639, 16
      %v6749 = vrot.slane %v6747, 4
      %v6750 = vor.u32 %v6746, %v6749
      %v6751 = vsel %vm909, %v6741, %v6750
      %v6753 = vshrl.u32 %v6640, 16
      %v6755 = vrot.slane %v6753, 3
      %v6756 = vshll.u32 %v6640, 16
      %v6758 = vrot.slane %v6756, 4
      %v6759 = vor.u32 %v6755, %v6758
      %v6760 = vsel %vm909, %v6750, %v6759
      %v6762 = vshrl.u32 %v6641, 16
      %v6764 = vrot.slane %v6762, 3
      %v6765 = vshll.u32 %v6641, 16
      %v6767 = vrot.slane %v6765, 4
      %v6768 = vor.u32 %v6764, %v6767
      %v6769 = vsel %vm909, %v6759, %v6768
      %v6771 = vshrl.u32 %v6642, 16
      %v6773 = vrot.slane %v6771, 3
      %v6774 = vshll.u32 %v6642, 16
      %v6776 = vrot.slane %v6774, 4
      %v6777 = vor.u32 %v6773, %v6776
      %v6778 = vsel %vm909, %v6768, %v6777
      %v6780 = vshrl.u32 %v6643, 16
      %v6782 = vrot.slane %v6780, 3
      %v6783 = vshll.u32 %v6643, 16
      %v6785 = vrot.slane %v6783, 4
      %v6786 = vor.u32 %v6782, %v6785
      %v6787 = vsel %vm909, %v6777, %v6786
      %v6789 = vshrl.u32 %v6644, 16
      %v6791 = vrot.slane %v6789, 3
      %v6792 = vshll.u32 %v6644, 16
      %v6794 = vrot.slane %v6792, 4
      %v6795 = vor.u32 %v6791, %v6794
      %v6796 = vsel %vm909, %v6786, %v6795
      %v6798 = vshrl.u32 %v6645, 16
      %v6800 = vrot.slane %v6798, 3
      %v6801 = vshll.u32 %v6645, 16
      %v6803 = vrot.slane %v6801, 4
      %v6804 = vor.u32 %v6800, %v6803
      %v6805 = vsel %vm909, %v6795, %v6804
      %v6807 = vshrl.u32 %v6646, 16
      %v6809 = vrot.slane %v6807, 3
      %v6810 = vshll.u32 %v6646, 16
      %v6812 = vrot.slane %v6810, 4
      %v6813 = vor.u32 %v6809, %v6812
      %v6814 = vsel %vm909, %v6804, %v6813
      %v6816 = vshrl.u32 %v6647, 16
      %v6818 = vrot.slane %v6816, 3
      %v6819 = vshll.u32 %v6647, 16
      %v6821 = vrot.slane %v6819, 4
      %v6822 = vor.u32 %v6818, %v6821
      %v6823 = vsel %vm909, %v6813, %v6822
      %v6825 = vshrl.u32 %v6648, 16
      %v6827 = vrot.slane %v6825, 3
      %v6828 = vshll.u32 %v6648, 16
      %v6830 = vrot.slane %v6828, 4
      %v6831 = vor.u32 %v6827, %v6830
      %v6832 = vsel %vm909, %v6822, %v6831
      %v6834 = vshrl.u32 %v6649, 16
      %v6836 = vrot.slane %v6834, 3
      %v6837 = vshll.u32 %v6649, 16
      %v6839 = vrot.slane %v6837, 4
      %v6840 = vor.u32 %v6836, %v6839
      %v6841 = vsel %vm909, %v6831, %v6840
      %v6843 = vshrl.u32 %v6650, 16
      %v6845 = vrot.slane %v6843, 3
      %v6846 = vshll.u32 %v6650, 16
      %v6848 = vrot.slane %v6846, 4
      %v6849 = vor.u32 %v6845, %v6848
      %v6850 = vsel %vm909, %v6840, %v6849
      %v6852 = vshrl.u32 %v6651, 16
      %v6854 = vrot.slane %v6852, 3
      %v6855 = vshll.u32 %v6651, 16
      %v6857 = vrot.slane %v6855, 4
      %v6858 = vor.u32 %v6854, %v6857
      %v6859 = vsel %vm909, %v6849, %v6858
      %v6861 = vshrl.u32 %v6652, 16
      %v6863 = vrot.slane %v6861, 3
      %v6864 = vshll.u32 %v6652, 16
      %v6866 = vrot.slane %v6864, 4
      %v6867 = vor.u32 %v6863, %v6866
      %v6868 = vsel %vm909, %v6858, %v6867
      %v6870 = vshrl.u32 %v6653, 16
      %v6872 = vrot.slane %v6870, 3
      %v6873 = vshll.u32 %v6653, 16
      %v6875 = vrot.slane %v6873, 4
      %v6876 = vor.u32 %v6872, %v6875
      %v6877 = vsel %vm909, %v6867, %v6876
      %v6879 = vsel %vm580, %v6670, 0
      %v6882 = vsel %vm580, %v6679, 0
      %v6885 = vsel %vm580, %v6688, 0
      %v6888 = vsel %vm580, %v6697, 0
      %v6891 = vsel %vm580, %v6706, 0
      %v6894 = vsel %vm580, %v6715, 0
      %v6897 = vsel %vm580, %v6724, 0
      %v6900 = vsel %vm580, %v6733, 0
      %v6903 = vsel %vm580, %v6742, 0
      %v6906 = vsel %vm580, %v6751, 0
      %v6909 = vsel %vm580, %v6760, 0
      %v6912 = vsel %vm580, %v6769, 0
      %v6915 = vsel %vm580, %v6778, 0
      %v6918 = vsel %vm580, %v6787, 0
      %v6921 = vsel %vm580, %v6796, 0
      %v6924 = vsel %vm580, %v6805, 0
      %v6927 = vsel %vm580, %v6814, 0
      %v6930 = vsel %vm580, %v6823, 0
      %v6933 = vsel %vm580, %v6832, 0
      %v6936 = vsel %vm580, %v6841, 0
      %v6939 = vsel %vm580, %v6850, 0
      %v6942 = vsel %vm580, %v6859, 0
      %v6945 = vsel %vm580, %v6868, 0
      %v6948 = vsel %vm580, %v6877, 0
      %v6951 = vsel %vm653, %v6220, 0
      %6953 = vmatprep.subr.bf16.mxu0 0
      %6954 = vmatpush1.bf16.msra.mxu0 0
      %6955 = vmatprep.subr.bf16.mxu0 0
      %6956 = vmatpush1.bf16.msra.mxu0 0
      %6957 = vmatprep.subr.bf16.mxu0 0
      %6958 = vmatpush1.bf16.msra.mxu0 0
      %6959 = vmatprep.subr.bf16.mxu0 0
      %6960 = vmatpush1.bf16.msra.mxu0 0
      %6961 = vmatprep.subr.bf16.mxu0 0
      %6962 = vmatpush1.bf16.msra.mxu0 0
      %6963 = vmatprep.subr.bf16.mxu0 0
      %6964 = vmatpush1.bf16.msra.mxu0 0
      %6965 = vmatprep.subr.bf16.mxu0 0
      %6966 = vmatpush1.bf16.msra.mxu0 0
      %6967 = vmatprep.subr.bf16.mxu0 0
      %6968 = vmatpush1.bf16.msra.mxu0 %v6951
      %6969 = vmatprep.subr.bf16.mxu0 0
      %6970 = vmatpush2.bf16.msra.mxu0 0
      %6971 = vmatprep.subr.bf16.mxu0 0
      %6972 = vmatpush2.bf16.msra.mxu0 0
      %6973 = vmatprep.subr.bf16.mxu0 0
      %6974 = vmatpush2.bf16.msra.mxu0 0
      %6975 = vmatprep.subr.bf16.mxu0 0
      %6976 = vmatpush2.bf16.msra.mxu0 0
      %6977 = vmatprep.subr.bf16.mxu0 0
      %6978 = vmatpush2.bf16.msra.mxu0 0
      %6979 = vmatprep.subr.bf16.mxu0 0
      %6980 = vmatpush2.bf16.msra.mxu0 0
      %6981 = vmatprep.subr.bf16.mxu0 0
      %6982 = vmatpush2.bf16.msra.mxu0 0
      %6983 = vmatprep.subr.bf16.mxu0 0
      %6984 = vmatpush2.bf16.msra.mxu0 0
      %6985 = vmatprep.mubr.bf16.mxu0 0
      %6986 = vmatmul.mubr.bf16.gmra.mxu0 %v6879
      %v6987 = vpop.f32.mrf.mxu0
      %v6988 = vadd.f32 %v6453, %v6987
      %v6989 = vpop.f32.mrf.mxu0
      %v6990 = vpop.f32.mrf.mxu0
      %v6991 = vadd.f32 %v6456, %v6990
      %v6992 = vpop.f32.mrf.mxu0
      %6993 = vmatprep.mubr.bf16.mxu0 0
      %6994 = vmatmul.mubr.bf16.gmra.mxu0 %v6882
      %v6995 = vpop.f32.mrf.mxu0
      %v6996 = vpop.f32.mrf.mxu0
      %v6997 = vpop.f32.mrf.mxu0
      %v6998 = vadd.f32 %v6463, %v6997
      %v6999 = vpop.f32.mrf.mxu0
      %7000 = vmatprep.mubr.bf16.mxu0 0
      %7001 = vmatmul.mubr.bf16.gmra.mxu0 %v6885
      %v7002 = vpop.f32.mrf.mxu0
      %v7003 = vadd.f32 %v6468, %v7002
      %v7004 = vpop.f32.mrf.mxu0
      %v7005 = vpop.f32.mrf.mxu0
      %v7006 = vpop.f32.mrf.mxu0
      %7007 = vmatprep.mubr.bf16.mxu0 0
      %7008 = vmatmul.mubr.bf16.gmra.mxu0 %v6888
      %v7009 = vpop.f32.mrf.mxu0
      %v7010 = vadd.f32 %v6475, %v7009
      %v7011 = vpop.f32.mrf.mxu0
      %v7012 = vpop.f32.mrf.mxu0
      %v7013 = vadd.f32 %v6478, %v7012
      %v7014 = vpop.f32.mrf.mxu0
      %7015 = vmatprep.mubr.bf16.mxu0 0
      %7016 = vmatmul.mubr.bf16.gmra.mxu0 %v6891
      %v7017 = vpop.f32.mrf.mxu0
      %v7018 = vpop.f32.mrf.mxu0
      %v7019 = vpop.f32.mrf.mxu0
      %v7020 = vadd.f32 %v6485, %v7019
      %v7021 = vpop.f32.mrf.mxu0
      %7022 = vmatprep.mubr.bf16.mxu0 0
      %7023 = vmatmul.mubr.bf16.gmra.mxu0 %v6894
      %v7024 = vpop.f32.mrf.mxu0
      %v7025 = vadd.f32 %v6490, %v7024
      %v7026 = vpop.f32.mrf.mxu0
      %v7027 = vpop.f32.mrf.mxu0
      %v7028 = vpop.f32.mrf.mxu0
      %7029 = vmatprep.mubr.bf16.mxu0 0
      %7030 = vmatmul.mubr.bf16.gmra.mxu0 %v6897
      %v7031 = vpop.f32.mrf.mxu0
      %v7032 = vadd.f32 %v6497, %v7031
      %v7033 = vpop.f32.mrf.mxu0
      %v7034 = vpop.f32.mrf.mxu0
      %v7035 = vadd.f32 %v6500, %v7034
      %v7036 = vpop.f32.mrf.mxu0
      %7037 = vmatprep.mubr.bf16.mxu0 0
      %7038 = vmatmul.mubr.bf16.gmra.mxu0 %v6900
      %v7039 = vpop.f32.mrf.mxu0
      %v7040 = vpop.f32.mrf.mxu0
      %v7041 = vpop.f32.mrf.mxu0
      %v7042 = vadd.f32 %v6507, %v7041
      %v7043 = vpop.f32.mrf.mxu0
      %7044 = vmatprep.mubr.bf16.mxu0 0
      %7045 = vmatmul.mubr.bf16.gmra.mxu0 %v6903
      %v7046 = vpop.f32.mrf.mxu0
      %v7047 = vadd.f32 %v6512, %v7046
      %v7048 = vpop.f32.mrf.mxu0
      %v7049 = vpop.f32.mrf.mxu0
      %v7050 = vpop.f32.mrf.mxu0
      %7051 = vmatprep.mubr.bf16.mxu0 0
      %7052 = vmatmul.mubr.bf16.gmra.mxu0 %v6906
      %v7053 = vpop.f32.mrf.mxu0
      %v7054 = vadd.f32 %v6519, %v7053
      %v7055 = vpop.f32.mrf.mxu0
      %v7056 = vpop.f32.mrf.mxu0
      %v7057 = vadd.f32 %v6522, %v7056
      %v7058 = vpop.f32.mrf.mxu0
      %7059 = vmatprep.mubr.bf16.mxu0 0
      %7060 = vmatmul.mubr.bf16.gmra.mxu0 %v6909
      %v7061 = vpop.f32.mrf.mxu0
      %v7062 = vpop.f32.mrf.mxu0
      %v7063 = vpop.f32.mrf.mxu0
      %v7064 = vadd.f32 %v6529, %v7063
      %v7065 = vpop.f32.mrf.mxu0
      %7066 = vmatprep.mubr.bf16.mxu0 0
      %7067 = vmatmul.mubr.bf16.gmra.mxu0 %v6912
      %v7068 = vpop.f32.mrf.mxu0
      %v7069 = vadd.f32 %v6534, %v7068
      %v7070 = vpop.f32.mrf.mxu0
      %v7071 = vpop.f32.mrf.mxu0
      %v7072 = vpop.f32.mrf.mxu0
      %7073 = vmatprep.mubr.bf16.mxu0 0
      %7074 = vmatmul.mubr.bf16.gmra.mxu0 %v6915
      %v7075 = vpop.f32.mrf.mxu0
      %v7076 = vadd.f32 %v6541, %v7075
      %v7077 = vpop.f32.mrf.mxu0
      %v7078 = vpop.f32.mrf.mxu0
      %v7079 = vadd.f32 %v6544, %v7078
      %v7080 = vpop.f32.mrf.mxu0
      %7081 = vmatprep.mubr.bf16.mxu0 0
      %7082 = vmatmul.mubr.bf16.gmra.mxu0 %v6918
      %v7083 = vpop.f32.mrf.mxu0
      %v7084 = vpop.f32.mrf.mxu0
      %v7085 = vpop.f32.mrf.mxu0
      %v7086 = vadd.f32 %v6551, %v7085
      %v7087 = vpop.f32.mrf.mxu0
      %7088 = vmatprep.mubr.bf16.mxu0 0
      %7089 = vmatmul.mubr.bf16.gmra.mxu0 %v6921
      %v7090 = vpop.f32.mrf.mxu0
      %v7091 = vadd.f32 %v6556, %v7090
      %v7092 = vpop.f32.mrf.mxu0
      %v7093 = vpop.f32.mrf.mxu0
      %v7094 = vpop.f32.mrf.mxu0
      %7095 = vmatprep.mubr.bf16.mxu0 0
      %7096 = vmatmul.mubr.bf16.gmra.mxu0 %v6924
      %v7097 = vpop.f32.mrf.mxu0
      %v7098 = vadd.f32 %v6563, %v7097
      %v7099 = vpop.f32.mrf.mxu0
      %v7100 = vpop.f32.mrf.mxu0
      %v7101 = vadd.f32 %v6566, %v7100
      %v7102 = vpop.f32.mrf.mxu0
      %7103 = vmatprep.mubr.bf16.mxu0 0
      %7104 = vmatmul.mubr.bf16.gmra.mxu0 %v6927
      %v7105 = vpop.f32.mrf.mxu0
      %v7106 = vpop.f32.mrf.mxu0
      %v7107 = vpop.f32.mrf.mxu0
      %v7108 = vadd.f32 %v6573, %v7107
      %v7109 = vpop.f32.mrf.mxu0
      %7110 = vmatprep.mubr.bf16.mxu0 0
      %7111 = vmatmul.mubr.bf16.gmra.mxu0 %v6930
      %v7112 = vpop.f32.mrf.mxu0
      %v7113 = vadd.f32 %v6578, %v7112
      %v7114 = vpop.f32.mrf.mxu0
      %v7115 = vpop.f32.mrf.mxu0
      %v7116 = vpop.f32.mrf.mxu0
      %7117 = vmatprep.mubr.bf16.mxu0 0
      %7118 = vmatmul.mubr.bf16.gmra.mxu0 %v6933
      %v7119 = vpop.f32.mrf.mxu0
      %v7120 = vadd.f32 %v6585, %v7119
      %v7121 = vpop.f32.mrf.mxu0
      %v7122 = vpop.f32.mrf.mxu0
      %v7123 = vadd.f32 %v6588, %v7122
      %v7124 = vpop.f32.mrf.mxu0
      %7125 = vmatprep.mubr.bf16.mxu0 0
      %7126 = vmatmul.mubr.bf16.gmra.mxu0 %v6936
      %v7127 = vpop.f32.mrf.mxu0
      %v7128 = vpop.f32.mrf.mxu0
      %v7129 = vpop.f32.mrf.mxu0
      %v7130 = vadd.f32 %v6595, %v7129
      %v7131 = vpop.f32.mrf.mxu0
      %7132 = vmatprep.mubr.bf16.mxu0 0
      %7133 = vmatmul.mubr.bf16.gmra.mxu0 %v6939
      %v7134 = vpop.f32.mrf.mxu0
      %v7135 = vadd.f32 %v6600, %v7134
      %v7136 = vpop.f32.mrf.mxu0
      %v7137 = vpop.f32.mrf.mxu0
      %v7138 = vpop.f32.mrf.mxu0
      %7139 = vmatprep.mubr.bf16.mxu0 0
      %7140 = vmatmul.mubr.bf16.gmra.mxu0 %v6942
      %v7141 = vpop.f32.mrf.mxu0
      %v7142 = vadd.f32 %v6607, %v7141
      %v7143 = vpop.f32.mrf.mxu0
      %v7144 = vpop.f32.mrf.mxu0
      %v7145 = vadd.f32 %v6610, %v7144
      %v7146 = vpop.f32.mrf.mxu0
      %7147 = vmatprep.mubr.bf16.mxu0 0
      %7148 = vmatmul.mubr.bf16.gmra.mxu0 %v6945
      %v7149 = vpop.f32.mrf.mxu0
      %v7150 = vpop.f32.mrf.mxu0
      %v7151 = vpop.f32.mrf.mxu0
      %v7152 = vadd.f32 %v6617, %v7151
      %v7153 = vpop.f32.mrf.mxu0
      %7154 = vmatprep.mubr.bf16.mxu0 0
      %7155 = vmatmul.mubr.bf16.gmra.mxu0 %v6948
      %v7156 = vpop.f32.mrf.mxu0
      %v7157 = vadd.f32 %v6622, %v7156
      %v7158 = vpop.f32.mrf.mxu0
      %v7159 = vpop.f32.mrf.mxu0
      %v7160 = vpop.f32.mrf.mxu0
      %7161 = vdwg.mxu0
      %v7162 = vld [vmem:[#allocation3 + $0x4] sm:$0xf]
      %v7163 = vld [vmem:[#allocation3 + $0x8] sm:$0xf]
      %v7164 = vld [vmem:[#allocation3 + $0xc] sm:$0xf]
      %v7165 = vld [vmem:[#allocation3 + $0x10] sm:$0xf]
      %v7166 = vld [vmem:[#allocation3 + $0x14] sm:$0xf]
      %v7167 = vld [vmem:[#allocation3 + $0x18] sm:$0xf]
      %v7168 = vld [vmem:[#allocation3 + $0x1c] sm:$0xf]
      %v7169 = vld [vmem:[#allocation3 + $0x20] sm:$0xf]
      %v7170 = vld [vmem:[#allocation3 + $0x24] sm:$0xf]
      %v7171 = vld [vmem:[#allocation3 + $0x28] sm:$0xf]
      %v7172 = vld [vmem:[#allocation3 + $0x2c] sm:$0xf]
      %v7173 = vld [vmem:[#allocation3 + $0x30] sm:$0xf]
      %v7174 = vld [vmem:[#allocation3 + $0x34] sm:$0xf]
      %v7175 = vld [vmem:[#allocation3 + $0x38] sm:$0xf]
      %v7176 = vld [vmem:[#allocation3 + $0x3c] sm:$0xf]
      %v7177 = vld [vmem:[#allocation3 + $0x40] sm:$0xf]
      %v7178 = vld [vmem:[#allocation3 + $0x44] sm:$0xf]
      %v7179 = vld [vmem:[#allocation3 + $0x48] sm:$0xf]
      %v7180 = vld [vmem:[#allocation3 + $0x4c] sm:$0xf]
      %v7181 = vld [vmem:[#allocation3 + $0x50] sm:$0xf]
      %v7182 = vld [vmem:[#allocation3 + $0x54] sm:$0xf]
      %v7183 = vld [vmem:[#allocation3 + $0x58] sm:$0xf]
      %v7184 = vld [vmem:[#allocation3 + $0x5c] sm:$0xf]
      %v7185 = vld [vmem:[#allocation3 + $0x60] sm:$0xf]
      %v7186 = vld [vmem:[#allocation3 + $0x64] sm:$0xf]
      %v7187 = vld [vmem:[#allocation3 + $0x68] sm:$0xf]
      %v7188 = vld [vmem:[#allocation3 + $0x6c] sm:$0xf]
      %v7189 = vld [vmem:[#allocation3 + $0x70] sm:$0xf]
      %v7190 = vld [vmem:[#allocation3 + $0x74] sm:$0xf]
      %v7191 = vld [vmem:[#allocation3 + $0x78] sm:$0xf]
      %v7192 = vld [vmem:[#allocation3 + $0x7c] sm:$0xf]
      %v7193 = vld [vmem:[#allocation3 + $0x80] sm:$0xf]
      %v7194 = vld [vmem:[#allocation3 + $0x84] sm:$0xf]
      %v7195 = vld [vmem:[#allocation3 + $0x88] sm:$0xf]
      %v7196 = vld [vmem:[#allocation3 + $0x8c] sm:$0xf]
      %v7197 = vld [vmem:[#allocation3 + $0x90] sm:$0xf]
      %v7198 = vld [vmem:[#allocation3 + $0x94] sm:$0xf]
      %v7199 = vld [vmem:[#allocation3 + $0x98] sm:$0xf]
      %v7200 = vld [vmem:[#allocation3 + $0x9c] sm:$0xf]
      %v7201 = vld [vmem:[#allocation3 + $0xa0] sm:$0xf]
      %v7202 = vld [vmem:[#allocation3 + $0xa4] sm:$0xf]
      %v7203 = vld [vmem:[#allocation3 + $0xa8] sm:$0xf]
      %v7204 = vld [vmem:[#allocation3 + $0xac] sm:$0xf]
      %v7205 = vld [vmem:[#allocation3 + $0xb0] sm:$0xf]
      %v7206 = vld [vmem:[#allocation3 + $0xb4] sm:$0xf]
      %v7207 = vld [vmem:[#allocation3 + $0xb8] sm:$0xf]
      %v7208 = vld [vmem:[#allocation3 + $0xbc] sm:$0xf]
      %v7209 = vld [vmem:[#allocation3 + $0xc0] sm:$0xf]
      %v7210 = vld [vmem:[#allocation3 + $0xc4] sm:$0x1]
      %s7211 = scalar_lea.vmem %s2, 4
      %v7212 = vld [vmem:[%s7211] sm:$0x3]
      %v7262 = vunpack.c.l.b16 %v7162
      %v7263 = vunpack.c.l.b16 %v7163
      %v7264 = vunpack.c.l.b16 %v7164
      %v7265 = vunpack.c.l.b16 %v7165
      %v7266 = vunpack.c.l.b16 %v7166
      %v7267 = vunpack.c.l.b16 %v7167
      %v7268 = vunpack.c.l.b16 %v7168
      %v7269 = vunpack.c.l.b16 %v7169
      %v7270 = vunpack.c.l.b16 %v7170
      %v7271 = vunpack.c.l.b16 %v7171
      %v7272 = vunpack.c.l.b16 %v7172
      %v7273 = vunpack.c.l.b16 %v7173
      %v7274 = vunpack.c.l.b16 %v7174
      %v7275 = vunpack.c.l.b16 %v7175
      %v7276 = vunpack.c.l.b16 %v7176
      %v7277 = vunpack.c.l.b16 %v7177
      %v7278 = vunpack.c.l.b16 %v7178
      %v7279 = vunpack.c.l.b16 %v7179
      %v7280 = vunpack.c.l.b16 %v7180
      %v7281 = vunpack.c.l.b16 %v7181
      %v7282 = vunpack.c.l.b16 %v7182
      %v7283 = vunpack.c.l.b16 %v7183
      %v7284 = vunpack.c.l.b16 %v7184
      %v7285 = vunpack.c.l.b16 %v7185
      %v7286 = vunpack.c.l.b16 %v7186
      %v7287 = vunpack.c.l.b16 %v7187
      %v7288 = vunpack.c.l.b16 %v7188
      %v7289 = vunpack.c.l.b16 %v7189
      %v7290 = vunpack.c.l.b16 %v7190
      %v7291 = vunpack.c.l.b16 %v7191
      %v7292 = vunpack.c.l.b16 %v7192
      %v7293 = vunpack.c.l.b16 %v7193
      %v7294 = vunpack.c.l.b16 %v7194
      %v7295 = vunpack.c.l.b16 %v7195
      %v7296 = vunpack.c.l.b16 %v7196
      %v7297 = vunpack.c.l.b16 %v7197
      %v7298 = vunpack.c.l.b16 %v7198
      %v7299 = vunpack.c.l.b16 %v7199
      %v7300 = vunpack.c.l.b16 %v7200
      %v7301 = vunpack.c.l.b16 %v7201
      %v7302 = vunpack.c.l.b16 %v7202
      %v7303 = vunpack.c.l.b16 %v7203
      %v7304 = vunpack.c.l.b16 %v7204
      %v7305 = vunpack.c.l.b16 %v7205
      %v7306 = vunpack.c.l.b16 %v7206
      %v7307 = vunpack.c.l.b16 %v7207
      %v7308 = vunpack.c.l.b16 %v7208
      %v7309 = vunpack.c.l.b16 %v7209
      %v7310 = vunpack.c.l.b16 %v7210
      %v7311 = vpack.c.b16 %v7263, %v7262
      %v7312 = vpack.c.b16 %v7265, %v7264
      %v7313 = vpack.c.b16 %v7267, %v7266
      %v7314 = vpack.c.b16 %v7269, %v7268
      %v7315 = vpack.c.b16 %v7271, %v7270
      %v7316 = vpack.c.b16 %v7273, %v7272
      %v7317 = vpack.c.b16 %v7275, %v7274
      %v7318 = vpack.c.b16 %v7277, %v7276
      %v7319 = vpack.c.b16 %v7279, %v7278
      %v7320 = vpack.c.b16 %v7281, %v7280
      %v7321 = vpack.c.b16 %v7283, %v7282
      %v7322 = vpack.c.b16 %v7285, %v7284
      %v7323 = vpack.c.b16 %v7287, %v7286
      %v7324 = vpack.c.b16 %v7289, %v7288
      %v7325 = vpack.c.b16 %v7291, %v7290
      %v7326 = vpack.c.b16 %v7293, %v7292
      %v7327 = vpack.c.b16 %v7295, %v7294
      %v7328 = vpack.c.b16 %v7297, %v7296
      %v7329 = vpack.c.b16 %v7299, %v7298
      %v7330 = vpack.c.b16 %v7301, %v7300
      %v7331 = vpack.c.b16 %v7303, %v7302
      %v7332 = vpack.c.b16 %v7305, %v7304
      %v7333 = vpack.c.b16 %v7307, %v7306
      %v7334 = vpack.c.b16 %v7309, %v7308
      %v7335 = vpack.c.b16 %v7310, %v7310
      %v7337 = vshrl.u32 %v7311, 16
      %v7339 = vshll.u32 %v7311, 16
      %v7341 = vrot.slane %v7339, 1
      %v7342 = vor.u32 %v7337, %v7341
      %v7344 = vshll.u32 %v7312, 16
      %v7346 = vrot.slane %v7344, 1
      %v7347 = vsel %vm1608, %v7342, %v7346
      %v7348 = vshrl.u32 %v7312, 16
      %v7350 = vor.u32 %v7348, %v7346
      %v7352 = vshll.u32 %v7313, 16
      %v7354 = vrot.slane %v7352, 1
      %v7355 = vsel %vm1608, %v7350, %v7354
      %v7356 = vshrl.u32 %v7313, 16
      %v7358 = vor.u32 %v7356, %v7354
      %v7360 = vshll.u32 %v7314, 16
      %v7362 = vrot.slane %v7360, 1
      %v7363 = vsel %vm1608, %v7358, %v7362
      %v7364 = vshrl.u32 %v7314, 16
      %v7366 = vor.u32 %v7364, %v7362
      %v7368 = vshll.u32 %v7315, 16
      %v7370 = vrot.slane %v7368, 1
      %v7371 = vsel %vm1608, %v7366, %v7370
      %v7372 = vshrl.u32 %v7315, 16
      %v7374 = vor.u32 %v7372, %v7370
      %v7376 = vshll.u32 %v7316, 16
      %v7378 = vrot.slane %v7376, 1
      %v7379 = vsel %vm1608, %v7374, %v7378
      %v7380 = vshrl.u32 %v7316, 16
      %v7382 = vor.u32 %v7380, %v7378
      %v7384 = vshll.u32 %v7317, 16
      %v7386 = vrot.slane %v7384, 1
      %v7387 = vsel %vm1608, %v7382, %v7386
      %v7388 = vshrl.u32 %v7317, 16
      %v7390 = vor.u32 %v7388, %v7386
      %v7392 = vshll.u32 %v7318, 16
      %v7394 = vrot.slane %v7392, 1
      %v7395 = vsel %vm1608, %v7390, %v7394
      %v7396 = vshrl.u32 %v7318, 16
      %v7398 = vor.u32 %v7396, %v7394
      %v7400 = vshll.u32 %v7319, 16
      %v7402 = vrot.slane %v7400, 1
      %v7403 = vsel %vm1608, %v7398, %v7402
      %v7404 = vshrl.u32 %v7319, 16
      %v7406 = vor.u32 %v7404, %v7402
      %v7408 = vshll.u32 %v7320, 16
      %v7410 = vrot.slane %v7408, 1
      %v7411 = vsel %vm1608, %v7406, %v7410
      %v7412 = vshrl.u32 %v7320, 16
      %v7414 = vor.u32 %v7412, %v7410
      %v7416 = vshll.u32 %v7321, 16
      %v7418 = vrot.slane %v7416, 1
      %v7419 = vsel %vm1608, %v7414, %v7418
      %v7420 = vshrl.u32 %v7321, 16
      %v7422 = vor.u32 %v7420, %v7418
      %v7424 = vshll.u32 %v7322, 16
      %v7426 = vrot.slane %v7424, 1
      %v7427 = vsel %vm1608, %v7422, %v7426
      %v7428 = vshrl.u32 %v7322, 16
      %v7430 = vor.u32 %v7428, %v7426
      %v7432 = vshll.u32 %v7323, 16
      %v7434 = vrot.slane %v7432, 1
      %v7435 = vsel %vm1608, %v7430, %v7434
      %v7436 = vshrl.u32 %v7323, 16
      %v7438 = vor.u32 %v7436, %v7434
      %v7440 = vshll.u32 %v7324, 16
      %v7442 = vrot.slane %v7440, 1
      %v7443 = vsel %vm1608, %v7438, %v7442
      %v7444 = vshrl.u32 %v7324, 16
      %v7446 = vor.u32 %v7444, %v7442
      %v7448 = vshll.u32 %v7325, 16
      %v7450 = vrot.slane %v7448, 1
      %v7451 = vsel %vm1608, %v7446, %v7450
      %v7452 = vshrl.u32 %v7325, 16
      %v7454 = vor.u32 %v7452, %v7450
      %v7456 = vshll.u32 %v7326, 16
      %v7458 = vrot.slane %v7456, 1
      %v7459 = vsel %vm1608, %v7454, %v7458
      %v7460 = vshrl.u32 %v7326, 16
      %v7462 = vor.u32 %v7460, %v7458
      %v7464 = vshll.u32 %v7327, 16
      %v7466 = vrot.slane %v7464, 1
      %v7467 = vsel %vm1608, %v7462, %v7466
      %v7468 = vshrl.u32 %v7327, 16
      %v7470 = vor.u32 %v7468, %v7466
      %v7472 = vshll.u32 %v7328, 16
      %v7474 = vrot.slane %v7472, 1
      %v7475 = vsel %vm1608, %v7470, %v7474
      %v7476 = vshrl.u32 %v7328, 16
      %v7478 = vor.u32 %v7476, %v7474
      %v7480 = vshll.u32 %v7329, 16
      %v7482 = vrot.slane %v7480, 1
      %v7483 = vsel %vm1608, %v7478, %v7482
      %v7484 = vshrl.u32 %v7329, 16
      %v7486 = vor.u32 %v7484, %v7482
      %v7488 = vshll.u32 %v7330, 16
      %v7490 = vrot.slane %v7488, 1
      %v7491 = vsel %vm1608, %v7486, %v7490
      %v7492 = vshrl.u32 %v7330, 16
      %v7494 = vor.u32 %v7492, %v7490
      %v7496 = vshll.u32 %v7331, 16
      %v7498 = vrot.slane %v7496, 1
      %v7499 = vsel %vm1608, %v7494, %v7498
      %v7500 = vshrl.u32 %v7331, 16
      %v7502 = vor.u32 %v7500, %v7498
      %v7504 = vshll.u32 %v7332, 16
      %v7506 = vrot.slane %v7504, 1
      %v7507 = vsel %vm1608, %v7502, %v7506
      %v7508 = vshrl.u32 %v7332, 16
      %v7510 = vor.u32 %v7508, %v7506
      %v7512 = vshll.u32 %v7333, 16
      %v7514 = vrot.slane %v7512, 1
      %v7515 = vsel %vm1608, %v7510, %v7514
      %v7516 = vshrl.u32 %v7333, 16
      %v7518 = vor.u32 %v7516, %v7514
      %v7520 = vshll.u32 %v7334, 16
      %v7522 = vrot.slane %v7520, 1
      %v7523 = vsel %vm1608, %v7518, %v7522
      %v7524 = vshrl.u32 %v7334, 16
      %v7526 = vor.u32 %v7524, %v7522
      %v7528 = vshll.u32 %v7335, 16
      %v7530 = vrot.slane %v7528, 1
      %v7531 = vsel %vm1608, %v7526, %v7530
      %v7533 = vsel %vm580, %v7347, 0
      %v7536 = vsel %vm580, %v7355, 0
      %v7539 = vsel %vm580, %v7363, 0
      %v7542 = vsel %vm580, %v7371, 0
      %v7545 = vsel %vm580, %v7379, 0
      %v7548 = vsel %vm580, %v7387, 0
      %v7551 = vsel %vm580, %v7395, 0
      %v7554 = vsel %vm580, %v7403, 0
      %v7557 = vsel %vm580, %v7411, 0
      %v7560 = vsel %vm580, %v7419, 0
      %v7563 = vsel %vm580, %v7427, 0
      %v7566 = vsel %vm580, %v7435, 0
      %v7569 = vsel %vm580, %v7443, 0
      %v7572 = vsel %vm580, %v7451, 0
      %v7575 = vsel %vm580, %v7459, 0
      %v7578 = vsel %vm580, %v7467, 0
      %v7581 = vsel %vm580, %v7475, 0
      %v7584 = vsel %vm580, %v7483, 0
      %v7587 = vsel %vm580, %v7491, 0
      %v7590 = vsel %vm580, %v7499, 0
      %v7593 = vsel %vm580, %v7507, 0
      %v7596 = vsel %vm580, %v7515, 0
      %v7599 = vsel %vm580, %v7523, 0
      %v7602 = vsel %vm580, %v7531, 0
      %v7605 = vsel %vm653, %v7212, 0
      %7607 = vmatprep.subr.bf16.mxu0 0
      %7608 = vmatpush1.bf16.msra.mxu0 0
      %7609 = vmatprep.subr.bf16.mxu0 0
      %7610 = vmatpush1.bf16.msra.mxu0 0
      %7611 = vmatprep.subr.bf16.mxu0 0
      %7612 = vmatpush1.bf16.msra.mxu0 0
      %7613 = vmatprep.subr.bf16.mxu0 0
      %7614 = vmatpush1.bf16.msra.mxu0 0
      %7615 = vmatprep.subr.bf16.mxu0 0
      %7616 = vmatpush1.bf16.msra.mxu0 0
      %7617 = vmatprep.subr.bf16.mxu0 0
      %7618 = vmatpush1.bf16.msra.mxu0 0
      %7619 = vmatprep.subr.bf16.mxu0 0
      %7620 = vmatpush1.bf16.msra.mxu0 0
      %7621 = vmatprep.subr.bf16.mxu0 0
      %7622 = vmatpush1.bf16.msra.mxu0 %v7605
      %7623 = vmatprep.subr.bf16.mxu0 0
      %7624 = vmatpush2.bf16.msra.mxu0 0
      %7625 = vmatprep.subr.bf16.mxu0 0
      %7626 = vmatpush2.bf16.msra.mxu0 0
      %7627 = vmatprep.subr.bf16.mxu0 0
      %7628 = vmatpush2.bf16.msra.mxu0 0
      %7629 = vmatprep.subr.bf16.mxu0 0
      %7630 = vmatpush2.bf16.msra.mxu0 0
      %7631 = vmatprep.subr.bf16.mxu0 0
      %7632 = vmatpush2.bf16.msra.mxu0 0
      %7633 = vmatprep.subr.bf16.mxu0 0
      %7634 = vmatpush2.bf16.msra.mxu0 0
      %7635 = vmatprep.subr.bf16.mxu0 0
      %7636 = vmatpush2.bf16.msra.mxu0 0
      %7637 = vmatprep.subr.bf16.mxu0 0
      %7638 = vmatpush2.bf16.msra.mxu0 0
      %7639 = vmatprep.mubr.bf16.mxu0 0
      %7640 = vmatmul.mubr.bf16.gmra.mxu0 %v7533
      %v7641 = vpop.f32.mrf.mxu0
      %v7642 = vadd.f32 0.0, %v7641
      %v7643 = vpop.f32.mrf.mxu0
      %v7644 = vpop.f32.mrf.mxu0
      %v7645 = vadd.f32 0.0, %v7644
      %v7646 = vpop.f32.mrf.mxu0
      %7647 = vmatprep.mubr.bf16.mxu0 0
      %7648 = vmatmul.mubr.bf16.gmra.mxu0 %v7536
      %v7649 = vpop.f32.mrf.mxu0
      %v7650 = vpop.f32.mrf.mxu0
      %v7651 = vpop.f32.mrf.mxu0
      %v7652 = vadd.f32 0.0, %v7651
      %v7653 = vpop.f32.mrf.mxu0
      %7654 = vmatprep.mubr.bf16.mxu0 0
      %7655 = vmatmul.mubr.bf16.gmra.mxu0 %v7539
      %v7656 = vpop.f32.mrf.mxu0
      %v7657 = vadd.f32 0.0, %v7656
      %v7658 = vpop.f32.mrf.mxu0
      %v7659 = vpop.f32.mrf.mxu0
      %v7660 = vpop.f32.mrf.mxu0
      %7661 = vmatprep.mubr.bf16.mxu0 0
      %7662 = vmatmul.mubr.bf16.gmra.mxu0 %v7542
      %v7663 = vpop.f32.mrf.mxu0
      %v7664 = vadd.f32 0.0, %v7663
      %v7665 = vpop.f32.mrf.mxu0
      %v7666 = vpop.f32.mrf.mxu0
      %v7667 = vadd.f32 0.0, %v7666
      %v7668 = vpop.f32.mrf.mxu0
      %7669 = vmatprep.mubr.bf16.mxu0 0
      %7670 = vmatmul.mubr.bf16.gmra.mxu0 %v7545
      %v7671 = vpop.f32.mrf.mxu0
      %v7672 = vpop.f32.mrf.mxu0
      %v7673 = vpop.f32.mrf.mxu0
      %v7674 = vadd.f32 0.0, %v7673
      %v7675 = vpop.f32.mrf.mxu0
      %7676 = vmatprep.mubr.bf16.mxu0 0
      %7677 = vmatmul.mubr.bf16.gmra.mxu0 %v7548
      %v7678 = vpop.f32.mrf.mxu0
      %v7679 = vadd.f32 0.0, %v7678
      %v7680 = vpop.f32.mrf.mxu0
      %v7681 = vpop.f32.mrf.mxu0
      %v7682 = vpop.f32.mrf.mxu0
      %7683 = vmatprep.mubr.bf16.mxu0 0
      %7684 = vmatmul.mubr.bf16.gmra.mxu0 %v7551
      %v7685 = vpop.f32.mrf.mxu0
      %v7686 = vadd.f32 0.0, %v7685
      %v7687 = vpop.f32.mrf.mxu0
      %v7688 = vpop.f32.mrf.mxu0
      %v7689 = vadd.f32 0.0, %v7688
      %v7690 = vpop.f32.mrf.mxu0
      %7691 = vmatprep.mubr.bf16.mxu0 0
      %7692 = vmatmul.mubr.bf16.gmra.mxu0 %v7554
      %v7693 = vpop.f32.mrf.mxu0
      %v7694 = vpop.f32.mrf.mxu0
      %v7695 = vpop.f32.mrf.mxu0
      %v7696 = vadd.f32 0.0, %v7695
      %v7697 = vpop.f32.mrf.mxu0
      %7698 = vmatprep.mubr.bf16.mxu0 0
      %7699 = vmatmul.mubr.bf16.gmra.mxu0 %v7557
      %v7700 = vpop.f32.mrf.mxu0
      %v7701 = vadd.f32 0.0, %v7700
      %v7702 = vpop.f32.mrf.mxu0
      %v7703 = vpop.f32.mrf.mxu0
      %v7704 = vpop.f32.mrf.mxu0
      %7705 = vmatprep.mubr.bf16.mxu0 0
      %7706 = vmatmul.mubr.bf16.gmra.mxu0 %v7560
      %v7707 = vpop.f32.mrf.mxu0
      %v7708 = vadd.f32 0.0, %v7707
      %v7709 = vpop.f32.mrf.mxu0
      %v7710 = vpop.f32.mrf.mxu0
      %v7711 = vadd.f32 0.0, %v7710
      %v7712 = vpop.f32.mrf.mxu0
      %7713 = vmatprep.mubr.bf16.mxu0 0
      %7714 = vmatmul.mubr.bf16.gmra.mxu0 %v7563
      %v7715 = vpop.f32.mrf.mxu0
      %v7716 = vpop.f32.mrf.mxu0
      %v7717 = vpop.f32.mrf.mxu0
      %v7718 = vadd.f32 0.0, %v7717
      %v7719 = vpop.f32.mrf.mxu0
      %7720 = vmatprep.mubr.bf16.mxu0 0
      %7721 = vmatmul.mubr.bf16.gmra.mxu0 %v7566
      %v7722 = vpop.f32.mrf.mxu0
      %v7723 = vadd.f32 0.0, %v7722
      %v7724 = vpop.f32.mrf.mxu0
      %v7725 = vpop.f32.mrf.mxu0
      %v7726 = vpop.f32.mrf.mxu0
      %7727 = vmatprep.mubr.bf16.mxu0 0
      %7728 = vmatmul.mubr.bf16.gmra.mxu0 %v7569
      %v7729 = vpop.f32.mrf.mxu0
      %v7730 = vadd.f32 0.0, %v7729
      %v7731 = vpop.f32.mrf.mxu0
      %v7732 = vpop.f32.mrf.mxu0
      %v7733 = vadd.f32 0.0, %v7732
      %v7734 = vpop.f32.mrf.mxu0
      %7735 = vmatprep.mubr.bf16.mxu0 0
      %7736 = vmatmul.mubr.bf16.gmra.mxu0 %v7572
      %v7737 = vpop.f32.mrf.mxu0
      %v7738 = vpop.f32.mrf.mxu0
      %v7739 = vpop.f32.mrf.mxu0
      %v7740 = vadd.f32 0.0, %v7739
      %v7741 = vpop.f32.mrf.mxu0
      %7742 = vmatprep.mubr.bf16.mxu0 0
      %7743 = vmatmul.mubr.bf16.gmra.mxu0 %v7575
      %v7744 = vpop.f32.mrf.mxu0
      %v7745 = vadd.f32 0.0, %v7744
      %v7746 = vpop.f32.mrf.mxu0
      %v7747 = vpop.f32.mrf.mxu0
      %v7748 = vpop.f32.mrf.mxu0
      %7749 = vmatprep.mubr.bf16.mxu0 0
      %7750 = vmatmul.mubr.bf16.gmra.mxu0 %v7578
      %v7751 = vpop.f32.mrf.mxu0
      %v7752 = vadd.f32 0.0, %v7751
      %v7753 = vpop.f32.mrf.mxu0
      %v7754 = vpop.f32.mrf.mxu0
      %v7755 = vadd.f32 0.0, %v7754
      %v7756 = vpop.f32.mrf.mxu0
      %7757 = vmatprep.mubr.bf16.mxu0 0
      %7758 = vmatmul.mubr.bf16.gmra.mxu0 %v7581
      %v7759 = vpop.f32.mrf.mxu0
      %v7760 = vpop.f32.mrf.mxu0
      %v7761 = vpop.f32.mrf.mxu0
      %v7762 = vadd.f32 0.0, %v7761
      %v7763 = vpop.f32.mrf.mxu0
      %7764 = vmatprep.mubr.bf16.mxu0 0
      %7765 = vmatmul.mubr.bf16.gmra.mxu0 %v7584
      %v7766 = vpop.f32.mrf.mxu0
      %v7767 = vadd.f32 0.0, %v7766
      %v7768 = vpop.f32.mrf.mxu0
      %v7769 = vpop.f32.mrf.mxu0
      %v7770 = vpop.f32.mrf.mxu0
      %7771 = vmatprep.mubr.bf16.mxu0 0
      %7772 = vmatmul.mubr.bf16.gmra.mxu0 %v7587
      %v7773 = vpop.f32.mrf.mxu0
      %v7774 = vadd.f32 0.0, %v7773
      %v7775 = vpop.f32.mrf.mxu0
      %v7776 = vpop.f32.mrf.mxu0
      %v7777 = vadd.f32 0.0, %v7776
      %v7778 = vpop.f32.mrf.mxu0
      %7779 = vmatprep.mubr.bf16.mxu0 0
      %7780 = vmatmul.mubr.bf16.gmra.mxu0 %v7590
      %v7781 = vpop.f32.mrf.mxu0
      %v7782 = vpop.f32.mrf.mxu0
      %v7783 = vpop.f32.mrf.mxu0
      %v7784 = vadd.f32 0.0, %v7783
      %v7785 = vpop.f32.mrf.mxu0
      %7786 = vmatprep.mubr.bf16.mxu0 0
      %7787 = vmatmul.mubr.bf16.gmra.mxu0 %v7593
      %v7788 = vpop.f32.mrf.mxu0
      %v7789 = vadd.f32 0.0, %v7788
      %v7790 = vpop.f32.mrf.mxu0
      %v7791 = vpop.f32.mrf.mxu0
      %v7792 = vpop.f32.mrf.mxu0
      %7793 = vmatprep.mubr.bf16.mxu0 0
      %7794 = vmatmul.mubr.bf16.gmra.mxu0 %v7596
      %v7795 = vpop.f32.mrf.mxu0
      %v7796 = vadd.f32 0.0, %v7795
      %v7797 = vpop.f32.mrf.mxu0
      %v7798 = vpop.f32.mrf.mxu0
      %v7799 = vadd.f32 0.0, %v7798
      %v7800 = vpop.f32.mrf.mxu0
      %7801 = vmatprep.mubr.bf16.mxu0 0
      %7802 = vmatmul.mubr.bf16.gmra.mxu0 %v7599
      %v7803 = vpop.f32.mrf.mxu0
      %v7804 = vpop.f32.mrf.mxu0
      %v7805 = vpop.f32.mrf.mxu0
      %v7806 = vadd.f32 0.0, %v7805
      %v7807 = vpop.f32.mrf.mxu0
      %7808 = vmatprep.mubr.bf16.mxu0 0
      %7809 = vmatmul.mubr.bf16.gmra.mxu0 %v7602
      %v7810 = vpop.f32.mrf.mxu0
      %v7811 = vadd.f32 0.0, %v7810
      %v7812 = vpop.f32.mrf.mxu0
      %v7813 = vpop.f32.mrf.mxu0
      %v7814 = vpop.f32.mrf.mxu0
      %7815 = vdwg.mxu0
      %v7816 = vadd.f32 %v6988, %v7642
      %v7817 = vadd.f32 %v6991, %v7645
      %v7818 = vadd.f32 %v6998, %v7652
      %v7819 = vadd.f32 %v7003, %v7657
      %v7820 = vadd.f32 %v7010, %v7664
      %v7821 = vadd.f32 %v7013, %v7667
      %v7822 = vadd.f32 %v7020, %v7674
      %v7823 = vadd.f32 %v7025, %v7679
      %v7824 = vadd.f32 %v7032, %v7686
      %v7825 = vadd.f32 %v7035, %v7689
      %v7826 = vadd.f32 %v7042, %v7696
      %v7827 = vadd.f32 %v7047, %v7701
      %v7828 = vadd.f32 %v7054, %v7708
      %v7829 = vadd.f32 %v7057, %v7711
      %v7830 = vadd.f32 %v7064, %v7718
      %v7831 = vadd.f32 %v7069, %v7723
      %v7832 = vadd.f32 %v7076, %v7730
      %v7833 = vadd.f32 %v7079, %v7733
      %v7834 = vadd.f32 %v7086, %v7740
      %v7835 = vadd.f32 %v7091, %v7745
      %v7836 = vadd.f32 %v7098, %v7752
      %v7837 = vadd.f32 %v7101, %v7755
      %v7838 = vadd.f32 %v7108, %v7762
      %v7839 = vadd.f32 %v7113, %v7767
      %v7840 = vadd.f32 %v7120, %v7774
      %v7841 = vadd.f32 %v7123, %v7777
      %v7842 = vadd.f32 %v7130, %v7784
      %v7843 = vadd.f32 %v7135, %v7789
      %v7844 = vadd.f32 %v7142, %v7796
      %v7845 = vadd.f32 %v7145, %v7799
      %v7846 = vadd.f32 %v7152, %v7806
      %v7847 = vadd.f32 %v7157, %v7811
      %v7848 = vld [vmem:[#allocation3 + $0xc] sm:$0x8]
      %v7849 = vld [vmem:[#allocation3 + $0x10] sm:$0xf]
      %v7850 = vld [vmem:[#allocation3 + $0x14] sm:$0xf]
      %v7851 = vld [vmem:[#allocation3 + $0x18] sm:$0xf]
      %v7852 = vld [vmem:[#allocation3 + $0x1c] sm:$0xf]
      %v7853 = vld [vmem:[#allocation3 + $0x20] sm:$0xf]
      %v7854 = vld [vmem:[#allocation3 + $0x24] sm:$0xf]
      %v7855 = vld [vmem:[#allocation3 + $0x28] sm:$0xf]
      %v7856 = vld [vmem:[#allocation3 + $0x2c] sm:$0xf]
      %v7857 = vld [vmem:[#allocation3 + $0x30] sm:$0xf]
      %v7858 = vld [vmem:[#allocation3 + $0x34] sm:$0xf]
      %v7859 = vld [vmem:[#allocation3 + $0x38] sm:$0xf]
      %v7860 = vld [vmem:[#allocation3 + $0x3c] sm:$0xf]
      %v7861 = vld [vmem:[#allocation3 + $0x40] sm:$0xf]
      %v7862 = vld [vmem:[#allocation3 + $0x44] sm:$0xf]
      %v7863 = vld [vmem:[#allocation3 + $0x48] sm:$0xf]
      %v7864 = vld [vmem:[#allocation3 + $0x4c] sm:$0xf]
      %v7865 = vld [vmem:[#allocation3 + $0x50] sm:$0xf]
      %v7866 = vld [vmem:[#allocation3 + $0x54] sm:$0xf]
      %v7867 = vld [vmem:[#allocation3 + $0x58] sm:$0xf]
      %v7868 = vld [vmem:[#allocation3 + $0x5c] sm:$0xf]
      %v7869 = vld [vmem:[#allocation3 + $0x60] sm:$0xf]
      %v7870 = vld [vmem:[#allocation3 + $0x64] sm:$0xf]
      %v7871 = vld [vmem:[#allocation3 + $0x68] sm:$0xf]
      %v7872 = vld [vmem:[#allocation3 + $0x6c] sm:$0xf]
      %v7873 = vld [vmem:[#allocation3 + $0x70] sm:$0xf]
      %v7874 = vld [vmem:[#allocation3 + $0x74] sm:$0xf]
      %v7875 = vld [vmem:[#allocation3 + $0x78] sm:$0xf]
      %v7876 = vld [vmem:[#allocation3 + $0x7c] sm:$0xf]
      %v7877 = vld [vmem:[#allocation3 + $0x80] sm:$0xf]
      %v7878 = vld [vmem:[#allocation3 + $0x84] sm:$0xf]
      %v7879 = vld [vmem:[#allocation3 + $0x88] sm:$0xf]
      %v7880 = vld [vmem:[#allocation3 + $0x8c] sm:$0xf]
      %v7881 = vld [vmem:[#allocation3 + $0x90] sm:$0xf]
      %v7882 = vld [vmem:[#allocation3 + $0x94] sm:$0xf]
      %v7883 = vld [vmem:[#allocation3 + $0x98] sm:$0xf]
      %v7884 = vld [vmem:[#allocation3 + $0x9c] sm:$0xf]
      %v7885 = vld [vmem:[#allocation3 + $0xa0] sm:$0xf]
      %v7886 = vld [vmem:[#allocation3 + $0xa4] sm:$0xf]
      %v7887 = vld [vmem:[#allocation3 + $0xa8] sm:$0xf]
      %v7888 = vld [vmem:[#allocation3 + $0xac] sm:$0xf]
      %v7889 = vld [vmem:[#allocation3 + $0xb0] sm:$0xf]
      %v7890 = vld [vmem:[#allocation3 + $0xb4] sm:$0xf]
      %v7891 = vld [vmem:[#allocation3 + $0xb8] sm:$0xf]
      %v7892 = vld [vmem:[#allocation3 + $0xbc] sm:$0xf]
      %v7893 = vld [vmem:[#allocation3 + $0xc0] sm:$0xf]
      %v7894 = vld [vmem:[#allocation3 + $0xc4] sm:$0xf]
      %v7895 = vld [vmem:[#allocation3 + $0xc8] sm:$0xf]
      %v7896 = vld [vmem:[#allocation3 + $0xcc] sm:$0xf]
      %s7897 = scalar_lea.vmem %s2, 6
      %v7898 = vld [vmem:[%s7897] sm:$0x3]
      %v7948 = vunpack.c.l.b16 %v7848
      %v7949 = vunpack.c.l.b16 %v7849
      %v7950 = vunpack.c.l.b16 %v7850
      %v7951 = vunpack.c.l.b16 %v7851
      %v7952 = vunpack.c.l.b16 %v7852
      %v7953 = vunpack.c.l.b16 %v7853
      %v7954 = vunpack.c.l.b16 %v7854
      %v7955 = vunpack.c.l.b16 %v7855
      %v7956 = vunpack.c.l.b16 %v7856
      %v7957 = vunpack.c.l.b16 %v7857
      %v7958 = vunpack.c.l.b16 %v7858
      %v7959 = vunpack.c.l.b16 %v7859
      %v7960 = vunpack.c.l.b16 %v7860
      %v7961 = vunpack.c.l.b16 %v7861
      %v7962 = vunpack.c.l.b16 %v7862
      %v7963 = vunpack.c.l.b16 %v7863
      %v7964 = vunpack.c.l.b16 %v7864
      %v7965 = vunpack.c.l.b16 %v7865
      %v7966 = vunpack.c.l.b16 %v7866
      %v7967 = vunpack.c.l.b16 %v7867
      %v7968 = vunpack.c.l.b16 %v7868
      %v7969 = vunpack.c.l.b16 %v7869
      %v7970 = vunpack.c.l.b16 %v7870
      %v7971 = vunpack.c.l.b16 %v7871
      %v7972 = vunpack.c.l.b16 %v7872
      %v7973 = vunpack.c.l.b16 %v7873
      %v7974 = vunpack.c.l.b16 %v7874
      %v7975 = vunpack.c.l.b16 %v7875
      %v7976 = vunpack.c.l.b16 %v7876
      %v7977 = vunpack.c.l.b16 %v7877
      %v7978 = vunpack.c.l.b16 %v7878
      %v7979 = vunpack.c.l.b16 %v7879
      %v7980 = vunpack.c.l.b16 %v7880
      %v7981 = vunpack.c.l.b16 %v7881
      %v7982 = vunpack.c.l.b16 %v7882
      %v7983 = vunpack.c.l.b16 %v7883
      %v7984 = vunpack.c.l.b16 %v7884
      %v7985 = vunpack.c.l.b16 %v7885
      %v7986 = vunpack.c.l.b16 %v7886
      %v7987 = vunpack.c.l.b16 %v7887
      %v7988 = vunpack.c.l.b16 %v7888
      %v7989 = vunpack.c.l.b16 %v7889
      %v7990 = vunpack.c.l.b16 %v7890
      %v7991 = vunpack.c.l.b16 %v7891
      %v7992 = vunpack.c.l.b16 %v7892
      %v7993 = vunpack.c.l.b16 %v7893
      %v7994 = vunpack.c.l.b16 %v7894
      %v7995 = vunpack.c.l.b16 %v7895
      %v7996 = vunpack.c.l.b16 %v7896
      %v7997 = vpack.c.b16 %v7949, %v7948
      %v7998 = vpack.c.b16 %v7951, %v7950
      %v7999 = vpack.c.b16 %v7953, %v7952
      %v8000 = vpack.c.b16 %v7955, %v7954
      %v8001 = vpack.c.b16 %v7957, %v7956
      %v8002 = vpack.c.b16 %v7959, %v7958
      %v8003 = vpack.c.b16 %v7961, %v7960
      %v8004 = vpack.c.b16 %v7963, %v7962
      %v8005 = vpack.c.b16 %v7965, %v7964
      %v8006 = vpack.c.b16 %v7967, %v7966
      %v8007 = vpack.c.b16 %v7969, %v7968
      %v8008 = vpack.c.b16 %v7971, %v7970
      %v8009 = vpack.c.b16 %v7973, %v7972
      %v8010 = vpack.c.b16 %v7975, %v7974
      %v8011 = vpack.c.b16 %v7977, %v7976
      %v8012 = vpack.c.b16 %v7979, %v7978
      %v8013 = vpack.c.b16 %v7981, %v7980
      %v8014 = vpack.c.b16 %v7983, %v7982
      %v8015 = vpack.c.b16 %v7985, %v7984
      %v8016 = vpack.c.b16 %v7987, %v7986
      %v8017 = vpack.c.b16 %v7989, %v7988
      %v8018 = vpack.c.b16 %v7991, %v7990
      %v8019 = vpack.c.b16 %v7993, %v7992
      %v8020 = vpack.c.b16 %v7995, %v7994
      %v8021 = vpack.c.b16 %v7996, %v7996
      %v8023 = vshrl.u32 %v7997, 16
      %v8025 = vrot.slane %v8023, 3
      %v8026 = vshll.u32 %v7997, 16
      %v8028 = vrot.slane %v8026, 4
      %v8029 = vor.u32 %v8025, %v8028
      %v8031 = vshrl.u32 %v7998, 16
      %v8033 = vrot.slane %v8031, 3
      %v8034 = vshll.u32 %v7998, 16
      %v8036 = vrot.slane %v8034, 4
      %v8037 = vor.u32 %v8033, %v8036
      %v8038 = vsel %vm909, %v8029, %v8037
      %v8040 = vshrl.u32 %v7999, 16
      %v8042 = vrot.slane %v8040, 3
      %v8043 = vshll.u32 %v7999, 16
      %v8045 = vrot.slane %v8043, 4
      %v8046 = vor.u32 %v8042, %v8045
      %v8047 = vsel %vm909, %v8037, %v8046
      %v8049 = vshrl.u32 %v8000, 16
      %v8051 = vrot.slane %v8049, 3
      %v8052 = vshll.u32 %v8000, 16
      %v8054 = vrot.slane %v8052, 4
      %v8055 = vor.u32 %v8051, %v8054
      %v8056 = vsel %vm909, %v8046, %v8055
      %v8058 = vshrl.u32 %v8001, 16
      %v8060 = vrot.slane %v8058, 3
      %v8061 = vshll.u32 %v8001, 16
      %v8063 = vrot.slane %v8061, 4
      %v8064 = vor.u32 %v8060, %v8063
      %v8065 = vsel %vm909, %v8055, %v8064
      %v8067 = vshrl.u32 %v8002, 16
      %v8069 = vrot.slane %v8067, 3
      %v8070 = vshll.u32 %v8002, 16
      %v8072 = vrot.slane %v8070, 4
      %v8073 = vor.u32 %v8069, %v8072
      %v8074 = vsel %vm909, %v8064, %v8073
      %v8076 = vshrl.u32 %v8003, 16
      %v8078 = vrot.slane %v8076, 3
      %v8079 = vshll.u32 %v8003, 16
      %v8081 = vrot.slane %v8079, 4
      %v8082 = vor.u32 %v8078, %v8081
      %v8083 = vsel %vm909, %v8073, %v8082
      %v8085 = vshrl.u32 %v8004, 16
      %v8087 = vrot.slane %v8085, 3
      %v8088 = vshll.u32 %v8004, 16
      %v8090 = vrot.slane %v8088, 4
      %v8091 = vor.u32 %v8087, %v8090
      %v8092 = vsel %vm909, %v8082, %v8091
      %v8094 = vshrl.u32 %v8005, 16
      %v8096 = vrot.slane %v8094, 3
      %v8097 = vshll.u32 %v8005, 16
      %v8099 = vrot.slane %v8097, 4
      %v8100 = vor.u32 %v8096, %v8099
      %v8101 = vsel %vm909, %v8091, %v8100
      %v8103 = vshrl.u32 %v8006, 16
      %v8105 = vrot.slane %v8103, 3
      %v8106 = vshll.u32 %v8006, 16
      %v8108 = vrot.slane %v8106, 4
      %v8109 = vor.u32 %v8105, %v8108
      %v8110 = vsel %vm909, %v8100, %v8109
      %v8112 = vshrl.u32 %v8007, 16
      %v8114 = vrot.slane %v8112, 3
      %v8115 = vshll.u32 %v8007, 16
      %v8117 = vrot.slane %v8115, 4
      %v8118 = vor.u32 %v8114, %v8117
      %v8119 = vsel %vm909, %v8109, %v8118
      %v8121 = vshrl.u32 %v8008, 16
      %v8123 = vrot.slane %v8121, 3
      %v8124 = vshll.u32 %v8008, 16
      %v8126 = vrot.slane %v8124, 4
      %v8127 = vor.u32 %v8123, %v8126
      %v8128 = vsel %vm909, %v8118, %v8127
      %v8130 = vshrl.u32 %v8009, 16
      %v8132 = vrot.slane %v8130, 3
      %v8133 = vshll.u32 %v8009, 16
      %v8135 = vrot.slane %v8133, 4
      %v8136 = vor.u32 %v8132, %v8135
      %v8137 = vsel %vm909, %v8127, %v8136
      %v8139 = vshrl.u32 %v8010, 16
      %v8141 = vrot.slane %v8139, 3
      %v8142 = vshll.u32 %v8010, 16
      %v8144 = vrot.slane %v8142, 4
      %v8145 = vor.u32 %v8141, %v8144
      %v8146 = vsel %vm909, %v8136, %v8145
      %v8148 = vshrl.u32 %v8011, 16
      %v8150 = vrot.slane %v8148, 3
      %v8151 = vshll.u32 %v8011, 16
      %v8153 = vrot.slane %v8151, 4
      %v8154 = vor.u32 %v8150, %v8153
      %v8155 = vsel %vm909, %v8145, %v8154
      %v8157 = vshrl.u32 %v8012, 16
      %v8159 = vrot.slane %v8157, 3
      %v8160 = vshll.u32 %v8012, 16
      %v8162 = vrot.slane %v8160, 4
      %v8163 = vor.u32 %v8159, %v8162
      %v8164 = vsel %vm909, %v8154, %v8163
      %v8166 = vshrl.u32 %v8013, 16
      %v8168 = vrot.slane %v8166, 3
      %v8169 = vshll.u32 %v8013, 16
      %v8171 = vrot.slane %v8169, 4
      %v8172 = vor.u32 %v8168, %v8171
      %v8173 = vsel %vm909, %v8163, %v8172
      %v8175 = vshrl.u32 %v8014, 16
      %v8177 = vrot.slane %v8175, 3
      %v8178 = vshll.u32 %v8014, 16
      %v8180 = vrot.slane %v8178, 4
      %v8181 = vor.u32 %v8177, %v8180
      %v8182 = vsel %vm909, %v8172, %v8181
      %v8184 = vshrl.u32 %v8015, 16
      %v8186 = vrot.slane %v8184, 3
      %v8187 = vshll.u32 %v8015, 16
      %v8189 = vrot.slane %v8187, 4
      %v8190 = vor.u32 %v8186, %v8189
      %v8191 = vsel %vm909, %v8181, %v8190
      %v8193 = vshrl.u32 %v8016, 16
      %v8195 = vrot.slane %v8193, 3
      %v8196 = vshll.u32 %v8016, 16
      %v8198 = vrot.slane %v8196, 4
      %v8199 = vor.u32 %v8195, %v8198
      %v8200 = vsel %vm909, %v8190, %v8199
      %v8202 = vshrl.u32 %v8017, 16
      %v8204 = vrot.slane %v8202, 3
      %v8205 = vshll.u32 %v8017, 16
      %v8207 = vrot.slane %v8205, 4
      %v8208 = vor.u32 %v8204, %v8207
      %v8209 = vsel %vm909, %v8199, %v8208
      %v8211 = vshrl.u32 %v8018, 16
      %v8213 = vrot.slane %v8211, 3
      %v8214 = vshll.u32 %v8018, 16
      %v8216 = vrot.slane %v8214, 4
      %v8217 = vor.u32 %v8213, %v8216
      %v8218 = vsel %vm909, %v8208, %v8217
      %v8220 = vshrl.u32 %v8019, 16
      %v8222 = vrot.slane %v8220, 3
      %v8223 = vshll.u32 %v8019, 16
      %v8225 = vrot.slane %v8223, 4
      %v8226 = vor.u32 %v8222, %v8225
      %v8227 = vsel %vm909, %v8217, %v8226
      %v8229 = vshrl.u32 %v8020, 16
      %v8231 = vrot.slane %v8229, 3
      %v8232 = vshll.u32 %v8020, 16
      %v8234 = vrot.slane %v8232, 4
      %v8235 = vor.u32 %v8231, %v8234
      %v8236 = vsel %vm909, %v8226, %v8235
      %v8238 = vshrl.u32 %v8021, 16
      %v8240 = vrot.slane %v8238, 3
      %v8241 = vshll.u32 %v8021, 16
      %v8243 = vrot.slane %v8241, 4
      %v8244 = vor.u32 %v8240, %v8243
      %v8245 = vsel %vm909, %v8235, %v8244
      %v8247 = vsel %vm580, %v8038, 0
      %v8250 = vsel %vm580, %v8047, 0
      %v8253 = vsel %vm580, %v8056, 0
      %v8256 = vsel %vm580, %v8065, 0
      %v8259 = vsel %vm580, %v8074, 0
      %v8262 = vsel %vm580, %v8083, 0
      %v8265 = vsel %vm580, %v8092, 0
      %v8268 = vsel %vm580, %v8101, 0
      %v8271 = vsel %vm580, %v8110, 0
      %v8274 = vsel %vm580, %v8119, 0
      %v8277 = vsel %vm580, %v8128, 0
      %v8280 = vsel %vm580, %v8137, 0
      %v8283 = vsel %vm580, %v8146, 0
      %v8286 = vsel %vm580, %v8155, 0
      %v8289 = vsel %vm580, %v8164, 0
      %v8292 = vsel %vm580, %v8173, 0
      %v8295 = vsel %vm580, %v8182, 0
      %v8298 = vsel %vm580, %v8191, 0
      %v8301 = vsel %vm580, %v8200, 0
      %v8304 = vsel %vm580, %v8209, 0
      %v8307 = vsel %vm580, %v8218, 0
      %v8310 = vsel %vm580, %v8227, 0
      %v8313 = vsel %vm580, %v8236, 0
      %v8316 = vsel %vm580, %v8245, 0
      %v8319 = vsel %vm653, %v7898, 0
      %8321 = vmatprep.subr.bf16.mxu0 0
      %8322 = vmatpush1.bf16.msra.mxu0 0
      %8323 = vmatprep.subr.bf16.mxu0 0
      %8324 = vmatpush1.bf16.msra.mxu0 0
      %8325 = vmatprep.subr.bf16.mxu0 0
      %8326 = vmatpush1.bf16.msra.mxu0 0
      %8327 = vmatprep.subr.bf16.mxu0 0
      %8328 = vmatpush1.bf16.msra.mxu0 0
      %8329 = vmatprep.subr.bf16.mxu0 0
      %8330 = vmatpush1.bf16.msra.mxu0 0
      %8331 = vmatprep.subr.bf16.mxu0 0
      %8332 = vmatpush1.bf16.msra.mxu0 0
      %8333 = vmatprep.subr.bf16.mxu0 0
      %8334 = vmatpush1.bf16.msra.mxu0 0
      %8335 = vmatprep.subr.bf16.mxu0 0
      %8336 = vmatpush1.bf16.msra.mxu0 %v8319
      %8337 = vmatprep.subr.bf16.mxu0 0
      %8338 = vmatpush2.bf16.msra.mxu0 0
      %8339 = vmatprep.subr.bf16.mxu0 0
      %8340 = vmatpush2.bf16.msra.mxu0 0
      %8341 = vmatprep.subr.bf16.mxu0 0
      %8342 = vmatpush2.bf16.msra.mxu0 0
      %8343 = vmatprep.subr.bf16.mxu0 0
      %8344 = vmatpush2.bf16.msra.mxu0 0
      %8345 = vmatprep.subr.bf16.mxu0 0
      %8346 = vmatpush2.bf16.msra.mxu0 0
      %8347 = vmatprep.subr.bf16.mxu0 0
      %8348 = vmatpush2.bf16.msra.mxu0 0
      %8349 = vmatprep.subr.bf16.mxu0 0
      %8350 = vmatpush2.bf16.msra.mxu0 0
      %8351 = vmatprep.subr.bf16.mxu0 0
      %8352 = vmatpush2.bf16.msra.mxu0 0
      %8353 = vmatprep.mubr.bf16.mxu0 0
      %8354 = vmatmul.mubr.bf16.gmra.mxu0 %v8247
      %v8355 = vpop.f32.mrf.mxu0
      %v8356 = vadd.f32 0.0, %v8355
      %v8357 = vpop.f32.mrf.mxu0
      %v8358 = vpop.f32.mrf.mxu0
      %v8359 = vadd.f32 0.0, %v8358
      %v8360 = vpop.f32.mrf.mxu0
      %8361 = vmatprep.mubr.bf16.mxu0 0
      %8362 = vmatmul.mubr.bf16.gmra.mxu0 %v8250
      %v8363 = vpop.f32.mrf.mxu0
      %v8364 = vpop.f32.mrf.mxu0
      %v8365 = vpop.f32.mrf.mxu0
      %v8366 = vadd.f32 0.0, %v8365
      %v8367 = vpop.f32.mrf.mxu0
      %8368 = vmatprep.mubr.bf16.mxu0 0
      %8369 = vmatmul.mubr.bf16.gmra.mxu0 %v8253
      %v8370 = vpop.f32.mrf.mxu0
      %v8371 = vadd.f32 0.0, %v8370
      %v8372 = vpop.f32.mrf.mxu0
      %v8373 = vpop.f32.mrf.mxu0
      %v8374 = vpop.f32.mrf.mxu0
      %8375 = vmatprep.mubr.bf16.mxu0 0
      %8376 = vmatmul.mubr.bf16.gmra.mxu0 %v8256
      %v8377 = vpop.f32.mrf.mxu0
      %v8378 = vadd.f32 0.0, %v8377
      %v8379 = vpop.f32.mrf.mxu0
      %v8380 = vpop.f32.mrf.mxu0
      %v8381 = vadd.f32 0.0, %v8380
      %v8382 = vpop.f32.mrf.mxu0
      %8383 = vmatprep.mubr.bf16.mxu0 0
      %8384 = vmatmul.mubr.bf16.gmra.mxu0 %v8259
      %v8385 = vpop.f32.mrf.mxu0
      %v8386 = vpop.f32.mrf.mxu0
      %v8387 = vpop.f32.mrf.mxu0
      %v8388 = vadd.f32 0.0, %v8387
      %v8389 = vpop.f32.mrf.mxu0
      %8390 = vmatprep.mubr.bf16.mxu0 0
      %8391 = vmatmul.mubr.bf16.gmra.mxu0 %v8262
      %v8392 = vpop.f32.mrf.mxu0
      %v8393 = vadd.f32 0.0, %v8392
      %v8394 = vpop.f32.mrf.mxu0
      %v8395 = vpop.f32.mrf.mxu0
      %v8396 = vpop.f32.mrf.mxu0
      %8397 = vmatprep.mubr.bf16.mxu0 0
      %8398 = vmatmul.mubr.bf16.gmra.mxu0 %v8265
      %v8399 = vpop.f32.mrf.mxu0
      %v8400 = vadd.f32 0.0, %v8399
      %v8401 = vpop.f32.mrf.mxu0
      %v8402 = vpop.f32.mrf.mxu0
      %v8403 = vadd.f32 0.0, %v8402
      %v8404 = vpop.f32.mrf.mxu0
      %8405 = vmatprep.mubr.bf16.mxu0 0
      %8406 = vmatmul.mubr.bf16.gmra.mxu0 %v8268
      %v8407 = vpop.f32.mrf.mxu0
      %v8408 = vpop.f32.mrf.mxu0
      %v8409 = vpop.f32.mrf.mxu0
      %v8410 = vadd.f32 0.0, %v8409
      %v8411 = vpop.f32.mrf.mxu0
      %8412 = vmatprep.mubr.bf16.mxu0 0
      %8413 = vmatmul.mubr.bf16.gmra.mxu0 %v8271
      %v8414 = vpop.f32.mrf.mxu0
      %v8415 = vadd.f32 0.0, %v8414
      %v8416 = vpop.f32.mrf.mxu0
      %v8417 = vpop.f32.mrf.mxu0
      %v8418 = vpop.f32.mrf.mxu0
      %8419 = vmatprep.mubr.bf16.mxu0 0
      %8420 = vmatmul.mubr.bf16.gmra.mxu0 %v8274
      %v8421 = vpop.f32.mrf.mxu0
      %v8422 = vadd.f32 0.0, %v8421
      %v8423 = vpop.f32.mrf.mxu0
      %v8424 = vpop.f32.mrf.mxu0
      %v8425 = vadd.f32 0.0, %v8424
      %v8426 = vpop.f32.mrf.mxu0
      %8427 = vmatprep.mubr.bf16.mxu0 0
      %8428 = vmatmul.mubr.bf16.gmra.mxu0 %v8277
      %v8429 = vpop.f32.mrf.mxu0
      %v8430 = vpop.f32.mrf.mxu0
      %v8431 = vpop.f32.mrf.mxu0
      %v8432 = vadd.f32 0.0, %v8431
      %v8433 = vpop.f32.mrf.mxu0
      %8434 = vmatprep.mubr.bf16.mxu0 0
      %8435 = vmatmul.mubr.bf16.gmra.mxu0 %v8280
      %v8436 = vpop.f32.mrf.mxu0
      %v8437 = vadd.f32 0.0, %v8436
      %v8438 = vpop.f32.mrf.mxu0
      %v8439 = vpop.f32.mrf.mxu0
      %v8440 = vpop.f32.mrf.mxu0
      %8441 = vmatprep.mubr.bf16.mxu0 0
      %8442 = vmatmul.mubr.bf16.gmra.mxu0 %v8283
      %v8443 = vpop.f32.mrf.mxu0
      %v8444 = vadd.f32 0.0, %v8443
      %v8445 = vpop.f32.mrf.mxu0
      %v8446 = vpop.f32.mrf.mxu0
      %v8447 = vadd.f32 0.0, %v8446
      %v8448 = vpop.f32.mrf.mxu0
      %8449 = vmatprep.mubr.bf16.mxu0 0
      %8450 = vmatmul.mubr.bf16.gmra.mxu0 %v8286
      %v8451 = vpop.f32.mrf.mxu0
      %v8452 = vpop.f32.mrf.mxu0
      %v8453 = vpop.f32.mrf.mxu0
      %v8454 = vadd.f32 0.0, %v8453
      %v8455 = vpop.f32.mrf.mxu0
      %8456 = vmatprep.mubr.bf16.mxu0 0
      %8457 = vmatmul.mubr.bf16.gmra.mxu0 %v8289
      %v8458 = vpop.f32.mrf.mxu0
      %v8459 = vadd.f32 0.0, %v8458
      %v8460 = vpop.f32.mrf.mxu0
      %v8461 = vpop.f32.mrf.mxu0
      %v8462 = vpop.f32.mrf.mxu0
      %8463 = vmatprep.mubr.bf16.mxu0 0
      %8464 = vmatmul.mubr.bf16.gmra.mxu0 %v8292
      %v8465 = vpop.f32.mrf.mxu0
      %v8466 = vadd.f32 0.0, %v8465
      %v8467 = vpop.f32.mrf.mxu0
      %v8468 = vpop.f32.mrf.mxu0
      %v8469 = vadd.f32 0.0, %v8468
      %v8470 = vpop.f32.mrf.mxu0
      %8471 = vmatprep.mubr.bf16.mxu0 0
      %8472 = vmatmul.mubr.bf16.gmra.mxu0 %v8295
      %v8473 = vpop.f32.mrf.mxu0
      %v8474 = vpop.f32.mrf.mxu0
      %v8475 = vpop.f32.mrf.mxu0
      %v8476 = vadd.f32 0.0, %v8475
      %v8477 = vpop.f32.mrf.mxu0
      %8478 = vmatprep.mubr.bf16.mxu0 0
      %8479 = vmatmul.mubr.bf16.gmra.mxu0 %v8298
      %v8480 = vpop.f32.mrf.mxu0
      %v8481 = vadd.f32 0.0, %v8480
      %v8482 = vpop.f32.mrf.mxu0
      %v8483 = vpop.f32.mrf.mxu0
      %v8484 = vpop.f32.mrf.mxu0
      %8485 = vmatprep.mubr.bf16.mxu0 0
      %8486 = vmatmul.mubr.bf16.gmra.mxu0 %v8301
      %v8487 = vpop.f32.mrf.mxu0
      %v8488 = vadd.f32 0.0, %v8487
      %v8489 = vpop.f32.mrf.mxu0
      %v8490 = vpop.f32.mrf.mxu0
      %v8491 = vadd.f32 0.0, %v8490
      %v8492 = vpop.f32.mrf.mxu0
      %8493 = vmatprep.mubr.bf16.mxu0 0
      %8494 = vmatmul.mubr.bf16.gmra.mxu0 %v8304
      %v8495 = vpop.f32.mrf.mxu0
      %v8496 = vpop.f32.mrf.mxu0
      %v8497 = vpop.f32.mrf.mxu0
      %v8498 = vadd.f32 0.0, %v8497
      %v8499 = vpop.f32.mrf.mxu0
      %8500 = vmatprep.mubr.bf16.mxu0 0
      %8501 = vmatmul.mubr.bf16.gmra.mxu0 %v8307
      %v8502 = vpop.f32.mrf.mxu0
      %v8503 = vadd.f32 0.0, %v8502
      %v8504 = vpop.f32.mrf.mxu0
      %v8505 = vpop.f32.mrf.mxu0
      %v8506 = vpop.f32.mrf.mxu0
      %8507 = vmatprep.mubr.bf16.mxu0 0
      %8508 = vmatmul.mubr.bf16.gmra.mxu0 %v8310
      %v8509 = vpop.f32.mrf.mxu0
      %v8510 = vadd.f32 0.0, %v8509
      %v8511 = vpop.f32.mrf.mxu0
      %v8512 = vpop.f32.mrf.mxu0
      %v8513 = vadd.f32 0.0, %v8512
      %v8514 = vpop.f32.mrf.mxu0
      %8515 = vmatprep.mubr.bf16.mxu0 0
      %8516 = vmatmul.mubr.bf16.gmra.mxu0 %v8313
      %v8517 = vpop.f32.mrf.mxu0
      %v8518 = vpop.f32.mrf.mxu0
      %v8519 = vpop.f32.mrf.mxu0
      %v8520 = vadd.f32 0.0, %v8519
      %v8521 = vpop.f32.mrf.mxu0
      %8522 = vmatprep.mubr.bf16.mxu0 0
      %8523 = vmatmul.mubr.bf16.gmra.mxu0 %v8316
      %v8524 = vpop.f32.mrf.mxu0
      %v8525 = vadd.f32 0.0, %v8524
      %v8526 = vpop.f32.mrf.mxu0
      %v8527 = vpop.f32.mrf.mxu0
      %v8528 = vpop.f32.mrf.mxu0
      %8529 = vdwg.mxu0
      %v8530 = vadd.f32 %v7816, %v8356
      %v8531 = vadd.f32 %v7817, %v8359
      %v8532 = vadd.f32 %v7818, %v8366
      %v8533 = vadd.f32 %v7819, %v8371
      %v8534 = vadd.f32 %v7820, %v8378
      %v8535 = vadd.f32 %v7821, %v8381
      %v8536 = vadd.f32 %v7822, %v8388
      %v8537 = vadd.f32 %v7823, %v8393
      %v8538 = vadd.f32 %v7824, %v8400
      %v8539 = vadd.f32 %v7825, %v8403
      %v8540 = vadd.f32 %v7826, %v8410
      %v8541 = vadd.f32 %v7827, %v8415
      %v8542 = vadd.f32 %v7828, %v8422
      %v8543 = vadd.f32 %v7829, %v8425
      %v8544 = vadd.f32 %v7830, %v8432
      %v8545 = vadd.f32 %v7831, %v8437
      %v8546 = vadd.f32 %v7832, %v8444
      %v8547 = vadd.f32 %v7833, %v8447
      %v8548 = vadd.f32 %v7834, %v8454
      %v8549 = vadd.f32 %v7835, %v8459
      %v8550 = vadd.f32 %v7836, %v8466
      %v8551 = vadd.f32 %v7837, %v8469
      %v8552 = vadd.f32 %v7838, %v8476
      %v8553 = vadd.f32 %v7839, %v8481
      %v8554 = vadd.f32 %v7840, %v8488
      %v8555 = vadd.f32 %v7841, %v8491
      %v8556 = vadd.f32 %v7842, %v8498
      %v8557 = vadd.f32 %v7843, %v8503
      %v8558 = vadd.f32 %v7844, %v8510
      %v8559 = vadd.f32 %v7845, %v8513
      %v8560 = vadd.f32 %v7846, %v8520
      %v8561 = vadd.f32 %v7847, %v8525
      %s8562 = scalar_lea.vmem %s2, 8
      %v8563 = vld [vmem:[%s8562] sm:$0x3]
      %v8564 = vpack.c.b16 %v7950, %v7949
      %v8565 = vpack.c.b16 %v7952, %v7951
      %v8566 = vpack.c.b16 %v7954, %v7953
      %v8567 = vpack.c.b16 %v7956, %v7955
      %v8568 = vpack.c.b16 %v7958, %v7957
      %v8569 = vpack.c.b16 %v7960, %v7959
      %v8570 = vpack.c.b16 %v7962, %v7961
      %v8571 = vpack.c.b16 %v7964, %v7963
      %v8572 = vpack.c.b16 %v7966, %v7965
      %v8573 = vpack.c.b16 %v7968, %v7967
      %v8574 = vpack.c.b16 %v7970, %v7969
      %v8575 = vpack.c.b16 %v7972, %v7971
      %v8576 = vpack.c.b16 %v7974, %v7973
      %v8577 = vpack.c.b16 %v7976, %v7975
      %v8578 = vpack.c.b16 %v7978, %v7977
      %v8579 = vpack.c.b16 %v7980, %v7979
      %v8580 = vpack.c.b16 %v7982, %v7981
      %v8581 = vpack.c.b16 %v7984, %v7983
      %v8582 = vpack.c.b16 %v7986, %v7985
      %v8583 = vpack.c.b16 %v7988, %v7987
      %v8584 = vpack.c.b16 %v7990, %v7989
      %v8585 = vpack.c.b16 %v7992, %v7991
      %v8586 = vpack.c.b16 %v7994, %v7993
      %v8587 = vpack.c.b16 %v7996, %v7995
      %v8589 = vsel %vm580, %v8564, 0
      %v8592 = vsel %vm580, %v8565, 0
      %v8595 = vsel %vm580, %v8566, 0
      %v8598 = vsel %vm580, %v8567, 0
      %v8601 = vsel %vm580, %v8568, 0
      %v8604 = vsel %vm580, %v8569, 0
      %v8607 = vsel %vm580, %v8570, 0
      %v8610 = vsel %vm580, %v8571, 0
      %v8613 = vsel %vm580, %v8572, 0
      %v8616 = vsel %vm580, %v8573, 0
      %v8619 = vsel %vm580, %v8574, 0
      %v8622 = vsel %vm580, %v8575, 0
      %v8625 = vsel %vm580, %v8576, 0
      %v8628 = vsel %vm580, %v8577, 0
      %v8631 = vsel %vm580, %v8578, 0
      %v8634 = vsel %vm580, %v8579, 0
      %v8637 = vsel %vm580, %v8580, 0
      %v8640 = vsel %vm580, %v8581, 0
      %v8643 = vsel %vm580, %v8582, 0
      %v8646 = vsel %vm580, %v8583, 0
      %v8649 = vsel %vm580, %v8584, 0
      %v8652 = vsel %vm580, %v8585, 0
      %v8655 = vsel %vm580, %v8586, 0
      %v8658 = vsel %vm580, %v8587, 0
      %v8661 = vsel %vm653, %v8563, 0
      %8663 = vmatprep.subr.bf16.mxu0 0
      %8664 = vmatpush1.bf16.msra.mxu0 0
      %8665 = vmatprep.subr.bf16.mxu0 0
      %8666 = vmatpush1.bf16.msra.mxu0 0
      %8667 = vmatprep.subr.bf16.mxu0 0
      %8668 = vmatpush1.bf16.msra.mxu0 0
      %8669 = vmatprep.subr.bf16.mxu0 0
      %8670 = vmatpush1.bf16.msra.mxu0 0
      %8671 = vmatprep.subr.bf16.mxu0 0
      %8672 = vmatpush1.bf16.msra.mxu0 0
      %8673 = vmatprep.subr.bf16.mxu0 0
      %8674 = vmatpush1.bf16.msra.mxu0 0
      %8675 = vmatprep.subr.bf16.mxu0 0
      %8676 = vmatpush1.bf16.msra.mxu0 0
      %8677 = vmatprep.subr.bf16.mxu0 0
      %8678 = vmatpush1.bf16.msra.mxu0 %v8661
      %8679 = vmatprep.subr.bf16.mxu0 0
      %8680 = vmatpush2.bf16.msra.mxu0 0
      %8681 = vmatprep.subr.bf16.mxu0 0
      %8682 = vmatpush2.bf16.msra.mxu0 0
      %8683 = vmatprep.subr.bf16.mxu0 0
      %8684 = vmatpush2.bf16.msra.mxu0 0
      %8685 = vmatprep.subr.bf16.mxu0 0
      %8686 = vmatpush2.bf16.msra.mxu0 0
      %8687 = vmatprep.subr.bf16.mxu0 0
      %8688 = vmatpush2.bf16.msra.mxu0 0
      %8689 = vmatprep.subr.bf16.mxu0 0
      %8690 = vmatpush2.bf16.msra.mxu0 0
      %8691 = vmatprep.subr.bf16.mxu0 0
      %8692 = vmatpush2.bf16.msra.mxu0 0
      %8693 = vmatprep.subr.bf16.mxu0 0
      %8694 = vmatpush2.bf16.msra.mxu0 0
      %8695 = vmatprep.mubr.bf16.mxu0 0
      %8696 = vmatmul.mubr.bf16.gmra.mxu0 %v8589
      %v8697 = vpop.f32.mrf.mxu0
      %v8698 = vadd.f32 0.0, %v8697
      %v8699 = vpop.f32.mrf.mxu0
      %v8700 = vpop.f32.mrf.mxu0
      %v8701 = vadd.f32 0.0, %v8700
      %v8702 = vpop.f32.mrf.mxu0
      %8703 = vmatprep.mubr.bf16.mxu0 0
      %8704 = vmatmul.mubr.bf16.gmra.mxu0 %v8592
      %v8705 = vpop.f32.mrf.mxu0
      %v8706 = vpop.f32.mrf.mxu0
      %v8707 = vpop.f32.mrf.mxu0
      %v8708 = vadd.f32 0.0, %v8707
      %v8709 = vpop.f32.mrf.mxu0
      %8710 = vmatprep.mubr.bf16.mxu0 0
      %8711 = vmatmul.mubr.bf16.gmra.mxu0 %v8595
      %v8712 = vpop.f32.mrf.mxu0
      %v8713 = vadd.f32 0.0, %v8712
      %v8714 = vpop.f32.mrf.mxu0
      %v8715 = vpop.f32.mrf.mxu0
      %v8716 = vpop.f32.mrf.mxu0
      %8717 = vmatprep.mubr.bf16.mxu0 0
      %8718 = vmatmul.mubr.bf16.gmra.mxu0 %v8598
      %v8719 = vpop.f32.mrf.mxu0
      %v8720 = vadd.f32 0.0, %v8719
      %v8721 = vpop.f32.mrf.mxu0
      %v8722 = vpop.f32.mrf.mxu0
      %v8723 = vadd.f32 0.0, %v8722
      %v8724 = vpop.f32.mrf.mxu0
      %8725 = vmatprep.mubr.bf16.mxu0 0
      %8726 = vmatmul.mubr.bf16.gmra.mxu0 %v8601
      %v8727 = vpop.f32.mrf.mxu0
      %v8728 = vpop.f32.mrf.mxu0
      %v8729 = vpop.f32.mrf.mxu0
      %v8730 = vadd.f32 0.0, %v8729
      %v8731 = vpop.f32.mrf.mxu0
      %8732 = vmatprep.mubr.bf16.mxu0 0
      %8733 = vmatmul.mubr.bf16.gmra.mxu0 %v8604
      %v8734 = vpop.f32.mrf.mxu0
      %v8735 = vadd.f32 0.0, %v8734
      %v8736 = vpop.f32.mrf.mxu0
      %v8737 = vpop.f32.mrf.mxu0
      %v8738 = vpop.f32.mrf.mxu0
      %8739 = vmatprep.mubr.bf16.mxu0 0
      %8740 = vmatmul.mubr.bf16.gmra.mxu0 %v8607
      %v8741 = vpop.f32.mrf.mxu0
      %v8742 = vadd.f32 0.0, %v8741
      %v8743 = vpop.f32.mrf.mxu0
      %v8744 = vpop.f32.mrf.mxu0
      %v8745 = vadd.f32 0.0, %v8744
      %v8746 = vpop.f32.mrf.mxu0
      %8747 = vmatprep.mubr.bf16.mxu0 0
      %8748 = vmatmul.mubr.bf16.gmra.mxu0 %v8610
      %v8749 = vpop.f32.mrf.mxu0
      %v8750 = vpop.f32.mrf.mxu0
      %v8751 = vpop.f32.mrf.mxu0
      %v8752 = vadd.f32 0.0, %v8751
      %v8753 = vpop.f32.mrf.mxu0
      %8754 = vmatprep.mubr.bf16.mxu0 0
      %8755 = vmatmul.mubr.bf16.gmra.mxu0 %v8613
      %v8756 = vpop.f32.mrf.mxu0
      %v8757 = vadd.f32 0.0, %v8756
      %v8758 = vpop.f32.mrf.mxu0
      %v8759 = vpop.f32.mrf.mxu0
      %v8760 = vpop.f32.mrf.mxu0
      %8761 = vmatprep.mubr.bf16.mxu0 0
      %8762 = vmatmul.mubr.bf16.gmra.mxu0 %v8616
      %v8763 = vpop.f32.mrf.mxu0
      %v8764 = vadd.f32 0.0, %v8763
      %v8765 = vpop.f32.mrf.mxu0
      %v8766 = vpop.f32.mrf.mxu0
      %v8767 = vadd.f32 0.0, %v8766
      %v8768 = vpop.f32.mrf.mxu0
      %8769 = vmatprep.mubr.bf16.mxu0 0
      %8770 = vmatmul.mubr.bf16.gmra.mxu0 %v8619
      %v8771 = vpop.f32.mrf.mxu0
      %v8772 = vpop.f32.mrf.mxu0
      %v8773 = vpop.f32.mrf.mxu0
      %v8774 = vadd.f32 0.0, %v8773
      %v8775 = vpop.f32.mrf.mxu0
      %8776 = vmatprep.mubr.bf16.mxu0 0
      %8777 = vmatmul.mubr.bf16.gmra.mxu0 %v8622
      %v8778 = vpop.f32.mrf.mxu0
      %v8779 = vadd.f32 0.0, %v8778
      %v8780 = vpop.f32.mrf.mxu0
      %v8781 = vpop.f32.mrf.mxu0
      %v8782 = vpop.f32.mrf.mxu0
      %8783 = vmatprep.mubr.bf16.mxu0 0
      %8784 = vmatmul.mubr.bf16.gmra.mxu0 %v8625
      %v8785 = vpop.f32.mrf.mxu0
      %v8786 = vadd.f32 0.0, %v8785
      %v8787 = vpop.f32.mrf.mxu0
      %v8788 = vpop.f32.mrf.mxu0
      %v8789 = vadd.f32 0.0, %v8788
      %v8790 = vpop.f32.mrf.mxu0
      %8791 = vmatprep.mubr.bf16.mxu0 0
      %8792 = vmatmul.mubr.bf16.gmra.mxu0 %v8628
      %v8793 = vpop.f32.mrf.mxu0
      %v8794 = vpop.f32.mrf.mxu0
      %v8795 = vpop.f32.mrf.mxu0
      %v8796 = vadd.f32 0.0, %v8795
      %v8797 = vpop.f32.mrf.mxu0
      %8798 = vmatprep.mubr.bf16.mxu0 0
      %8799 = vmatmul.mubr.bf16.gmra.mxu0 %v8631
      %v8800 = vpop.f32.mrf.mxu0
      %v8801 = vadd.f32 0.0, %v8800
      %v8802 = vpop.f32.mrf.mxu0
      %v8803 = vpop.f32.mrf.mxu0
      %v8804 = vpop.f32.mrf.mxu0
      %8805 = vmatprep.mubr.bf16.mxu0 0
      %8806 = vmatmul.mubr.bf16.gmra.mxu0 %v8634
      %v8807 = vpop.f32.mrf.mxu0
      %v8808 = vadd.f32 0.0, %v8807
      %v8809 = vpop.f32.mrf.mxu0
      %v8810 = vpop.f32.mrf.mxu0
      %v8811 = vadd.f32 0.0, %v8810
      %v8812 = vpop.f32.mrf.mxu0
      %8813 = vmatprep.mubr.bf16.mxu0 0
      %8814 = vmatmul.mubr.bf16.gmra.mxu0 %v8637
      %v8815 = vpop.f32.mrf.mxu0
      %v8816 = vpop.f32.mrf.mxu0
      %v8817 = vpop.f32.mrf.mxu0
      %v8818 = vadd.f32 0.0, %v8817
      %v8819 = vpop.f32.mrf.mxu0
      %8820 = vmatprep.mubr.bf16.mxu0 0
      %8821 = vmatmul.mubr.bf16.gmra.mxu0 %v8640
      %v8822 = vpop.f32.mrf.mxu0
      %v8823 = vadd.f32 0.0, %v8822
      %v8824 = vpop.f32.mrf.mxu0
      %v8825 = vpop.f32.mrf.mxu0
      %v8826 = vpop.f32.mrf.mxu0
      %8827 = vmatprep.mubr.bf16.mxu0 0
      %8828 = vmatmul.mubr.bf16.gmra.mxu0 %v8643
      %v8829 = vpop.f32.mrf.mxu0
      %v8830 = vadd.f32 0.0, %v8829
      %v8831 = vpop.f32.mrf.mxu0
      %v8832 = vpop.f32.mrf.mxu0
      %v8833 = vadd.f32 0.0, %v8832
      %v8834 = vpop.f32.mrf.mxu0
      %8835 = vmatprep.mubr.bf16.mxu0 0
      %8836 = vmatmul.mubr.bf16.gmra.mxu0 %v8646
      %v8837 = vpop.f32.mrf.mxu0
      %v8838 = vpop.f32.mrf.mxu0
      %v8839 = vpop.f32.mrf.mxu0
      %v8840 = vadd.f32 0.0, %v8839
      %v8841 = vpop.f32.mrf.mxu0
      %8842 = vmatprep.mubr.bf16.mxu0 0
      %8843 = vmatmul.mubr.bf16.gmra.mxu0 %v8649
      %v8844 = vpop.f32.mrf.mxu0
      %v8845 = vadd.f32 0.0, %v8844
      %v8846 = vpop.f32.mrf.mxu0
      %v8847 = vpop.f32.mrf.mxu0
      %v8848 = vpop.f32.mrf.mxu0
      %8849 = vmatprep.mubr.bf16.mxu0 0
      %8850 = vmatmul.mubr.bf16.gmra.mxu0 %v8652
      %v8851 = vpop.f32.mrf.mxu0
      %v8852 = vadd.f32 0.0, %v8851
      %v8853 = vpop.f32.mrf.mxu0
      %v8854 = vpop.f32.mrf.mxu0
      %v8855 = vadd.f32 0.0, %v8854
      %v8856 = vpop.f32.mrf.mxu0
      %8857 = vmatprep.mubr.bf16.mxu0 0
      %8858 = vmatmul.mubr.bf16.gmra.mxu0 %v8655
      %v8859 = vpop.f32.mrf.mxu0
      %v8860 = vpop.f32.mrf.mxu0
      %v8861 = vpop.f32.mrf.mxu0
      %v8862 = vadd.f32 0.0, %v8861
      %v8863 = vpop.f32.mrf.mxu0
      %8864 = vmatprep.mubr.bf16.mxu0 0
      %8865 = vmatmul.mubr.bf16.gmra.mxu0 %v8658
      %v8866 = vpop.f32.mrf.mxu0
      %v8867 = vadd.f32 0.0, %v8866
      %v8868 = vpop.f32.mrf.mxu0
      %v8869 = vpop.f32.mrf.mxu0
      %v8870 = vpop.f32.mrf.mxu0
      %8871 = vdwg.mxu0
      %v8872 = vadd.f32 %v8530, %v8698
      %v8873 = vadd.f32 %v8531, %v8701
      %v8874 = vadd.f32 %v8532, %v8708
      %v8875 = vadd.f32 %v8533, %v8713
      %v8876 = vadd.f32 %v8534, %v8720
      %v8877 = vadd.f32 %v8535, %v8723
      %v8878 = vadd.f32 %v8536, %v8730
      %v8879 = vadd.f32 %v8537, %v8735
      %v8880 = vadd.f32 %v8538, %v8742
      %v8881 = vadd.f32 %v8539, %v8745
      %v8882 = vadd.f32 %v8540, %v8752
      %v8883 = vadd.f32 %v8541, %v8757
      %v8884 = vadd.f32 %v8542, %v8764
      %v8885 = vadd.f32 %v8543, %v8767
      %v8886 = vadd.f32 %v8544, %v8774
      %v8887 = vadd.f32 %v8545, %v8779
      %v8888 = vadd.f32 %v8546, %v8786
      %v8889 = vadd.f32 %v8547, %v8789
      %v8890 = vadd.f32 %v8548, %v8796
      %v8891 = vadd.f32 %v8549, %v8801
      %v8892 = vadd.f32 %v8550, %v8808
      %v8893 = vadd.f32 %v8551, %v8811
      %v8894 = vadd.f32 %v8552, %v8818
      %v8895 = vadd.f32 %v8553, %v8823
      %v8896 = vadd.f32 %v8554, %v8830
      %v8897 = vadd.f32 %v8555, %v8833
      %v8898 = vadd.f32 %v8556, %v8840
      %v8899 = vadd.f32 %v8557, %v8845
      %v8900 = vadd.f32 %v8558, %v8852
      %v8901 = vadd.f32 %v8559, %v8855
      %v8902 = vadd.f32 %v8560, %v8862
      %v8903 = vadd.f32 %v8561, %v8867
      %v8904 = vld [vmem:[#allocation3 + $0x10] sm:$0xf]
      %v8905 = vld [vmem:[#allocation3 + $0x14] sm:$0xf]
      %v8906 = vld [vmem:[#allocation3 + $0x18] sm:$0xf]
      %v8907 = vld [vmem:[#allocation3 + $0x1c] sm:$0xf]
      %v8908 = vld [vmem:[#allocation3 + $0x20] sm:$0xf]
      %v8909 = vld [vmem:[#allocation3 + $0x24] sm:$0xf]
      %v8910 = vld [vmem:[#allocation3 + $0x28] sm:$0xf]
      %v8911 = vld [vmem:[#allocation3 + $0x2c] sm:$0xf]
      %v8912 = vld [vmem:[#allocation3 + $0x30] sm:$0xf]
      %v8913 = vld [vmem:[#allocation3 + $0x34] sm:$0xf]
      %v8914 = vld [vmem:[#allocation3 + $0x38] sm:$0xf]
      %v8915 = vld [vmem:[#allocation3 + $0x3c] sm:$0xf]
      %v8916 = vld [vmem:[#allocation3 + $0x40] sm:$0xf]
      %v8917 = vld [vmem:[#allocation3 + $0x44] sm:$0xf]
      %v8918 = vld [vmem:[#allocation3 + $0x48] sm:$0xf]
      %v8919 = vld [vmem:[#allocation3 + $0x4c] sm:$0xf]
      %v8920 = vld [vmem:[#allocation3 + $0x50] sm:$0xf]
      %v8921 = vld [vmem:[#allocation3 + $0x54] sm:$0xf]
      %v8922 = vld [vmem:[#allocation3 + $0x58] sm:$0xf]
      %v8923 = vld [vmem:[#allocation3 + $0x5c] sm:$0xf]
      %v8924 = vld [vmem:[#allocation3 + $0x60] sm:$0xf]
      %v8925 = vld [vmem:[#allocation3 + $0x64] sm:$0xf]
      %v8926 = vld [vmem:[#allocation3 + $0x68] sm:$0xf]
      %v8927 = vld [vmem:[#allocation3 + $0x6c] sm:$0xf]
      %v8928 = vld [vmem:[#allocation3 + $0x70] sm:$0xf]
      %v8929 = vld [vmem:[#allocation3 + $0x74] sm:$0xf]
      %v8930 = vld [vmem:[#allocation3 + $0x78] sm:$0xf]
      %v8931 = vld [vmem:[#allocation3 + $0x7c] sm:$0xf]
      %v8932 = vld [vmem:[#allocation3 + $0x80] sm:$0xf]
      %v8933 = vld [vmem:[#allocation3 + $0x84] sm:$0xf]
      %v8934 = vld [vmem:[#allocation3 + $0x88] sm:$0xf]
      %v8935 = vld [vmem:[#allocation3 + $0x8c] sm:$0xf]
      %v8936 = vld [vmem:[#allocation3 + $0x90] sm:$0xf]
      %v8937 = vld [vmem:[#allocation3 + $0x94] sm:$0xf]
      %v8938 = vld [vmem:[#allocation3 + $0x98] sm:$0xf]
      %v8939 = vld [vmem:[#allocation3 + $0x9c] sm:$0xf]
      %v8940 = vld [vmem:[#allocation3 + $0xa0] sm:$0xf]
      %v8941 = vld [vmem:[#allocation3 + $0xa4] sm:$0xf]
      %v8942 = vld [vmem:[#allocation3 + $0xa8] sm:$0xf]
      %v8943 = vld [vmem:[#allocation3 + $0xac] sm:$0xf]
      %v8944 = vld [vmem:[#allocation3 + $0xb0] sm:$0xf]
      %v8945 = vld [vmem:[#allocation3 + $0xb4] sm:$0xf]
      %v8946 = vld [vmem:[#allocation3 + $0xb8] sm:$0xf]
      %v8947 = vld [vmem:[#allocation3 + $0xbc] sm:$0xf]
      %v8948 = vld [vmem:[#allocation3 + $0xc0] sm:$0xf]
      %v8949 = vld [vmem:[#allocation3 + $0xc4] sm:$0xf]
      %v8950 = vld [vmem:[#allocation3 + $0xc8] sm:$0xf]
      %v8951 = vld [vmem:[#allocation3 + $0xcc] sm:$0xf]
      %v8952 = vld [vmem:[#allocation3 + $0xd0] sm:$0x1]
      %s8953 = scalar_lea.vmem %s2, 10
      %v8954 = vld [vmem:[%s8953] sm:$0x3]
      %v9004 = vunpack.c.l.b16 %v8904
      %v9005 = vunpack.c.l.b16 %v8905
      %v9006 = vunpack.c.l.b16 %v8906
      %v9007 = vunpack.c.l.b16 %v8907
      %v9008 = vunpack.c.l.b16 %v8908
      %v9009 = vunpack.c.l.b16 %v8909
      %v9010 = vunpack.c.l.b16 %v8910
      %v9011 = vunpack.c.l.b16 %v8911
      %v9012 = vunpack.c.l.b16 %v8912
      %v9013 = vunpack.c.l.b16 %v8913
      %v9014 = vunpack.c.l.b16 %v8914
      %v9015 = vunpack.c.l.b16 %v8915
      %v9016 = vunpack.c.l.b16 %v8916
      %v9017 = vunpack.c.l.b16 %v8917
      %v9018 = vunpack.c.l.b16 %v8918
      %v9019 = vunpack.c.l.b16 %v8919
      %v9020 = vunpack.c.l.b16 %v8920
      %v9021 = vunpack.c.l.b16 %v8921
      %v9022 = vunpack.c.l.b16 %v8922
      %v9023 = vunpack.c.l.b16 %v8923
      %v9024 = vunpack.c.l.b16 %v8924
      %v9025 = vunpack.c.l.b16 %v8925
      %v9026 = vunpack.c.l.b16 %v8926
      %v9027 = vunpack.c.l.b16 %v8927
      %v9028 = vunpack.c.l.b16 %v8928
      %v9029 = vunpack.c.l.b16 %v8929
      %v9030 = vunpack.c.l.b16 %v8930
      %v9031 = vunpack.c.l.b16 %v8931
      %v9032 = vunpack.c.l.b16 %v8932
      %v9033 = vunpack.c.l.b16 %v8933
      %v9034 = vunpack.c.l.b16 %v8934
      %v9035 = vunpack.c.l.b16 %v8935
      %v9036 = vunpack.c.l.b16 %v8936
      %v9037 = vunpack.c.l.b16 %v8937
      %v9038 = vunpack.c.l.b16 %v8938
      %v9039 = vunpack.c.l.b16 %v8939
      %v9040 = vunpack.c.l.b16 %v8940
      %v9041 = vunpack.c.l.b16 %v8941
      %v9042 = vunpack.c.l.b16 %v8942
      %v9043 = vunpack.c.l.b16 %v8943
      %v9044 = vunpack.c.l.b16 %v8944
      %v9045 = vunpack.c.l.b16 %v8945
      %v9046 = vunpack.c.l.b16 %v8946
      %v9047 = vunpack.c.l.b16 %v8947
      %v9048 = vunpack.c.l.b16 %v8948
      %v9049 = vunpack.c.l.b16 %v8949
      %v9050 = vunpack.c.l.b16 %v8950
      %v9051 = vunpack.c.l.b16 %v8951
      %v9052 = vunpack.c.l.b16 %v8952
      %v9053 = vpack.c.b16 %v9005, %v9004
      %v9054 = vpack.c.b16 %v9007, %v9006
      %v9055 = vpack.c.b16 %v9009, %v9008
      %v9056 = vpack.c.b16 %v9011, %v9010
      %v9057 = vpack.c.b16 %v9013, %v9012
      %v9058 = vpack.c.b16 %v9015, %v9014
      %v9059 = vpack.c.b16 %v9017, %v9016
      %v9060 = vpack.c.b16 %v9019, %v9018
      %v9061 = vpack.c.b16 %v9021, %v9020
      %v9062 = vpack.c.b16 %v9023, %v9022
      %v9063 = vpack.c.b16 %v9025, %v9024
      %v9064 = vpack.c.b16 %v9027, %v9026
      %v9065 = vpack.c.b16 %v9029, %v9028
      %v9066 = vpack.c.b16 %v9031, %v9030
      %v9067 = vpack.c.b16 %v9033, %v9032
      %v9068 = vpack.c.b16 %v9035, %v9034
      %v9069 = vpack.c.b16 %v9037, %v9036
      %v9070 = vpack.c.b16 %v9039, %v9038
      %v9071 = vpack.c.b16 %v9041, %v9040
      %v9072 = vpack.c.b16 %v9043, %v9042
      %v9073 = vpack.c.b16 %v9045, %v9044
      %v9074 = vpack.c.b16 %v9047, %v9046
      %v9075 = vpack.c.b16 %v9049, %v9048
      %v9076 = vpack.c.b16 %v9051, %v9050
      %v9077 = vpack.c.b16 %v9052, %v9052
      %v9079 = vshrl.u32 %v9053, 16
      %v9081 = vshll.u32 %v9053, 16
      %v9083 = vrot.slane %v9081, 1
      %v9084 = vor.u32 %v9079, %v9083
      %v9086 = vshll.u32 %v9054, 16
      %v9088 = vrot.slane %v9086, 1
      %v9089 = vsel %vm1608, %v9084, %v9088
      %v9090 = vshrl.u32 %v9054, 16
      %v9092 = vor.u32 %v9090, %v9088
      %v9094 = vshll.u32 %v9055, 16
      %v9096 = vrot.slane %v9094, 1
      %v9097 = vsel %vm1608, %v9092, %v9096
      %v9098 = vshrl.u32 %v9055, 16
      %v9100 = vor.u32 %v9098, %v9096
      %v9102 = vshll.u32 %v9056, 16
      %v9104 = vrot.slane %v9102, 1
      %v9105 = vsel %vm1608, %v9100, %v9104
      %v9106 = vshrl.u32 %v9056, 16
      %v9108 = vor.u32 %v9106, %v9104
      %v9110 = vshll.u32 %v9057, 16
      %v9112 = vrot.slane %v9110, 1
      %v9113 = vsel %vm1608, %v9108, %v9112
      %v9114 = vshrl.u32 %v9057, 16
      %v9116 = vor.u32 %v9114, %v9112
      %v9118 = vshll.u32 %v9058, 16
      %v9120 = vrot.slane %v9118, 1
      %v9121 = vsel %vm1608, %v9116, %v9120
      %v9122 = vshrl.u32 %v9058, 16
      %v9124 = vor.u32 %v9122, %v9120
      %v9126 = vshll.u32 %v9059, 16
      %v9128 = vrot.slane %v9126, 1
      %v9129 = vsel %vm1608, %v9124, %v9128
      %v9130 = vshrl.u32 %v9059, 16
      %v9132 = vor.u32 %v9130, %v9128
      %v9134 = vshll.u32 %v9060, 16
      %v9136 = vrot.slane %v9134, 1
      %v9137 = vsel %vm1608, %v9132, %v9136
      %v9138 = vshrl.u32 %v9060, 16
      %v9140 = vor.u32 %v9138, %v9136
      %v9142 = vshll.u32 %v9061, 16
      %v9144 = vrot.slane %v9142, 1
      %v9145 = vsel %vm1608, %v9140, %v9144
      %v9146 = vshrl.u32 %v9061, 16
      %v9148 = vor.u32 %v9146, %v9144
      %v9150 = vshll.u32 %v9062, 16
      %v9152 = vrot.slane %v9150, 1
      %v9153 = vsel %vm1608, %v9148, %v9152
      %v9154 = vshrl.u32 %v9062, 16
      %v9156 = vor.u32 %v9154, %v9152
      %v9158 = vshll.u32 %v9063, 16
      %v9160 = vrot.slane %v9158, 1
      %v9161 = vsel %vm1608, %v9156, %v9160
      %v9162 = vshrl.u32 %v9063, 16
      %v9164 = vor.u32 %v9162, %v9160
      %v9166 = vshll.u32 %v9064, 16
      %v9168 = vrot.slane %v9166, 1
      %v9169 = vsel %vm1608, %v9164, %v9168
      %v9170 = vshrl.u32 %v9064, 16
      %v9172 = vor.u32 %v9170, %v9168
      %v9174 = vshll.u32 %v9065, 16
      %v9176 = vrot.slane %v9174, 1
      %v9177 = vsel %vm1608, %v9172, %v9176
      %v9178 = vshrl.u32 %v9065, 16
      %v9180 = vor.u32 %v9178, %v9176
      %v9182 = vshll.u32 %v9066, 16
      %v9184 = vrot.slane %v9182, 1
      %v9185 = vsel %vm1608, %v9180, %v9184
      %v9186 = vshrl.u32 %v9066, 16
      %v9188 = vor.u32 %v9186, %v9184
      %v9190 = vshll.u32 %v9067, 16
      %v9192 = vrot.slane %v9190, 1
      %v9193 = vsel %vm1608, %v9188, %v9192
      %v9194 = vshrl.u32 %v9067, 16
      %v9196 = vor.u32 %v9194, %v9192
      %v9198 = vshll.u32 %v9068, 16
      %v9200 = vrot.slane %v9198, 1
      %v9201 = vsel %vm1608, %v9196, %v9200
      %v9202 = vshrl.u32 %v9068, 16
      %v9204 = vor.u32 %v9202, %v9200
      %v9206 = vshll.u32 %v9069, 16
      %v9208 = vrot.slane %v9206, 1
      %v9209 = vsel %vm1608, %v9204, %v9208
      %v9210 = vshrl.u32 %v9069, 16
      %v9212 = vor.u32 %v9210, %v9208
      %v9214 = vshll.u32 %v9070, 16
      %v9216 = vrot.slane %v9214, 1
      %v9217 = vsel %vm1608, %v9212, %v9216
      %v9218 = vshrl.u32 %v9070, 16
      %v9220 = vor.u32 %v9218, %v9216
      %v9222 = vshll.u32 %v9071, 16
      %v9224 = vrot.slane %v9222, 1
      %v9225 = vsel %vm1608, %v9220, %v9224
      %v9226 = vshrl.u32 %v9071, 16
      %v9228 = vor.u32 %v9226, %v9224
      %v9230 = vshll.u32 %v9072, 16
      %v9232 = vrot.slane %v9230, 1
      %v9233 = vsel %vm1608, %v9228, %v9232
      %v9234 = vshrl.u32 %v9072, 16
      %v9236 = vor.u32 %v9234, %v9232
      %v9238 = vshll.u32 %v9073, 16
      %v9240 = vrot.slane %v9238, 1
      %v9241 = vsel %vm1608, %v9236, %v9240
      %v9242 = vshrl.u32 %v9073, 16
      %v9244 = vor.u32 %v9242, %v9240
      %v9246 = vshll.u32 %v9074, 16
      %v9248 = vrot.slane %v9246, 1
      %v9249 = vsel %vm1608, %v9244, %v9248
      %v9250 = vshrl.u32 %v9074, 16
      %v9252 = vor.u32 %v9250, %v9248
      %v9254 = vshll.u32 %v9075, 16
      %v9256 = vrot.slane %v9254, 1
      %v9257 = vsel %vm1608, %v9252, %v9256
      %v9258 = vshrl.u32 %v9075, 16
      %v9260 = vor.u32 %v9258, %v9256
      %v9262 = vshll.u32 %v9076, 16
      %v9264 = vrot.slane %v9262, 1
      %v9265 = vsel %vm1608, %v9260, %v9264
      %v9266 = vshrl.u32 %v9076, 16
      %v9268 = vor.u32 %v9266, %v9264
      %v9270 = vshll.u32 %v9077, 16
      %v9272 = vrot.slane %v9270, 1
      %v9273 = vsel %vm1608, %v9268, %v9272
      %v9275 = vsel %vm580, %v9089, 0
      %v9278 = vsel %vm580, %v9097, 0
      %v9281 = vsel %vm580, %v9105, 0
      %v9284 = vsel %vm580, %v9113, 0
      %v9287 = vsel %vm580, %v9121, 0
      %v9290 = vsel %vm580, %v9129, 0
      %v9293 = vsel %vm580, %v9137, 0
      %v9296 = vsel %vm580, %v9145, 0
      %v9299 = vsel %vm580, %v9153, 0
      %v9302 = vsel %vm580, %v9161, 0
      %v9305 = vsel %vm580, %v9169, 0
      %v9308 = vsel %vm580, %v9177, 0
      %v9311 = vsel %vm580, %v9185, 0
      %v9314 = vsel %vm580, %v9193, 0
      %v9317 = vsel %vm580, %v9201, 0
      %v9320 = vsel %vm580, %v9209, 0
      %v9323 = vsel %vm580, %v9217, 0
      %v9326 = vsel %vm580, %v9225, 0
      %v9329 = vsel %vm580, %v9233, 0
      %v9332 = vsel %vm580, %v9241, 0
      %v9335 = vsel %vm580, %v9249, 0
      %v9338 = vsel %vm580, %v9257, 0
      %v9341 = vsel %vm580, %v9265, 0
      %v9344 = vsel %vm580, %v9273, 0
      %v9347 = vsel %vm653, %v8954, 0
      %9349 = vmatprep.subr.bf16.mxu0 0
      %9350 = vmatpush1.bf16.msra.mxu0 0
      %9351 = vmatprep.subr.bf16.mxu0 0
      %9352 = vmatpush1.bf16.msra.mxu0 0
      %9353 = vmatprep.subr.bf16.mxu0 0
      %9354 = vmatpush1.bf16.msra.mxu0 0
      %9355 = vmatprep.subr.bf16.mxu0 0
      %9356 = vmatpush1.bf16.msra.mxu0 0
      %9357 = vmatprep.subr.bf16.mxu0 0
      %9358 = vmatpush1.bf16.msra.mxu0 0
      %9359 = vmatprep.subr.bf16.mxu0 0
      %9360 = vmatpush1.bf16.msra.mxu0 0
      %9361 = vmatprep.subr.bf16.mxu0 0
      %9362 = vmatpush1.bf16.msra.mxu0 0
      %9363 = vmatprep.subr.bf16.mxu0 0
      %9364 = vmatpush1.bf16.msra.mxu0 %v9347
      %9365 = vmatprep.subr.bf16.mxu0 0
      %9366 = vmatpush2.bf16.msra.mxu0 0
      %9367 = vmatprep.subr.bf16.mxu0 0
      %9368 = vmatpush2.bf16.msra.mxu0 0
      %9369 = vmatprep.subr.bf16.mxu0 0
      %9370 = vmatpush2.bf16.msra.mxu0 0
      %9371 = vmatprep.subr.bf16.mxu0 0
      %9372 = vmatpush2.bf16.msra.mxu0 0
      %9373 = vmatprep.subr.bf16.mxu0 0
      %9374 = vmatpush2.bf16.msra.mxu0 0
      %9375 = vmatprep.subr.bf16.mxu0 0
      %9376 = vmatpush2.bf16.msra.mxu0 0
      %9377 = vmatprep.subr.bf16.mxu0 0
      %9378 = vmatpush2.bf16.msra.mxu0 0
      %9379 = vmatprep.subr.bf16.mxu0 0
      %9380 = vmatpush2.bf16.msra.mxu0 0
      %9381 = vmatprep.mubr.bf16.mxu0 0
      %9382 = vmatmul.mubr.bf16.gmra.mxu0 %v9275
      %v9383 = vpop.f32.mrf.mxu0
      %v9384 = vadd.f32 0.0, %v9383
      %v9385 = vpop.f32.mrf.mxu0
      %v9386 = vpop.f32.mrf.mxu0
      %v9387 = vadd.f32 0.0, %v9386
      %v9388 = vpop.f32.mrf.mxu0
      %9389 = vmatprep.mubr.bf16.mxu0 0
      %9390 = vmatmul.mubr.bf16.gmra.mxu0 %v9278
      %v9391 = vpop.f32.mrf.mxu0
      %v9392 = vpop.f32.mrf.mxu0
      %v9393 = vpop.f32.mrf.mxu0
      %v9394 = vadd.f32 0.0, %v9393
      %v9395 = vpop.f32.mrf.mxu0
      %9396 = vmatprep.mubr.bf16.mxu0 0
      %9397 = vmatmul.mubr.bf16.gmra.mxu0 %v9281
      %v9398 = vpop.f32.mrf.mxu0
      %v9399 = vadd.f32 0.0, %v9398
      %v9400 = vpop.f32.mrf.mxu0
      %v9401 = vpop.f32.mrf.mxu0
      %v9402 = vpop.f32.mrf.mxu0
      %9403 = vmatprep.mubr.bf16.mxu0 0
      %9404 = vmatmul.mubr.bf16.gmra.mxu0 %v9284
      %v9405 = vpop.f32.mrf.mxu0
      %v9406 = vadd.f32 0.0, %v9405
      %v9407 = vpop.f32.mrf.mxu0
      %v9408 = vpop.f32.mrf.mxu0
      %v9409 = vadd.f32 0.0, %v9408
      %v9410 = vpop.f32.mrf.mxu0
      %9411 = vmatprep.mubr.bf16.mxu0 0
      %9412 = vmatmul.mubr.bf16.gmra.mxu0 %v9287
      %v9413 = vpop.f32.mrf.mxu0
      %v9414 = vpop.f32.mrf.mxu0
      %v9415 = vpop.f32.mrf.mxu0
      %v9416 = vadd.f32 0.0, %v9415
      %v9417 = vpop.f32.mrf.mxu0
      %9418 = vmatprep.mubr.bf16.mxu0 0
      %9419 = vmatmul.mubr.bf16.gmra.mxu0 %v9290
      %v9420 = vpop.f32.mrf.mxu0
      %v9421 = vadd.f32 0.0, %v9420
      %v9422 = vpop.f32.mrf.mxu0
      %v9423 = vpop.f32.mrf.mxu0
      %v9424 = vpop.f32.mrf.mxu0
      %9425 = vmatprep.mubr.bf16.mxu0 0
      %9426 = vmatmul.mubr.bf16.gmra.mxu0 %v9293
      %v9427 = vpop.f32.mrf.mxu0
      %v9428 = vadd.f32 0.0, %v9427
      %v9429 = vpop.f32.mrf.mxu0
      %v9430 = vpop.f32.mrf.mxu0
      %v9431 = vadd.f32 0.0, %v9430
      %v9432 = vpop.f32.mrf.mxu0
      %9433 = vmatprep.mubr.bf16.mxu0 0
      %9434 = vmatmul.mubr.bf16.gmra.mxu0 %v9296
      %v9435 = vpop.f32.mrf.mxu0
      %v9436 = vpop.f32.mrf.mxu0
      %v9437 = vpop.f32.mrf.mxu0
      %v9438 = vadd.f32 0.0, %v9437
      %v9439 = vpop.f32.mrf.mxu0
      %9440 = vmatprep.mubr.bf16.mxu0 0
      %9441 = vmatmul.mubr.bf16.gmra.mxu0 %v9299
      %v9442 = vpop.f32.mrf.mxu0
      %v9443 = vadd.f32 0.0, %v9442
      %v9444 = vpop.f32.mrf.mxu0
      %v9445 = vpop.f32.mrf.mxu0
      %v9446 = vpop.f32.mrf.mxu0
      %9447 = vmatprep.mubr.bf16.mxu0 0
      %9448 = vmatmul.mubr.bf16.gmra.mxu0 %v9302
      %v9449 = vpop.f32.mrf.mxu0
      %v9450 = vadd.f32 0.0, %v9449
      %v9451 = vpop.f32.mrf.mxu0
      %v9452 = vpop.f32.mrf.mxu0
      %v9453 = vadd.f32 0.0, %v9452
      %v9454 = vpop.f32.mrf.mxu0
      %9455 = vmatprep.mubr.bf16.mxu0 0
      %9456 = vmatmul.mubr.bf16.gmra.mxu0 %v9305
      %v9457 = vpop.f32.mrf.mxu0
      %v9458 = vpop.f32.mrf.mxu0
      %v9459 = vpop.f32.mrf.mxu0
      %v9460 = vadd.f32 0.0, %v9459
      %v9461 = vpop.f32.mrf.mxu0
      %9462 = vmatprep.mubr.bf16.mxu0 0
      %9463 = vmatmul.mubr.bf16.gmra.mxu0 %v9308
      %v9464 = vpop.f32.mrf.mxu0
      %v9465 = vadd.f32 0.0, %v9464
      %v9466 = vpop.f32.mrf.mxu0
      %v9467 = vpop.f32.mrf.mxu0
      %v9468 = vpop.f32.mrf.mxu0
      %9469 = vmatprep.mubr.bf16.mxu0 0
      %9470 = vmatmul.mubr.bf16.gmra.mxu0 %v9311
      %v9471 = vpop.f32.mrf.mxu0
      %v9472 = vadd.f32 0.0, %v9471
      %v9473 = vpop.f32.mrf.mxu0
      %v9474 = vpop.f32.mrf.mxu0
      %v9475 = vadd.f32 0.0, %v9474
      %v9476 = vpop.f32.mrf.mxu0
      %9477 = vmatprep.mubr.bf16.mxu0 0
      %9478 = vmatmul.mubr.bf16.gmra.mxu0 %v9314
      %v9479 = vpop.f32.mrf.mxu0
      %v9480 = vpop.f32.mrf.mxu0
      %v9481 = vpop.f32.mrf.mxu0
      %v9482 = vadd.f32 0.0, %v9481
      %v9483 = vpop.f32.mrf.mxu0
      %9484 = vmatprep.mubr.bf16.mxu0 0
      %9485 = vmatmul.mubr.bf16.gmra.mxu0 %v9317
      %v9486 = vpop.f32.mrf.mxu0
      %v9487 = vadd.f32 0.0, %v9486
      %v9488 = vpop.f32.mrf.mxu0
      %v9489 = vpop.f32.mrf.mxu0
      %v9490 = vpop.f32.mrf.mxu0
      %9491 = vmatprep.mubr.bf16.mxu0 0
      %9492 = vmatmul.mubr.bf16.gmra.mxu0 %v9320
      %v9493 = vpop.f32.mrf.mxu0
      %v9494 = vadd.f32 0.0, %v9493
      %v9495 = vpop.f32.mrf.mxu0
      %v9496 = vpop.f32.mrf.mxu0
      %v9497 = vadd.f32 0.0, %v9496
      %v9498 = vpop.f32.mrf.mxu0
      %9499 = vmatprep.mubr.bf16.mxu0 0
      %9500 = vmatmul.mubr.bf16.gmra.mxu0 %v9323
      %v9501 = vpop.f32.mrf.mxu0
      %v9502 = vpop.f32.mrf.mxu0
      %v9503 = vpop.f32.mrf.mxu0
      %v9504 = vadd.f32 0.0, %v9503
      %v9505 = vpop.f32.mrf.mxu0
      %9506 = vmatprep.mubr.bf16.mxu0 0
      %9507 = vmatmul.mubr.bf16.gmra.mxu0 %v9326
      %v9508 = vpop.f32.mrf.mxu0
      %v9509 = vadd.f32 0.0, %v9508
      %v9510 = vpop.f32.mrf.mxu0
      %v9511 = vpop.f32.mrf.mxu0
      %v9512 = vpop.f32.mrf.mxu0
      %9513 = vmatprep.mubr.bf16.mxu0 0
      %9514 = vmatmul.mubr.bf16.gmra.mxu0 %v9329
      %v9515 = vpop.f32.mrf.mxu0
      %v9516 = vadd.f32 0.0, %v9515
      %v9517 = vpop.f32.mrf.mxu0
      %v9518 = vpop.f32.mrf.mxu0
      %v9519 = vadd.f32 0.0, %v9518
      %v9520 = vpop.f32.mrf.mxu0
      %9521 = vmatprep.mubr.bf16.mxu0 0
      %9522 = vmatmul.mubr.bf16.gmra.mxu0 %v9332
      %v9523 = vpop.f32.mrf.mxu0
      %v9524 = vpop.f32.mrf.mxu0
      %v9525 = vpop.f32.mrf.mxu0
      %v9526 = vadd.f32 0.0, %v9525
      %v9527 = vpop.f32.mrf.mxu0
      %9528 = vmatprep.mubr.bf16.mxu0 0
      %9529 = vmatmul.mubr.bf16.gmra.mxu0 %v9335
      %v9530 = vpop.f32.mrf.mxu0
      %v9531 = vadd.f32 0.0, %v9530
      %v9532 = vpop.f32.mrf.mxu0
      %v9533 = vpop.f32.mrf.mxu0
      %v9534 = vpop.f32.mrf.mxu0
      %9535 = vmatprep.mubr.bf16.mxu0 0
      %9536 = vmatmul.mubr.bf16.gmra.mxu0 %v9338
      %v9537 = vpop.f32.mrf.mxu0
      %v9538 = vadd.f32 0.0, %v9537
      %v9539 = vpop.f32.mrf.mxu0
      %v9540 = vpop.f32.mrf.mxu0
      %v9541 = vadd.f32 0.0, %v9540
      %v9542 = vpop.f32.mrf.mxu0
      %9543 = vmatprep.mubr.bf16.mxu0 0
      %9544 = vmatmul.mubr.bf16.gmra.mxu0 %v9341
      %v9545 = vpop.f32.mrf.mxu0
      %v9546 = vpop.f32.mrf.mxu0
      %v9547 = vpop.f32.mrf.mxu0
      %v9548 = vadd.f32 0.0, %v9547
      %v9549 = vpop.f32.mrf.mxu0
      %9550 = vmatprep.mubr.bf16.mxu0 0
      %9551 = vmatmul.mubr.bf16.gmra.mxu0 %v9344
      %v9552 = vpop.f32.mrf.mxu0
      %v9553 = vadd.f32 0.0, %v9552
      %v9554 = vpop.f32.mrf.mxu0
      %v9555 = vpop.f32.mrf.mxu0
      %v9556 = vpop.f32.mrf.mxu0
      %9557 = vdwg.mxu0
      %v9558 = vadd.f32 %v8872, %v9384
      %v9559 = vadd.f32 %v8873, %v9387
      %v9560 = vadd.f32 %v8874, %v9394
      %v9561 = vadd.f32 %v8875, %v9399
      %v9562 = vadd.f32 %v8876, %v9406
      %v9563 = vadd.f32 %v8877, %v9409
      %v9564 = vadd.f32 %v8878, %v9416
      %v9565 = vadd.f32 %v8879, %v9421
      %v9566 = vadd.f32 %v8880, %v9428
      %v9567 = vadd.f32 %v8881, %v9431
      %v9568 = vadd.f32 %v8882, %v9438
      %v9569 = vadd.f32 %v8883, %v9443
      %v9570 = vadd.f32 %v8884, %v9450
      %v9571 = vadd.f32 %v8885, %v9453
      %v9572 = vadd.f32 %v8886, %v9460
      %v9573 = vadd.f32 %v8887, %v9465
      %v9574 = vadd.f32 %v8888, %v9472
      %v9575 = vadd.f32 %v8889, %v9475
      %v9576 = vadd.f32 %v8890, %v9482
      %v9577 = vadd.f32 %v8891, %v9487
      %v9578 = vadd.f32 %v8892, %v9494
      %v9579 = vadd.f32 %v8893, %v9497
      %v9580 = vadd.f32 %v8894, %v9504
      %v9581 = vadd.f32 %v8895, %v9509
      %v9582 = vadd.f32 %v8896, %v9516
      %v9583 = vadd.f32 %v8897, %v9519
      %v9584 = vadd.f32 %v8898, %v9526
      %v9585 = vadd.f32 %v8899, %v9531
      %v9586 = vadd.f32 %v8900, %v9538
      %v9587 = vadd.f32 %v8901, %v9541
      %v9588 = vadd.f32 %v8902, %v9548
      %v9589 = vadd.f32 %v8903, %v9553
      %v9590 = vld [vmem:[#allocation3 + $0x18] sm:$0x8]
      %v9591 = vld [vmem:[#allocation3 + $0x1c] sm:$0xf]
      %v9592 = vld [vmem:[#allocation3 + $0x20] sm:$0xf]
      %v9593 = vld [vmem:[#allocation3 + $0x24] sm:$0xf]
      %v9594 = vld [vmem:[#allocation3 + $0x28] sm:$0xf]
      %v9595 = vld [vmem:[#allocation3 + $0x2c] sm:$0xf]
      %v9596 = vld [vmem:[#allocation3 + $0x30] sm:$0xf]
      %v9597 = vld [vmem:[#allocation3 + $0x34] sm:$0xf]
      %v9598 = vld [vmem:[#allocation3 + $0x38] sm:$0xf]
      %v9599 = vld [vmem:[#allocation3 + $0x3c] sm:$0xf]
      %v9600 = vld [vmem:[#allocation3 + $0x40] sm:$0xf]
      %v9601 = vld [vmem:[#allocation3 + $0x44] sm:$0xf]
      %v9602 = vld [vmem:[#allocation3 + $0x48] sm:$0xf]
      %v9603 = vld [vmem:[#allocation3 + $0x4c] sm:$0xf]
      %v9604 = vld [vmem:[#allocation3 + $0x50] sm:$0xf]
      %v9605 = vld [vmem:[#allocation3 + $0x54] sm:$0xf]
      %v9606 = vld [vmem:[#allocation3 + $0x58] sm:$0xf]
      %v9607 = vld [vmem:[#allocation3 + $0x5c] sm:$0xf]
      %v9608 = vld [vmem:[#allocation3 + $0x60] sm:$0xf]
      %v9609 = vld [vmem:[#allocation3 + $0x64] sm:$0xf]
      %v9610 = vld [vmem:[#allocation3 + $0x68] sm:$0xf]
      %v9611 = vld [vmem:[#allocation3 + $0x6c] sm:$0xf]
      %v9612 = vld [vmem:[#allocation3 + $0x70] sm:$0xf]
      %v9613 = vld [vmem:[#allocation3 + $0x74] sm:$0xf]
      %v9614 = vld [vmem:[#allocation3 + $0x78] sm:$0xf]
      %v9615 = vld [vmem:[#allocation3 + $0x7c] sm:$0xf]
      %v9616 = vld [vmem:[#allocation3 + $0x80] sm:$0xf]
      %v9617 = vld [vmem:[#allocation3 + $0x84] sm:$0xf]
      %v9618 = vld [vmem:[#allocation3 + $0x88] sm:$0xf]
      %v9619 = vld [vmem:[#allocation3 + $0x8c] sm:$0xf]
      %v9620 = vld [vmem:[#allocation3 + $0x90] sm:$0xf]
      %v9621 = vld [vmem:[#allocation3 + $0x94] sm:$0xf]
      %v9622 = vld [vmem:[#allocation3 + $0x98] sm:$0xf]
      %v9623 = vld [vmem:[#allocation3 + $0x9c] sm:$0xf]
      %v9624 = vld [vmem:[#allocation3 + $0xa0] sm:$0xf]
      %v9625 = vld [vmem:[#allocation3 + $0xa4] sm:$0xf]
      %v9626 = vld [vmem:[#allocation3 + $0xa8] sm:$0xf]
      %v9627 = vld [vmem:[#allocation3 + $0xac] sm:$0xf]
      %v9628 = vld [vmem:[#allocation3 + $0xb0] sm:$0xf]
      %v9629 = vld [vmem:[#allocation3 + $0xb4] sm:$0xf]
      %v9630 = vld [vmem:[#allocation3 + $0xb8] sm:$0xf]
      %v9631 = vld [vmem:[#allocation3 + $0xbc] sm:$0xf]
      %v9632 = vld [vmem:[#allocation3 + $0xc0] sm:$0xf]
      %v9633 = vld [vmem:[#allocation3 + $0xc4] sm:$0xf]
      %v9634 = vld [vmem:[#allocation3 + $0xc8] sm:$0xf]
      %v9635 = vld [vmem:[#allocation3 + $0xcc] sm:$0xf]
      %v9636 = vld [vmem:[#allocation3 + $0xd0] sm:$0xf]
      %v9637 = vld [vmem:[#allocation3 + $0xd4] sm:$0xf]
      %v9638 = vld [vmem:[#allocation3 + $0xd8] sm:$0xf]
      %s9639 = scalar_lea.vmem %s2, 12
      %v9640 = vld [vmem:[%s9639] sm:$0x3]
      %v9690 = vunpack.c.l.b16 %v9590
      %v9691 = vunpack.c.l.b16 %v9591
      %v9692 = vunpack.c.l.b16 %v9592
      %v9693 = vunpack.c.l.b16 %v9593
      %v9694 = vunpack.c.l.b16 %v9594
      %v9695 = vunpack.c.l.b16 %v9595
      %v9696 = vunpack.c.l.b16 %v9596
      %v9697 = vunpack.c.l.b16 %v9597
      %v9698 = vunpack.c.l.b16 %v9598
      %v9699 = vunpack.c.l.b16 %v9599
      %v9700 = vunpack.c.l.b16 %v9600
      %v9701 = vunpack.c.l.b16 %v9601
      %v9702 = vunpack.c.l.b16 %v9602
      %v9703 = vunpack.c.l.b16 %v9603
      %v9704 = vunpack.c.l.b16 %v9604
      %v9705 = vunpack.c.l.b16 %v9605
      %v9706 = vunpack.c.l.b16 %v9606
      %v9707 = vunpack.c.l.b16 %v9607
      %v9708 = vunpack.c.l.b16 %v9608
      %v9709 = vunpack.c.l.b16 %v9609
      %v9710 = vunpack.c.l.b16 %v9610
      %v9711 = vunpack.c.l.b16 %v9611
      %v9712 = vunpack.c.l.b16 %v9612
      %v9713 = vunpack.c.l.b16 %v9613
      %v9714 = vunpack.c.l.b16 %v9614
      %v9715 = vunpack.c.l.b16 %v9615
      %v9716 = vunpack.c.l.b16 %v9616
      %v9717 = vunpack.c.l.b16 %v9617
      %v9718 = vunpack.c.l.b16 %v9618
      %v9719 = vunpack.c.l.b16 %v9619
      %v9720 = vunpack.c.l.b16 %v9620
      %v9721 = vunpack.c.l.b16 %v9621
      %v9722 = vunpack.c.l.b16 %v9622
      %v9723 = vunpack.c.l.b16 %v9623
      %v9724 = vunpack.c.l.b16 %v9624
      %v9725 = vunpack.c.l.b16 %v9625
      %v9726 = vunpack.c.l.b16 %v9626
      %v9727 = vunpack.c.l.b16 %v9627
      %v9728 = vunpack.c.l.b16 %v9628
      %v9729 = vunpack.c.l.b16 %v9629
      %v9730 = vunpack.c.l.b16 %v9630
      %v9731 = vunpack.c.l.b16 %v9631
      %v9732 = vunpack.c.l.b16 %v9632
      %v9733 = vunpack.c.l.b16 %v9633
      %v9734 = vunpack.c.l.b16 %v9634
      %v9735 = vunpack.c.l.b16 %v9635
      %v9736 = vunpack.c.l.b16 %v9636
      %v9737 = vunpack.c.l.b16 %v9637
      %v9738 = vunpack.c.l.b16 %v9638
      %v9739 = vpack.c.b16 %v9691, %v9690
      %v9740 = vpack.c.b16 %v9693, %v9692
      %v9741 = vpack.c.b16 %v9695, %v9694
      %v9742 = vpack.c.b16 %v9697, %v9696
      %v9743 = vpack.c.b16 %v9699, %v9698
      %v9744 = vpack.c.b16 %v9701, %v9700
      %v9745 = vpack.c.b16 %v9703, %v9702
      %v9746 = vpack.c.b16 %v9705, %v9704
      %v9747 = vpack.c.b16 %v9707, %v9706
      %v9748 = vpack.c.b16 %v9709, %v9708
      %v9749 = vpack.c.b16 %v9711, %v9710
      %v9750 = vpack.c.b16 %v9713, %v9712
      %v9751 = vpack.c.b16 %v9715, %v9714
      %v9752 = vpack.c.b16 %v9717, %v9716
      %v9753 = vpack.c.b16 %v9719, %v9718
      %v9754 = vpack.c.b16 %v9721, %v9720
      %v9755 = vpack.c.b16 %v9723, %v9722
      %v9756 = vpack.c.b16 %v9725, %v9724
      %v9757 = vpack.c.b16 %v9727, %v9726
      %v9758 = vpack.c.b16 %v9729, %v9728
      %v9759 = vpack.c.b16 %v9731, %v9730
      %v9760 = vpack.c.b16 %v9733, %v9732
      %v9761 = vpack.c.b16 %v9735, %v9734
      %v9762 = vpack.c.b16 %v9737, %v9736
      %v9763 = vpack.c.b16 %v9738, %v9738
      %v9765 = vshrl.u32 %v9739, 16
      %v9767 = vrot.slane %v9765, 3
      %v9768 = vshll.u32 %v9739, 16
      %v9770 = vrot.slane %v9768, 4
      %v9771 = vor.u32 %v9767, %v9770
      %v9773 = vshrl.u32 %v9740, 16
      %v9775 = vrot.slane %v9773, 3
      %v9776 = vshll.u32 %v9740, 16
      %v9778 = vrot.slane %v9776, 4
      %v9779 = vor.u32 %v9775, %v9778
      %v9780 = vsel %vm909, %v9771, %v9779
      %v9782 = vshrl.u32 %v9741, 16
      %v9784 = vrot.slane %v9782, 3
      %v9785 = vshll.u32 %v9741, 16
      %v9787 = vrot.slane %v9785, 4
      %v9788 = vor.u32 %v9784, %v9787
      %v9789 = vsel %vm909, %v9779, %v9788
      %v9791 = vshrl.u32 %v9742, 16
      %v9793 = vrot.slane %v9791, 3
      %v9794 = vshll.u32 %v9742, 16
      %v9796 = vrot.slane %v9794, 4
      %v9797 = vor.u32 %v9793, %v9796
      %v9798 = vsel %vm909, %v9788, %v9797
      %v9800 = vshrl.u32 %v9743, 16
      %v9802 = vrot.slane %v9800, 3
      %v9803 = vshll.u32 %v9743, 16
      %v9805 = vrot.slane %v9803, 4
      %v9806 = vor.u32 %v9802, %v9805
      %v9807 = vsel %vm909, %v9797, %v9806
      %v9809 = vshrl.u32 %v9744, 16
      %v9811 = vrot.slane %v9809, 3
      %v9812 = vshll.u32 %v9744, 16
      %v9814 = vrot.slane %v9812, 4
      %v9815 = vor.u32 %v9811, %v9814
      %v9816 = vsel %vm909, %v9806, %v9815
      %v9818 = vshrl.u32 %v9745, 16
      %v9820 = vrot.slane %v9818, 3
      %v9821 = vshll.u32 %v9745, 16
      %v9823 = vrot.slane %v9821, 4
      %v9824 = vor.u32 %v9820, %v9823
      %v9825 = vsel %vm909, %v9815, %v9824
      %v9827 = vshrl.u32 %v9746, 16
      %v9829 = vrot.slane %v9827, 3
      %v9830 = vshll.u32 %v9746, 16
      %v9832 = vrot.slane %v9830, 4
      %v9833 = vor.u32 %v9829, %v9832
      %v9834 = vsel %vm909, %v9824, %v9833
      %v9836 = vshrl.u32 %v9747, 16
      %v9838 = vrot.slane %v9836, 3
      %v9839 = vshll.u32 %v9747, 16
      %v9841 = vrot.slane %v9839, 4
      %v9842 = vor.u32 %v9838, %v9841
      %v9843 = vsel %vm909, %v9833, %v9842
      %v9845 = vshrl.u32 %v9748, 16
      %v9847 = vrot.slane %v9845, 3
      %v9848 = vshll.u32 %v9748, 16
      %v9850 = vrot.slane %v9848, 4
      %v9851 = vor.u32 %v9847, %v9850
      %v9852 = vsel %vm909, %v9842, %v9851
      %v9854 = vshrl.u32 %v9749, 16
      %v9856 = vrot.slane %v9854, 3
      %v9857 = vshll.u32 %v9749, 16
      %v9859 = vrot.slane %v9857, 4
      %v9860 = vor.u32 %v9856, %v9859
      %v9861 = vsel %vm909, %v9851, %v9860
      %v9863 = vshrl.u32 %v9750, 16
      %v9865 = vrot.slane %v9863, 3
      %v9866 = vshll.u32 %v9750, 16
      %v9868 = vrot.slane %v9866, 4
      %v9869 = vor.u32 %v9865, %v9868
      %v9870 = vsel %vm909, %v9860, %v9869
      %v9872 = vshrl.u32 %v9751, 16
      %v9874 = vrot.slane %v9872, 3
      %v9875 = vshll.u32 %v9751, 16
      %v9877 = vrot.slane %v9875, 4
      %v9878 = vor.u32 %v9874, %v9877
      %v9879 = vsel %vm909, %v9869, %v9878
      %v9881 = vshrl.u32 %v9752, 16
      %v9883 = vrot.slane %v9881, 3
      %v9884 = vshll.u32 %v9752, 16
      %v9886 = vrot.slane %v9884, 4
      %v9887 = vor.u32 %v9883, %v9886
      %v9888 = vsel %vm909, %v9878, %v9887
      %v9890 = vshrl.u32 %v9753, 16
      %v9892 = vrot.slane %v9890, 3
      %v9893 = vshll.u32 %v9753, 16
      %v9895 = vrot.slane %v9893, 4
      %v9896 = vor.u32 %v9892, %v9895
      %v9897 = vsel %vm909, %v9887, %v9896
      %v9899 = vshrl.u32 %v9754, 16
      %v9901 = vrot.slane %v9899, 3
      %v9902 = vshll.u32 %v9754, 16
      %v9904 = vrot.slane %v9902, 4
      %v9905 = vor.u32 %v9901, %v9904
      %v9906 = vsel %vm909, %v9896, %v9905
      %v9908 = vshrl.u32 %v9755, 16
      %v9910 = vrot.slane %v9908, 3
      %v9911 = vshll.u32 %v9755, 16
      %v9913 = vrot.slane %v9911, 4
      %v9914 = vor.u32 %v9910, %v9913
      %v9915 = vsel %vm909, %v9905, %v9914
      %v9917 = vshrl.u32 %v9756, 16
      %v9919 = vrot.slane %v9917, 3
      %v9920 = vshll.u32 %v9756, 16
      %v9922 = vrot.slane %v9920, 4
      %v9923 = vor.u32 %v9919, %v9922
      %v9924 = vsel %vm909, %v9914, %v9923
      %v9926 = vshrl.u32 %v9757, 16
      %v9928 = vrot.slane %v9926, 3
      %v9929 = vshll.u32 %v9757, 16
      %v9931 = vrot.slane %v9929, 4
      %v9932 = vor.u32 %v9928, %v9931
      %v9933 = vsel %vm909, %v9923, %v9932
      %v9935 = vshrl.u32 %v9758, 16
      %v9937 = vrot.slane %v9935, 3
      %v9938 = vshll.u32 %v9758, 16
      %v9940 = vrot.slane %v9938, 4
      %v9941 = vor.u32 %v9937, %v9940
      %v9942 = vsel %vm909, %v9932, %v9941
      %v9944 = vshrl.u32 %v9759, 16
      %v9946 = vrot.slane %v9944, 3
      %v9947 = vshll.u32 %v9759, 16
      %v9949 = vrot.slane %v9947, 4
      %v9950 = vor.u32 %v9946, %v9949
      %v9951 = vsel %vm909, %v9941, %v9950
      %v9953 = vshrl.u32 %v9760, 16
      %v9955 = vrot.slane %v9953, 3
      %v9956 = vshll.u32 %v9760, 16
      %v9958 = vrot.slane %v9956, 4
      %v9959 = vor.u32 %v9955, %v9958
      %v9960 = vsel %vm909, %v9950, %v9959
      %v9962 = vshrl.u32 %v9761, 16
      %v9964 = vrot.slane %v9962, 3
      %v9965 = vshll.u32 %v9761, 16
      %v9967 = vrot.slane %v9965, 4
      %v9968 = vor.u32 %v9964, %v9967
      %v9969 = vsel %vm909, %v9959, %v9968
      %v9971 = vshrl.u32 %v9762, 16
      %v9973 = vrot.slane %v9971, 3
      %v9974 = vshll.u32 %v9762, 16
      %v9976 = vrot.slane %v9974, 4
      %v9977 = vor.u32 %v9973, %v9976
      %v9978 = vsel %vm909, %v9968, %v9977
      %v9980 = vshrl.u32 %v9763, 16
      %v9982 = vrot.slane %v9980, 3
      %v9983 = vshll.u32 %v9763, 16
      %v9985 = vrot.slane %v9983, 4
      %v9986 = vor.u32 %v9982, %v9985
      %v9987 = vsel %vm909, %v9977, %v9986
      %v9989 = vsel %vm580, %v9780, 0
      %v9992 = vsel %vm580, %v9789, 0
      %v9995 = vsel %vm580, %v9798, 0
      %v9998 = vsel %vm580, %v9807, 0
      %v10001 = vsel %vm580, %v9816, 0
      %v10004 = vsel %vm580, %v9825, 0
      %v10007 = vsel %vm580, %v9834, 0
      %v10010 = vsel %vm580, %v9843, 0
      %v10013 = vsel %vm580, %v9852, 0
      %v10016 = vsel %vm580, %v9861, 0
      %v10019 = vsel %vm580, %v9870, 0
      %v10022 = vsel %vm580, %v9879, 0
      %v10025 = vsel %vm580, %v9888, 0
      %v10028 = vsel %vm580, %v9897, 0
      %v10031 = vsel %vm580, %v9906, 0
      %v10034 = vsel %vm580, %v9915, 0
      %v10037 = vsel %vm580, %v9924, 0
      %v10040 = vsel %vm580, %v9933, 0
      %v10043 = vsel %vm580, %v9942, 0
      %v10046 = vsel %vm580, %v9951, 0
      %v10049 = vsel %vm580, %v9960, 0
      %v10052 = vsel %vm580, %v9969, 0
      %v10055 = vsel %vm580, %v9978, 0
      %v10058 = vsel %vm580, %v9987, 0
      %v10061 = vsel %vm653, %v9640, 0
      %10063 = vmatprep.subr.bf16.mxu0 0
      %10064 = vmatpush1.bf16.msra.mxu0 0
      %10065 = vmatprep.subr.bf16.mxu0 0
      %10066 = vmatpush1.bf16.msra.mxu0 0
      %10067 = vmatprep.subr.bf16.mxu0 0
      %10068 = vmatpush1.bf16.msra.mxu0 0
      %10069 = vmatprep.subr.bf16.mxu0 0
      %10070 = vmatpush1.bf16.msra.mxu0 0
      %10071 = vmatprep.subr.bf16.mxu0 0
      %10072 = vmatpush1.bf16.msra.mxu0 0
      %10073 = vmatprep.subr.bf16.mxu0 0
      %10074 = vmatpush1.bf16.msra.mxu0 0
      %10075 = vmatprep.subr.bf16.mxu0 0
      %10076 = vmatpush1.bf16.msra.mxu0 0
      %10077 = vmatprep.subr.bf16.mxu0 0
      %10078 = vmatpush1.bf16.msra.mxu0 %v10061
      %10079 = vmatprep.subr.bf16.mxu0 0
      %10080 = vmatpush2.bf16.msra.mxu0 0
      %10081 = vmatprep.subr.bf16.mxu0 0
      %10082 = vmatpush2.bf16.msra.mxu0 0
      %10083 = vmatprep.subr.bf16.mxu0 0
      %10084 = vmatpush2.bf16.msra.mxu0 0
      %10085 = vmatprep.subr.bf16.mxu0 0
      %10086 = vmatpush2.bf16.msra.mxu0 0
      %10087 = vmatprep.subr.bf16.mxu0 0
      %10088 = vmatpush2.bf16.msra.mxu0 0
      %10089 = vmatprep.subr.bf16.mxu0 0
      %10090 = vmatpush2.bf16.msra.mxu0 0
      %10091 = vmatprep.subr.bf16.mxu0 0
      %10092 = vmatpush2.bf16.msra.mxu0 0
      %10093 = vmatprep.subr.bf16.mxu0 0
      %10094 = vmatpush2.bf16.msra.mxu0 0
      %10095 = vmatprep.mubr.bf16.mxu0 0
      %10096 = vmatmul.mubr.bf16.gmra.mxu0 %v9989
      %v10097 = vpop.f32.mrf.mxu0
      %v10098 = vadd.f32 0.0, %v10097
      %v10099 = vpop.f32.mrf.mxu0
      %v10100 = vpop.f32.mrf.mxu0
      %v10101 = vadd.f32 0.0, %v10100
      %v10102 = vpop.f32.mrf.mxu0
      %10103 = vmatprep.mubr.bf16.mxu0 0
      %10104 = vmatmul.mubr.bf16.gmra.mxu0 %v9992
      %v10105 = vpop.f32.mrf.mxu0
      %v10106 = vpop.f32.mrf.mxu0
      %v10107 = vpop.f32.mrf.mxu0
      %v10108 = vadd.f32 0.0, %v10107
      %v10109 = vpop.f32.mrf.mxu0
      %10110 = vmatprep.mubr.bf16.mxu0 0
      %10111 = vmatmul.mubr.bf16.gmra.mxu0 %v9995
      %v10112 = vpop.f32.mrf.mxu0
      %v10113 = vadd.f32 0.0, %v10112
      %v10114 = vpop.f32.mrf.mxu0
      %v10115 = vpop.f32.mrf.mxu0
      %v10116 = vpop.f32.mrf.mxu0
      %10117 = vmatprep.mubr.bf16.mxu0 0
      %10118 = vmatmul.mubr.bf16.gmra.mxu0 %v9998
      %v10119 = vpop.f32.mrf.mxu0
      %v10120 = vadd.f32 0.0, %v10119
      %v10121 = vpop.f32.mrf.mxu0
      %v10122 = vpop.f32.mrf.mxu0
      %v10123 = vadd.f32 0.0, %v10122
      %v10124 = vpop.f32.mrf.mxu0
      %10125 = vmatprep.mubr.bf16.mxu0 0
      %10126 = vmatmul.mubr.bf16.gmra.mxu0 %v10001
      %v10127 = vpop.f32.mrf.mxu0
      %v10128 = vpop.f32.mrf.mxu0
      %v10129 = vpop.f32.mrf.mxu0
      %v10130 = vadd.f32 0.0, %v10129
      %v10131 = vpop.f32.mrf.mxu0
      %10132 = vmatprep.mubr.bf16.mxu0 0
      %10133 = vmatmul.mubr.bf16.gmra.mxu0 %v10004
      %v10134 = vpop.f32.mrf.mxu0
      %v10135 = vadd.f32 0.0, %v10134
      %v10136 = vpop.f32.mrf.mxu0
      %v10137 = vpop.f32.mrf.mxu0
      %v10138 = vpop.f32.mrf.mxu0
      %10139 = vmatprep.mubr.bf16.mxu0 0
      %10140 = vmatmul.mubr.bf16.gmra.mxu0 %v10007
      %v10141 = vpop.f32.mrf.mxu0
      %v10142 = vadd.f32 0.0, %v10141
      %v10143 = vpop.f32.mrf.mxu0
      %v10144 = vpop.f32.mrf.mxu0
      %v10145 = vadd.f32 0.0, %v10144
      %v10146 = vpop.f32.mrf.mxu0
      %10147 = vmatprep.mubr.bf16.mxu0 0
      %10148 = vmatmul.mubr.bf16.gmra.mxu0 %v10010
      %v10149 = vpop.f32.mrf.mxu0
      %v10150 = vpop.f32.mrf.mxu0
      %v10151 = vpop.f32.mrf.mxu0
      %v10152 = vadd.f32 0.0, %v10151
      %v10153 = vpop.f32.mrf.mxu0
      %10154 = vmatprep.mubr.bf16.mxu0 0
      %10155 = vmatmul.mubr.bf16.gmra.mxu0 %v10013
      %v10156 = vpop.f32.mrf.mxu0
      %v10157 = vadd.f32 0.0, %v10156
      %v10158 = vpop.f32.mrf.mxu0
      %v10159 = vpop.f32.mrf.mxu0
      %v10160 = vpop.f32.mrf.mxu0
      %10161 = vmatprep.mubr.bf16.mxu0 0
      %10162 = vmatmul.mubr.bf16.gmra.mxu0 %v10016
      %v10163 = vpop.f32.mrf.mxu0
      %v10164 = vadd.f32 0.0, %v10163
      %v10165 = vpop.f32.mrf.mxu0
      %v10166 = vpop.f32.mrf.mxu0
      %v10167 = vadd.f32 0.0, %v10166
      %v10168 = vpop.f32.mrf.mxu0
      %10169 = vmatprep.mubr.bf16.mxu0 0
      %10170 = vmatmul.mubr.bf16.gmra.mxu0 %v10019
      %v10171 = vpop.f32.mrf.mxu0
      %v10172 = vpop.f32.mrf.mxu0
      %v10173 = vpop.f32.mrf.mxu0
      %v10174 = vadd.f32 0.0, %v10173
      %v10175 = vpop.f32.mrf.mxu0
      %10176 = vmatprep.mubr.bf16.mxu0 0
      %10177 = vmatmul.mubr.bf16.gmra.mxu0 %v10022
      %v10178 = vpop.f32.mrf.mxu0
      %v10179 = vadd.f32 0.0, %v10178
      %v10180 = vpop.f32.mrf.mxu0
      %v10181 = vpop.f32.mrf.mxu0
      %v10182 = vpop.f32.mrf.mxu0
      %10183 = vmatprep.mubr.bf16.mxu0 0
      %10184 = vmatmul.mubr.bf16.gmra.mxu0 %v10025
      %v10185 = vpop.f32.mrf.mxu0
      %v10186 = vadd.f32 0.0, %v10185
      %v10187 = vpop.f32.mrf.mxu0
      %v10188 = vpop.f32.mrf.mxu0
      %v10189 = vadd.f32 0.0, %v10188
      %v10190 = vpop.f32.mrf.mxu0
      %10191 = vmatprep.mubr.bf16.mxu0 0
      %10192 = vmatmul.mubr.bf16.gmra.mxu0 %v10028
      %v10193 = vpop.f32.mrf.mxu0
      %v10194 = vpop.f32.mrf.mxu0
      %v10195 = vpop.f32.mrf.mxu0
      %v10196 = vadd.f32 0.0, %v10195
      %v10197 = vpop.f32.mrf.mxu0
      %10198 = vmatprep.mubr.bf16.mxu0 0
      %10199 = vmatmul.mubr.bf16.gmra.mxu0 %v10031
      %v10200 = vpop.f32.mrf.mxu0
      %v10201 = vadd.f32 0.0, %v10200
      %v10202 = vpop.f32.mrf.mxu0
      %v10203 = vpop.f32.mrf.mxu0
      %v10204 = vpop.f32.mrf.mxu0
      %10205 = vmatprep.mubr.bf16.mxu0 0
      %10206 = vmatmul.mubr.bf16.gmra.mxu0 %v10034
      %v10207 = vpop.f32.mrf.mxu0
      %v10208 = vadd.f32 0.0, %v10207
      %v10209 = vpop.f32.mrf.mxu0
      %v10210 = vpop.f32.mrf.mxu0
      %v10211 = vadd.f32 0.0, %v10210
      %v10212 = vpop.f32.mrf.mxu0
      %10213 = vmatprep.mubr.bf16.mxu0 0
      %10214 = vmatmul.mubr.bf16.gmra.mxu0 %v10037
      %v10215 = vpop.f32.mrf.mxu0
      %v10216 = vpop.f32.mrf.mxu0
      %v10217 = vpop.f32.mrf.mxu0
      %v10218 = vadd.f32 0.0, %v10217
      %v10219 = vpop.f32.mrf.mxu0
      %10220 = vmatprep.mubr.bf16.mxu0 0
      %10221 = vmatmul.mubr.bf16.gmra.mxu0 %v10040
      %v10222 = vpop.f32.mrf.mxu0
      %v10223 = vadd.f32 0.0, %v10222
      %v10224 = vpop.f32.mrf.mxu0
      %v10225 = vpop.f32.mrf.mxu0
      %v10226 = vpop.f32.mrf.mxu0
      %10227 = vmatprep.mubr.bf16.mxu0 0
      %10228 = vmatmul.mubr.bf16.gmra.mxu0 %v10043
      %v10229 = vpop.f32.mrf.mxu0
      %v10230 = vadd.f32 0.0, %v10229
      %v10231 = vpop.f32.mrf.mxu0
      %v10232 = vpop.f32.mrf.mxu0
      %v10233 = vadd.f32 0.0, %v10232
      %v10234 = vpop.f32.mrf.mxu0
      %10235 = vmatprep.mubr.bf16.mxu0 0
      %10236 = vmatmul.mubr.bf16.gmra.mxu0 %v10046
      %v10237 = vpop.f32.mrf.mxu0
      %v10238 = vpop.f32.mrf.mxu0
      %v10239 = vpop.f32.mrf.mxu0
      %v10240 = vadd.f32 0.0, %v10239
      %v10241 = vpop.f32.mrf.mxu0
      %10242 = vmatprep.mubr.bf16.mxu0 0
      %10243 = vmatmul.mubr.bf16.gmra.mxu0 %v10049
      %v10244 = vpop.f32.mrf.mxu0
      %v10245 = vadd.f32 0.0, %v10244
      %v10246 = vpop.f32.mrf.mxu0
      %v10247 = vpop.f32.mrf.mxu0
      %v10248 = vpop.f32.mrf.mxu0
      %10249 = vmatprep.mubr.bf16.mxu0 0
      %10250 = vmatmul.mubr.bf16.gmra.mxu0 %v10052
      %v10251 = vpop.f32.mrf.mxu0
      %v10252 = vadd.f32 0.0, %v10251
      %v10253 = vpop.f32.mrf.mxu0
      %v10254 = vpop.f32.mrf.mxu0
      %v10255 = vadd.f32 0.0, %v10254
      %v10256 = vpop.f32.mrf.mxu0
      %10257 = vmatprep.mubr.bf16.mxu0 0
      %10258 = vmatmul.mubr.bf16.gmra.mxu0 %v10055
      %v10259 = vpop.f32.mrf.mxu0
      %v10260 = vpop.f32.mrf.mxu0
      %v10261 = vpop.f32.mrf.mxu0
      %v10262 = vadd.f32 0.0, %v10261
      %v10263 = vpop.f32.mrf.mxu0
      %10264 = vmatprep.mubr.bf16.mxu0 0
      %10265 = vmatmul.mubr.bf16.gmra.mxu0 %v10058
      %v10266 = vpop.f32.mrf.mxu0
      %v10267 = vadd.f32 0.0, %v10266
      %v10268 = vpop.f32.mrf.mxu0
      %v10269 = vpop.f32.mrf.mxu0
      %v10270 = vpop.f32.mrf.mxu0
      %10271 = vdwg.mxu0
      %v10272 = vadd.f32 %v9558, %v10098
      %v10273 = vadd.f32 %v9559, %v10101
      %v10274 = vadd.f32 %v9560, %v10108
      %v10275 = vadd.f32 %v9561, %v10113
      %v10276 = vadd.f32 %v9562, %v10120
      %v10277 = vadd.f32 %v9563, %v10123
      %v10278 = vadd.f32 %v9564, %v10130
      %v10279 = vadd.f32 %v9565, %v10135
      %v10280 = vadd.f32 %v9566, %v10142
      %v10281 = vadd.f32 %v9567, %v10145
      %v10282 = vadd.f32 %v9568, %v10152
      %v10283 = vadd.f32 %v9569, %v10157
      %v10284 = vadd.f32 %v9570, %v10164
      %v10285 = vadd.f32 %v9571, %v10167
      %v10286 = vadd.f32 %v9572, %v10174
      %v10287 = vadd.f32 %v9573, %v10179
      %v10288 = vadd.f32 %v9574, %v10186
      %v10289 = vadd.f32 %v9575, %v10189
      %v10290 = vadd.f32 %v9576, %v10196
      %v10291 = vadd.f32 %v9577, %v10201
      %v10292 = vadd.f32 %v9578, %v10208
      %v10293 = vadd.f32 %v9579, %v10211
      %v10294 = vadd.f32 %v9580, %v10218
      %v10295 = vadd.f32 %v9581, %v10223
      %v10296 = vadd.f32 %v9582, %v10230
      %v10297 = vadd.f32 %v9583, %v10233
      %v10298 = vadd.f32 %v9584, %v10240
      %v10299 = vadd.f32 %v9585, %v10245
      %v10300 = vadd.f32 %v9586, %v10252
      %v10301 = vadd.f32 %v9587, %v10255
      %v10302 = vadd.f32 %v9588, %v10262
      %v10303 = vadd.f32 %v9589, %v10267
      %s10304 = scalar_lea.vmem %s2, 14
      %v10305 = vld [vmem:[%s10304] sm:$0x3]
      %v10306 = vpack.c.b16 %v9692, %v9691
      %v10307 = vpack.c.b16 %v9694, %v9693
      %v10308 = vpack.c.b16 %v9696, %v9695
      %v10309 = vpack.c.b16 %v9698, %v9697
      %v10310 = vpack.c.b16 %v9700, %v9699
      %v10311 = vpack.c.b16 %v9702, %v9701
      %v10312 = vpack.c.b16 %v9704, %v9703
      %v10313 = vpack.c.b16 %v9706, %v9705
      %v10314 = vpack.c.b16 %v9708, %v9707
      %v10315 = vpack.c.b16 %v9710, %v9709
      %v10316 = vpack.c.b16 %v9712, %v9711
      %v10317 = vpack.c.b16 %v9714, %v9713
      %v10318 = vpack.c.b16 %v9716, %v9715
      %v10319 = vpack.c.b16 %v9718, %v9717
      %v10320 = vpack.c.b16 %v9720, %v9719
      %v10321 = vpack.c.b16 %v9722, %v9721
      %v10322 = vpack.c.b16 %v9724, %v9723
      %v10323 = vpack.c.b16 %v9726, %v9725
      %v10324 = vpack.c.b16 %v9728, %v9727
      %v10325 = vpack.c.b16 %v9730, %v9729
      %v10326 = vpack.c.b16 %v9732, %v9731
      %v10327 = vpack.c.b16 %v9734, %v9733
      %v10328 = vpack.c.b16 %v9736, %v9735
      %v10329 = vpack.c.b16 %v9738, %v9737
      %v10331 = vsel %vm580, %v10306, 0
      %v10334 = vsel %vm580, %v10307, 0
      %v10337 = vsel %vm580, %v10308, 0
      %v10340 = vsel %vm580, %v10309, 0
      %v10343 = vsel %vm580, %v10310, 0
      %v10346 = vsel %vm580, %v10311, 0
      %v10349 = vsel %vm580, %v10312, 0
      %v10352 = vsel %vm580, %v10313, 0
      %v10355 = vsel %vm580, %v10314, 0
      %v10358 = vsel %vm580, %v10315, 0
      %v10361 = vsel %vm580, %v10316, 0
      %v10364 = vsel %vm580, %v10317, 0
      %v10367 = vsel %vm580, %v10318, 0
      %v10370 = vsel %vm580, %v10319, 0
      %v10373 = vsel %vm580, %v10320, 0
      %v10376 = vsel %vm580, %v10321, 0
      %v10379 = vsel %vm580, %v10322, 0
      %v10382 = vsel %vm580, %v10323, 0
      %v10385 = vsel %vm580, %v10324, 0
      %v10388 = vsel %vm580, %v10325, 0
      %v10391 = vsel %vm580, %v10326, 0
      %v10394 = vsel %vm580, %v10327, 0
      %v10397 = vsel %vm580, %v10328, 0
      %v10400 = vsel %vm580, %v10329, 0
      %v10403 = vsel %vm653, %v10305, 0
      %10405 = vmatprep.subr.bf16.mxu0 0
      %10406 = vmatpush1.bf16.msra.mxu0 0
      %10407 = vmatprep.subr.bf16.mxu0 0
      %10408 = vmatpush1.bf16.msra.mxu0 0
      %10409 = vmatprep.subr.bf16.mxu0 0
      %10410 = vmatpush1.bf16.msra.mxu0 0
      %10411 = vmatprep.subr.bf16.mxu0 0
      %10412 = vmatpush1.bf16.msra.mxu0 0
      %10413 = vmatprep.subr.bf16.mxu0 0
      %10414 = vmatpush1.bf16.msra.mxu0 0
      %10415 = vmatprep.subr.bf16.mxu0 0
      %10416 = vmatpush1.bf16.msra.mxu0 0
      %10417 = vmatprep.subr.bf16.mxu0 0
      %10418 = vmatpush1.bf16.msra.mxu0 0
      %10419 = vmatprep.subr.bf16.mxu0 0
      %10420 = vmatpush1.bf16.msra.mxu0 %v10403
      %10421 = vmatprep.subr.bf16.mxu0 0
      %10422 = vmatpush2.bf16.msra.mxu0 0
      %10423 = vmatprep.subr.bf16.mxu0 0
      %10424 = vmatpush2.bf16.msra.mxu0 0
      %10425 = vmatprep.subr.bf16.mxu0 0
      %10426 = vmatpush2.bf16.msra.mxu0 0
      %10427 = vmatprep.subr.bf16.mxu0 0
      %10428 = vmatpush2.bf16.msra.mxu0 0
      %10429 = vmatprep.subr.bf16.mxu0 0
      %10430 = vmatpush2.bf16.msra.mxu0 0
      %10431 = vmatprep.subr.bf16.mxu0 0
      %10432 = vmatpush2.bf16.msra.mxu0 0
      %10433 = vmatprep.subr.bf16.mxu0 0
      %10434 = vmatpush2.bf16.msra.mxu0 0
      %10435 = vmatprep.subr.bf16.mxu0 0
      %10436 = vmatpush2.bf16.msra.mxu0 0
      %10437 = vmatprep.mubr.bf16.mxu0 0
      %10438 = vmatmul.mubr.bf16.gmra.mxu0 %v10331
      %v10439 = vpop.f32.mrf.mxu0
      %v10440 = vadd.f32 0.0, %v10439
      %v10441 = vpop.f32.mrf.mxu0
      %v10442 = vpop.f32.mrf.mxu0
      %v10443 = vadd.f32 0.0, %v10442
      %v10444 = vpop.f32.mrf.mxu0
      %10445 = vmatprep.mubr.bf16.mxu0 0
      %10446 = vmatmul.mubr.bf16.gmra.mxu0 %v10334
      %v10447 = vpop.f32.mrf.mxu0
      %v10448 = vpop.f32.mrf.mxu0
      %v10449 = vpop.f32.mrf.mxu0
      %v10450 = vadd.f32 0.0, %v10449
      %v10451 = vpop.f32.mrf.mxu0
      %10452 = vmatprep.mubr.bf16.mxu0 0
      %10453 = vmatmul.mubr.bf16.gmra.mxu0 %v10337
      %v10454 = vpop.f32.mrf.mxu0
      %v10455 = vadd.f32 0.0, %v10454
      %v10456 = vpop.f32.mrf.mxu0
      %v10457 = vpop.f32.mrf.mxu0
      %v10458 = vpop.f32.mrf.mxu0
      %10459 = vmatprep.mubr.bf16.mxu0 0
      %10460 = vmatmul.mubr.bf16.gmra.mxu0 %v10340
      %v10461 = vpop.f32.mrf.mxu0
      %v10462 = vadd.f32 0.0, %v10461
      %v10463 = vpop.f32.mrf.mxu0
      %v10464 = vpop.f32.mrf.mxu0
      %v10465 = vadd.f32 0.0, %v10464
      %v10466 = vpop.f32.mrf.mxu0
      %10467 = vmatprep.mubr.bf16.mxu0 0
      %10468 = vmatmul.mubr.bf16.gmra.mxu0 %v10343
      %v10469 = vpop.f32.mrf.mxu0
      %v10470 = vpop.f32.mrf.mxu0
      %v10471 = vpop.f32.mrf.mxu0
      %v10472 = vadd.f32 0.0, %v10471
      %v10473 = vpop.f32.mrf.mxu0
      %10474 = vmatprep.mubr.bf16.mxu0 0
      %10475 = vmatmul.mubr.bf16.gmra.mxu0 %v10346
      %v10476 = vpop.f32.mrf.mxu0
      %v10477 = vadd.f32 0.0, %v10476
      %v10478 = vpop.f32.mrf.mxu0
      %v10479 = vpop.f32.mrf.mxu0
      %v10480 = vpop.f32.mrf.mxu0
      %10481 = vmatprep.mubr.bf16.mxu0 0
      %10482 = vmatmul.mubr.bf16.gmra.mxu0 %v10349
      %v10483 = vpop.f32.mrf.mxu0
      %v10484 = vadd.f32 0.0, %v10483
      %v10485 = vpop.f32.mrf.mxu0
      %v10486 = vpop.f32.mrf.mxu0
      %v10487 = vadd.f32 0.0, %v10486
      %v10488 = vpop.f32.mrf.mxu0
      %10489 = vmatprep.mubr.bf16.mxu0 0
      %10490 = vmatmul.mubr.bf16.gmra.mxu0 %v10352
      %v10491 = vpop.f32.mrf.mxu0
      %v10492 = vpop.f32.mrf.mxu0
      %v10493 = vpop.f32.mrf.mxu0
      %v10494 = vadd.f32 0.0, %v10493
      %v10495 = vpop.f32.mrf.mxu0
      %10496 = vmatprep.mubr.bf16.mxu0 0
      %10497 = vmatmul.mubr.bf16.gmra.mxu0 %v10355
      %v10498 = vpop.f32.mrf.mxu0
      %v10499 = vadd.f32 0.0, %v10498
      %v10500 = vpop.f32.mrf.mxu0
      %v10501 = vpop.f32.mrf.mxu0
      %v10502 = vpop.f32.mrf.mxu0
      %10503 = vmatprep.mubr.bf16.mxu0 0
      %10504 = vmatmul.mubr.bf16.gmra.mxu0 %v10358
      %v10505 = vpop.f32.mrf.mxu0
      %v10506 = vadd.f32 0.0, %v10505
      %v10507 = vpop.f32.mrf.mxu0
      %v10508 = vpop.f32.mrf.mxu0
      %v10509 = vadd.f32 0.0, %v10508
      %v10510 = vpop.f32.mrf.mxu0
      %10511 = vmatprep.mubr.bf16.mxu0 0
      %10512 = vmatmul.mubr.bf16.gmra.mxu0 %v10361
      %v10513 = vpop.f32.mrf.mxu0
      %v10514 = vpop.f32.mrf.mxu0
      %v10515 = vpop.f32.mrf.mxu0
      %v10516 = vadd.f32 0.0, %v10515
      %v10517 = vpop.f32.mrf.mxu0
      %10518 = vmatprep.mubr.bf16.mxu0 0
      %10519 = vmatmul.mubr.bf16.gmra.mxu0 %v10364
      %v10520 = vpop.f32.mrf.mxu0
      %v10521 = vadd.f32 0.0, %v10520
      %v10522 = vpop.f32.mrf.mxu0
      %v10523 = vpop.f32.mrf.mxu0
      %v10524 = vpop.f32.mrf.mxu0
      %10525 = vmatprep.mubr.bf16.mxu0 0
      %10526 = vmatmul.mubr.bf16.gmra.mxu0 %v10367
      %v10527 = vpop.f32.mrf.mxu0
      %v10528 = vadd.f32 0.0, %v10527
      %v10529 = vpop.f32.mrf.mxu0
      %v10530 = vpop.f32.mrf.mxu0
      %v10531 = vadd.f32 0.0, %v10530
      %v10532 = vpop.f32.mrf.mxu0
      %10533 = vmatprep.mubr.bf16.mxu0 0
      %10534 = vmatmul.mubr.bf16.gmra.mxu0 %v10370
      %v10535 = vpop.f32.mrf.mxu0
      %v10536 = vpop.f32.mrf.mxu0
      %v10537 = vpop.f32.mrf.mxu0
      %v10538 = vadd.f32 0.0, %v10537
      %v10539 = vpop.f32.mrf.mxu0
      %10540 = vmatprep.mubr.bf16.mxu0 0
      %10541 = vmatmul.mubr.bf16.gmra.mxu0 %v10373
      %v10542 = vpop.f32.mrf.mxu0
      %v10543 = vadd.f32 0.0, %v10542
      %v10544 = vpop.f32.mrf.mxu0
      %v10545 = vpop.f32.mrf.mxu0
      %v10546 = vpop.f32.mrf.mxu0
      %10547 = vmatprep.mubr.bf16.mxu0 0
      %10548 = vmatmul.mubr.bf16.gmra.mxu0 %v10376
      %v10549 = vpop.f32.mrf.mxu0
      %v10550 = vadd.f32 0.0, %v10549
      %v10551 = vpop.f32.mrf.mxu0
      %v10552 = vpop.f32.mrf.mxu0
      %v10553 = vadd.f32 0.0, %v10552
      %v10554 = vpop.f32.mrf.mxu0
      %10555 = vmatprep.mubr.bf16.mxu0 0
      %10556 = vmatmul.mubr.bf16.gmra.mxu0 %v10379
      %v10557 = vpop.f32.mrf.mxu0
      %v10558 = vpop.f32.mrf.mxu0
      %v10559 = vpop.f32.mrf.mxu0
      %v10560 = vadd.f32 0.0, %v10559
      %v10561 = vpop.f32.mrf.mxu0
      %10562 = vmatprep.mubr.bf16.mxu0 0
      %10563 = vmatmul.mubr.bf16.gmra.mxu0 %v10382
      %v10564 = vpop.f32.mrf.mxu0
      %v10565 = vadd.f32 0.0, %v10564
      %v10566 = vpop.f32.mrf.mxu0
      %v10567 = vpop.f32.mrf.mxu0
      %v10568 = vpop.f32.mrf.mxu0
      %10569 = vmatprep.mubr.bf16.mxu0 0
      %10570 = vmatmul.mubr.bf16.gmra.mxu0 %v10385
      %v10571 = vpop.f32.mrf.mxu0
      %v10572 = vadd.f32 0.0, %v10571
      %v10573 = vpop.f32.mrf.mxu0
      %v10574 = vpop.f32.mrf.mxu0
      %v10575 = vadd.f32 0.0, %v10574
      %v10576 = vpop.f32.mrf.mxu0
      %10577 = vmatprep.mubr.bf16.mxu0 0
      %10578 = vmatmul.mubr.bf16.gmra.mxu0 %v10388
      %v10579 = vpop.f32.mrf.mxu0
      %v10580 = vpop.f32.mrf.mxu0
      %v10581 = vpop.f32.mrf.mxu0
      %v10582 = vadd.f32 0.0, %v10581
      %v10583 = vpop.f32.mrf.mxu0
      %10584 = vmatprep.mubr.bf16.mxu0 0
      %10585 = vmatmul.mubr.bf16.gmra.mxu0 %v10391
      %v10586 = vpop.f32.mrf.mxu0
      %v10587 = vadd.f32 0.0, %v10586
      %v10588 = vpop.f32.mrf.mxu0
      %v10589 = vpop.f32.mrf.mxu0
      %v10590 = vpop.f32.mrf.mxu0
      %10591 = vmatprep.mubr.bf16.mxu0 0
      %10592 = vmatmul.mubr.bf16.gmra.mxu0 %v10394
      %v10593 = vpop.f32.mrf.mxu0
      %v10594 = vadd.f32 0.0, %v10593
      %v10595 = vpop.f32.mrf.mxu0
      %v10596 = vpop.f32.mrf.mxu0
      %v10597 = vadd.f32 0.0, %v10596
      %v10598 = vpop.f32.mrf.mxu0
      %10599 = vmatprep.mubr.bf16.mxu0 0
      %10600 = vmatmul.mubr.bf16.gmra.mxu0 %v10397
      %v10601 = vpop.f32.mrf.mxu0
      %v10602 = vpop.f32.mrf.mxu0
      %v10603 = vpop.f32.mrf.mxu0
      %v10604 = vadd.f32 0.0, %v10603
      %v10605 = vpop.f32.mrf.mxu0
      %10606 = vmatprep.mubr.bf16.mxu0 0
      %10607 = vmatmul.mubr.bf16.gmra.mxu0 %v10400
      %v10608 = vpop.f32.mrf.mxu0
      %v10609 = vadd.f32 0.0, %v10608
      %v10610 = vpop.f32.mrf.mxu0
      %v10611 = vpop.f32.mrf.mxu0
      %v10612 = vpop.f32.mrf.mxu0
      %10613 = vdwg.mxu0
      %v10614 = vadd.f32 %v10272, %v10440
      %v10615 = vadd.f32 %v10273, %v10443
      %v10616 = vadd.f32 %v10274, %v10450
      %v10617 = vadd.f32 %v10275, %v10455
      %v10618 = vadd.f32 %v10276, %v10462
      %v10619 = vadd.f32 %v10277, %v10465
      %v10620 = vadd.f32 %v10278, %v10472
      %v10621 = vadd.f32 %v10279, %v10477
      %v10622 = vadd.f32 %v10280, %v10484
      %v10623 = vadd.f32 %v10281, %v10487
      %v10624 = vadd.f32 %v10282, %v10494
      %v10625 = vadd.f32 %v10283, %v10499
      %v10626 = vadd.f32 %v10284, %v10506
      %v10627 = vadd.f32 %v10285, %v10509
      %v10628 = vadd.f32 %v10286, %v10516
      %v10629 = vadd.f32 %v10287, %v10521
      %v10630 = vadd.f32 %v10288, %v10528
      %v10631 = vadd.f32 %v10289, %v10531
      %v10632 = vadd.f32 %v10290, %v10538
      %v10633 = vadd.f32 %v10291, %v10543
      %v10634 = vadd.f32 %v10292, %v10550
      %v10635 = vadd.f32 %v10293, %v10553
      %v10636 = vadd.f32 %v10294, %v10560
      %v10637 = vadd.f32 %v10295, %v10565
      %v10638 = vadd.f32 %v10296, %v10572
      %v10639 = vadd.f32 %v10297, %v10575
      %v10640 = vadd.f32 %v10298, %v10582
      %v10641 = vadd.f32 %v10299, %v10587
      %v10642 = vadd.f32 %v10300, %v10594
      %v10643 = vadd.f32 %v10301, %v10597
      %v10644 = vadd.f32 %v10302, %v10604
      %v10645 = vadd.f32 %v10303, %v10609
      %v10646 = vld [vmem:[#allocation3 + $0x1c] sm:$0xf]
      %v10647 = vld [vmem:[#allocation3 + $0x20] sm:$0xf]
      %v10648 = vld [vmem:[#allocation3 + $0x24] sm:$0xf]
      %v10649 = vld [vmem:[#allocation3 + $0x28] sm:$0xf]
      %v10650 = vld [vmem:[#allocation3 + $0x2c] sm:$0xf]
      %v10651 = vld [vmem:[#allocation3 + $0x30] sm:$0xf]
      %v10652 = vld [vmem:[#allocation3 + $0x34] sm:$0xf]
      %v10653 = vld [vmem:[#allocation3 + $0x38] sm:$0xf]
      %v10654 = vld [vmem:[#allocation3 + $0x3c] sm:$0xf]
      %v10655 = vld [vmem:[#allocation3 + $0x40] sm:$0xf]
      %v10656 = vld [vmem:[#allocation3 + $0x44] sm:$0xf]
      %v10657 = vld [vmem:[#allocation3 + $0x48] sm:$0xf]
      %v10658 = vld [vmem:[#allocation3 + $0x4c] sm:$0xf]
      %v10659 = vld [vmem:[#allocation3 + $0x50] sm:$0xf]
      %v10660 = vld [vmem:[#allocation3 + $0x54] sm:$0xf]
      %v10661 = vld [vmem:[#allocation3 + $0x58] sm:$0xf]
      %v10662 = vld [vmem:[#allocation3 + $0x5c] sm:$0xf]
      %v10663 = vld [vmem:[#allocation3 + $0x60] sm:$0xf]
      %v10664 = vld [vmem:[#allocation3 + $0x64] sm:$0xf]
      %v10665 = vld [vmem:[#allocation3 + $0x68] sm:$0xf]
      %v10666 = vld [vmem:[#allocation3 + $0x6c] sm:$0xf]
      %v10667 = vld [vmem:[#allocation3 + $0x70] sm:$0xf]
      %v10668 = vld [vmem:[#allocation3 + $0x74] sm:$0xf]
      %v10669 = vld [vmem:[#allocation3 + $0x78] sm:$0xf]
      %v10670 = vld [vmem:[#allocation3 + $0x7c] sm:$0xf]
      %v10671 = vld [vmem:[#allocation3 + $0x80] sm:$0xf]
      %v10672 = vld [vmem:[#allocation3 + $0x84] sm:$0xf]
      %v10673 = vld [vmem:[#allocation3 + $0x88] sm:$0xf]
      %v10674 = vld [vmem:[#allocation3 + $0x8c] sm:$0xf]
      %v10675 = vld [vmem:[#allocation3 + $0x90] sm:$0xf]
      %v10676 = vld [vmem:[#allocation3 + $0x94] sm:$0xf]
      %v10677 = vld [vmem:[#allocation3 + $0x98] sm:$0xf]
      %v10678 = vld [vmem:[#allocation3 + $0x9c] sm:$0xf]
      %v10679 = vld [vmem:[#allocation3 + $0xa0] sm:$0xf]
      %v10680 = vld [vmem:[#allocation3 + $0xa4] sm:$0xf]
      %v10681 = vld [vmem:[#allocation3 + $0xa8] sm:$0xf]
      %v10682 = vld [vmem:[#allocation3 + $0xac] sm:$0xf]
      %v10683 = vld [vmem:[#allocation3 + $0xb0] sm:$0xf]
      %v10684 = vld [vmem:[#allocation3 + $0xb4] sm:$0xf]
      %v10685 = vld [vmem:[#allocation3 + $0xb8] sm:$0xf]
      %v10686 = vld [vmem:[#allocation3 + $0xbc] sm:$0xf]
      %v10687 = vld [vmem:[#allocation3 + $0xc0] sm:$0xf]
      %v10688 = vld [vmem:[#allocation3 + $0xc4] sm:$0xf]
      %v10689 = vld [vmem:[#allocation3 + $0xc8] sm:$0xf]
      %v10690 = vld [vmem:[#allocation3 + $0xcc] sm:$0xf]
      %v10691 = vld [vmem:[#allocation3 + $0xd0] sm:$0xf]
      %v10692 = vld [vmem:[#allocation3 + $0xd4] sm:$0xf]
      %v10693 = vld [vmem:[#allocation3 + $0xd8] sm:$0xf]
      %v10694 = vld [vmem:[#allocation3 + $0xdc] sm:$0x1]
      %s10695 = scalar_lea.vmem %s2, 16
      %v10696 = vld [vmem:[%s10695] sm:$0x3]
      %v10746 = vunpack.c.l.b16 %v10646
      %v10747 = vunpack.c.l.b16 %v10647
      %v10748 = vunpack.c.l.b16 %v10648
      %v10749 = vunpack.c.l.b16 %v10649
      %v10750 = vunpack.c.l.b16 %v10650
      %v10751 = vunpack.c.l.b16 %v10651
      %v10752 = vunpack.c.l.b16 %v10652
      %v10753 = vunpack.c.l.b16 %v10653
      %v10754 = vunpack.c.l.b16 %v10654
      %v10755 = vunpack.c.l.b16 %v10655
      %v10756 = vunpack.c.l.b16 %v10656
      %v10757 = vunpack.c.l.b16 %v10657
      %v10758 = vunpack.c.l.b16 %v10658
      %v10759 = vunpack.c.l.b16 %v10659
      %v10760 = vunpack.c.l.b16 %v10660
      %v10761 = vunpack.c.l.b16 %v10661
      %v10762 = vunpack.c.l.b16 %v10662
      %v10763 = vunpack.c.l.b16 %v10663
      %v10764 = vunpack.c.l.b16 %v10664
      %v10765 = vunpack.c.l.b16 %v10665
      %v10766 = vunpack.c.l.b16 %v10666
      %v10767 = vunpack.c.l.b16 %v10667
      %v10768 = vunpack.c.l.b16 %v10668
      %v10769 = vunpack.c.l.b16 %v10669
      %v10770 = vunpack.c.l.b16 %v10670
      %v10771 = vunpack.c.l.b16 %v10671
      %v10772 = vunpack.c.l.b16 %v10672
      %v10773 = vunpack.c.l.b16 %v10673
      %v10774 = vunpack.c.l.b16 %v10674
      %v10775 = vunpack.c.l.b16 %v10675
      %v10776 = vunpack.c.l.b16 %v10676
      %v10777 = vunpack.c.l.b16 %v10677
      %v10778 = vunpack.c.l.b16 %v10678
      %v10779 = vunpack.c.l.b16 %v10679
      %v10780 = vunpack.c.l.b16 %v10680
      %v10781 = vunpack.c.l.b16 %v10681
      %v10782 = vunpack.c.l.b16 %v10682
      %v10783 = vunpack.c.l.b16 %v10683
      %v10784 = vunpack.c.l.b16 %v10684
      %v10785 = vunpack.c.l.b16 %v10685
      %v10786 = vunpack.c.l.b16 %v10686
      %v10787 = vunpack.c.l.b16 %v10687
      %v10788 = vunpack.c.l.b16 %v10688
      %v10789 = vunpack.c.l.b16 %v10689
      %v10790 = vunpack.c.l.b16 %v10690
      %v10791 = vunpack.c.l.b16 %v10691
      %v10792 = vunpack.c.l.b16 %v10692
      %v10793 = vunpack.c.l.b16 %v10693
      %v10794 = vunpack.c.l.b16 %v10694
      %v10795 = vpack.c.b16 %v10747, %v10746
      %v10796 = vpack.c.b16 %v10749, %v10748
      %v10797 = vpack.c.b16 %v10751, %v10750
      %v10798 = vpack.c.b16 %v10753, %v10752
      %v10799 = vpack.c.b16 %v10755, %v10754
      %v10800 = vpack.c.b16 %v10757, %v10756
      %v10801 = vpack.c.b16 %v10759, %v10758
      %v10802 = vpack.c.b16 %v10761, %v10760
      %v10803 = vpack.c.b16 %v10763, %v10762
      %v10804 = vpack.c.b16 %v10765, %v10764
      %v10805 = vpack.c.b16 %v10767, %v10766
      %v10806 = vpack.c.b16 %v10769, %v10768
      %v10807 = vpack.c.b16 %v10771, %v10770
      %v10808 = vpack.c.b16 %v10773, %v10772
      %v10809 = vpack.c.b16 %v10775, %v10774
      %v10810 = vpack.c.b16 %v10777, %v10776
      %v10811 = vpack.c.b16 %v10779, %v10778
      %v10812 = vpack.c.b16 %v10781, %v10780
      %v10813 = vpack.c.b16 %v10783, %v10782
      %v10814 = vpack.c.b16 %v10785, %v10784
      %v10815 = vpack.c.b16 %v10787, %v10786
      %v10816 = vpack.c.b16 %v10789, %v10788
      %v10817 = vpack.c.b16 %v10791, %v10790
      %v10818 = vpack.c.b16 %v10793, %v10792
      %v10819 = vpack.c.b16 %v10794, %v10794
      %v10821 = vshrl.u32 %v10795, 16
      %v10823 = vshll.u32 %v10795, 16
      %v10825 = vrot.slane %v10823, 1
      %v10826 = vor.u32 %v10821, %v10825
      %v10828 = vshll.u32 %v10796, 16
      %v10830 = vrot.slane %v10828, 1
      %v10831 = vsel %vm1608, %v10826, %v10830
      %v10832 = vshrl.u32 %v10796, 16
      %v10834 = vor.u32 %v10832, %v10830
      %v10836 = vshll.u32 %v10797, 16
      %v10838 = vrot.slane %v10836, 1
      %v10839 = vsel %vm1608, %v10834, %v10838
      %v10840 = vshrl.u32 %v10797, 16
      %v10842 = vor.u32 %v10840, %v10838
      %v10844 = vshll.u32 %v10798, 16
      %v10846 = vrot.slane %v10844, 1
      %v10847 = vsel %vm1608, %v10842, %v10846
      %v10848 = vshrl.u32 %v10798, 16
      %v10850 = vor.u32 %v10848, %v10846
      %v10852 = vshll.u32 %v10799, 16
      %v10854 = vrot.slane %v10852, 1
      %v10855 = vsel %vm1608, %v10850, %v10854
      %v10856 = vshrl.u32 %v10799, 16
      %v10858 = vor.u32 %v10856, %v10854
      %v10860 = vshll.u32 %v10800, 16
      %v10862 = vrot.slane %v10860, 1
      %v10863 = vsel %vm1608, %v10858, %v10862
      %v10864 = vshrl.u32 %v10800, 16
      %v10866 = vor.u32 %v10864, %v10862
      %v10868 = vshll.u32 %v10801, 16
      %v10870 = vrot.slane %v10868, 1
      %v10871 = vsel %vm1608, %v10866, %v10870
      %v10872 = vshrl.u32 %v10801, 16
      %v10874 = vor.u32 %v10872, %v10870
      %v10876 = vshll.u32 %v10802, 16
      %v10878 = vrot.slane %v10876, 1
      %v10879 = vsel %vm1608, %v10874, %v10878
      %v10880 = vshrl.u32 %v10802, 16
      %v10882 = vor.u32 %v10880, %v10878
      %v10884 = vshll.u32 %v10803, 16
      %v10886 = vrot.slane %v10884, 1
      %v10887 = vsel %vm1608, %v10882, %v10886
      %v10888 = vshrl.u32 %v10803, 16
      %v10890 = vor.u32 %v10888, %v10886
      %v10892 = vshll.u32 %v10804, 16
      %v10894 = vrot.slane %v10892, 1
      %v10895 = vsel %vm1608, %v10890, %v10894
      %v10896 = vshrl.u32 %v10804, 16
      %v10898 = vor.u32 %v10896, %v10894
      %v10900 = vshll.u32 %v10805, 16
      %v10902 = vrot.slane %v10900, 1
      %v10903 = vsel %vm1608, %v10898, %v10902
      %v10904 = vshrl.u32 %v10805, 16
      %v10906 = vor.u32 %v10904, %v10902
      %v10908 = vshll.u32 %v10806, 16
      %v10910 = vrot.slane %v10908, 1
      %v10911 = vsel %vm1608, %v10906, %v10910
      %v10912 = vshrl.u32 %v10806, 16
      %v10914 = vor.u32 %v10912, %v10910
      %v10916 = vshll.u32 %v10807, 16
      %v10918 = vrot.slane %v10916, 1
      %v10919 = vsel %vm1608, %v10914, %v10918
      %v10920 = vshrl.u32 %v10807, 16
      %v10922 = vor.u32 %v10920, %v10918
      %v10924 = vshll.u32 %v10808, 16
      %v10926 = vrot.slane %v10924, 1
      %v10927 = vsel %vm1608, %v10922, %v10926
      %v10928 = vshrl.u32 %v10808, 16
      %v10930 = vor.u32 %v10928, %v10926
      %v10932 = vshll.u32 %v10809, 16
      %v10934 = vrot.slane %v10932, 1
      %v10935 = vsel %vm1608, %v10930, %v10934
      %v10936 = vshrl.u32 %v10809, 16
      %v10938 = vor.u32 %v10936, %v10934
      %v10940 = vshll.u32 %v10810, 16
      %v10942 = vrot.slane %v10940, 1
      %v10943 = vsel %vm1608, %v10938, %v10942
      %v10944 = vshrl.u32 %v10810, 16
      %v10946 = vor.u32 %v10944, %v10942
      %v10948 = vshll.u32 %v10811, 16
      %v10950 = vrot.slane %v10948, 1
      %v10951 = vsel %vm1608, %v10946, %v10950
      %v10952 = vshrl.u32 %v10811, 16
      %v10954 = vor.u32 %v10952, %v10950
      %v10956 = vshll.u32 %v10812, 16
      %v10958 = vrot.slane %v10956, 1
      %v10959 = vsel %vm1608, %v10954, %v10958
      %v10960 = vshrl.u32 %v10812, 16
      %v10962 = vor.u32 %v10960, %v10958
      %v10964 = vshll.u32 %v10813, 16
      %v10966 = vrot.slane %v10964, 1
      %v10967 = vsel %vm1608, %v10962, %v10966
      %v10968 = vshrl.u32 %v10813, 16
      %v10970 = vor.u32 %v10968, %v10966
      %v10972 = vshll.u32 %v10814, 16
      %v10974 = vrot.slane %v10972, 1
      %v10975 = vsel %vm1608, %v10970, %v10974
      %v10976 = vshrl.u32 %v10814, 16
      %v10978 = vor.u32 %v10976, %v10974
      %v10980 = vshll.u32 %v10815, 16
      %v10982 = vrot.slane %v10980, 1
      %v10983 = vsel %vm1608, %v10978, %v10982
      %v10984 = vshrl.u32 %v10815, 16
      %v10986 = vor.u32 %v10984, %v10982
      %v10988 = vshll.u32 %v10816, 16
      %v10990 = vrot.slane %v10988, 1
      %v10991 = vsel %vm1608, %v10986, %v10990
      %v10992 = vshrl.u32 %v10816, 16
      %v10994 = vor.u32 %v10992, %v10990
      %v10996 = vshll.u32 %v10817, 16
      %v10998 = vrot.slane %v10996, 1
      %v10999 = vsel %vm1608, %v10994, %v10998
      %v11000 = vshrl.u32 %v10817, 16
      %v11002 = vor.u32 %v11000, %v10998
      %v11004 = vshll.u32 %v10818, 16
      %v11006 = vrot.slane %v11004, 1
      %v11007 = vsel %vm1608, %v11002, %v11006
      %v11008 = vshrl.u32 %v10818, 16
      %v11010 = vor.u32 %v11008, %v11006
      %v11012 = vshll.u32 %v10819, 16
      %v11014 = vrot.slane %v11012, 1
      %v11015 = vsel %vm1608, %v11010, %v11014
      %v11017 = vsel %vm580, %v10831, 0
      %v11020 = vsel %vm580, %v10839, 0
      %v11023 = vsel %vm580, %v10847, 0
      %v11026 = vsel %vm580, %v10855, 0
      %v11029 = vsel %vm580, %v10863, 0
      %v11032 = vsel %vm580, %v10871, 0
      %v11035 = vsel %vm580, %v10879, 0
      %v11038 = vsel %vm580, %v10887, 0
      %v11041 = vsel %vm580, %v10895, 0
      %v11044 = vsel %vm580, %v10903, 0
      %v11047 = vsel %vm580, %v10911, 0
      %v11050 = vsel %vm580, %v10919, 0
      %v11053 = vsel %vm580, %v10927, 0
      %v11056 = vsel %vm580, %v10935, 0
      %v11059 = vsel %vm580, %v10943, 0
      %v11062 = vsel %vm580, %v10951, 0
      %v11065 = vsel %vm580, %v10959, 0
      %v11068 = vsel %vm580, %v10967, 0
      %v11071 = vsel %vm580, %v10975, 0
      %v11074 = vsel %vm580, %v10983, 0
      %v11077 = vsel %vm580, %v10991, 0
      %v11080 = vsel %vm580, %v10999, 0
      %v11083 = vsel %vm580, %v11007, 0
      %v11086 = vsel %vm580, %v11015, 0
      %v11089 = vsel %vm653, %v10696, 0
      %11091 = vmatprep.subr.bf16.mxu0 0
      %11092 = vmatpush1.bf16.msra.mxu0 0
      %11093 = vmatprep.subr.bf16.mxu0 0
      %11094 = vmatpush1.bf16.msra.mxu0 0
      %11095 = vmatprep.subr.bf16.mxu0 0
      %11096 = vmatpush1.bf16.msra.mxu0 0
      %11097 = vmatprep.subr.bf16.mxu0 0
      %11098 = vmatpush1.bf16.msra.mxu0 0
      %11099 = vmatprep.subr.bf16.mxu0 0
      %11100 = vmatpush1.bf16.msra.mxu0 0
      %11101 = vmatprep.subr.bf16.mxu0 0
      %11102 = vmatpush1.bf16.msra.mxu0 0
      %11103 = vmatprep.subr.bf16.mxu0 0
      %11104 = vmatpush1.bf16.msra.mxu0 0
      %11105 = vmatprep.subr.bf16.mxu0 0
      %11106 = vmatpush1.bf16.msra.mxu0 %v11089
      %11107 = vmatprep.subr.bf16.mxu0 0
      %11108 = vmatpush2.bf16.msra.mxu0 0
      %11109 = vmatprep.subr.bf16.mxu0 0
      %11110 = vmatpush2.bf16.msra.mxu0 0
      %11111 = vmatprep.subr.bf16.mxu0 0
      %11112 = vmatpush2.bf16.msra.mxu0 0
      %11113 = vmatprep.subr.bf16.mxu0 0
      %11114 = vmatpush2.bf16.msra.mxu0 0
      %11115 = vmatprep.subr.bf16.mxu0 0
      %11116 = vmatpush2.bf16.msra.mxu0 0
      %11117 = vmatprep.subr.bf16.mxu0 0
      %11118 = vmatpush2.bf16.msra.mxu0 0
      %11119 = vmatprep.subr.bf16.mxu0 0
      %11120 = vmatpush2.bf16.msra.mxu0 0
      %11121 = vmatprep.subr.bf16.mxu0 0
      %11122 = vmatpush2.bf16.msra.mxu0 0
      %11123 = vmatprep.mubr.bf16.mxu0 0
      %11124 = vmatmul.mubr.bf16.gmra.mxu0 %v11017
      %v11125 = vpop.f32.mrf.mxu0
      %v11126 = vadd.f32 0.0, %v11125
      %v11127 = vpop.f32.mrf.mxu0
      %v11128 = vpop.f32.mrf.mxu0
      %v11129 = vadd.f32 0.0, %v11128
      %v11130 = vpop.f32.mrf.mxu0
      %11131 = vmatprep.mubr.bf16.mxu0 0
      %11132 = vmatmul.mubr.bf16.gmra.mxu0 %v11020
      %v11133 = vpop.f32.mrf.mxu0
      %v11134 = vpop.f32.mrf.mxu0
      %v11135 = vpop.f32.mrf.mxu0
      %v11136 = vadd.f32 0.0, %v11135
      %v11137 = vpop.f32.mrf.mxu0
      %11138 = vmatprep.mubr.bf16.mxu0 0
      %11139 = vmatmul.mubr.bf16.gmra.mxu0 %v11023
      %v11140 = vpop.f32.mrf.mxu0
      %v11141 = vadd.f32 0.0, %v11140
      %v11142 = vpop.f32.mrf.mxu0
      %v11143 = vpop.f32.mrf.mxu0
      %v11144 = vpop.f32.mrf.mxu0
      %11145 = vmatprep.mubr.bf16.mxu0 0
      %11146 = vmatmul.mubr.bf16.gmra.mxu0 %v11026
      %v11147 = vpop.f32.mrf.mxu0
      %v11148 = vadd.f32 0.0, %v11147
      %v11149 = vpop.f32.mrf.mxu0
      %v11150 = vpop.f32.mrf.mxu0
      %v11151 = vadd.f32 0.0, %v11150
      %v11152 = vpop.f32.mrf.mxu0
      %11153 = vmatprep.mubr.bf16.mxu0 0
      %11154 = vmatmul.mubr.bf16.gmra.mxu0 %v11029
      %v11155 = vpop.f32.mrf.mxu0
      %v11156 = vpop.f32.mrf.mxu0
      %v11157 = vpop.f32.mrf.mxu0
      %v11158 = vadd.f32 0.0, %v11157
      %v11159 = vpop.f32.mrf.mxu0
      %11160 = vmatprep.mubr.bf16.mxu0 0
      %11161 = vmatmul.mubr.bf16.gmra.mxu0 %v11032
      %v11162 = vpop.f32.mrf.mxu0
      %v11163 = vadd.f32 0.0, %v11162
      %v11164 = vpop.f32.mrf.mxu0
      %v11165 = vpop.f32.mrf.mxu0
      %v11166 = vpop.f32.mrf.mxu0
      %11167 = vmatprep.mubr.bf16.mxu0 0
      %11168 = vmatmul.mubr.bf16.gmra.mxu0 %v11035
      %v11169 = vpop.f32.mrf.mxu0
      %v11170 = vadd.f32 0.0, %v11169
      %v11171 = vpop.f32.mrf.mxu0
      %v11172 = vpop.f32.mrf.mxu0
      %v11173 = vadd.f32 0.0, %v11172
      %v11174 = vpop.f32.mrf.mxu0
      %11175 = vmatprep.mubr.bf16.mxu0 0
      %11176 = vmatmul.mubr.bf16.gmra.mxu0 %v11038
      %v11177 = vpop.f32.mrf.mxu0
      %v11178 = vpop.f32.mrf.mxu0
      %v11179 = vpop.f32.mrf.mxu0
      %v11180 = vadd.f32 0.0, %v11179
      %v11181 = vpop.f32.mrf.mxu0
      %11182 = vmatprep.mubr.bf16.mxu0 0
      %11183 = vmatmul.mubr.bf16.gmra.mxu0 %v11041
      %v11184 = vpop.f32.mrf.mxu0
      %v11185 = vadd.f32 0.0, %v11184
      %v11186 = vpop.f32.mrf.mxu0
      %v11187 = vpop.f32.mrf.mxu0
      %v11188 = vpop.f32.mrf.mxu0
      %11189 = vmatprep.mubr.bf16.mxu0 0
      %11190 = vmatmul.mubr.bf16.gmra.mxu0 %v11044
      %v11191 = vpop.f32.mrf.mxu0
      %v11192 = vadd.f32 0.0, %v11191
      %v11193 = vpop.f32.mrf.mxu0
      %v11194 = vpop.f32.mrf.mxu0
      %v11195 = vadd.f32 0.0, %v11194
      %v11196 = vpop.f32.mrf.mxu0
      %11197 = vmatprep.mubr.bf16.mxu0 0
      %11198 = vmatmul.mubr.bf16.gmra.mxu0 %v11047
      %v11199 = vpop.f32.mrf.mxu0
      %v11200 = vpop.f32.mrf.mxu0
      %v11201 = vpop.f32.mrf.mxu0
      %v11202 = vadd.f32 0.0, %v11201
      %v11203 = vpop.f32.mrf.mxu0
      %11204 = vmatprep.mubr.bf16.mxu0 0
      %11205 = vmatmul.mubr.bf16.gmra.mxu0 %v11050
      %v11206 = vpop.f32.mrf.mxu0
      %v11207 = vadd.f32 0.0, %v11206
      %v11208 = vpop.f32.mrf.mxu0
      %v11209 = vpop.f32.mrf.mxu0
      %v11210 = vpop.f32.mrf.mxu0
      %11211 = vmatprep.mubr.bf16.mxu0 0
      %11212 = vmatmul.mubr.bf16.gmra.mxu0 %v11053
      %v11213 = vpop.f32.mrf.mxu0
      %v11214 = vadd.f32 0.0, %v11213
      %v11215 = vpop.f32.mrf.mxu0
      %v11216 = vpop.f32.mrf.mxu0
      %v11217 = vadd.f32 0.0, %v11216
      %v11218 = vpop.f32.mrf.mxu0
      %11219 = vmatprep.mubr.bf16.mxu0 0
      %11220 = vmatmul.mubr.bf16.gmra.mxu0 %v11056
      %v11221 = vpop.f32.mrf.mxu0
      %v11222 = vpop.f32.mrf.mxu0
      %v11223 = vpop.f32.mrf.mxu0
      %v11224 = vadd.f32 0.0, %v11223
      %v11225 = vpop.f32.mrf.mxu0
      %11226 = vmatprep.mubr.bf16.mxu0 0
      %11227 = vmatmul.mubr.bf16.gmra.mxu0 %v11059
      %v11228 = vpop.f32.mrf.mxu0
      %v11229 = vadd.f32 0.0, %v11228
      %v11230 = vpop.f32.mrf.mxu0
      %v11231 = vpop.f32.mrf.mxu0
      %v11232 = vpop.f32.mrf.mxu0
      %11233 = vmatprep.mubr.bf16.mxu0 0
      %11234 = vmatmul.mubr.bf16.gmra.mxu0 %v11062
      %v11235 = vpop.f32.mrf.mxu0
      %v11236 = vadd.f32 0.0, %v11235
      %v11237 = vpop.f32.mrf.mxu0
      %v11238 = vpop.f32.mrf.mxu0
      %v11239 = vadd.f32 0.0, %v11238
      %v11240 = vpop.f32.mrf.mxu0
      %11241 = vmatprep.mubr.bf16.mxu0 0
      %11242 = vmatmul.mubr.bf16.gmra.mxu0 %v11065
      %v11243 = vpop.f32.mrf.mxu0
      %v11244 = vpop.f32.mrf.mxu0
      %v11245 = vpop.f32.mrf.mxu0
      %v11246 = vadd.f32 0.0, %v11245
      %v11247 = vpop.f32.mrf.mxu0
      %11248 = vmatprep.mubr.bf16.mxu0 0
      %11249 = vmatmul.mubr.bf16.gmra.mxu0 %v11068
      %v11250 = vpop.f32.mrf.mxu0
      %v11251 = vadd.f32 0.0, %v11250
      %v11252 = vpop.f32.mrf.mxu0
      %v11253 = vpop.f32.mrf.mxu0
      %v11254 = vpop.f32.mrf.mxu0
      %11255 = vmatprep.mubr.bf16.mxu0 0
      %11256 = vmatmul.mubr.bf16.gmra.mxu0 %v11071
      %v11257 = vpop.f32.mrf.mxu0
      %v11258 = vadd.f32 0.0, %v11257
      %v11259 = vpop.f32.mrf.mxu0
      %v11260 = vpop.f32.mrf.mxu0
      %v11261 = vadd.f32 0.0, %v11260
      %v11262 = vpop.f32.mrf.mxu0
      %11263 = vmatprep.mubr.bf16.mxu0 0
      %11264 = vmatmul.mubr.bf16.gmra.mxu0 %v11074
      %v11265 = vpop.f32.mrf.mxu0
      %v11266 = vpop.f32.mrf.mxu0
      %v11267 = vpop.f32.mrf.mxu0
      %v11268 = vadd.f32 0.0, %v11267
      %v11269 = vpop.f32.mrf.mxu0
      %11270 = vmatprep.mubr.bf16.mxu0 0
      %11271 = vmatmul.mubr.bf16.gmra.mxu0 %v11077
      %v11272 = vpop.f32.mrf.mxu0
      %v11273 = vadd.f32 0.0, %v11272
      %v11274 = vpop.f32.mrf.mxu0
      %v11275 = vpop.f32.mrf.mxu0
      %v11276 = vpop.f32.mrf.mxu0
      %11277 = vmatprep.mubr.bf16.mxu0 0
      %11278 = vmatmul.mubr.bf16.gmra.mxu0 %v11080
      %v11279 = vpop.f32.mrf.mxu0
      %v11280 = vadd.f32 0.0, %v11279
      %v11281 = vpop.f32.mrf.mxu0
      %v11282 = vpop.f32.mrf.mxu0
      %v11283 = vadd.f32 0.0, %v11282
      %v11284 = vpop.f32.mrf.mxu0
      %11285 = vmatprep.mubr.bf16.mxu0 0
      %11286 = vmatmul.mubr.bf16.gmra.mxu0 %v11083
      %v11287 = vpop.f32.mrf.mxu0
      %v11288 = vpop.f32.mrf.mxu0
      %v11289 = vpop.f32.mrf.mxu0
      %v11290 = vadd.f32 0.0, %v11289
      %v11291 = vpop.f32.mrf.mxu0
      %11292 = vmatprep.mubr.bf16.mxu0 0
      %11293 = vmatmul.mubr.bf16.gmra.mxu0 %v11086
      %v11294 = vpop.f32.mrf.mxu0
      %v11295 = vadd.f32 0.0, %v11294
      %v11296 = vpop.f32.mrf.mxu0
      %v11297 = vpop.f32.mrf.mxu0
      %v11298 = vpop.f32.mrf.mxu0
      %11299 = vdwg.mxu0
      %v11300 = vadd.f32 %v10614, %v11126
      %v11301 = vadd.f32 %v10615, %v11129
      %v11302 = vadd.f32 %v10616, %v11136
      %v11303 = vadd.f32 %v10617, %v11141
      %v11304 = vadd.f32 %v10618, %v11148
      %v11305 = vadd.f32 %v10619, %v11151
      %v11306 = vadd.f32 %v10620, %v11158
      %v11307 = vadd.f32 %v10621, %v11163
      %v11308 = vadd.f32 %v10622, %v11170
      %v11309 = vadd.f32 %v10623, %v11173
      %v11310 = vadd.f32 %v10624, %v11180
      %v11311 = vadd.f32 %v10625, %v11185
      %v11312 = vadd.f32 %v10626, %v11192
      %v11313 = vadd.f32 %v10627, %v11195
      %v11314 = vadd.f32 %v10628, %v11202
      %v11315 = vadd.f32 %v10629, %v11207
      %v11316 = vadd.f32 %v10630, %v11214
      %v11317 = vadd.f32 %v10631, %v11217
      %v11318 = vadd.f32 %v10632, %v11224
      %v11319 = vadd.f32 %v10633, %v11229
      %v11320 = vadd.f32 %v10634, %v11236
      %v11321 = vadd.f32 %v10635, %v11239
      %v11322 = vadd.f32 %v10636, %v11246
      %v11323 = vadd.f32 %v10637, %v11251
      %v11324 = vadd.f32 %v10638, %v11258
      %v11325 = vadd.f32 %v10639, %v11261
      %v11326 = vadd.f32 %v10640, %v11268
      %v11327 = vadd.f32 %v10641, %v11273
      %v11328 = vadd.f32 %v10642, %v11280
      %v11329 = vadd.f32 %v10643, %v11283
      %v11330 = vadd.f32 %v10644, %v11290
      %v11331 = vadd.f32 %v10645, %v11295
      %v11332 = vld [vmem:[%s165] sm:$0xff]
      %v11333 = vld [vmem:[%s165 + $0x8] sm:$0xff]
      %v11334 = vld [vmem:[%s165 + $0x10] sm:$0xff]
      %v11335 = vld [vmem:[%s165 + $0x18] sm:$0xff]
      %v11336 = vld [vmem:[%s165 + $0x20] sm:$0xff]
      %v11337 = vld [vmem:[%s165 + $0x28] sm:$0xff]
      %v11338 = vld [vmem:[%s165 + $0x30] sm:$0xff]
      %v11339 = vld [vmem:[%s165 + $0x38] sm:$0xff]
      %v11340 = vld [vmem:[%s165 + $0x40] sm:$0xff]
      %v11341 = vld [vmem:[%s165 + $0x48] sm:$0xff]
      %v11342 = vld [vmem:[%s165 + $0x50] sm:$0xff]
      %v11343 = vld [vmem:[%s165 + $0x58] sm:$0xff]
      %v11344 = vld [vmem:[%s165 + $0x60] sm:$0xff]
      %v11345 = vld [vmem:[%s165 + $0x68] sm:$0xff]
      %v11346 = vld [vmem:[%s165 + $0x70] sm:$0xff]
      %v11347 = vld [vmem:[%s165 + $0x78] sm:$0xff]
      %v11348 = vld [vmem:[%s165 + $0x80] sm:$0xff]
      %v11349 = vld [vmem:[%s165 + $0x88] sm:$0xff]
      %v11350 = vld [vmem:[%s165 + $0x90] sm:$0xff]
      %v11351 = vld [vmem:[%s165 + $0x98] sm:$0xff]
      %v11352 = vld [vmem:[%s165 + $0xa0] sm:$0xff]
      %v11353 = vld [vmem:[%s165 + $0xa8] sm:$0xff]
      %v11354 = vld [vmem:[%s165 + $0xb0] sm:$0xff]
      %v11355 = vld [vmem:[%s165 + $0xb8] sm:$0xff]
      %v11356 = vld [vmem:[%s165 + $0xc0] sm:$0xff]
      %v11357 = vld [vmem:[%s165 + $0xc8] sm:$0xff]
      %v11358 = vld [vmem:[%s165 + $0xd0] sm:$0xff]
      %v11359 = vld [vmem:[%s165 + $0xd8] sm:$0xff]
      %v11360 = vld [vmem:[%s165 + $0xe0] sm:$0xff]
      %v11361 = vld [vmem:[%s165 + $0xe8] sm:$0xff]
      %v11362 = vld [vmem:[%s165 + $0xf0] sm:$0xff]
      %v11363 = vld [vmem:[%s165 + $0xf8] sm:$0xff]
      %v11364 = vadd.f32 %v11332, %v11300
      %v11365 = vadd.f32 %v11333, %v11301
      %v11366 = vadd.f32 %v11334, %v11302
      %v11367 = vadd.f32 %v11335, %v11303
      %v11368 = vadd.f32 %v11336, %v11304
      %v11369 = vadd.f32 %v11337, %v11305
      %v11370 = vadd.f32 %v11338, %v11306
      %v11371 = vadd.f32 %v11339, %v11307
      %v11372 = vadd.f32 %v11340, %v11308
      %v11373 = vadd.f32 %v11341, %v11309
      %v11374 = vadd.f32 %v11342, %v11310
      %v11375 = vadd.f32 %v11343, %v11311
      %v11376 = vadd.f32 %v11344, %v11312
      %v11377 = vadd.f32 %v11345, %v11313
      %v11378 = vadd.f32 %v11346, %v11314
      %v11379 = vadd.f32 %v11347, %v11315
      %v11380 = vadd.f32 %v11348, %v11316
      %v11381 = vadd.f32 %v11349, %v11317
      %v11382 = vadd.f32 %v11350, %v11318
      %v11383 = vadd.f32 %v11351, %v11319
      %v11384 = vadd.f32 %v11352, %v11320
      %v11385 = vadd.f32 %v11353, %v11321
      %v11386 = vadd.f32 %v11354, %v11322
      %v11387 = vadd.f32 %v11355, %v11323
      %v11388 = vadd.f32 %v11356, %v11324
      %v11389 = vadd.f32 %v11357, %v11325
      %v11390 = vadd.f32 %v11358, %v11326
      %v11391 = vadd.f32 %v11359, %v11327
      %v11392 = vadd.f32 %v11360, %v11328
      %v11393 = vadd.f32 %v11361, %v11329
      %v11394 = vadd.f32 %v11362, %v11330
      %v11395 = vadd.f32 %v11363, %v11331
      %11396 = vst.msk [vmem:[%s170] sm:$0xff] %vm580, %v11364
      %11397 = vst.msk [vmem:[%s170 + $0x8] sm:$0xff] %vm580, %v11365
      %11398 = vst.msk [vmem:[%s170 + $0x10] sm:$0xff] %vm580, %v11366
      %11399 = vst.msk [vmem:[%s170 + $0x18] sm:$0xff] %vm580, %v11367
      %11400 = vst.msk [vmem:[%s170 + $0x20] sm:$0xff] %vm580, %v11368
      %11401 = vst.msk [vmem:[%s170 + $0x28] sm:$0xff] %vm580, %v11369
      %11402 = vst.msk [vmem:[%s170 + $0x30] sm:$0xff] %vm580, %v11370
      %11403 = vst.msk [vmem:[%s170 + $0x38] sm:$0xff] %vm580, %v11371
      %11404 = vst.msk [vmem:[%s170 + $0x40] sm:$0xff] %vm580, %v11372
      %11405 = vst.msk [vmem:[%s170 + $0x48] sm:$0xff] %vm580, %v11373
      %11406 = vst.msk [vmem:[%s170 + $0x50] sm:$0xff] %vm580, %v11374
      %11407 = vst.msk [vmem:[%s170 + $0x58] sm:$0xff] %vm580, %v11375
      %11408 = vst.msk [vmem:[%s170 + $0x60] sm:$0xff] %vm580, %v11376
      %11409 = vst.msk [vmem:[%s170 + $0x68] sm:$0xff] %vm580, %v11377
      %11410 = vst.msk [vmem:[%s170 + $0x70] sm:$0xff] %vm580, %v11378
      %11411 = vst.msk [vmem:[%s170 + $0x78] sm:$0xff] %vm580, %v11379
      %11412 = vst.msk [vmem:[%s170 + $0x80] sm:$0xff] %vm580, %v11380
      %11413 = vst.msk [vmem:[%s170 + $0x88] sm:$0xff] %vm580, %v11381
      %11414 = vst.msk [vmem:[%s170 + $0x90] sm:$0xff] %vm580, %v11382
      %11415 = vst.msk [vmem:[%s170 + $0x98] sm:$0xff] %vm580, %v11383
      %11416 = vst.msk [vmem:[%s170 + $0xa0] sm:$0xff] %vm580, %v11384
      %11417 = vst.msk [vmem:[%s170 + $0xa8] sm:$0xff] %vm580, %v11385
      %11418 = vst.msk [vmem:[%s170 + $0xb0] sm:$0xff] %vm580, %v11386
      %11419 = vst.msk [vmem:[%s170 + $0xb8] sm:$0xff] %vm580, %v11387
      %11420 = vst.msk [vmem:[%s170 + $0xc0] sm:$0xff] %vm580, %v11388
      %11421 = vst.msk [vmem:[%s170 + $0xc8] sm:$0xff] %vm580, %v11389
      %11422 = vst.msk [vmem:[%s170 + $0xd0] sm:$0xff] %vm580, %v11390
      %11423 = vst.msk [vmem:[%s170 + $0xd8] sm:$0xff] %vm580, %v11391
      %11424 = vst.msk [vmem:[%s170 + $0xe0] sm:$0xff] %vm580, %v11392
      %11425 = vst.msk [vmem:[%s170 + $0xe8] sm:$0xff] %vm580, %v11393
      %11426 = vst.msk [vmem:[%s170 + $0xf0] sm:$0xff] %vm580, %v11394
      %11427 = vst.msk [vmem:[%s170 + $0xf8] sm:$0xff] %vm580, %v11395
      %p11428 = scmp.lt.s32.totalorder %s14, 1
      %s11429 = scalar_select %p11428, %s14, 1
      %s11430 = smul.addr %s11429, 32
      %s11431 = smul.addr %s11430, 8
      %s11432 = scalar_lea.vmem %s3, %s11431
      // Predicated region
      $region33: #{tpu_custom_call.1} parent=31 // pred_check
        %p11433 = pneg %p100
      $region34: #{tpu_custom_call.1} parent=31 // pred_check_branch
        %11435 = sbr.rel (%p11433) target = $region36
      $region35: #{tpu_custom_call.1} parent=31 // pred_region
        _
      $region36: #{tpu_custom_call.1} parent=31 // pred_fallthru
        _
    $region32: #{tpu_custom_call.1} parent=5 // pred_fallthru
      _
    %p11436 = scmp.le.s32.totalorder 2, %s9
    // Predicated region
    $region37: #{tpu_custom_call.1} parent=5 // pred_check
      %p11437 = pneg %p11436
    $region38: #{tpu_custom_call.1} parent=5 // pred_check_branch
      %11439 = sbr.rel (%p11437) target = $region40
    $region39: #{tpu_custom_call.1} parent=5 // pred_region
      %s11440 = ssub.s32 %s9, 2
      // Predicated region
      $region41: #{tpu_custom_call.1} parent=39 // pred_check
        %p11441 = pneg %p106
      $region42: #{tpu_custom_call.1} parent=39 // pred_check_branch
        %11443 = sbr.rel (%p11441) target = $region44
      $region43: #{tpu_custom_call.1} parent=39 // pred_region
        %p11444 = scmp.lt.s32.totalorder %s15, 1
        %s11445 = scalar_select %p11444, %s15, 1
        %s11446 = smul.addr %s11445, 32
        %s11447 = smul.addr %s11446, 8
        %s11448 = scalar_lea.vmem %s3, %s11447
      $region44: #{tpu_custom_call.1} parent=39 // pred_fallthru
        _
    $region40: #{tpu_custom_call.1} parent=5 // pred_fallthru
      _
  $region6: #{tpu_custom_call.1} parent=0 // loop_footer
    %s13 = sadd.s32 1, %s9
  $region7: #{tpu_custom_call.1} parent=0 // loop_footer_branch
    %8 = sbr.rel target = $region3
  $region8: #{tpu_custom_call.1} parent=0 // loop_exit
    _

</llo_original>
